<compile_context>
chip_gen: v7x
topology: tpu7x:2x2x1
jax: 0.10.0
libtpu: 0.0.40
codegen_flags: <defaults>
</compile_context>

<pallas_src>
import functools

import jax
import jax.numpy as jnp
from jax.experimental import pallas as pl
from jax.experimental.pallas import tpu as pltpu


def _mask_head_kernel(xcol_ref, w1_ref, b1_ref, w2_ref, b2_ref, wd_ref, bd_ref,
                      wm_ref, bm_ref, mleft_ref, mright_ref, out_ref,
                      h1buf_ref, h2buf_ref, *, H, W, PAD):
    # xcol_ref : (1, H*W, K1p)  bf16  conv1 im2col patches (K padded to 128)
    # w1_ref   : (K1p, C)       bf16
    # w2_ref   : (3, 3, C, C)   bf16  conv2 per-tap weights  [dy, dx, cin, cout]
    # wd_ref   : (2, 2, C, C)   bf16  deconv-as-conv weights, spatially flipped
    # wm_ref   : (C, Kp)        bf16  1x1 predictor, lane-padded classes
    # b*_ref   : (1, C)/(1, Kp) f32 biases
    # mleft/mright_ref : (H*W, 1) f32  x-boundary masks (left / right taps)
    # out_ref  : (1, H*W, Kp)   f32 full-grid output slab (cropped in wrapper)
    # h1buf_ref: (H*W + 2*PAD, C) f32 flat zero-bordered conv1 activations
    # h2buf_ref: (H*W + PAD, C)   f32 flat conv2 activations (+ zero tail)
    HW = H * W
    C = w1_ref.shape[1]
    Kp = wm_ref.shape[1]
    f32 = jnp.float32
    bf16 = jnp.bfloat16

    # ---- conv1: ONE im2col matmul, K padded to 128 (bf16 operands) ----------
    h1 = jnp.maximum(
        jnp.dot(xcol_ref[0], w1_ref[...], preferred_element_type=f32)
        + b1_ref[...], 0.0)                                      # (HW, C) f32

    # flat buffer with PAD zero rows on each side (handles the y zero-padding
    # of the 3x3 conv); interior store is 8-sublane aligned and lane-dense.
    h1buf_ref[0:PAD, :] = jnp.zeros((PAD, C), f32)
    h1buf_ref[PAD:PAD + HW, :] = h1
    h1buf_ref[PAD + HW:PAD + HW + PAD, :] = jnp.zeros((PAD, C), f32)

    mleft = mleft_ref[...]                                       # (HW, 1) f32
    mright = mright_ref[...]

    # ---- conv2: 3x3 pad=1  ->  nine accumulating K=C matmuls over row-shifted
    #      flat h1 (shift = (dy-1)*W + (dx-1)); x-boundary taps masked. --------
    acc2 = jnp.zeros((HW, C), f32)
    for dy in range(3):
        for dx in range(3):
            s = (dy - 1) * W + (dx - 1)
            tap = h1buf_ref[PAD + s:PAD + s + HW, :]             # (HW, C) f32
            if dx == 0:
                tap = tap * mleft
            elif dx == 2:
                tap = tap * mright
            acc2 = acc2 + jnp.dot(tap.astype(bf16), w2_ref[dy, dx],
                                  preferred_element_type=f32)
    h2 = jnp.maximum(acc2 + b2_ref[...], 0.0)                    # (HW, C) f32

    # flat h2 buffer; rows >= HW only feed output rows that the wrapper crops.
    h2buf_ref[0:HW, :] = h2
    h2buf_ref[HW:HW + PAD, :] = jnp.zeros((PAD, C), f32)

    # ---- deconv: ConvTranspose2d(k=2, s=1, p=2) == 2x2 VALID conv with
    #      spatially flipped weights; computed over the FULL grid as four
    #      accumulating matmuls on row shifts {0, 1, W, W+1}; wrapper crops. ---
    accd = jnp.zeros((HW, C), f32)
    for dy in range(2):
        for dx in range(2):
            s = dy * W + dx
            tap = h2buf_ref[s:s + HW, :]
            accd = accd + jnp.dot(tap.astype(bf16), wd_ref[dy, dx],
                                  preferred_element_type=f32)
    hd = jnp.maximum(accd + bd_ref[...], 0.0)                    # (HW, C) f32

    # ---- 1x1 mask predictor: lane-dense (Kp = 128) unmasked output store ----
    m = jnp.dot(hd.astype(bf16), wm_ref[...],
                preferred_element_type=f32) + bm_ref[...]
    out_ref[...] = m.reshape(1, HW, Kp).astype(out_ref.dtype)


def mask_head_forward(x_nchw, params):
    """x_nchw: (N, Cin, H, W) f32.  Returns masks (N, n_classes, H-3, W-3)."""
    w1_t, b1, w2_t, b2, wd_t, bd, wm_t, bm = params
    N, Cin, H, W = x_nchw.shape
    C = w1_t.shape[0]
    K = wm_t.shape[0]
    Kp = ((K + 127) // 128) * 128
    HW = H * W
    Ho, Wo = H - 3, W - 3
    PAD = ((W + 1 + 7) // 8) * 8            # >= W+1 and 8-sublane aligned
    K1 = 9 * Cin
    K1p = ((K1 + 127) // 128) * 128

    # ---------- wrapper-side prep: layout plumbing only (no compute) ----------
    x_nhwc = jnp.transpose(x_nchw, (0, 2, 3, 1))
    xp = jnp.pad(x_nhwc, ((0, 0), (1, 1), (1, 1), (0, 0)))
    patches = jnp.concatenate(
        [xp[:, dy:dy + H, dx:dx + W, :] for dy in range(3) for dx in range(3)],
        axis=-1).reshape(N, HW, K1)
    xcol = jnp.pad(patches, ((0, 0), (0, 0), (0, K1p - K1))).astype(jnp.bfloat16)

    # conv1: (Cout, Cin, 3, 3) -> (9*Cin, C) tap-major, K zero-padded to 128
    w1 = jnp.transpose(w1_t, (2, 3, 1, 0)).reshape(K1, C)
    w1 = jnp.pad(w1, ((0, K1p - K1), (0, 0))).astype(jnp.bfloat16)
    # conv2: (Cout, Cin, 3, 3) -> per-tap (3, 3, Cin, Cout)
    w2 = jnp.transpose(w2_t, (2, 3, 1, 0)).astype(jnp.bfloat16)
    # deconv (ConvTranspose2d weight (Cin, Cout, 2, 2)): flipped conv weight
    #   wflip[dy, dx, c, o] = wd_t[c, o, 1-dy, 1-dx]
    wd = jnp.transpose(wd_t[:, :, ::-1, ::-1], (2, 3, 0, 1)).astype(jnp.bfloat16)
    # 1x1 predictor, lane-padded to Kp
    wm = (jnp.zeros((C, Kp), jnp.float32)
          .at[:, :K].set(wm_t[:, :, 0, 0].T).astype(jnp.bfloat16))

    b1r = b1.reshape(1, C).astype(jnp.float32)
    b2r = b2.reshape(1, C).astype(jnp.float32)
    bdr = bd.reshape(1, C).astype(jnp.float32)
    bmr = jnp.zeros((1, Kp), jnp.float32).at[0, :K].set(bm)

    # x-boundary masks for the 3x3 conv taps (compile-time constants)
    col = jnp.arange(HW, dtype=jnp.int32) % W
    mleft = (col >= 1).astype(jnp.float32).reshape(HW, 1)
    mright = (col <= W - 2).astype(jnp.float32).reshape(HW, 1)

    kernel = functools.partial(_mask_head_kernel, H=H, W=W, PAD=PAD)

    out = pl.pallas_call(
        kernel,
        out_shape=jax.ShapeDtypeStruct((N, HW, Kp), jnp.float32),
        grid_spec=pltpu.PrefetchScalarGridSpec(
            num_scalar_prefetch=0,
            grid=(N,),
            in_specs=[
                pl.BlockSpec((1, HW, K1p), lambda i: (i, 0, 0)),
                pl.BlockSpec((K1p, C), lambda i: (0, 0)),
                pl.BlockSpec((1, C), lambda i: (0, 0)),
                pl.BlockSpec((3, 3, C, C), lambda i: (0, 0, 0, 0)),
                pl.BlockSpec((1, C), lambda i: (0, 0)),
                pl.BlockSpec((2, 2, C, C), lambda i: (0, 0, 0, 0)),
                pl.BlockSpec((1, C), lambda i: (0, 0)),
                pl.BlockSpec((C, Kp), lambda i: (0, 0)),
                pl.BlockSpec((1, Kp), lambda i: (0, 0)),
                pl.BlockSpec((HW, 1), lambda i: (0, 0)),
                pl.BlockSpec((HW, 1), lambda i: (0, 0)),
            ],
            out_specs=pl.BlockSpec((1, HW, Kp), lambda i: (i, 0, 0)),
            scratch_shapes=[
                pltpu.VMEM((HW + 2 * PAD, C), jnp.float32),   # flat padded h1
                pltpu.VMEM((HW + PAD, C), jnp.float32),       # flat h2 (+ tail)
            ],
        ),
        compiler_params=pltpu.CompilerParams(
            dimension_semantics=("parallel",),
            vmem_limit_bytes=32 * 1024 * 1024,
        ),
    )(xcol, w1, b1r, w2, b2r, wd, bdr, wm, bmr, mleft, mright)

    # crop full-grid deconv output to the valid window, strip lane padding
    masks = out.reshape(N, H, W, Kp)[:, 1:1 + Ho, 1:1 + Wo, :K]
    return jnp.transpose(masks, (0, 3, 1, 2))                 # NHWC -> NCHW


def init_params(key, in_channels, hidden, n_classes):
    """Parameters in PyTorch layouts: Conv2d (out,in,kh,kw), ConvT (in,out,kh,kw)."""
    ks = jax.random.split(key, 8)
    w1 = 0.10 * jax.random.normal(ks[0], (hidden, in_channels, 3, 3), jnp.float32)
    b1 = 0.10 * jax.random.normal(ks[1], (hidden,), jnp.float32)
    w2 = 0.02 * jax.random.normal(ks[2], (hidden, hidden, 3, 3), jnp.float32)
    b2 = 0.10 * jax.random.normal(ks[3], (hidden,), jnp.float32)
    wd = 0.03 * jax.random.normal(ks[4], (hidden, hidden, 2, 2), jnp.float32)
    bd = 0.10 * jax.random.normal(ks[5], (hidden,), jnp.float32)
    wm = 0.05 * jax.random.normal(ks[6], (n_classes, hidden, 1, 1), jnp.float32)
    bm = 0.10 * jax.random.normal(ks[7], (n_classes,), jnp.float32)
    return (w1, b1, w2, b2, wd, bd, wm, bm)


def mask_head_reference(x_nchw, params):
    """Pure-JAX f32 reference following the PyTorch op definitions directly."""
    w1, b1, w2, b2, wd, bd, wm, bm = params
    hp = jax.lax.Precision.HIGHEST
    x = jnp.transpose(x_nchw, (0, 2, 3, 1))  # NHWC
    h = jax.lax.conv_general_dilated(
        x, jnp.transpose(w1, (2, 3, 1, 0)), (1, 1), "SAME",
        dimension_numbers=("NHWC", "HWIO", "NHWC"), precision=hp)
    h = jnp.maximum(h + b1, 0.0)
    h = jax.lax.conv_general_dilated(
        h, jnp.transpose(w2, (2, 3, 1, 0)), (1, 1), "SAME",
        dimension_numbers=("NHWC", "HWIO", "NHWC"), precision=hp)
    h = jnp.maximum(h + b2, 0.0)
    # ConvTranspose2d(k=2, s=1, p=2) by definition: scatter-add the full
    # transposed conv, then crop `padding` rows/cols from every side.
    N, H, W, C = h.shape
    Co = wd.shape[1]
    y = jnp.zeros((N, H + 1, W + 1, Co), jnp.float32)
    for m in range(2):
        for n in range(2):
            y = y.at[:, m:m + H, n:n + W, :].add(
                jnp.einsum("nhwc,co->nhwo", h, wd[:, :, m, n], precision=hp))
    p = 2
    y = y[:, p:H + 1 - p, p:W + 1 - p, :]
    y = jnp.maximum(y + bd, 0.0)
    masks = jnp.einsum("nhwc,kc->nhwk", y, wm[:, :, 0, 0], precision=hp) + bm
    return jnp.transpose(masks, (0, 3, 1, 2))


if __name__ == "__main__":
    N, Cin, H, W = 2, 4, 16, 16
    C = 256              # hidden width hard-coded by MaskHead
    n_classes = 5

    key = jax.random.PRNGKey(0)
    kx, kp = jax.random.split(key)
    x = jax.random.normal(kx, (N, Cin, H, W), jnp.float32)
    params = init_params(kp, Cin, C, n_classes)

    masks = jax.jit(mask_head_forward)(x, params)
    jax.block_until_ready(masks)

    ref = mask_head_reference(x, params)
    assert masks.shape == (N, n_classes, H - 3, W - 3), masks.shape
    max_err = float(jnp.max(jnp.abs(masks - ref)))
    # bf16 MXU operands (f32 accumulation) vs HIGHEST-precision f32 reference.
    assert jnp.allclose(masks, ref, atol=5e-2, rtol=5e-2), max_err

    print("KERNEL_OK")
</pallas_src>

<mosaic_0001>
module attributes {stable_mosaic.version = 11 : i64} {
  func.func @_mask_head_kernel(%arg0: i32, %arg1: memref<1x256x128xbf16, #tpu.memory_space<vmem>>, %arg2: memref<128x256xbf16, #tpu.memory_space<vmem>>, %arg3: memref<1x256xf32, #tpu.memory_space<vmem>>, %arg4: memref<3x3x256x256xbf16, #tpu.memory_space<vmem>>, %arg5: memref<1x256xf32, #tpu.memory_space<vmem>>, %arg6: memref<2x2x256x256xbf16, #tpu.memory_space<vmem>>, %arg7: memref<1x256xf32, #tpu.memory_space<vmem>>, %arg8: memref<256x128xbf16, #tpu.memory_space<vmem>>, %arg9: memref<1x128xf32, #tpu.memory_space<vmem>>, %arg10: memref<256x1xf32, #tpu.memory_space<vmem>>, %arg11: memref<256x1xf32, #tpu.memory_space<vmem>>, %arg12: memref<1x256x128xf32, #tpu.memory_space<vmem>>, %arg13: memref<304x256xf32, #tpu.memory_space<vmem>>, %arg14: memref<280x256xf32, #tpu.memory_space<vmem>>) attributes {dimension_semantics = [#tpu.dimension_semantics<parallel>], iteration_bounds = array<i64: 2>, scalar_prefetch = 0 : i64, scratch_operands = 2 : i64, tpu.core_type = #tpu.core_type<tc>, window_params = [{transform_indices = @transform_0, window_bounds = array<i64: 1, 256, 128>}, {pipeline_mode = #tpu.pipeline_mode<synchronous>, transform_indices = @transform_1, window_bounds = array<i64: 128, 256>}, {pipeline_mode = #tpu.pipeline_mode<synchronous>, transform_indices = @transform_2, window_bounds = array<i64: 1, 256>}, {pipeline_mode = #tpu.pipeline_mode<synchronous>, transform_indices = @transform_3, window_bounds = array<i64: 3, 3, 256, 256>}, {pipeline_mode = #tpu.pipeline_mode<synchronous>, transform_indices = @transform_4, window_bounds = array<i64: 1, 256>}, {pipeline_mode = #tpu.pipeline_mode<synchronous>, transform_indices = @transform_5, window_bounds = array<i64: 2, 2, 256, 256>}, {pipeline_mode = #tpu.pipeline_mode<synchronous>, transform_indices = @transform_6, window_bounds = array<i64: 1, 256>}, {pipeline_mode = #tpu.pipeline_mode<synchronous>, transform_indices = @transform_7, window_bounds = array<i64: 256, 128>}, {pipeline_mode = #tpu.pipeline_mode<synchronous>, transform_indices = @transform_8, window_bounds = array<i64: 1, 128>}, {pipeline_mode = #tpu.pipeline_mode<synchronous>, transform_indices = @transform_9, window_bounds = array<i64: 256, 1>}, {pipeline_mode = #tpu.pipeline_mode<synchronous>, transform_indices = @transform_10, window_bounds = array<i64: 256, 1>}, {transform_indices = @transform_11, window_bounds = array<i64: 1, 256, 128>}]} {
    %c0 = arith.constant 0 : index
    %c0_0 = arith.constant 0 : index
    %c0_1 = arith.constant 0 : index
    %0 = vector.load %arg1[%c0, %c0_0, %c0_1] : memref<1x256x128xbf16, #tpu.memory_space<vmem>>, vector<1x256x128xbf16>
    %1 = vector.shape_cast %0 : vector<1x256x128xbf16> to vector<256x128xbf16>
    %c0_2 = arith.constant 0 : index
    %c0_3 = arith.constant 0 : index
    %2 = vector.load %arg2[%c0_2, %c0_3] : memref<128x256xbf16, #tpu.memory_space<vmem>>, vector<128x256xbf16>
    %cst = arith.constant dense<0.000000e+00> : vector<256x256xf32>
    %3 = tpu.matmul %1, %2, %cst {dimension_numbers = #tpu.dot_dimension_numbers<[1], [0], [0], [1], [0, 0, 1, 1], [], []>} : vector<256x128xbf16>, vector<128x256xbf16>, vector<256x256xf32> -> vector<256x256xf32>
    %c0_4 = arith.constant 0 : index
    %c0_5 = arith.constant 0 : index
    %4 = vector.load %arg3[%c0_4, %c0_5] : memref<1x256xf32, #tpu.memory_space<vmem>>, vector<1x256xf32>
    %5 = vector.broadcast %4 : vector<1x256xf32> to vector<256x256xf32>
    %6 = arith.addf %3, %5 : vector<256x256xf32>
    %cst_6 = arith.constant 0.000000e+00 : f32
    %7 = vector.broadcast %cst_6 : f32 to vector<256x256xf32>
    %8 = arith.maximumf %6, %7 : vector<256x256xf32>
    %cst_7 = arith.constant 0.000000e+00 : f32
    %9 = vector.broadcast %cst_7 : f32 to vector<24x256xf32>
    %c0_8 = arith.constant 0 : index
    %c0_9 = arith.constant 0 : index
    %10 = vector.load %arg13[%c0_8, %c0_9] : memref<304x256xf32, #tpu.memory_space<vmem>>, vector<24x256xf32>
    tpu.vector_store %arg13[%c0_8, %c0_9], %9 {strides = array<i32>} : memref<304x256xf32, #tpu.memory_space<vmem>>, vector<24x256xf32>,
    %c24 = arith.constant 24 : index
    %c0_10 = arith.constant 0 : index
    %11 = vector.load %arg13[%c24, %c0_10] : memref<304x256xf32, #tpu.memory_space<vmem>>, vector<256x256xf32>
    tpu.vector_store %arg13[%c24, %c0_10], %8 {strides = array<i32>} : memref<304x256xf32, #tpu.memory_space<vmem>>, vector<256x256xf32>,
    %cst_11 = arith.constant 0.000000e+00 : f32
    %12 = vector.broadcast %cst_11 : f32 to vector<24x256xf32>
    %c280 = arith.constant 280 : index
    %c0_12 = arith.constant 0 : index
    %13 = vector.load %arg13[%c280, %c0_12] : memref<304x256xf32, #tpu.memory_space<vmem>>, vector<24x256xf32>
    tpu.vector_store %arg13[%c280, %c0_12], %12 {strides = array<i32>} : memref<304x256xf32, #tpu.memory_space<vmem>>, vector<24x256xf32>,
    %c0_13 = arith.constant 0 : index
    %c0_14 = arith.constant 0 : index
    %14 = vector.load %arg10[%c0_13, %c0_14] : memref<256x1xf32, #tpu.memory_space<vmem>>, vector<256x1xf32>
    %c0_15 = arith.constant 0 : index
    %c0_16 = arith.constant 0 : index
    %15 = vector.load %arg11[%c0_15, %c0_16] : memref<256x1xf32, #tpu.memory_space<vmem>>, vector<256x1xf32>
    %cst_17 = arith.constant 0.000000e+00 : f32
    %16 = vector.broadcast %cst_17 : f32 to vector<256x256xf32>
    %c7 = arith.constant 7 : index
    %c0_18 = arith.constant 0 : index
    %17 = vector.load %arg13[%c7, %c0_18] : memref<304x256xf32, #tpu.memory_space<vmem>>, vector<256x256xf32>
    %18 = vector.broadcast %14 : vector<256x1xf32> to vector<256x256xf32>
    %19 = arith.mulf %17, %18 : vector<256x256xf32>
    %20 = arith.truncf %19 : vector<256x256xf32> to vector<256x256xbf16>
    %c0_19 = arith.constant 0 : index
    %c0_20 = arith.constant 0 : index
    %c0_21 = arith.constant 0 : index
    %c0_22 = arith.constant 0 : index
    %21 = vector.load %arg4[%c0_19, %c0_20, %c0_21, %c0_22] : memref<3x3x256x256xbf16, #tpu.memory_space<vmem>>, vector<1x1x256x256xbf16>
    %22 = vector.shape_cast %21 : vector<1x1x256x256xbf16> to vector<256x256xbf16>
    %cst_23 = arith.constant dense<0.000000e+00> : vector<256x256xf32>
    %23 = tpu.matmul %20, %22, %cst_23 {dimension_numbers = #tpu.dot_dimension_numbers<[1], [0], [0], [1], [0, 0, 1, 1], [], []>} : vector<256x256xbf16>, vector<256x256xbf16>, vector<256x256xf32> -> vector<256x256xf32>
    %24 = arith.addf %16, %23 : vector<256x256xf32>
    %c8 = arith.constant 8 : index
    %c0_24 = arith.constant 0 : index
    %25 = vector.load %arg13[%c8, %c0_24] : memref<304x256xf32, #tpu.memory_space<vmem>>, vector<256x256xf32>
    %26 = arith.truncf %25 : vector<256x256xf32> to vector<256x256xbf16>
    %c0_25 = arith.constant 0 : index
    %c1 = arith.constant 1 : index
    %c0_26 = arith.constant 0 : index
    %c0_27 = arith.constant 0 : index
    %27 = vector.load %arg4[%c0_25, %c1, %c0_26, %c0_27] : memref<3x3x256x256xbf16, #tpu.memory_space<vmem>>, vector<1x1x256x256xbf16>
    %28 = vector.shape_cast %27 : vector<1x1x256x256xbf16> to vector<256x256xbf16>
    %cst_28 = arith.constant dense<0.000000e+00> : vector<256x256xf32>
    %29 = tpu.matmul %26, %28, %cst_28 {dimension_numbers = #tpu.dot_dimension_numbers<[1], [0], [0], [1], [0, 0, 1, 1], [], []>} : vector<256x256xbf16>, vector<256x256xbf16>, vector<256x256xf32> -> vector<256x256xf32>
    %30 = arith.addf %24, %29 : vector<256x256xf32>
    %c9 = arith.constant 9 : index
    %c0_29 = arith.constant 0 : index
    %31 = vector.load %arg13[%c9, %c0_29] : memref<304x256xf32, #tpu.memory_space<vmem>>, vector<256x256xf32>
    %32 = vector.broadcast %15 : vector<256x1xf32> to vector<256x256xf32>
    %33 = arith.mulf %31, %32 : vector<256x256xf32>
    %34 = arith.truncf %33 : vector<256x256xf32> to vector<256x256xbf16>
    %c0_30 = arith.constant 0 : index
    %c2 = arith.constant 2 : index
    %c0_31 = arith.constant 0 : index
    %c0_32 = arith.constant 0 : index
    %35 = vector.load %arg4[%c0_30, %c2, %c0_31, %c0_32] : memref<3x3x256x256xbf16, #tpu.memory_space<vmem>>, vector<1x1x256x256xbf16>
    %36 = vector.shape_cast %35 : vector<1x1x256x256xbf16> to vector<256x256xbf16>
    %cst_33 = arith.constant dense<0.000000e+00> : vector<256x256xf32>
    %37 = tpu.matmul %34, %36, %cst_33 {dimension_numbers = #tpu.dot_dimension_numbers<[1], [0], [0], [1], [0, 0, 1, 1], [], []>} : vector<256x256xbf16>, vector<256x256xbf16>, vector<256x256xf32> -> vector<256x256xf32>
    %38 = arith.addf %30, %37 : vector<256x256xf32>
    %c23 = arith.constant 23 : index
    %c0_34 = arith.constant 0 : index
    %39 = vector.load %arg13[%c23, %c0_34] : memref<304x256xf32, #tpu.memory_space<vmem>>, vector<256x256xf32>
    %40 = vector.broadcast %14 : vector<256x1xf32> to vector<256x256xf32>
    %41 = arith.mulf %39, %40 : vector<256x256xf32>
    %42 = arith.truncf %41 : vector<256x256xf32> to vector<256x256xbf16>
    %c1_35 = arith.constant 1 : index
    %c0_36 = arith.constant 0 : index
    %c0_37 = arith.constant 0 : index
    %c0_38 = arith.constant 0 : index
    %43 = vector.load %arg4[%c1_35, %c0_36, %c0_37, %c0_38] : memref<3x3x256x256xbf16, #tpu.memory_space<vmem>>, vector<1x1x256x256xbf16>
    %44 = vector.shape_cast %43 : vector<1x1x256x256xbf16> to vector<256x256xbf16>
    %cst_39 = arith.constant dense<0.000000e+00> : vector<256x256xf32>
    %45 = tpu.matmul %42, %44, %cst_39 {dimension_numbers = #tpu.dot_dimension_numbers<[1], [0], [0], [1], [0, 0, 1, 1], [], []>} : vector<256x256xbf16>, vector<256x256xbf16>, vector<256x256xf32> -> vector<256x256xf32>
    %46 = arith.addf %38, %45 : vector<256x256xf32>
    %c24_40 = arith.constant 24 : index
    %c0_41 = arith.constant 0 : index
    %47 = vector.load %arg13[%c24_40, %c0_41] : memref<304x256xf32, #tpu.memory_space<vmem>>, vector<256x256xf32>
    %48 = arith.truncf %47 : vector<256x256xf32> to vector<256x256xbf16>
    %c1_42 = arith.constant 1 : index
    %c1_43 = arith.constant 1 : index
    %c0_44 = arith.constant 0 : index
    %c0_45 = arith.constant 0 : index
    %49 = vector.load %arg4[%c1_42, %c1_43, %c0_44, %c0_45] : memref<3x3x256x256xbf16, #tpu.memory_space<vmem>>, vector<1x1x256x256xbf16>
    %50 = vector.shape_cast %49 : vector<1x1x256x256xbf16> to vector<256x256xbf16>
    %cst_46 = arith.constant dense<0.000000e+00> : vector<256x256xf32>
    %51 = tpu.matmul %48, %50, %cst_46 {dimension_numbers = #tpu.dot_dimension_numbers<[1], [0], [0], [1], [0, 0, 1, 1], [], []>} : vector<256x256xbf16>, vector<256x256xbf16>, vector<256x256xf32> -> vector<256x256xf32>
    %52 = arith.addf %46, %51 : vector<256x256xf32>
    %c25 = arith.constant 25 : index
    %c0_47 = arith.constant 0 : index
    %53 = vector.load %arg13[%c25, %c0_47] : memref<304x256xf32, #tpu.memory_space<vmem>>, vector<256x256xf32>
    %54 = vector.broadcast %15 : vector<256x1xf32> to vector<256x256xf32>
    %55 = arith.mulf %53, %54 : vector<256x256xf32>
    %56 = arith.truncf %55 : vector<256x256xf32> to vector<256x256xbf16>
    %c1_48 = arith.constant 1 : index
    %c2_49 = arith.constant 2 : index
    %c0_50 = arith.constant 0 : index
    %c0_51 = arith.constant 0 : index
    %57 = vector.load %arg4[%c1_48, %c2_49, %c0_50, %c0_51] : memref<3x3x256x256xbf16, #tpu.memory_space<vmem>>, vector<1x1x256x256xbf16>
    %58 = vector.shape_cast %57 : vector<1x1x256x256xbf16> to vector<256x256xbf16>
    %cst_52 = arith.constant dense<0.000000e+00> : vector<256x256xf32>
    %59 = tpu.matmul %56, %58, %cst_52 {dimension_numbers = #tpu.dot_dimension_numbers<[1], [0], [0], [1], [0, 0, 1, 1], [], []>} : vector<256x256xbf16>, vector<256x256xbf16>, vector<256x256xf32> -> vector<256x256xf32>
    %60 = arith.addf %52, %59 : vector<256x256xf32>
    %c39 = arith.constant 39 : index
    %c0_53 = arith.constant 0 : index
    %61 = vector.load %arg13[%c39, %c0_53] : memref<304x256xf32, #tpu.memory_space<vmem>>, vector<256x256xf32>
    %62 = vector.broadcast %14 : vector<256x1xf32> to vector<256x256xf32>
    %63 = arith.mulf %61, %62 : vector<256x256xf32>
    %64 = arith.truncf %63 : vector<256x256xf32> to vector<256x256xbf16>
    %c2_54 = arith.constant 2 : index
    %c0_55 = arith.constant 0 : index
    %c0_56 = arith.constant 0 : index
    %c0_57 = arith.constant 0 : index
    %65 = vector.load %arg4[%c2_54, %c0_55, %c0_56, %c0_57] : memref<3x3x256x256xbf16, #tpu.memory_space<vmem>>, vector<1x1x256x256xbf16>
    %66 = vector.shape_cast %65 : vector<1x1x256x256xbf16> to vector<256x256xbf16>
    %cst_58 = arith.constant dense<0.000000e+00> : vector<256x256xf32>
    %67 = tpu.matmul %64, %66, %cst_58 {dimension_numbers = #tpu.dot_dimension_numbers<[1], [0], [0], [1], [0, 0, 1, 1], [], []>} : vector<256x256xbf16>, vector<256x256xbf16>, vector<256x256xf32> -> vector<256x256xf32>
    %68 = arith.addf %60, %67 : vector<256x256xf32>
    %c40 = arith.constant 40 : index
    %c0_59 = arith.constant 0 : index
    %69 = vector.load %arg13[%c40, %c0_59] : memref<304x256xf32, #tpu.memory_space<vmem>>, vector<256x256xf32>
    %70 = arith.truncf %69 : vector<256x256xf32> to vector<256x256xbf16>
    %c2_60 = arith.constant 2 : index
    %c1_61 = arith.constant 1 : index
    %c0_62 = arith.constant 0 : index
    %c0_63 = arith.constant 0 : index
    %71 = vector.load %arg4[%c2_60, %c1_61, %c0_62, %c0_63] : memref<3x3x256x256xbf16, #tpu.memory_space<vmem>>, vector<1x1x256x256xbf16>
    %72 = vector.shape_cast %71 : vector<1x1x256x256xbf16> to vector<256x256xbf16>
    %cst_64 = arith.constant dense<0.000000e+00> : vector<256x256xf32>
    %73 = tpu.matmul %70, %72, %cst_64 {dimension_numbers = #tpu.dot_dimension_numbers<[1], [0], [0], [1], [0, 0, 1, 1], [], []>} : vector<256x256xbf16>, vector<256x256xbf16>, vector<256x256xf32> -> vector<256x256xf32>
    %74 = arith.addf %68, %73 : vector<256x256xf32>
    %c41 = arith.constant 41 : index
    %c0_65 = arith.constant 0 : index
    %75 = vector.load %arg13[%c41, %c0_65] : memref<304x256xf32, #tpu.memory_space<vmem>>, vector<256x256xf32>
    %76 = vector.broadcast %15 : vector<256x1xf32> to vector<256x256xf32>
    %77 = arith.mulf %75, %76 : vector<256x256xf32>
    %78 = arith.truncf %77 : vector<256x256xf32> to vector<256x256xbf16>
    %c2_66 = arith.constant 2 : index
    %c2_67 = arith.constant 2 : index
    %c0_68 = arith.constant 0 : index
    %c0_69 = arith.constant 0 : index
    %79 = vector.load %arg4[%c2_66, %c2_67, %c0_68, %c0_69] : memref<3x3x256x256xbf16, #tpu.memory_space<vmem>>, vector<1x1x256x256xbf16>
    %80 = vector.shape_cast %79 : vector<1x1x256x256xbf16> to vector<256x256xbf16>
    %cst_70 = arith.constant dense<0.000000e+00> : vector<256x256xf32>
    %81 = tpu.matmul %78, %80, %cst_70 {dimension_numbers = #tpu.dot_dimension_numbers<[1], [0], [0], [1], [0, 0, 1, 1], [], []>} : vector<256x256xbf16>, vector<256x256xbf16>, vector<256x256xf32> -> vector<256x256xf32>
    %82 = arith.addf %74, %81 : vector<256x256xf32>
    %c0_71 = arith.constant 0 : index
    %c0_72 = arith.constant 0 : index
    %83 = vector.load %arg5[%c0_71, %c0_72] : memref<1x256xf32, #tpu.memory_space<vmem>>, vector<1x256xf32>
    %84 = vector.broadcast %83 : vector<1x256xf32> to vector<256x256xf32>
    %85 = arith.addf %82, %84 : vector<256x256xf32>
    %cst_73 = arith.constant 0.000000e+00 : f32
    %86 = vector.broadcast %cst_73 : f32 to vector<256x256xf32>
    %87 = arith.maximumf %85, %86 : vector<256x256xf32>
    %c0_74 = arith.constant 0 : index
    %c0_75 = arith.constant 0 : index
    %88 = vector.load %arg14[%c0_74, %c0_75] : memref<280x256xf32, #tpu.memory_space<vmem>>, vector<256x256xf32>
    tpu.vector_store %arg14[%c0_74, %c0_75], %87 {strides = array<i32>} : memref<280x256xf32, #tpu.memory_space<vmem>>, vector<256x256xf32>,
    %cst_76 = arith.constant 0.000000e+00 : f32
    %89 = vector.broadcast %cst_76 : f32 to vector<24x256xf32>
    %c256 = arith.constant 256 : index
    %c0_77 = arith.constant 0 : index
    %90 = vector.load %arg14[%c256, %c0_77] : memref<280x256xf32, #tpu.memory_space<vmem>>, vector<24x256xf32>
    tpu.vector_store %arg14[%c256, %c0_77], %89 {strides = array<i32>} : memref<280x256xf32, #tpu.memory_space<vmem>>, vector<24x256xf32>,
    %cst_78 = arith.constant 0.000000e+00 : f32
    %91 = vector.broadcast %cst_78 : f32 to vector<256x256xf32>
    %c0_79 = arith.constant 0 : index
    %c0_80 = arith.constant 0 : index
    %92 = vector.load %arg14[%c0_79, %c0_80] : memref<280x256xf32, #tpu.memory_space<vmem>>, vector<256x256xf32>
    %93 = arith.truncf %92 : vector<256x256xf32> to vector<256x256xbf16>
    %c0_81 = arith.constant 0 : index
    %c0_82 = arith.constant 0 : index
    %c0_83 = arith.constant 0 : index
    %c0_84 = arith.constant 0 : index
    %94 = vector.load %arg6[%c0_81, %c0_82, %c0_83, %c0_84] : memref<2x2x256x256xbf16, #tpu.memory_space<vmem>>, vector<1x1x256x256xbf16>
    %95 = vector.shape_cast %94 : vector<1x1x256x256xbf16> to vector<256x256xbf16>
    %cst_85 = arith.constant dense<0.000000e+00> : vector<256x256xf32>
    %96 = tpu.matmul %93, %95, %cst_85 {dimension_numbers = #tpu.dot_dimension_numbers<[1], [0], [0], [1], [0, 0, 1, 1], [], []>} : vector<256x256xbf16>, vector<256x256xbf16>, vector<256x256xf32> -> vector<256x256xf32>
    %97 = arith.addf %91, %96 : vector<256x256xf32>
    %c1_86 = arith.constant 1 : index
    %c0_87 = arith.constant 0 : index
    %98 = vector.load %arg14[%c1_86, %c0_87] : memref<280x256xf32, #tpu.memory_space<vmem>>, vector<256x256xf32>
    %99 = arith.truncf %98 : vector<256x256xf32> to vector<256x256xbf16>
    %c0_88 = arith.constant 0 : index
    %c1_89 = arith.constant 1 : index
    %c0_90 = arith.constant 0 : index
    %c0_91 = arith.constant 0 : index
    %100 = vector.load %arg6[%c0_88, %c1_89, %c0_90, %c0_91] : memref<2x2x256x256xbf16, #tpu.memory_space<vmem>>, vector<1x1x256x256xbf16>
    %101 = vector.shape_cast %100 : vector<1x1x256x256xbf16> to vector<256x256xbf16>
    %cst_92 = arith.constant dense<0.000000e+00> : vector<256x256xf32>
    %102 = tpu.matmul %99, %101, %cst_92 {dimension_numbers = #tpu.dot_dimension_numbers<[1], [0], [0], [1], [0, 0, 1, 1], [], []>} : vector<256x256xbf16>, vector<256x256xbf16>, vector<256x256xf32> -> vector<256x256xf32>
    %103 = arith.addf %97, %102 : vector<256x256xf32>
    %c16 = arith.constant 16 : index
    %c0_93 = arith.constant 0 : index
    %104 = vector.load %arg14[%c16, %c0_93] : memref<280x256xf32, #tpu.memory_space<vmem>>, vector<256x256xf32>
    %105 = arith.truncf %104 : vector<256x256xf32> to vector<256x256xbf16>
    %c1_94 = arith.constant 1 : index
    %c0_95 = arith.constant 0 : index
    %c0_96 = arith.constant 0 : index
    %c0_97 = arith.constant 0 : index
    %106 = vector.load %arg6[%c1_94, %c0_95, %c0_96, %c0_97] : memref<2x2x256x256xbf16, #tpu.memory_space<vmem>>, vector<1x1x256x256xbf16>
    %107 = vector.shape_cast %106 : vector<1x1x256x256xbf16> to vector<256x256xbf16>
    %cst_98 = arith.constant dense<0.000000e+00> : vector<256x256xf32>
    %108 = tpu.matmul %105, %107, %cst_98 {dimension_numbers = #tpu.dot_dimension_numbers<[1], [0], [0], [1], [0, 0, 1, 1], [], []>} : vector<256x256xbf16>, vector<256x256xbf16>, vector<256x256xf32> -> vector<256x256xf32>
    %109 = arith.addf %103, %108 : vector<256x256xf32>
    %c17 = arith.constant 17 : index
    %c0_99 = arith.constant 0 : index
    %110 = vector.load %arg14[%c17, %c0_99] : memref<280x256xf32, #tpu.memory_space<vmem>>, vector<256x256xf32>
    %111 = arith.truncf %110 : vector<256x256xf32> to vector<256x256xbf16>
    %c1_100 = arith.constant 1 : index
    %c1_101 = arith.constant 1 : index
    %c0_102 = arith.constant 0 : index
    %c0_103 = arith.constant 0 : index
    %112 = vector.load %arg6[%c1_100, %c1_101, %c0_102, %c0_103] : memref<2x2x256x256xbf16, #tpu.memory_space<vmem>>, vector<1x1x256x256xbf16>
    %113 = vector.shape_cast %112 : vector<1x1x256x256xbf16> to vector<256x256xbf16>
    %cst_104 = arith.constant dense<0.000000e+00> : vector<256x256xf32>
    %114 = tpu.matmul %111, %113, %cst_104 {dimension_numbers = #tpu.dot_dimension_numbers<[1], [0], [0], [1], [0, 0, 1, 1], [], []>} : vector<256x256xbf16>, vector<256x256xbf16>, vector<256x256xf32> -> vector<256x256xf32>
    %115 = arith.addf %109, %114 : vector<256x256xf32>
    %c0_105 = arith.constant 0 : index
    %c0_106 = arith.constant 0 : index
    %116 = vector.load %arg7[%c0_105, %c0_106] : memref<1x256xf32, #tpu.memory_space<vmem>>, vector<1x256xf32>
    %117 = vector.broadcast %116 : vector<1x256xf32> to vector<256x256xf32>
    %118 = arith.addf %115, %117 : vector<256x256xf32>
    %cst_107 = arith.constant 0.000000e+00 : f32
    %119 = vector.broadcast %cst_107 : f32 to vector<256x256xf32>
    %120 = arith.maximumf %118, %119 : vector<256x256xf32>
    %121 = arith.truncf %120 : vector<256x256xf32> to vector<256x256xbf16>
    %c0_108 = arith.constant 0 : index
    %c0_109 = arith.constant 0 : index
    %122 = vector.load %arg8[%c0_108, %c0_109] : memref<256x128xbf16, #tpu.memory_space<vmem>>, vector<256x128xbf16>
    %cst_110 = arith.constant dense<0.000000e+00> : vector<256x128xf32>
    %123 = tpu.matmul %121, %122, %cst_110 {dimension_numbers = #tpu.dot_dimension_numbers<[1], [0], [0], [1], [0, 0, 1, 1], [], []>} : vector<256x256xbf16>, vector<256x128xbf16>, vector<256x128xf32> -> vector<256x128xf32>
    %c0_111 = arith.constant 0 : index
    %c0_112 = arith.constant 0 : index
    %124 = vector.load %arg9[%c0_111, %c0_112] : memref<1x128xf32, #tpu.memory_space<vmem>>, vector<1x128xf32>
    %125 = vector.broadcast %124 : vector<1x128xf32> to vector<256x128xf32>
    %126 = arith.addf %123, %125 : vector<256x128xf32>
    %127 = vector.shape_cast %126 : vector<256x128xf32> to vector<1x256x128xf32>
    %c0_113 = arith.constant 0 : index
    %c0_114 = arith.constant 0 : index
    %c0_115 = arith.constant 0 : index
    %128 = vector.load %arg12[%c0_113, %c0_114, %c0_115] : memref<1x256x128xf32, #tpu.memory_space<vmem>>, vector<1x256x128xf32>
    tpu.vector_store %arg12[%c0_113, %c0_114, %c0_115], %127 {strides = array<i32>} : memref<1x256x128xf32, #tpu.memory_space<vmem>>, vector<1x256x128xf32>,
    return
  }
  func.func @transform_0(%arg0: i32) -> (i32, i32, i32) {
    %c0_i32 = arith.constant 0 : i32
    %c0_i32_0 = arith.constant 0 : i32
    %c0_i32_1 = arith.constant 0 : i32
    return %arg0, %c0_i32, %c0_i32_0 : i32, i32, i32
  }
  func.func @transform_1(%arg0: i32) -> (i32, i32) {
    %c0_i32 = arith.constant 0 : i32
    %c0_i32_0 = arith.constant 0 : i32
    %c0_i32_1 = arith.constant 0 : i32
    return %c0_i32, %c0_i32_0 : i32, i32
  }
  func.func @transform_2(%arg0: i32) -> (i32, i32) {
    %c0_i32 = arith.constant 0 : i32
    %c0_i32_0 = arith.constant 0 : i32
    %c0_i32_1 = arith.constant 0 : i32
    return %c0_i32, %c0_i32_0 : i32, i32
  }
  func.func @transform_3(%arg0: i32) -> (i32, i32, i32, i32) {
    %c0_i32 = arith.constant 0 : i32
    %c0_i32_0 = arith.constant 0 : i32
    %c0_i32_1 = arith.constant 0 : i32
    %c0_i32_2 = arith.constant 0 : i32
    %c0_i32_3 = arith.constant 0 : i32
    return %c0_i32, %c0_i32_0, %c0_i32_1, %c0_i32_2 : i32, i32, i32, i32
  }
  func.func @transform_4(%arg0: i32) -> (i32, i32) {
    %c0_i32 = arith.constant 0 : i32
    %c0_i32_0 = arith.constant 0 : i32
    %c0_i32_1 = arith.constant 0 : i32
    return %c0_i32, %c0_i32_0 : i32, i32
  }
  func.func @transform_5(%arg0: i32) -> (i32, i32, i32, i32) {
    %c0_i32 = arith.constant 0 : i32
    %c0_i32_0 = arith.constant 0 : i32
    %c0_i32_1 = arith.constant 0 : i32
    %c0_i32_2 = arith.constant 0 : i32
    %c0_i32_3 = arith.constant 0 : i32
    return %c0_i32, %c0_i32_0, %c0_i32_1, %c0_i32_2 : i32, i32, i32, i32
  }
  func.func @transform_6(%arg0: i32) -> (i32, i32) {
    %c0_i32 = arith.constant 0 : i32
    %c0_i32_0 = arith.constant 0 : i32
    %c0_i32_1 = arith.constant 0 : i32
    return %c0_i32, %c0_i32_0 : i32, i32
  }
  func.func @transform_7(%arg0: i32) -> (i32, i32) {
    %c0_i32 = arith.constant 0 : i32
    %c0_i32_0 = arith.constant 0 : i32
    %c0_i32_1 = arith.constant 0 : i32
    return %c0_i32, %c0_i32_0 : i32, i32
  }
  func.func @transform_8(%arg0: i32) -> (i32, i32) {
    %c0_i32 = arith.constant 0 : i32
    %c0_i32_0 = arith.constant 0 : i32
    %c0_i32_1 = arith.constant 0 : i32
    return %c0_i32, %c0_i32_0 : i32, i32
  }
  func.func @transform_9(%arg0: i32) -> (i32, i32) {
    %c0_i32 = arith.constant 0 : i32
    %c0_i32_0 = arith.constant 0 : i32
    %c0_i32_1 = arith.constant 0 : i32
    return %c0_i32, %c0_i32_0 : i32, i32
  }
  func.func @transform_10(%arg0: i32) -> (i32, i32) {
    %c0_i32 = arith.constant 0 : i32
    %c0_i32_0 = arith.constant 0 : i32
    %c0_i32_1 = arith.constant 0 : i32
    return %c0_i32, %c0_i32_0 : i32, i32
  }
  func.func @transform_11(%arg0: i32) -> (i32, i32, i32) {
    %c0_i32 = arith.constant 0 : i32
    %c0_i32_0 = arith.constant 0 : i32
    %c0_i32_1 = arith.constant 0 : i32
    return %arg0, %c0_i32, %c0_i32_0 : i32, i32, i32
  }
}

</mosaic_0001>

<llo_original>
// kernel: mask_head_forward.1
$region0: #{mask_head_forward.1}
  #allocation0 [shape = 'u32[]', space=smem, size = 0x4, offset = 0x4, fixed_abs, tag = 'smem constant byte address 0x4 - core index']
  #allocation1 [shape = 'u32[144,128]{1,0:T(1,128)}', space=vmem, size = 0x12000, scoped, tag = 'internal scratch']
  #allocation2 [shape = 'f32[304,256]{1,0:T(8,128)}', space=vmem, size = 0x4c000, scoped, tag = 'scratch operand']
  #allocation3 [shape = 'f32[280,256]{1,0:T(8,128)}', space=vmem, size = 0x46000, scoped, tag = 'scratch operand']
  %s0 = inlined_call_operand.vmem [shape: bf16[2,256,128], index: 0, kind: input, shape index: {}]
  %s1 = inlined_call_operand.vmem [shape: bf16[128,256], index: 1, kind: input, shape index: {}]
  %s2 = inlined_call_operand.vmem [shape: f32[1,256], index: 2, kind: input, shape index: {}]
  %s3 = inlined_call_operand.vmem [shape: bf16[3,3,256,256], index: 3, kind: input, shape index: {}]
  %s4 = inlined_call_operand.vmem [shape: f32[1,256], index: 4, kind: input, shape index: {}]
  %s5 = inlined_call_operand.vmem [shape: bf16[2,2,256,256], index: 5, kind: input, shape index: {}]
  %s6 = inlined_call_operand.vmem [shape: f32[1,256], index: 6, kind: input, shape index: {}]
  %s7 = inlined_call_operand.vmem [shape: bf16[256,128], index: 7, kind: input, shape index: {}]
  %s8 = inlined_call_operand.vmem [shape: f32[1,128], index: 8, kind: input, shape index: {}]
  %s9 = inlined_call_operand.vmem [shape: f32[256,1], index: 9, kind: input, shape index: {}]
  %s10 = inlined_call_operand.vmem [shape: f32[256,1], index: 10, kind: input, shape index: {}]
  %s11 = inlined_call_operand.vmem [shape: f32[2,256,128], index: 11, kind: output, shape index: {}]
  %s12 = sld [smem:[#allocation0]]
  $region77: #{mask_head_forward.1} parent=0
    _
  %s14 = ssub.s32 1, %s12
  %s15 = scalar_select 0, %s14, %s12
  loop: start=0, step=1, limit=4
  $region2: #{mask_head_forward.1} parent=0 // loop_pre_header
    _
  $region3: #{mask_head_forward.1} parent=0 // loop_header
    %s17 = sphi 0, %s21
    %p18 = scmp.ge.s32.totalorder %s17, 4
    %s27 = sphi 0, %s29
    %s30 = sphi 0, %s27
    %s31 = sphi 0, %s30
    %s47 = sphi 0, %s31
    %s51 = sphi 0, %s51
    %s53 = sphi 0, %s51
    %s54 = sphi 0, %s53
    %s68 = sphi 0, %s54
    %s72 = sphi 0, %s72
    %s74 = sphi 0, %s72
    %s75 = sphi 0, %s74
    %s89 = sphi 0, %s75
    %s93 = sphi 0, %s93
    %s95 = sphi 0, %s93
    %s96 = sphi 0, %s95
    %s110 = sphi 0, %s96
    %s114 = sphi 0, %s114
    %s116 = sphi 0, %s114
    %s117 = sphi 0, %s116
    %s131 = sphi 0, %s117
    %s135 = sphi 0, %s135
    %s137 = sphi 0, %s135
    %s138 = sphi 0, %s137
    %s152 = sphi 0, %s138
    %s156 = sphi 0, %s156
    %s158 = sphi 0, %s156
    %s159 = sphi 0, %s158
    %s173 = sphi 0, %s159
    %s177 = sphi 0, %s177
    %s179 = sphi 0, %s177
    %s180 = sphi 0, %s179
    %s194 = sphi 0, %s180
    %s198 = sphi 0, %s198
    %s200 = sphi 0, %s198
    %s201 = sphi 0, %s200
    %s215 = sphi 0, %s201
    %s219 = sphi 0, %s219
    %s221 = sphi 0, %s219
    %s222 = sphi 0, %s221
    %s236 = sphi 0, %s222
    %s240 = sphi 0, %s240
    %s242 = sphi 0, %s240
    %s243 = sphi 0, %s242
    %s257 = sphi 0, %s243
    %s263 = sphi 0, %s265
    %s266 = sphi 0, %s263
    %s267 = sphi 0, %s266
    %s283 = sphi 0, %s267
  $region4: #{mask_head_forward.1} parent=0 // loop_header_branch
    %20 = sbr.rel (%p18) target = $region8
  $region5: #{mask_head_forward.1} parent=0 // loop_body
    %s22 = ssub.s32 %s17, 1
    %s23 = ssub.s32 %s17, 2
    %s24 = sadd.s32 %s17, 1
    %s25 = ssub.s32 %s17, %s24
    %p26 = scmp.eq.s32.totalorder %s25, 0
    %s28 = sadd.s32 %s27, 1
    %s29 = scalar_select %p26, %s27, %s28
    %p32 = pneg %p26
    %p33 = scmp.eq.s32.totalorder %s17, 1
    %p34 = por %p32, %p33
    %p35 = scmp.ne.s32.totalorder %s27, %s30
    %p36 = scmp.eq.s32.totalorder %s17, 0
    %p37 = por %p35, %p36
    %p38 = scmp.ne.s32.totalorder %s27, %s30
    %p39 = scmp.eq.s32.totalorder %s22, 1
    %p40 = por %p38, %p39
    %p41 = scmp.ne.s32.totalorder %s30, %s31
    %p42 = scmp.eq.s32.totalorder %s22, 0
    %p43 = por %p41, %p42
    %p44 = scmp.ne.s32.totalorder %s30, %s31
    %p45 = scmp.eq.s32.totalorder %s23, 1
    %p46 = por %p44, %p45
    %p48 = scmp.ne.s32.totalorder %s31, %s47
    %p49 = scmp.eq.s32.totalorder %s23, 0
    %p50 = por %p48, %p49
    %s52 = sadd.s32 %s51, 1
    %p55 = scmp.eq.s32.totalorder %s17, 1
    %p56 = scmp.ne.s32.totalorder %s51, %s53
    %p57 = scmp.eq.s32.totalorder %s17, 0
    %p58 = por %p56, %p57
    %p59 = scmp.ne.s32.totalorder %s51, %s53
    %p60 = scmp.eq.s32.totalorder %s22, 1
    %p61 = por %p59, %p60
    %p62 = scmp.ne.s32.totalorder %s53, %s54
    %p63 = scmp.eq.s32.totalorder %s22, 0
    %p64 = por %p62, %p63
    %p65 = scmp.ne.s32.totalorder %s53, %s54
    %p66 = scmp.eq.s32.totalorder %s23, 1
    %p67 = por %p65, %p66
    %p69 = scmp.ne.s32.totalorder %s54, %s68
    %p70 = scmp.eq.s32.totalorder %s23, 0
    %p71 = por %p69, %p70
    %s73 = sadd.s32 %s72, 1
    %p76 = scmp.eq.s32.totalorder %s17, 1
    %p77 = scmp.ne.s32.totalorder %s72, %s74
    %p78 = scmp.eq.s32.totalorder %s17, 0
    %p79 = por %p77, %p78
    %p80 = scmp.ne.s32.totalorder %s72, %s74
    %p81 = scmp.eq.s32.totalorder %s22, 1
    %p82 = por %p80, %p81
    %p83 = scmp.ne.s32.totalorder %s74, %s75
    %p84 = scmp.eq.s32.totalorder %s22, 0
    %p85 = por %p83, %p84
    %p86 = scmp.ne.s32.totalorder %s74, %s75
    %p87 = scmp.eq.s32.totalorder %s23, 1
    %p88 = por %p86, %p87
    %p90 = scmp.ne.s32.totalorder %s75, %s89
    %p91 = scmp.eq.s32.totalorder %s23, 0
    %p92 = por %p90, %p91
    %s94 = sadd.s32 %s93, 1
    %p97 = scmp.eq.s32.totalorder %s17, 1
    %p98 = scmp.ne.s32.totalorder %s93, %s95
    %p99 = scmp.eq.s32.totalorder %s17, 0
    %p100 = por %p98, %p99
    %p101 = scmp.ne.s32.totalorder %s93, %s95
    %p102 = scmp.eq.s32.totalorder %s22, 1
    %p103 = por %p101, %p102
    %p104 = scmp.ne.s32.totalorder %s95, %s96
    %p105 = scmp.eq.s32.totalorder %s22, 0
    %p106 = por %p104, %p105
    %p107 = scmp.ne.s32.totalorder %s95, %s96
    %p108 = scmp.eq.s32.totalorder %s23, 1
    %p109 = por %p107, %p108
    %p111 = scmp.ne.s32.totalorder %s96, %s110
    %p112 = scmp.eq.s32.totalorder %s23, 0
    %p113 = por %p111, %p112
    %s115 = sadd.s32 %s114, 1
    %p118 = scmp.eq.s32.totalorder %s17, 1
    %p119 = scmp.ne.s32.totalorder %s114, %s116
    %p120 = scmp.eq.s32.totalorder %s17, 0
    %p121 = por %p119, %p120
    %p122 = scmp.ne.s32.totalorder %s114, %s116
    %p123 = scmp.eq.s32.totalorder %s22, 1
    %p124 = por %p122, %p123
    %p125 = scmp.ne.s32.totalorder %s116, %s117
    %p126 = scmp.eq.s32.totalorder %s22, 0
    %p127 = por %p125, %p126
    %p128 = scmp.ne.s32.totalorder %s116, %s117
    %p129 = scmp.eq.s32.totalorder %s23, 1
    %p130 = por %p128, %p129
    %p132 = scmp.ne.s32.totalorder %s117, %s131
    %p133 = scmp.eq.s32.totalorder %s23, 0
    %p134 = por %p132, %p133
    %s136 = sadd.s32 %s135, 1
    %p139 = scmp.eq.s32.totalorder %s17, 1
    %p140 = scmp.ne.s32.totalorder %s135, %s137
    %p141 = scmp.eq.s32.totalorder %s17, 0
    %p142 = por %p140, %p141
    %p143 = scmp.ne.s32.totalorder %s135, %s137
    %p144 = scmp.eq.s32.totalorder %s22, 1
    %p145 = por %p143, %p144
    %p146 = scmp.ne.s32.totalorder %s137, %s138
    %p147 = scmp.eq.s32.totalorder %s22, 0
    %p148 = por %p146, %p147
    %p149 = scmp.ne.s32.totalorder %s137, %s138
    %p150 = scmp.eq.s32.totalorder %s23, 1
    %p151 = por %p149, %p150
    %p153 = scmp.ne.s32.totalorder %s138, %s152
    %p154 = scmp.eq.s32.totalorder %s23, 0
    %p155 = por %p153, %p154
    %s157 = sadd.s32 %s156, 1
    %p160 = scmp.eq.s32.totalorder %s17, 1
    %p161 = scmp.ne.s32.totalorder %s156, %s158
    %p162 = scmp.eq.s32.totalorder %s17, 0
    %p163 = por %p161, %p162
    %p164 = scmp.ne.s32.totalorder %s156, %s158
    %p165 = scmp.eq.s32.totalorder %s22, 1
    %p166 = por %p164, %p165
    %p167 = scmp.ne.s32.totalorder %s158, %s159
    %p168 = scmp.eq.s32.totalorder %s22, 0
    %p169 = por %p167, %p168
    %p170 = scmp.ne.s32.totalorder %s158, %s159
    %p171 = scmp.eq.s32.totalorder %s23, 1
    %p172 = por %p170, %p171
    %p174 = scmp.ne.s32.totalorder %s159, %s173
    %p175 = scmp.eq.s32.totalorder %s23, 0
    %p176 = por %p174, %p175
    %s178 = sadd.s32 %s177, 1
    %p181 = scmp.eq.s32.totalorder %s17, 1
    %p182 = scmp.ne.s32.totalorder %s177, %s179
    %p183 = scmp.eq.s32.totalorder %s17, 0
    %p184 = por %p182, %p183
    %p185 = scmp.ne.s32.totalorder %s177, %s179
    %p186 = scmp.eq.s32.totalorder %s22, 1
    %p187 = por %p185, %p186
    %p188 = scmp.ne.s32.totalorder %s179, %s180
    %p189 = scmp.eq.s32.totalorder %s22, 0
    %p190 = por %p188, %p189
    %p191 = scmp.ne.s32.totalorder %s179, %s180
    %p192 = scmp.eq.s32.totalorder %s23, 1
    %p193 = por %p191, %p192
    %p195 = scmp.ne.s32.totalorder %s180, %s194
    %p196 = scmp.eq.s32.totalorder %s23, 0
    %p197 = por %p195, %p196
    %s199 = sadd.s32 %s198, 1
    %p202 = scmp.eq.s32.totalorder %s17, 1
    %p203 = scmp.ne.s32.totalorder %s198, %s200
    %p204 = scmp.eq.s32.totalorder %s17, 0
    %p205 = por %p203, %p204
    %p206 = scmp.ne.s32.totalorder %s198, %s200
    %p207 = scmp.eq.s32.totalorder %s22, 1
    %p208 = por %p206, %p207
    %p209 = scmp.ne.s32.totalorder %s200, %s201
    %p210 = scmp.eq.s32.totalorder %s22, 0
    %p211 = por %p209, %p210
    %p212 = scmp.ne.s32.totalorder %s200, %s201
    %p213 = scmp.eq.s32.totalorder %s23, 1
    %p214 = por %p212, %p213
    %p216 = scmp.ne.s32.totalorder %s201, %s215
    %p217 = scmp.eq.s32.totalorder %s23, 0
    %p218 = por %p216, %p217
    %s220 = sadd.s32 %s219, 1
    %p223 = scmp.eq.s32.totalorder %s17, 1
    %p224 = scmp.ne.s32.totalorder %s219, %s221
    %p225 = scmp.eq.s32.totalorder %s17, 0
    %p226 = por %p224, %p225
    %p227 = scmp.ne.s32.totalorder %s219, %s221
    %p228 = scmp.eq.s32.totalorder %s22, 1
    %p229 = por %p227, %p228
    %p230 = scmp.ne.s32.totalorder %s221, %s222
    %p231 = scmp.eq.s32.totalorder %s22, 0
    %p232 = por %p230, %p231
    %p233 = scmp.ne.s32.totalorder %s221, %s222
    %p234 = scmp.eq.s32.totalorder %s23, 1
    %p235 = por %p233, %p234
    %p237 = scmp.ne.s32.totalorder %s222, %s236
    %p238 = scmp.eq.s32.totalorder %s23, 0
    %p239 = por %p237, %p238
    %s241 = sadd.s32 %s240, 1
    %p244 = scmp.eq.s32.totalorder %s17, 1
    %p245 = scmp.ne.s32.totalorder %s240, %s242
    %p246 = scmp.eq.s32.totalorder %s17, 0
    %p247 = por %p245, %p246
    %p248 = scmp.ne.s32.totalorder %s240, %s242
    %p249 = scmp.eq.s32.totalorder %s22, 1
    %p250 = por %p248, %p249
    %p251 = scmp.ne.s32.totalorder %s242, %s243
    %p252 = scmp.eq.s32.totalorder %s22, 0
    %p253 = por %p251, %p252
    %p254 = scmp.ne.s32.totalorder %s242, %s243
    %p255 = scmp.eq.s32.totalorder %s23, 1
    %p256 = por %p254, %p255
    %p258 = scmp.ne.s32.totalorder %s243, %s257
    %p259 = scmp.eq.s32.totalorder %s23, 0
    %p260 = por %p258, %p259
    %s261 = ssub.s32 %s17, %s24
    %p262 = scmp.eq.s32.totalorder %s261, 0
    %s264 = sadd.s32 %s263, 1
    %s265 = scalar_select %p262, %s263, %s264
    %p268 = pneg %p262
    %p269 = scmp.eq.s32.totalorder %s17, 1
    %p270 = por %p268, %p269
    %p271 = scmp.ne.s32.totalorder %s263, %s266
    %p272 = scmp.eq.s32.totalorder %s17, 0
    %p273 = por %p271, %p272
    %p274 = scmp.ne.s32.totalorder %s263, %s266
    %p275 = scmp.eq.s32.totalorder %s22, 1
    %p276 = por %p274, %p275
    %p277 = scmp.ne.s32.totalorder %s266, %s267
    %p278 = scmp.eq.s32.totalorder %s22, 0
    %p279 = por %p277, %p278
    %p280 = scmp.ne.s32.totalorder %s266, %s267
    %p281 = scmp.eq.s32.totalorder %s23, 1
    %p282 = por %p280, %p281
    %p284 = scmp.ne.s32.totalorder %s267, %s283
    %p285 = scmp.eq.s32.totalorder %s23, 0
    %p286 = por %p284, %p285
    %p287 = scmp.le.s32.totalorder 1, %s17
    %p288 = scmp.lt.s32.totalorder %s17, 3
    %p289 = pnand %p287, %p288
    %p290 = pneg %p289
    // Predicated region
    $region9: #{mask_head_forward.1} parent=5 // pred_check
      _
    $region10: #{mask_head_forward.1} parent=5 // pred_check_branch
      %292 = sbr.rel (%p289) target = $region12
    $region11: #{mask_head_forward.1} parent=5 // pred_region
      %s293 = ssub.s32 %s17, 1
      // Predicated region
      $region13: #{mask_head_forward.1} parent=11 // pred_check
        %p294 = pneg %p64
      $region14: #{mask_head_forward.1} parent=11 // pred_check_branch
        %296 = sbr.rel (%p294) target = $region16
      $region15: #{mask_head_forward.1} parent=11 // pred_region
        _
      $region16: #{mask_head_forward.1} parent=11 // pred_fallthru
        _
      // Predicated region
      $region17: #{mask_head_forward.1} parent=11 // pred_check
        %p297 = pneg %p85
      $region18: #{mask_head_forward.1} parent=11 // pred_check_branch
        %299 = sbr.rel (%p297) target = $region20
      $region19: #{mask_head_forward.1} parent=11 // pred_region
        _
      $region20: #{mask_head_forward.1} parent=11 // pred_fallthru
        _
      // Predicated region
      $region21: #{mask_head_forward.1} parent=11 // pred_check
        %p300 = pneg %p106
      $region22: #{mask_head_forward.1} parent=11 // pred_check_branch
        %302 = sbr.rel (%p300) target = $region24
      $region23: #{mask_head_forward.1} parent=11 // pred_region
        _
      $region24: #{mask_head_forward.1} parent=11 // pred_fallthru
        _
      // Predicated region
      $region25: #{mask_head_forward.1} parent=11 // pred_check
        %p303 = pneg %p127
      $region26: #{mask_head_forward.1} parent=11 // pred_check_branch
        %305 = sbr.rel (%p303) target = $region28
      $region27: #{mask_head_forward.1} parent=11 // pred_region
        _
      $region28: #{mask_head_forward.1} parent=11 // pred_fallthru
        _
      // Predicated region
      $region29: #{mask_head_forward.1} parent=11 // pred_check
        %p306 = pneg %p148
      $region30: #{mask_head_forward.1} parent=11 // pred_check_branch
        %308 = sbr.rel (%p306) target = $region32
      $region31: #{mask_head_forward.1} parent=11 // pred_region
        _
      $region32: #{mask_head_forward.1} parent=11 // pred_fallthru
        _
      // Predicated region
      $region33: #{mask_head_forward.1} parent=11 // pred_check
        %p309 = pneg %p169
      $region34: #{mask_head_forward.1} parent=11 // pred_check_branch
        %311 = sbr.rel (%p309) target = $region36
      $region35: #{mask_head_forward.1} parent=11 // pred_region
        _
      $region36: #{mask_head_forward.1} parent=11 // pred_fallthru
        _
      // Predicated region
      $region37: #{mask_head_forward.1} parent=11 // pred_check
        %p312 = pneg %p190
      $region38: #{mask_head_forward.1} parent=11 // pred_check_branch
        %314 = sbr.rel (%p312) target = $region40
      $region39: #{mask_head_forward.1} parent=11 // pred_region
        _
      $region40: #{mask_head_forward.1} parent=11 // pred_fallthru
        _
      // Predicated region
      $region41: #{mask_head_forward.1} parent=11 // pred_check
        %p315 = pneg %p211
      $region42: #{mask_head_forward.1} parent=11 // pred_check_branch
        %317 = sbr.rel (%p315) target = $region44
      $region43: #{mask_head_forward.1} parent=11 // pred_region
        _
      $region44: #{mask_head_forward.1} parent=11 // pred_fallthru
        _
      // Predicated region
      $region45: #{mask_head_forward.1} parent=11 // pred_check
        %p318 = pneg %p232
      $region46: #{mask_head_forward.1} parent=11 // pred_check_branch
        %320 = sbr.rel (%p318) target = $region48
      $region47: #{mask_head_forward.1} parent=11 // pred_region
        _
      $region48: #{mask_head_forward.1} parent=11 // pred_fallthru
        _
      // Predicated region
      $region49: #{mask_head_forward.1} parent=11 // pred_check
        %p321 = pneg %p253
      $region50: #{mask_head_forward.1} parent=11 // pred_check_branch
        %323 = sbr.rel (%p321) target = $region52
      $region51: #{mask_head_forward.1} parent=11 // pred_region
        _
      $region52: #{mask_head_forward.1} parent=11 // pred_fallthru
        _
    $region12: #{mask_head_forward.1} parent=5 // pred_fallthru
      _
    %p324 = scmp.lt.s32.totalorder %s17, 2
    // Predicated region
    $region53: #{mask_head_forward.1} parent=5 // pred_check
      %p325 = pneg %p324
    $region54: #{mask_head_forward.1} parent=5 // pred_check_branch
      %327 = sbr.rel (%p325) target = $region56
    $region55: #{mask_head_forward.1} parent=5 // pred_region
      // Predicated region
      $region57: #{mask_head_forward.1} parent=55 // pred_check
        %p328 = pneg %p37
      $region58: #{mask_head_forward.1} parent=55 // pred_check_branch
        %330 = sbr.rel (%p328) target = $region60
      $region59: #{mask_head_forward.1} parent=55 // pred_region
        %p331 = scmp.lt.s32.totalorder %s17, 1
        %s332 = scalar_select %p331, %s17, 1
        %s333 = smul.addr %s332, 32
        %s334 = smul.addr %s333, 4
        %s335 = scalar_lea.vmem %s0, %s334
      $region60: #{mask_head_forward.1} parent=55 // pred_fallthru
        _
    $region56: #{mask_head_forward.1} parent=5 // pred_fallthru
      _
    %p336 = scmp.le.s32.totalorder 1, %s17
    %p337 = scmp.lt.s32.totalorder %s17, 3
    %p338 = pnand %p336, %p337
    %p339 = pneg %p338
    // Predicated region
    $region61: #{mask_head_forward.1} parent=5 // pred_check
      _
    $region62: #{mask_head_forward.1} parent=5 // pred_check_branch
      %341 = sbr.rel (%p338) target = $region64
    $region63: #{mask_head_forward.1} parent=5 // pred_region
      %s342 = ssub.s32 %s17, 1
      %p343 = scmp.lt.s32.totalorder %s22, 1
      %s344 = scalar_select %p343, %s22, 1
      %s345 = smul.addr %s344, 32
      %s346 = smul.addr %s345, 4
      %s347 = scalar_lea.vmem %s0, %s346
      %p348 = pneg %p43
      %p349 = pneg %p40
      %p350 = pneg %p64
      %p351 = pneg %p61
      %p352 = pneg %p85
      %p353 = pneg %p82
      %p354 = pneg %p106
      %p355 = pneg %p103
      %p356 = pneg %p127
      %p357 = pneg %p124
      %p358 = pneg %p148
      %p359 = pneg %p145
      %p360 = pneg %p169
      %p361 = pneg %p166
      %p362 = pneg %p190
      %p363 = pneg %p187
      %p364 = pneg %p211
      %p365 = pneg %p208
      %p366 = pneg %p232
      %p367 = pneg %p229
      %p368 = pneg %p253
      %p369 = pneg %p250
      %p370 = pneg %p279
      %p371 = pneg %p276
      %p372 = scmp.lt.s32.totalorder %s22, 1
      %s373 = scalar_select %p372, %s22, 1
      %s374 = smul.addr %s373, 32
      %s375 = smul.addr %s374, 8
      %s376 = scalar_lea.vmem %s11, %s375
      %p377 = scmp.lt.s32.totalorder %s22, 1
      %s378 = scalar_select %p377, %s22, 1
      %s379 = smul.addr %s378, 32
      %s380 = smul.addr %s379, 4
      %s381 = scalar_lea.vmem %s0, %s380
      %p382 = scmp.lt.s32.totalorder %s22, 1
      %s383 = scalar_select %p382, %s22, 1
      %s384 = smul.addr %s383, 32
      %s385 = smul.addr %s384, 8
      %s386 = scalar_lea.vmem %s11, %s385
      %v388 = vld [vmem:[%s381] sm:$0xf]
      %v389 = vld [vmem:[%s381 + $0x4] sm:$0xf]
      %v390 = vld [vmem:[%s381 + $0x8] sm:$0xf]
      %v391 = vld [vmem:[%s381 + $0xc] sm:$0xf]
      %v392 = vld [vmem:[%s381 + $0x10] sm:$0xf]
      %v393 = vld [vmem:[%s381 + $0x14] sm:$0xf]
      %v394 = vld [vmem:[%s381 + $0x18] sm:$0xf]
      %v395 = vld [vmem:[%s381 + $0x1c] sm:$0xf]
      %v396 = vld [vmem:[%s381 + $0x20] sm:$0xf]
      %v397 = vld [vmem:[%s381 + $0x24] sm:$0xf]
      %v398 = vld [vmem:[%s381 + $0x28] sm:$0xf]
      %v399 = vld [vmem:[%s381 + $0x2c] sm:$0xf]
      %v400 = vld [vmem:[%s381 + $0x30] sm:$0xf]
      %v401 = vld [vmem:[%s381 + $0x34] sm:$0xf]
      %v402 = vld [vmem:[%s381 + $0x38] sm:$0xf]
      %v403 = vld [vmem:[%s381 + $0x3c] sm:$0xf]
      %v404 = vld [vmem:[%s381 + $0x40] sm:$0xf]
      %v405 = vld [vmem:[%s381 + $0x44] sm:$0xf]
      %v406 = vld [vmem:[%s381 + $0x48] sm:$0xf]
      %v407 = vld [vmem:[%s381 + $0x4c] sm:$0xf]
      %v408 = vld [vmem:[%s381 + $0x50] sm:$0xf]
      %v409 = vld [vmem:[%s381 + $0x54] sm:$0xf]
      %v410 = vld [vmem:[%s381 + $0x58] sm:$0xf]
      %v411 = vld [vmem:[%s381 + $0x5c] sm:$0xf]
      %v412 = vld [vmem:[%s381 + $0x60] sm:$0xf]
      %v413 = vld [vmem:[%s381 + $0x64] sm:$0xf]
      %v414 = vld [vmem:[%s381 + $0x68] sm:$0xf]
      %v415 = vld [vmem:[%s381 + $0x6c] sm:$0xf]
      %v416 = vld [vmem:[%s381 + $0x70] sm:$0xf]
      %v417 = vld [vmem:[%s381 + $0x74] sm:$0xf]
      %v418 = vld [vmem:[%s381 + $0x78] sm:$0xf]
      %v419 = vld [vmem:[%s381 + $0x7c] sm:$0xf]
      %v420 = vld [vmem:[%s1] sm:$0xff]
      %v421 = vld [vmem:[%s1 + $0x8] sm:$0xff]
      %v422 = vld [vmem:[%s1 + $0x10] sm:$0xff]
      %v423 = vld [vmem:[%s1 + $0x18] sm:$0xff]
      %v424 = vld [vmem:[%s1 + $0x20] sm:$0xff]
      %v425 = vld [vmem:[%s1 + $0x28] sm:$0xff]
      %v426 = vld [vmem:[%s1 + $0x30] sm:$0xff]
      %v427 = vld [vmem:[%s1 + $0x38] sm:$0xff]
      %v428 = vld [vmem:[%s1 + $0x40] sm:$0xff]
      %v429 = vld [vmem:[%s1 + $0x48] sm:$0xff]
      %v430 = vld [vmem:[%s1 + $0x50] sm:$0xff]
      %v431 = vld [vmem:[%s1 + $0x58] sm:$0xff]
      %v432 = vld [vmem:[%s1 + $0x60] sm:$0xff]
      %v433 = vld [vmem:[%s1 + $0x68] sm:$0xff]
      %v434 = vld [vmem:[%s1 + $0x70] sm:$0xff]
      %v435 = vld [vmem:[%s1 + $0x78] sm:$0xff]
      %v436 = vld [vmem:[%s2] sm:$0x3]
      %v438 = vlaneseq
      %v439 = vshrl.u32 %v438, 7
      %v440 = vsub.s32 0, %v439
      %v441 = vrot.slane %v436, %v440
      %v442 = vlaneseq
      %v443 = vshrl.u32 %v442, 7
      %v444 = vsub.s32 1, %v443
      %v445 = vrot.slane %v436, %v444
      %v480 = vunpack.c.l.b16 %v388
      %v481 = vunpack.c.l.b16 %v389
      %v482 = vunpack.c.l.b16 %v390
      %v483 = vunpack.c.l.b16 %v391
      %v484 = vunpack.c.l.b16 %v392
      %v485 = vunpack.c.l.b16 %v393
      %v486 = vunpack.c.l.b16 %v394
      %v487 = vunpack.c.l.b16 %v395
      %v488 = vunpack.c.l.b16 %v396
      %v489 = vunpack.c.l.b16 %v397
      %v490 = vunpack.c.l.b16 %v398
      %v491 = vunpack.c.l.b16 %v399
      %v492 = vunpack.c.l.b16 %v400
      %v493 = vunpack.c.l.b16 %v401
      %v494 = vunpack.c.l.b16 %v402
      %v495 = vunpack.c.l.b16 %v403
      %v496 = vunpack.c.l.b16 %v404
      %v497 = vunpack.c.l.b16 %v405
      %v498 = vunpack.c.l.b16 %v406
      %v499 = vunpack.c.l.b16 %v407
      %v500 = vunpack.c.l.b16 %v408
      %v501 = vunpack.c.l.b16 %v409
      %v502 = vunpack.c.l.b16 %v410
      %v503 = vunpack.c.l.b16 %v411
      %v504 = vunpack.c.l.b16 %v412
      %v505 = vunpack.c.l.b16 %v413
      %v506 = vunpack.c.l.b16 %v414
      %v507 = vunpack.c.l.b16 %v415
      %v508 = vunpack.c.l.b16 %v416
      %v509 = vunpack.c.l.b16 %v417
      %v510 = vunpack.c.l.b16 %v418
      %v511 = vunpack.c.l.b16 %v419
      %v512 = vpack.c.b16 %v481, %v480
      %v513 = vpack.c.b16 %v483, %v482
      %v514 = vpack.c.b16 %v485, %v484
      %v515 = vpack.c.b16 %v487, %v486
      %v516 = vpack.c.b16 %v489, %v488
      %v517 = vpack.c.b16 %v491, %v490
      %v518 = vpack.c.b16 %v493, %v492
      %v519 = vpack.c.b16 %v495, %v494
      %v520 = vpack.c.b16 %v497, %v496
      %v521 = vpack.c.b16 %v499, %v498
      %v522 = vpack.c.b16 %v501, %v500
      %v523 = vpack.c.b16 %v503, %v502
      %v524 = vpack.c.b16 %v505, %v504
      %v525 = vpack.c.b16 %v507, %v506
      %v526 = vpack.c.b16 %v509, %v508
      %v527 = vpack.c.b16 %v511, %v510
      %v560 = vunpack.c.l.b16 %v420
      %v561 = vunpack.c.h.b16 %v420
      %v562 = vunpack.c.l.b16 %v421
      %v563 = vunpack.c.h.b16 %v421
      %v564 = vunpack.c.l.b16 %v422
      %v565 = vunpack.c.h.b16 %v422
      %v566 = vunpack.c.l.b16 %v423
      %v567 = vunpack.c.h.b16 %v423
      %v568 = vunpack.c.l.b16 %v424
      %v569 = vunpack.c.h.b16 %v424
      %v570 = vunpack.c.l.b16 %v425
      %v571 = vunpack.c.h.b16 %v425
      %v572 = vunpack.c.l.b16 %v426
      %v573 = vunpack.c.h.b16 %v426
      %v574 = vunpack.c.l.b16 %v427
      %v575 = vunpack.c.h.b16 %v427
      %v576 = vunpack.c.l.b16 %v428
      %v577 = vunpack.c.h.b16 %v428
      %v578 = vunpack.c.l.b16 %v429
      %v579 = vunpack.c.h.b16 %v429
      %v580 = vunpack.c.l.b16 %v430
      %v581 = vunpack.c.h.b16 %v430
      %v582 = vunpack.c.l.b16 %v431
      %v583 = vunpack.c.h.b16 %v431
      %v584 = vunpack.c.l.b16 %v432
      %v585 = vunpack.c.h.b16 %v432
      %v586 = vunpack.c.l.b16 %v433
      %v587 = vunpack.c.h.b16 %v433
      %v588 = vunpack.c.l.b16 %v434
      %v589 = vunpack.c.h.b16 %v434
      %v590 = vunpack.c.l.b16 %v435
      %v591 = vunpack.c.h.b16 %v435
      %v592 = vpack.c.b16 %v562, %v560
      %v593 = vpack.c.b16 %v563, %v561
      %v594 = vpack.c.b16 %v566, %v564
      %v595 = vpack.c.b16 %v567, %v565
      %v596 = vpack.c.b16 %v570, %v568
      %v597 = vpack.c.b16 %v571, %v569
      %v598 = vpack.c.b16 %v574, %v572
      %v599 = vpack.c.b16 %v575, %v573
      %v600 = vpack.c.b16 %v578, %v576
      %v601 = vpack.c.b16 %v579, %v577
      %v602 = vpack.c.b16 %v582, %v580
      %v603 = vpack.c.b16 %v583, %v581
      %v604 = vpack.c.b16 %v586, %v584
      %v605 = vpack.c.b16 %v587, %v585
      %v606 = vpack.c.b16 %v590, %v588
      %v607 = vpack.c.b16 %v591, %v589
      %624 = vmatprep.subr.bf16.mxu0 %v593
      %625 = vmatpush1.bf16.msra.mxu0 %v592
      %626 = vmatprep.subr.bf16.mxu0 %v595
      %627 = vmatpush1.bf16.msra.mxu0 %v594
      %628 = vmatprep.subr.bf16.mxu0 %v597
      %629 = vmatpush1.bf16.msra.mxu0 %v596
      %630 = vmatprep.subr.bf16.mxu0 %v599
      %631 = vmatpush1.bf16.msra.mxu0 %v598
      %632 = vmatprep.subr.bf16.mxu0 %v601
      %633 = vmatpush1.bf16.msra.mxu0 %v600
      %634 = vmatprep.subr.bf16.mxu0 %v603
      %635 = vmatpush1.bf16.msra.mxu0 %v602
      %636 = vmatprep.subr.bf16.mxu0 %v605
      %637 = vmatpush1.bf16.msra.mxu0 %v604
      %638 = vmatprep.subr.bf16.mxu0 %v607
      %639 = vmatpush1.bf16.msra.mxu0 %v606
      %640 = vmatprep.subr.bf16.mxu0 0
      %641 = vmatpush1.bf16.msra.mxu0 0
      %642 = vmatprep.subr.bf16.mxu0 0
      %643 = vmatpush1.bf16.msra.mxu0 0
      %644 = vmatprep.subr.bf16.mxu0 0
      %645 = vmatpush1.bf16.msra.mxu0 0
      %646 = vmatprep.subr.bf16.mxu0 0
      %647 = vmatpush1.bf16.msra.mxu0 0
      %648 = vmatprep.subr.bf16.mxu0 0
      %649 = vmatpush1.bf16.msra.mxu0 0
      %650 = vmatprep.subr.bf16.mxu0 0
      %651 = vmatpush1.bf16.msra.mxu0 0
      %652 = vmatprep.subr.bf16.mxu0 0
      %653 = vmatpush1.bf16.msra.mxu0 0
      %654 = vmatprep.subr.bf16.mxu0 0
      %655 = vmatpush1.bf16.msra.mxu0 0
      %656 = vmatprep.mubr.bf16.mxu0 0
      %657 = vmatmul.mubr.bf16.gmra.mrb[0].mxu0 %v512
      %v658 = vpop.f32.mrb[0].mxu0
      %v659 = vadd.f32 %v441, %v658
      %v660 = vpop.f32.mrb[0].mxu0
      %v661 = vadd.f32 %v445, %v660
      %v662 = vpop.f32.mrb[0].mxu0
      %v663 = vadd.f32 %v441, %v662
      %v664 = vpop.f32.mrb[0].mxu0
      %v665 = vadd.f32 %v445, %v664
      %666 = vmatprep.mubr.bf16.mxu0 0
      %667 = vmatmul.mubr.bf16.gmra.mrb[0].mxu0 %v513
      %v668 = vpop.f32.mrb[0].mxu0
      %v669 = vadd.f32 %v441, %v668
      %v670 = vpop.f32.mrb[0].mxu0
      %v671 = vadd.f32 %v445, %v670
      %v672 = vpop.f32.mrb[0].mxu0
      %v673 = vadd.f32 %v441, %v672
      %v674 = vpop.f32.mrb[0].mxu0
      %v675 = vadd.f32 %v445, %v674
      %676 = vmatprep.mubr.bf16.mxu0 0
      %677 = vmatmul.mubr.bf16.gmra.mrb[0].mxu0 %v514
      %v678 = vpop.f32.mrb[0].mxu0
      %v679 = vadd.f32 %v441, %v678
      %v680 = vpop.f32.mrb[0].mxu0
      %v681 = vadd.f32 %v445, %v680
      %v682 = vpop.f32.mrb[0].mxu0
      %v683 = vadd.f32 %v441, %v682
      %v684 = vpop.f32.mrb[0].mxu0
      %v685 = vadd.f32 %v445, %v684
      %686 = vmatprep.mubr.bf16.mxu0 0
      %687 = vmatmul.mubr.bf16.gmra.mrb[0].mxu0 %v515
      %v688 = vpop.f32.mrb[0].mxu0
      %v689 = vadd.f32 %v441, %v688
      %v690 = vpop.f32.mrb[0].mxu0
      %v691 = vadd.f32 %v445, %v690
      %v692 = vpop.f32.mrb[0].mxu0
      %v693 = vadd.f32 %v441, %v692
      %v694 = vpop.f32.mrb[0].mxu0
      %v695 = vadd.f32 %v445, %v694
      %696 = vmatprep.mubr.bf16.mxu0 0
      %697 = vmatmul.mubr.bf16.gmra.mrb[0].mxu0 %v516
      %v698 = vpop.f32.mrb[0].mxu0
      %v699 = vadd.f32 %v441, %v698
      %v700 = vpop.f32.mrb[0].mxu0
      %v701 = vadd.f32 %v445, %v700
      %v702 = vpop.f32.mrb[0].mxu0
      %v703 = vadd.f32 %v441, %v702
      %v704 = vpop.f32.mrb[0].mxu0
      %v705 = vadd.f32 %v445, %v704
      %706 = vmatprep.mubr.bf16.mxu0 0
      %707 = vmatmul.mubr.bf16.gmra.mrb[0].mxu0 %v517
      %v708 = vpop.f32.mrb[0].mxu0
      %v709 = vadd.f32 %v441, %v708
      %v710 = vpop.f32.mrb[0].mxu0
      %v711 = vadd.f32 %v445, %v710
      %v712 = vpop.f32.mrb[0].mxu0
      %v713 = vadd.f32 %v441, %v712
      %v714 = vpop.f32.mrb[0].mxu0
      %v715 = vadd.f32 %v445, %v714
      %716 = vmatprep.mubr.bf16.mxu0 0
      %717 = vmatmul.mubr.bf16.gmra.mrb[0].mxu0 %v518
      %v718 = vpop.f32.mrb[0].mxu0
      %v719 = vadd.f32 %v441, %v718
      %v720 = vpop.f32.mrb[0].mxu0
      %v721 = vadd.f32 %v445, %v720
      %v722 = vpop.f32.mrb[0].mxu0
      %v723 = vadd.f32 %v441, %v722
      %v724 = vpop.f32.mrb[0].mxu0
      %v725 = vadd.f32 %v445, %v724
      %726 = vmatprep.mubr.bf16.mxu0 0
      %727 = vmatmul.mubr.bf16.gmra.mrb[0].mxu0 %v519
      %v728 = vpop.f32.mrb[0].mxu0
      %v729 = vadd.f32 %v441, %v728
      %v730 = vpop.f32.mrb[0].mxu0
      %v731 = vadd.f32 %v445, %v730
      %v732 = vpop.f32.mrb[0].mxu0
      %v733 = vadd.f32 %v441, %v732
      %v734 = vpop.f32.mrb[0].mxu0
      %v735 = vadd.f32 %v445, %v734
      %736 = vmatprep.mubr.bf16.mxu0 0
      %737 = vmatmul.mubr.bf16.gmra.mrb[0].mxu0 %v520
      %v738 = vpop.f32.mrb[0].mxu0
      %v739 = vadd.f32 %v441, %v738
      %v740 = vpop.f32.mrb[0].mxu0
      %v741 = vadd.f32 %v445, %v740
      %v742 = vpop.f32.mrb[0].mxu0
      %v743 = vadd.f32 %v441, %v742
      %v744 = vpop.f32.mrb[0].mxu0
      %v745 = vadd.f32 %v445, %v744
      %746 = vmatprep.mubr.bf16.mxu0 0
      %747 = vmatmul.mubr.bf16.gmra.mrb[0].mxu0 %v521
      %v748 = vpop.f32.mrb[0].mxu0
      %v749 = vadd.f32 %v441, %v748
      %v750 = vpop.f32.mrb[0].mxu0
      %v751 = vadd.f32 %v445, %v750
      %v752 = vpop.f32.mrb[0].mxu0
      %v753 = vadd.f32 %v441, %v752
      %v754 = vpop.f32.mrb[0].mxu0
      %v755 = vadd.f32 %v445, %v754
      %756 = vmatprep.mubr.bf16.mxu0 0
      %757 = vmatmul.mubr.bf16.gmra.mrb[0].mxu0 %v522
      %v758 = vpop.f32.mrb[0].mxu0
      %v759 = vadd.f32 %v441, %v758
      %v760 = vpop.f32.mrb[0].mxu0
      %v761 = vadd.f32 %v445, %v760
      %v762 = vpop.f32.mrb[0].mxu0
      %v763 = vadd.f32 %v441, %v762
      %v764 = vpop.f32.mrb[0].mxu0
      %v765 = vadd.f32 %v445, %v764
      %766 = vmatprep.mubr.bf16.mxu0 0
      %767 = vmatmul.mubr.bf16.gmra.mrb[0].mxu0 %v523
      %v768 = vpop.f32.mrb[0].mxu0
      %v769 = vadd.f32 %v441, %v768
      %v770 = vpop.f32.mrb[0].mxu0
      %v771 = vadd.f32 %v445, %v770
      %v772 = vpop.f32.mrb[0].mxu0
      %v773 = vadd.f32 %v441, %v772
      %v774 = vpop.f32.mrb[0].mxu0
      %v775 = vadd.f32 %v445, %v774
      %776 = vmatprep.mubr.bf16.mxu0 0
      %777 = vmatmul.mubr.bf16.gmra.mrb[0].mxu0 %v524
      %v778 = vpop.f32.mrb[0].mxu0
      %v779 = vadd.f32 %v441, %v778
      %v780 = vpop.f32.mrb[0].mxu0
      %v781 = vadd.f32 %v445, %v780
      %v782 = vpop.f32.mrb[0].mxu0
      %v783 = vadd.f32 %v441, %v782
      %v784 = vpop.f32.mrb[0].mxu0
      %v785 = vadd.f32 %v445, %v784
      %786 = vmatprep.mubr.bf16.mxu0 0
      %787 = vmatmul.mubr.bf16.gmra.mrb[0].mxu0 %v525
      %v788 = vpop.f32.mrb[0].mxu0
      %v789 = vadd.f32 %v441, %v788
      %v790 = vpop.f32.mrb[0].mxu0
      %v791 = vadd.f32 %v445, %v790
      %v792 = vpop.f32.mrb[0].mxu0
      %v793 = vadd.f32 %v441, %v792
      %v794 = vpop.f32.mrb[0].mxu0
      %v795 = vadd.f32 %v445, %v794
      %796 = vmatprep.mubr.bf16.mxu0 0
      %797 = vmatmul.mubr.bf16.gmra.mrb[0].mxu0 %v526
      %v798 = vpop.f32.mrb[0].mxu0
      %v799 = vadd.f32 %v441, %v798
      %v800 = vpop.f32.mrb[0].mxu0
      %v801 = vadd.f32 %v445, %v800
      %v802 = vpop.f32.mrb[0].mxu0
      %v803 = vadd.f32 %v441, %v802
      %v804 = vpop.f32.mrb[0].mxu0
      %v805 = vadd.f32 %v445, %v804
      %806 = vmatprep.mubr.bf16.mxu0 0
      %807 = vmatmul.mubr.bf16.gmra.mrb[0].mxu0 %v527
      %v808 = vpop.f32.mrb[0].mxu0
      %v809 = vadd.f32 %v441, %v808
      %v810 = vpop.f32.mrb[0].mxu0
      %v811 = vadd.f32 %v445, %v810
      %v812 = vpop.f32.mrb[0].mxu0
      %v813 = vadd.f32 %v441, %v812
      %v814 = vpop.f32.mrb[0].mxu0
      %v815 = vadd.f32 %v445, %v814
      %816 = vdwg.mxu0
      %v817 = vmax.f32 %v659, 0.0
      %v818 = vmax.f32 %v661, 0.0
      %v819 = vmax.f32 %v663, 0.0
      %v820 = vmax.f32 %v665, 0.0
      %v821 = vmax.f32 %v669, 0.0
      %v822 = vmax.f32 %v671, 0.0
      %v823 = vmax.f32 %v673, 0.0
      %v824 = vmax.f32 %v675, 0.0
      %v825 = vmax.f32 %v679, 0.0
      %v826 = vmax.f32 %v681, 0.0
      %v827 = vmax.f32 %v683, 0.0
      %v828 = vmax.f32 %v685, 0.0
      %v829 = vmax.f32 %v689, 0.0
      %v830 = vmax.f32 %v691, 0.0
      %v831 = vmax.f32 %v693, 0.0
      %v832 = vmax.f32 %v695, 0.0
      %v833 = vmax.f32 %v699, 0.0
      %v834 = vmax.f32 %v701, 0.0
      %v835 = vmax.f32 %v703, 0.0
      %v836 = vmax.f32 %v705, 0.0
      %v837 = vmax.f32 %v709, 0.0
      %v838 = vmax.f32 %v711, 0.0
      %v839 = vmax.f32 %v713, 0.0
      %v840 = vmax.f32 %v715, 0.0
      %v841 = vmax.f32 %v719, 0.0
      %v842 = vmax.f32 %v721, 0.0
      %v843 = vmax.f32 %v723, 0.0
      %v844 = vmax.f32 %v725, 0.0
      %v845 = vmax.f32 %v729, 0.0
      %v846 = vmax.f32 %v731, 0.0
      %v847 = vmax.f32 %v733, 0.0
      %v848 = vmax.f32 %v735, 0.0
      %v849 = vmax.f32 %v739, 0.0
      %v850 = vmax.f32 %v741, 0.0
      %v851 = vmax.f32 %v743, 0.0
      %v852 = vmax.f32 %v745, 0.0
      %v853 = vmax.f32 %v749, 0.0
      %v854 = vmax.f32 %v751, 0.0
      %v855 = vmax.f32 %v753, 0.0
      %v856 = vmax.f32 %v755, 0.0
      %v857 = vmax.f32 %v759, 0.0
      %v858 = vmax.f32 %v761, 0.0
      %v859 = vmax.f32 %v763, 0.0
      %v860 = vmax.f32 %v765, 0.0
      %v861 = vmax.f32 %v769, 0.0
      %v862 = vmax.f32 %v771, 0.0
      %v863 = vmax.f32 %v773, 0.0
      %v864 = vmax.f32 %v775, 0.0
      %v865 = vmax.f32 %v779, 0.0
      %v866 = vmax.f32 %v781, 0.0
      %v867 = vmax.f32 %v783, 0.0
      %v868 = vmax.f32 %v785, 0.0
      %v869 = vmax.f32 %v789, 0.0
      %v870 = vmax.f32 %v791, 0.0
      %v871 = vmax.f32 %v793, 0.0
      %v872 = vmax.f32 %v795, 0.0
      %v873 = vmax.f32 %v799, 0.0
      %v874 = vmax.f32 %v801, 0.0
      %v875 = vmax.f32 %v803, 0.0
      %v876 = vmax.f32 %v805, 0.0
      %v877 = vmax.f32 %v809, 0.0
      %v878 = vmax.f32 %v811, 0.0
      %v879 = vmax.f32 %v813, 0.0
      %v880 = vmax.f32 %v815, 0.0
      %881 = vst [vmem:[#allocation2] sm:$0xff] 0.0
      %882 = vst [vmem:[#allocation2 + $0x8] sm:$0xff] 0.0
      %883 = vst [vmem:[#allocation2 + $0x10] sm:$0xff] 0.0
      %884 = vst [vmem:[#allocation2 + $0x18] sm:$0xff] 0.0
      %885 = vst [vmem:[#allocation2 + $0x20] sm:$0xff] 0.0
      %886 = vst [vmem:[#allocation2 + $0x28] sm:$0xff] 0.0
      %887 = vst [vmem:[#allocation2 + $0x30] sm:$0xff] %v817
      %888 = vst [vmem:[#allocation2 + $0x38] sm:$0xff] %v818
      %889 = vst [vmem:[#allocation2 + $0x40] sm:$0xff] %v819
      %890 = vst [vmem:[#allocation2 + $0x48] sm:$0xff] %v820
      %891 = vst [vmem:[#allocation2 + $0x50] sm:$0xff] %v821
      %892 = vst [vmem:[#allocation2 + $0x58] sm:$0xff] %v822
      %893 = vst [vmem:[#allocation2 + $0x60] sm:$0xff] %v823
      %894 = vst [vmem:[#allocation2 + $0x68] sm:$0xff] %v824
      %895 = vst [vmem:[#allocation2 + $0x70] sm:$0xff] %v825
      %896 = vst [vmem:[#allocation2 + $0x78] sm:$0xff] %v826
      %897 = vst [vmem:[#allocation2 + $0x80] sm:$0xff] %v827
      %898 = vst [vmem:[#allocation2 + $0x88] sm:$0xff] %v828
      %899 = vst [vmem:[#allocation2 + $0x90] sm:$0xff] %v829
      %900 = vst [vmem:[#allocation2 + $0x98] sm:$0xff] %v830
      %901 = vst [vmem:[#allocation2 + $0xa0] sm:$0xff] %v831
      %902 = vst [vmem:[#allocation2 + $0xa8] sm:$0xff] %v832
      %903 = vst [vmem:[#allocation2 + $0xb0] sm:$0xff] %v833
      %904 = vst [vmem:[#allocation2 + $0xb8] sm:$0xff] %v834
      %905 = vst [vmem:[#allocation2 + $0xc0] sm:$0xff] %v835
      %906 = vst [vmem:[#allocation2 + $0xc8] sm:$0xff] %v836
      %907 = vst [vmem:[#allocation2 + $0xd0] sm:$0xff] %v837
      %908 = vst [vmem:[#allocation2 + $0xd8] sm:$0xff] %v838
      %909 = vst [vmem:[#allocation2 + $0xe0] sm:$0xff] %v839
      %910 = vst [vmem:[#allocation2 + $0xe8] sm:$0xff] %v840
      %911 = vst [vmem:[#allocation2 + $0xf0] sm:$0xff] %v841
      %912 = vst [vmem:[#allocation2 + $0xf8] sm:$0xff] %v842
      %913 = vst [vmem:[#allocation2 + $0x100] sm:$0xff] %v843
      %914 = vst [vmem:[#allocation2 + $0x108] sm:$0xff] %v844
      %915 = vst [vmem:[#allocation2 + $0x110] sm:$0xff] %v845
      %916 = vst [vmem:[#allocation2 + $0x118] sm:$0xff] %v846
      %917 = vst [vmem:[#allocation2 + $0x120] sm:$0xff] %v847
      %918 = vst [vmem:[#allocation2 + $0x128] sm:$0xff] %v848
      %919 = vst [vmem:[#allocation2 + $0x130] sm:$0xff] %v849
      %920 = vst [vmem:[#allocation2 + $0x138] sm:$0xff] %v850
      %921 = vst [vmem:[#allocation2 + $0x140] sm:$0xff] %v851
      %922 = vst [vmem:[#allocation2 + $0x148] sm:$0xff] %v852
      %923 = vst [vmem:[#allocation2 + $0x150] sm:$0xff] %v853
      %924 = vst [vmem:[#allocation2 + $0x158] sm:$0xff] %v854
      %925 = vst [vmem:[#allocation2 + $0x160] sm:$0xff] %v855
      %926 = vst [vmem:[#allocation2 + $0x168] sm:$0xff] %v856
      %927 = vst [vmem:[#allocation2 + $0x170] sm:$0xff] %v857
      %928 = vst [vmem:[#allocation2 + $0x178] sm:$0xff] %v858
      %929 = vst [vmem:[#allocation2 + $0x180] sm:$0xff] %v859
      %930 = vst [vmem:[#allocation2 + $0x188] sm:$0xff] %v860
      %931 = vst [vmem:[#allocation2 + $0x190] sm:$0xff] %v861
      %932 = vst [vmem:[#allocation2 + $0x198] sm:$0xff] %v862
      %933 = vst [vmem:[#allocation2 + $0x1a0] sm:$0xff] %v863
      %934 = vst [vmem:[#allocation2 + $0x1a8] sm:$0xff] %v864
      %935 = vst [vmem:[#allocation2 + $0x1b0] sm:$0xff] %v865
      %936 = vst [vmem:[#allocation2 + $0x1b8] sm:$0xff] %v866
      %937 = vst [vmem:[#allocation2 + $0x1c0] sm:$0xff] %v867
      %938 = vst [vmem:[#allocation2 + $0x1c8] sm:$0xff] %v868
      %939 = vst [vmem:[#allocation2 + $0x1d0] sm:$0xff] %v869
      %940 = vst [vmem:[#allocation2 + $0x1d8] sm:$0xff] %v870
      %941 = vst [vmem:[#allocation2 + $0x1e0] sm:$0xff] %v871
      %942 = vst [vmem:[#allocation2 + $0x1e8] sm:$0xff] %v872
      %943 = vst [vmem:[#allocation2 + $0x1f0] sm:$0xff] %v873
      %944 = vst [vmem:[#allocation2 + $0x1f8] sm:$0xff] %v874
      %945 = vst [vmem:[#allocation2 + $0x200] sm:$0xff] %v875
      %946 = vst [vmem:[#allocation2 + $0x208] sm:$0xff] %v876
      %947 = vst [vmem:[#allocation2 + $0x210] sm:$0xff] %v877
      %948 = vst [vmem:[#allocation2 + $0x218] sm:$0xff] %v878
      %949 = vst [vmem:[#allocation2 + $0x220] sm:$0xff] %v879
      %950 = vst [vmem:[#allocation2 + $0x228] sm:$0xff] %v880
      %951 = vst [vmem:[#allocation2 + $0x230] sm:$0xff] 0.0
      %952 = vst [vmem:[#allocation2 + $0x238] sm:$0xff] 0.0
      %953 = vst [vmem:[#allocation2 + $0x240] sm:$0xff] 0.0
      %954 = vst [vmem:[#allocation2 + $0x248] sm:$0xff] 0.0
      %955 = vst [vmem:[#allocation2 + $0x250] sm:$0xff] 0.0
      %956 = vst [vmem:[#allocation2 + $0x258] sm:$0xff] 0.0
      %v957 = vld [vmem:[%s9] sm:$0xff]
      %v958 = vld [vmem:[%s9 + $0x8] sm:$0xff]
      %v959 = vld [vmem:[%s9 + $0x10] sm:$0xff]
      %v960 = vld [vmem:[%s9 + $0x18] sm:$0xff]
      %v961 = vld [vmem:[%s9 + $0x20] sm:$0xff]
      %v962 = vld [vmem:[%s9 + $0x28] sm:$0xff]
      %v963 = vld [vmem:[%s9 + $0x30] sm:$0xff]
      %v964 = vld [vmem:[%s9 + $0x38] sm:$0xff]
      %v965 = vld [vmem:[%s9 + $0x40] sm:$0xff]
      %v966 = vld [vmem:[%s9 + $0x48] sm:$0xff]
      %v967 = vld [vmem:[%s9 + $0x50] sm:$0xff]
      %v968 = vld [vmem:[%s9 + $0x58] sm:$0xff]
      %v969 = vld [vmem:[%s9 + $0x60] sm:$0xff]
      %v970 = vld [vmem:[%s9 + $0x68] sm:$0xff]
      %v971 = vld [vmem:[%s9 + $0x70] sm:$0xff]
      %v972 = vld [vmem:[%s9 + $0x78] sm:$0xff]
      %v973 = vld [vmem:[%s9 + $0x80] sm:$0xff]
      %v974 = vld [vmem:[%s9 + $0x88] sm:$0xff]
      %v975 = vld [vmem:[%s9 + $0x90] sm:$0xff]
      %v976 = vld [vmem:[%s9 + $0x98] sm:$0xff]
      %v977 = vld [vmem:[%s9 + $0xa0] sm:$0xff]
      %v978 = vld [vmem:[%s9 + $0xa8] sm:$0xff]
      %v979 = vld [vmem:[%s9 + $0xb0] sm:$0xff]
      %v980 = vld [vmem:[%s9 + $0xb8] sm:$0xff]
      %v981 = vld [vmem:[%s9 + $0xc0] sm:$0xff]
      %v982 = vld [vmem:[%s9 + $0xc8] sm:$0xff]
      %v983 = vld [vmem:[%s9 + $0xd0] sm:$0xff]
      %v984 = vld [vmem:[%s9 + $0xd8] sm:$0xff]
      %v985 = vld [vmem:[%s9 + $0xe0] sm:$0xff]
      %v986 = vld [vmem:[%s9 + $0xe8] sm:$0xff]
      %v987 = vld [vmem:[%s9 + $0xf0] sm:$0xff]
      %v988 = vld [vmem:[%s9 + $0xf8] sm:$0xff]
      %v989 = vld [vmem:[%s10] sm:$0xff]
      %v990 = vld [vmem:[%s10 + $0x8] sm:$0xff]
      %v991 = vld [vmem:[%s10 + $0x10] sm:$0xff]
      %v992 = vld [vmem:[%s10 + $0x18] sm:$0xff]
      %v993 = vld [vmem:[%s10 + $0x20] sm:$0xff]
      %v994 = vld [vmem:[%s10 + $0x28] sm:$0xff]
      %v995 = vld [vmem:[%s10 + $0x30] sm:$0xff]
      %v996 = vld [vmem:[%s10 + $0x38] sm:$0xff]
      %v997 = vld [vmem:[%s10 + $0x40] sm:$0xff]
      %v998 = vld [vmem:[%s10 + $0x48] sm:$0xff]
      %v999 = vld [vmem:[%s10 + $0x50] sm:$0xff]
      %v1000 = vld [vmem:[%s10 + $0x58] sm:$0xff]
      %v1001 = vld [vmem:[%s10 + $0x60] sm:$0xff]
      %v1002 = vld [vmem:[%s10 + $0x68] sm:$0xff]
      %v1003 = vld [vmem:[%s10 + $0x70] sm:$0xff]
      %v1004 = vld [vmem:[%s10 + $0x78] sm:$0xff]
      %v1005 = vld [vmem:[%s10 + $0x80] sm:$0xff]
      %v1006 = vld [vmem:[%s10 + $0x88] sm:$0xff]
      %v1007 = vld [vmem:[%s10 + $0x90] sm:$0xff]
      %v1008 = vld [vmem:[%s10 + $0x98] sm:$0xff]
      %v1009 = vld [vmem:[%s10 + $0xa0] sm:$0xff]
      %v1010 = vld [vmem:[%s10 + $0xa8] sm:$0xff]
      %v1011 = vld [vmem:[%s10 + $0xb0] sm:$0xff]
      %v1012 = vld [vmem:[%s10 + $0xb8] sm:$0xff]
      %v1013 = vld [vmem:[%s10 + $0xc0] sm:$0xff]
      %v1014 = vld [vmem:[%s10 + $0xc8] sm:$0xff]
      %v1015 = vld [vmem:[%s10 + $0xd0] sm:$0xff]
      %v1016 = vld [vmem:[%s10 + $0xd8] sm:$0xff]
      %v1017 = vld [vmem:[%s10 + $0xe0] sm:$0xff]
      %v1018 = vld [vmem:[%s10 + $0xe8] sm:$0xff]
      %v1019 = vld [vmem:[%s10 + $0xf0] sm:$0xff]
      %v1020 = vld [vmem:[%s10 + $0xf8] sm:$0xff]
      %v1021 = vld [vmem:[#allocation2] sm:$0x80]
      %v1022 = vld [vmem:[#allocation2 + $0x8] sm:$0x80]
      %v1023 = vld [vmem:[#allocation2 + $0x10] sm:$0xff]
      %v1024 = vld [vmem:[#allocation2 + $0x18] sm:$0xff]
      %v1025 = vld [vmem:[#allocation2 + $0x20] sm:$0xff]
      %v1026 = vld [vmem:[#allocation2 + $0x28] sm:$0xff]
      %v1027 = vld [vmem:[#allocation2 + $0x30] sm:$0xff]
      %v1028 = vld [vmem:[#allocation2 + $0x38] sm:$0xff]
      %v1029 = vld [vmem:[#allocation2 + $0x40] sm:$0xff]
      %v1030 = vld [vmem:[#allocation2 + $0x48] sm:$0xff]
      %v1031 = vld [vmem:[#allocation2 + $0x50] sm:$0xff]
      %v1032 = vld [vmem:[#allocation2 + $0x58] sm:$0xff]
      %v1033 = vld [vmem:[#allocation2 + $0x60] sm:$0xff]
      %v1034 = vld [vmem:[#allocation2 + $0x68] sm:$0xff]
      %v1035 = vld [vmem:[#allocation2 + $0x70] sm:$0xff]
      %v1036 = vld [vmem:[#allocation2 + $0x78] sm:$0xff]
      %v1037 = vld [vmem:[#allocation2 + $0x80] sm:$0xff]
      %v1038 = vld [vmem:[#allocation2 + $0x88] sm:$0xff]
      %v1039 = vld [vmem:[#allocation2 + $0x90] sm:$0xff]
      %v1040 = vld [vmem:[#allocation2 + $0x98] sm:$0xff]
      %v1041 = vld [vmem:[#allocation2 + $0xa0] sm:$0xff]
      %v1042 = vld [vmem:[#allocation2 + $0xa8] sm:$0xff]
      %v1043 = vld [vmem:[#allocation2 + $0xb0] sm:$0xff]
      %v1044 = vld [vmem:[#allocation2 + $0xb8] sm:$0xff]
      %v1045 = vld [vmem:[#allocation2 + $0xc0] sm:$0xff]
      %v1046 = vld [vmem:[#allocation2 + $0xc8] sm:$0xff]
      %v1047 = vld [vmem:[#allocation2 + $0xd0] sm:$0xff]
      %v1048 = vld [vmem:[#allocation2 + $0xd8] sm:$0xff]
      %v1049 = vld [vmem:[#allocation2 + $0xe0] sm:$0xff]
      %v1050 = vld [vmem:[#allocation2 + $0xe8] sm:$0xff]
      %v1051 = vld [vmem:[#allocation2 + $0xf0] sm:$0xff]
      %v1052 = vld [vmem:[#allocation2 + $0xf8] sm:$0xff]
      %v1053 = vld [vmem:[#allocation2 + $0x100] sm:$0xff]
      %v1054 = vld [vmem:[#allocation2 + $0x108] sm:$0xff]
      %v1055 = vld [vmem:[#allocation2 + $0x110] sm:$0xff]
      %v1056 = vld [vmem:[#allocation2 + $0x118] sm:$0xff]
      %v1057 = vld [vmem:[#allocation2 + $0x120] sm:$0xff]
      %v1058 = vld [vmem:[#allocation2 + $0x128] sm:$0xff]
      %v1059 = vld [vmem:[#allocation2 + $0x130] sm:$0xff]
      %v1060 = vld [vmem:[#allocation2 + $0x138] sm:$0xff]
      %v1061 = vld [vmem:[#allocation2 + $0x140] sm:$0xff]
      %v1062 = vld [vmem:[#allocation2 + $0x148] sm:$0xff]
      %v1063 = vld [vmem:[#allocation2 + $0x150] sm:$0xff]
      %v1064 = vld [vmem:[#allocation2 + $0x158] sm:$0xff]
      %v1065 = vld [vmem:[#allocation2 + $0x160] sm:$0xff]
      %v1066 = vld [vmem:[#allocation2 + $0x168] sm:$0xff]
      %v1067 = vld [vmem:[#allocation2 + $0x170] sm:$0xff]
      %v1068 = vld [vmem:[#allocation2 + $0x178] sm:$0xff]
      %v1069 = vld [vmem:[#allocation2 + $0x180] sm:$0xff]
      %v1070 = vld [vmem:[#allocation2 + $0x188] sm:$0xff]
      %v1071 = vld [vmem:[#allocation2 + $0x190] sm:$0xff]
      %v1072 = vld [vmem:[#allocation2 + $0x198] sm:$0xff]
      %v1073 = vld [vmem:[#allocation2 + $0x1a0] sm:$0xff]
      %v1074 = vld [vmem:[#allocation2 + $0x1a8] sm:$0xff]
      %v1075 = vld [vmem:[#allocation2 + $0x1b0] sm:$0xff]
      %v1076 = vld [vmem:[#allocation2 + $0x1b8] sm:$0xff]
      %v1077 = vld [vmem:[#allocation2 + $0x1c0] sm:$0xff]
      %v1078 = vld [vmem:[#allocation2 + $0x1c8] sm:$0xff]
      %v1079 = vld [vmem:[#allocation2 + $0x1d0] sm:$0xff]
      %v1080 = vld [vmem:[#allocation2 + $0x1d8] sm:$0xff]
      %v1081 = vld [vmem:[#allocation2 + $0x1e0] sm:$0xff]
      %v1082 = vld [vmem:[#allocation2 + $0x1e8] sm:$0xff]
      %v1083 = vld [vmem:[#allocation2 + $0x1f0] sm:$0xff]
      %v1084 = vld [vmem:[#allocation2 + $0x1f8] sm:$0xff]
      %v1085 = vld [vmem:[#allocation2 + $0x200] sm:$0x7f]
      %v1086 = vld [vmem:[#allocation2 + $0x208] sm:$0x7f]
      %1088 = vset.pattern.permute.xlu0 0
      %1089 = vperm.xlu0 %1088, %v957
      %v1090 = vpop.permute.xlu0 %1089
      %1092 = vset.pattern.permute.xlu0 0
      %1093 = vperm.xlu0 %1092, %v958
      %v1094 = vpop.permute.xlu0 %1093
      %1096 = vset.pattern.permute.xlu0 0
      %1097 = vperm.xlu0 %1096, %v959
      %v1098 = vpop.permute.xlu0 %1097
      %1100 = vset.pattern.permute.xlu0 0
      %1101 = vperm.xlu0 %1100, %v960
      %v1102 = vpop.permute.xlu0 %1101
      %1104 = vset.pattern.permute.xlu0 0
      %1105 = vperm.xlu0 %1104, %v961
      %v1106 = vpop.permute.xlu0 %1105
      %1108 = vset.pattern.permute.xlu0 0
      %1109 = vperm.xlu0 %1108, %v962
      %v1110 = vpop.permute.xlu0 %1109
      %1112 = vset.pattern.permute.xlu0 0
      %1113 = vperm.xlu0 %1112, %v963
      %v1114 = vpop.permute.xlu0 %1113
      %1116 = vset.pattern.permute.xlu0 0
      %1117 = vperm.xlu0 %1116, %v964
      %v1118 = vpop.permute.xlu0 %1117
      %1120 = vset.pattern.permute.xlu0 0
      %1121 = vperm.xlu0 %1120, %v965
      %v1122 = vpop.permute.xlu0 %1121
      %1124 = vset.pattern.permute.xlu0 0
      %1125 = vperm.xlu0 %1124, %v966
      %v1126 = vpop.permute.xlu0 %1125
      %1128 = vset.pattern.permute.xlu0 0
      %1129 = vperm.xlu0 %1128, %v967
      %v1130 = vpop.permute.xlu0 %1129
      %1132 = vset.pattern.permute.xlu0 0
      %1133 = vperm.xlu0 %1132, %v968
      %v1134 = vpop.permute.xlu0 %1133
      %1136 = vset.pattern.permute.xlu0 0
      %1137 = vperm.xlu0 %1136, %v969
      %v1138 = vpop.permute.xlu0 %1137
      %1140 = vset.pattern.permute.xlu0 0
      %1141 = vperm.xlu0 %1140, %v970
      %v1142 = vpop.permute.xlu0 %1141
      %1144 = vset.pattern.permute.xlu0 0
      %1145 = vperm.xlu0 %1144, %v971
      %v1146 = vpop.permute.xlu0 %1145
      %1148 = vset.pattern.permute.xlu0 0
      %1149 = vperm.xlu0 %1148, %v972
      %v1150 = vpop.permute.xlu0 %1149
      %1152 = vset.pattern.permute.xlu0 0
      %1153 = vperm.xlu0 %1152, %v973
      %v1154 = vpop.permute.xlu0 %1153
      %1156 = vset.pattern.permute.xlu0 0
      %1157 = vperm.xlu0 %1156, %v974
      %v1158 = vpop.permute.xlu0 %1157
      %1160 = vset.pattern.permute.xlu0 0
      %1161 = vperm.xlu0 %1160, %v975
      %v1162 = vpop.permute.xlu0 %1161
      %1164 = vset.pattern.permute.xlu0 0
      %1165 = vperm.xlu0 %1164, %v976
      %v1166 = vpop.permute.xlu0 %1165
      %1168 = vset.pattern.permute.xlu0 0
      %1169 = vperm.xlu0 %1168, %v977
      %v1170 = vpop.permute.xlu0 %1169
      %1172 = vset.pattern.permute.xlu0 0
      %1173 = vperm.xlu0 %1172, %v978
      %v1174 = vpop.permute.xlu0 %1173
      %1176 = vset.pattern.permute.xlu0 0
      %1177 = vperm.xlu0 %1176, %v979
      %v1178 = vpop.permute.xlu0 %1177
      %1180 = vset.pattern.permute.xlu0 0
      %1181 = vperm.xlu0 %1180, %v980
      %v1182 = vpop.permute.xlu0 %1181
      %1184 = vset.pattern.permute.xlu0 0
      %1185 = vperm.xlu0 %1184, %v981
      %v1186 = vpop.permute.xlu0 %1185
      %1188 = vset.pattern.permute.xlu0 0
      %1189 = vperm.xlu0 %1188, %v982
      %v1190 = vpop.permute.xlu0 %1189
      %1192 = vset.pattern.permute.xlu0 0
      %1193 = vperm.xlu0 %1192, %v983
      %v1194 = vpop.permute.xlu0 %1193
      %1196 = vset.pattern.permute.xlu0 0
      %1197 = vperm.xlu0 %1196, %v984
      %v1198 = vpop.permute.xlu0 %1197
      %1200 = vset.pattern.permute.xlu0 0
      %1201 = vperm.xlu0 %1200, %v985
      %v1202 = vpop.permute.xlu0 %1201
      %1204 = vset.pattern.permute.xlu0 0
      %1205 = vperm.xlu0 %1204, %v986
      %v1206 = vpop.permute.xlu0 %1205
      %1208 = vset.pattern.permute.xlu0 0
      %1209 = vperm.xlu0 %1208, %v987
      %v1210 = vpop.permute.xlu0 %1209
      %1212 = vset.pattern.permute.xlu0 0
      %1213 = vperm.xlu0 %1212, %v988
      %v1214 = vpop.permute.xlu0 %1213
      %vm1215 = vcmask 1046528
      %v1216 = vrot.slane %v1090, 1
      %v1217 = vrot.slane %v1094, 1
      %v1218 = vsel %vm1215, %v1216, %v1217
      %v1219 = vrot.slane %v1098, 1
      %v1220 = vsel %vm1215, %v1217, %v1219
      %v1221 = vrot.slane %v1102, 1
      %v1222 = vsel %vm1215, %v1219, %v1221
      %v1223 = vrot.slane %v1106, 1
      %v1224 = vsel %vm1215, %v1221, %v1223
      %v1225 = vrot.slane %v1110, 1
      %v1226 = vsel %vm1215, %v1223, %v1225
      %v1227 = vrot.slane %v1114, 1
      %v1228 = vsel %vm1215, %v1225, %v1227
      %v1229 = vrot.slane %v1118, 1
      %v1230 = vsel %vm1215, %v1227, %v1229
      %v1231 = vrot.slane %v1122, 1
      %v1232 = vsel %vm1215, %v1229, %v1231
      %v1233 = vrot.slane %v1126, 1
      %v1234 = vsel %vm1215, %v1231, %v1233
      %v1235 = vrot.slane %v1130, 1
      %v1236 = vsel %vm1215, %v1233, %v1235
      %v1237 = vrot.slane %v1134, 1
      %v1238 = vsel %vm1215, %v1235, %v1237
      %v1239 = vrot.slane %v1138, 1
      %v1240 = vsel %vm1215, %v1237, %v1239
      %v1241 = vrot.slane %v1142, 1
      %v1242 = vsel %vm1215, %v1239, %v1241
      %v1243 = vrot.slane %v1146, 1
      %v1244 = vsel %vm1215, %v1241, %v1243
      %v1245 = vrot.slane %v1150, 1
      %v1246 = vsel %vm1215, %v1243, %v1245
      %v1247 = vrot.slane %v1154, 1
      %v1248 = vsel %vm1215, %v1245, %v1247
      %v1249 = vrot.slane %v1158, 1
      %v1250 = vsel %vm1215, %v1247, %v1249
      %v1251 = vrot.slane %v1162, 1
      %v1252 = vsel %vm1215, %v1249, %v1251
      %v1253 = vrot.slane %v1166, 1
      %v1254 = vsel %vm1215, %v1251, %v1253
      %v1255 = vrot.slane %v1170, 1
      %v1256 = vsel %vm1215, %v1253, %v1255
      %v1257 = vrot.slane %v1174, 1
      %v1258 = vsel %vm1215, %v1255, %v1257
      %v1259 = vrot.slane %v1178, 1
      %v1260 = vsel %vm1215, %v1257, %v1259
      %v1261 = vrot.slane %v1182, 1
      %v1262 = vsel %vm1215, %v1259, %v1261
      %v1263 = vrot.slane %v1186, 1
      %v1264 = vsel %vm1215, %v1261, %v1263
      %v1265 = vrot.slane %v1190, 1
      %v1266 = vsel %vm1215, %v1263, %v1265
      %v1267 = vrot.slane %v1194, 1
      %v1268 = vsel %vm1215, %v1265, %v1267
      %v1269 = vrot.slane %v1198, 1
      %v1270 = vsel %vm1215, %v1267, %v1269
      %v1271 = vrot.slane %v1202, 1
      %v1272 = vsel %vm1215, %v1269, %v1271
      %v1273 = vrot.slane %v1206, 1
      %v1274 = vsel %vm1215, %v1271, %v1273
      %v1275 = vrot.slane %v1210, 1
      %v1276 = vsel %vm1215, %v1273, %v1275
      %v1277 = vrot.slane %v1214, 1
      %v1278 = vsel %vm1215, %v1275, %v1277
      %v1312 = vmul.f32 %v1021, %v1216
      %v1313 = vmul.f32 %v1022, %v1216
      %v1314 = vmul.f32 %v1023, %v1218
      %v1315 = vmul.f32 %v1024, %v1218
      %v1316 = vmul.f32 %v1025, %v1220
      %v1317 = vmul.f32 %v1026, %v1220
      %v1318 = vmul.f32 %v1027, %v1222
      %v1319 = vmul.f32 %v1028, %v1222
      %v1320 = vmul.f32 %v1029, %v1224
      %v1321 = vmul.f32 %v1030, %v1224
      %v1322 = vmul.f32 %v1031, %v1226
      %v1323 = vmul.f32 %v1032, %v1226
      %v1324 = vmul.f32 %v1033, %v1228
      %v1325 = vmul.f32 %v1034, %v1228
      %v1326 = vmul.f32 %v1035, %v1230
      %v1327 = vmul.f32 %v1036, %v1230
      %v1328 = vmul.f32 %v1037, %v1232
      %v1329 = vmul.f32 %v1038, %v1232
      %v1330 = vmul.f32 %v1039, %v1234
      %v1331 = vmul.f32 %v1040, %v1234
      %v1332 = vmul.f32 %v1041, %v1236
      %v1333 = vmul.f32 %v1042, %v1236
      %v1334 = vmul.f32 %v1043, %v1238
      %v1335 = vmul.f32 %v1044, %v1238
      %v1336 = vmul.f32 %v1045, %v1240
      %v1337 = vmul.f32 %v1046, %v1240
      %v1338 = vmul.f32 %v1047, %v1242
      %v1339 = vmul.f32 %v1048, %v1242
      %v1340 = vmul.f32 %v1049, %v1244
      %v1341 = vmul.f32 %v1050, %v1244
      %v1342 = vmul.f32 %v1051, %v1246
      %v1343 = vmul.f32 %v1052, %v1246
      %v1344 = vmul.f32 %v1053, %v1248
      %v1345 = vmul.f32 %v1054, %v1248
      %v1346 = vmul.f32 %v1055, %v1250
      %v1347 = vmul.f32 %v1056, %v1250
      %v1348 = vmul.f32 %v1057, %v1252
      %v1349 = vmul.f32 %v1058, %v1252
      %v1350 = vmul.f32 %v1059, %v1254
      %v1351 = vmul.f32 %v1060, %v1254
      %v1352 = vmul.f32 %v1061, %v1256
      %v1353 = vmul.f32 %v1062, %v1256
      %v1354 = vmul.f32 %v1063, %v1258
      %v1355 = vmul.f32 %v1064, %v1258
      %v1356 = vmul.f32 %v1065, %v1260
      %v1357 = vmul.f32 %v1066, %v1260
      %v1358 = vmul.f32 %v1067, %v1262
      %v1359 = vmul.f32 %v1068, %v1262
      %v1360 = vmul.f32 %v1069, %v1264
      %v1361 = vmul.f32 %v1070, %v1264
      %v1362 = vmul.f32 %v1071, %v1266
      %v1363 = vmul.f32 %v1072, %v1266
      %v1364 = vmul.f32 %v1073, %v1268
      %v1365 = vmul.f32 %v1074, %v1268
      %v1366 = vmul.f32 %v1075, %v1270
      %v1367 = vmul.f32 %v1076, %v1270
      %v1368 = vmul.f32 %v1077, %v1272
      %v1369 = vmul.f32 %v1078, %v1272
      %v1370 = vmul.f32 %v1079, %v1274
      %v1371 = vmul.f32 %v1080, %v1274
      %v1372 = vmul.f32 %v1081, %v1276
      %v1373 = vmul.f32 %v1082, %v1276
      %v1374 = vmul.f32 %v1083, %v1278
      %v1375 = vmul.f32 %v1084, %v1278
      %v1376 = vmul.f32 %v1085, %v1277
      %v1377 = vmul.f32 %v1086, %v1277
      %v1378 = vpack.c.bf16 %v1314, %v1312
      %v1379 = vpack.c.bf16 %v1315, %v1313
      %v1380 = vpack.c.bf16 %v1318, %v1316
      %v1381 = vpack.c.bf16 %v1319, %v1317
      %v1382 = vpack.c.bf16 %v1322, %v1320
      %v1383 = vpack.c.bf16 %v1323, %v1321
      %v1384 = vpack.c.bf16 %v1326, %v1324
      %v1385 = vpack.c.bf16 %v1327, %v1325
      %v1386 = vpack.c.bf16 %v1330, %v1328
      %v1387 = vpack.c.bf16 %v1331, %v1329
      %v1388 = vpack.c.bf16 %v1334, %v1332
      %v1389 = vpack.c.bf16 %v1335, %v1333
      %v1390 = vpack.c.bf16 %v1338, %v1336
      %v1391 = vpack.c.bf16 %v1339, %v1337
      %v1392 = vpack.c.bf16 %v1342, %v1340
      %v1393 = vpack.c.bf16 %v1343, %v1341
      %v1394 = vpack.c.bf16 %v1346, %v1344
      %v1395 = vpack.c.bf16 %v1347, %v1345
      %v1396 = vpack.c.bf16 %v1350, %v1348
      %v1397 = vpack.c.bf16 %v1351, %v1349
      %v1398 = vpack.c.bf16 %v1354, %v1352
      %v1399 = vpack.c.bf16 %v1355, %v1353
      %v1400 = vpack.c.bf16 %v1358, %v1356
      %v1401 = vpack.c.bf16 %v1359, %v1357
      %v1402 = vpack.c.bf16 %v1362, %v1360
      %v1403 = vpack.c.bf16 %v1363, %v1361
      %v1404 = vpack.c.bf16 %v1366, %v1364
      %v1405 = vpack.c.bf16 %v1367, %v1365
      %v1406 = vpack.c.bf16 %v1370, %v1368
      %v1407 = vpack.c.bf16 %v1371, %v1369
      %v1408 = vpack.c.bf16 %v1374, %v1372
      %v1409 = vpack.c.bf16 %v1375, %v1373
      %v1410 = vpack.c.bf16 %v1376, %v1376
      %v1411 = vpack.c.bf16 %v1377, %v1377
      %v1412 = vld [vmem:[%s3] sm:$0xff]
      %v1413 = vld [vmem:[%s3 + $0x8] sm:$0xff]
      %v1414 = vld [vmem:[%s3 + $0x10] sm:$0xff]
      %v1415 = vld [vmem:[%s3 + $0x18] sm:$0xff]
      %v1416 = vld [vmem:[%s3 + $0x20] sm:$0xff]
      %v1417 = vld [vmem:[%s3 + $0x28] sm:$0xff]
      %v1418 = vld [vmem:[%s3 + $0x30] sm:$0xff]
      %v1419 = vld [vmem:[%s3 + $0x38] sm:$0xff]
      %v1420 = vld [vmem:[%s3 + $0x40] sm:$0xff]
      %v1421 = vld [vmem:[%s3 + $0x48] sm:$0xff]
      %v1422 = vld [vmem:[%s3 + $0x50] sm:$0xff]
      %v1423 = vld [vmem:[%s3 + $0x58] sm:$0xff]
      %v1424 = vld [vmem:[%s3 + $0x60] sm:$0xff]
      %v1425 = vld [vmem:[%s3 + $0x68] sm:$0xff]
      %v1426 = vld [vmem:[%s3 + $0x70] sm:$0xff]
      %v1427 = vld [vmem:[%s3 + $0x78] sm:$0xff]
      %v1428 = vld [vmem:[%s3 + $0x80] sm:$0xff]
      %v1429 = vld [vmem:[%s3 + $0x88] sm:$0xff]
      %v1430 = vld [vmem:[%s3 + $0x90] sm:$0xff]
      %v1431 = vld [vmem:[%s3 + $0x98] sm:$0xff]
      %v1432 = vld [vmem:[%s3 + $0xa0] sm:$0xff]
      %v1433 = vld [vmem:[%s3 + $0xa8] sm:$0xff]
      %v1434 = vld [vmem:[%s3 + $0xb0] sm:$0xff]
      %v1435 = vld [vmem:[%s3 + $0xb8] sm:$0xff]
      %v1436 = vld [vmem:[%s3 + $0xc0] sm:$0xff]
      %v1437 = vld [vmem:[%s3 + $0xc8] sm:$0xff]
      %v1438 = vld [vmem:[%s3 + $0xd0] sm:$0xff]
      %v1439 = vld [vmem:[%s3 + $0xd8] sm:$0xff]
      %v1440 = vld [vmem:[%s3 + $0xe0] sm:$0xff]
      %v1441 = vld [vmem:[%s3 + $0xe8] sm:$0xff]
      %v1442 = vld [vmem:[%s3 + $0xf0] sm:$0xff]
      %v1443 = vld [vmem:[%s3 + $0xf8] sm:$0xff]
      %v1444 = vld [vmem:[#allocation2 + $0x200] sm:$0xff]
      %v1445 = vld [vmem:[#allocation2 + $0x208] sm:$0xff]
      %v1446 = vpack.c.bf16 %v1025, %v1023
      %v1447 = vpack.c.bf16 %v1026, %v1024
      %v1448 = vpack.c.bf16 %v1029, %v1027
      %v1449 = vpack.c.bf16 %v1030, %v1028
      %v1450 = vpack.c.bf16 %v1033, %v1031
      %v1451 = vpack.c.bf16 %v1034, %v1032
      %v1452 = vpack.c.bf16 %v1037, %v1035
      %v1453 = vpack.c.bf16 %v1038, %v1036
      %v1454 = vpack.c.bf16 %v1041, %v1039
      %v1455 = vpack.c.bf16 %v1042, %v1040
      %v1456 = vpack.c.bf16 %v1045, %v1043
      %v1457 = vpack.c.bf16 %v1046, %v1044
      %v1458 = vpack.c.bf16 %v1049, %v1047
      %v1459 = vpack.c.bf16 %v1050, %v1048
      %v1460 = vpack.c.bf16 %v1053, %v1051
      %v1461 = vpack.c.bf16 %v1054, %v1052
      %v1462 = vpack.c.bf16 %v1057, %v1055
      %v1463 = vpack.c.bf16 %v1058, %v1056
      %v1464 = vpack.c.bf16 %v1061, %v1059
      %v1465 = vpack.c.bf16 %v1062, %v1060
      %v1466 = vpack.c.bf16 %v1065, %v1063
      %v1467 = vpack.c.bf16 %v1066, %v1064
      %v1468 = vpack.c.bf16 %v1069, %v1067
      %v1469 = vpack.c.bf16 %v1070, %v1068
      %v1470 = vpack.c.bf16 %v1073, %v1071
      %v1471 = vpack.c.bf16 %v1074, %v1072
      %v1472 = vpack.c.bf16 %v1077, %v1075
      %v1473 = vpack.c.bf16 %v1078, %v1076
      %v1474 = vpack.c.bf16 %v1081, %v1079
      %v1475 = vpack.c.bf16 %v1082, %v1080
      %v1476 = vpack.c.bf16 %v1444, %v1083
      %v1477 = vpack.c.bf16 %v1445, %v1084
      %s1478 = scalar_lea.vmem %s3, 256
      %v1479 = vld [vmem:[%s1478] sm:$0xff]
      %v1480 = vld [vmem:[%s1478 + $0x8] sm:$0xff]
      %v1481 = vld [vmem:[%s1478 + $0x10] sm:$0xff]
      %v1482 = vld [vmem:[%s1478 + $0x18] sm:$0xff]
      %v1483 = vld [vmem:[%s1478 + $0x20] sm:$0xff]
      %v1484 = vld [vmem:[%s1478 + $0x28] sm:$0xff]
      %v1485 = vld [vmem:[%s1478 + $0x30] sm:$0xff]
      %v1486 = vld [vmem:[%s1478 + $0x38] sm:$0xff]
      %v1487 = vld [vmem:[%s1478 + $0x40] sm:$0xff]
      %v1488 = vld [vmem:[%s1478 + $0x48] sm:$0xff]
      %v1489 = vld [vmem:[%s1478 + $0x50] sm:$0xff]
      %v1490 = vld [vmem:[%s1478 + $0x58] sm:$0xff]
      %v1491 = vld [vmem:[%s1478 + $0x60] sm:$0xff]
      %v1492 = vld [vmem:[%s1478 + $0x68] sm:$0xff]
      %v1493 = vld [vmem:[%s1478 + $0x70] sm:$0xff]
      %v1494 = vld [vmem:[%s1478 + $0x78] sm:$0xff]
      %v1495 = vld [vmem:[%s1478 + $0x80] sm:$0xff]
      %v1496 = vld [vmem:[%s1478 + $0x88] sm:$0xff]
      %v1497 = vld [vmem:[%s1478 + $0x90] sm:$0xff]
      %v1498 = vld [vmem:[%s1478 + $0x98] sm:$0xff]
      %v1499 = vld [vmem:[%s1478 + $0xa0] sm:$0xff]
      %v1500 = vld [vmem:[%s1478 + $0xa8] sm:$0xff]
      %v1501 = vld [vmem:[%s1478 + $0xb0] sm:$0xff]
      %v1502 = vld [vmem:[%s1478 + $0xb8] sm:$0xff]
      %v1503 = vld [vmem:[%s1478 + $0xc0] sm:$0xff]
      %v1504 = vld [vmem:[%s1478 + $0xc8] sm:$0xff]
      %v1505 = vld [vmem:[%s1478 + $0xd0] sm:$0xff]
      %v1506 = vld [vmem:[%s1478 + $0xd8] sm:$0xff]
      %v1507 = vld [vmem:[%s1478 + $0xe0] sm:$0xff]
      %v1508 = vld [vmem:[%s1478 + $0xe8] sm:$0xff]
      %v1509 = vld [vmem:[%s1478 + $0xf0] sm:$0xff]
      %v1510 = vld [vmem:[%s1478 + $0xf8] sm:$0xff]
      %v1543 = vunpack.c.l.b16 %v1479
      %v1544 = vunpack.c.h.b16 %v1479
      %v1545 = vunpack.c.l.b16 %v1480
      %v1546 = vunpack.c.h.b16 %v1480
      %v1547 = vunpack.c.l.b16 %v1481
      %v1548 = vunpack.c.h.b16 %v1481
      %v1549 = vunpack.c.l.b16 %v1482
      %v1550 = vunpack.c.h.b16 %v1482
      %v1551 = vunpack.c.l.b16 %v1483
      %v1552 = vunpack.c.h.b16 %v1483
      %v1553 = vunpack.c.l.b16 %v1484
      %v1554 = vunpack.c.h.b16 %v1484
      %v1555 = vunpack.c.l.b16 %v1485
      %v1556 = vunpack.c.h.b16 %v1485
      %v1557 = vunpack.c.l.b16 %v1486
      %v1558 = vunpack.c.h.b16 %v1486
      %v1559 = vunpack.c.l.b16 %v1487
      %v1560 = vunpack.c.h.b16 %v1487
      %v1561 = vunpack.c.l.b16 %v1488
      %v1562 = vunpack.c.h.b16 %v1488
      %v1563 = vunpack.c.l.b16 %v1489
      %v1564 = vunpack.c.h.b16 %v1489
      %v1565 = vunpack.c.l.b16 %v1490
      %v1566 = vunpack.c.h.b16 %v1490
      %v1567 = vunpack.c.l.b16 %v1491
      %v1568 = vunpack.c.h.b16 %v1491
      %v1569 = vunpack.c.l.b16 %v1492
      %v1570 = vunpack.c.h.b16 %v1492
      %v1571 = vunpack.c.l.b16 %v1493
      %v1572 = vunpack.c.h.b16 %v1493
      %v1573 = vunpack.c.l.b16 %v1494
      %v1574 = vunpack.c.h.b16 %v1494
      %v1575 = vunpack.c.l.b16 %v1495
      %v1576 = vunpack.c.h.b16 %v1495
      %v1577 = vunpack.c.l.b16 %v1496
      %v1578 = vunpack.c.h.b16 %v1496
      %v1579 = vunpack.c.l.b16 %v1497
      %v1580 = vunpack.c.h.b16 %v1497
      %v1581 = vunpack.c.l.b16 %v1498
      %v1582 = vunpack.c.h.b16 %v1498
      %v1583 = vunpack.c.l.b16 %v1499
      %v1584 = vunpack.c.h.b16 %v1499
      %v1585 = vunpack.c.l.b16 %v1500
      %v1586 = vunpack.c.h.b16 %v1500
      %v1587 = vunpack.c.l.b16 %v1501
      %v1588 = vunpack.c.h.b16 %v1501
      %v1589 = vunpack.c.l.b16 %v1502
      %v1590 = vunpack.c.h.b16 %v1502
      %v1591 = vunpack.c.l.b16 %v1503
      %v1592 = vunpack.c.h.b16 %v1503
      %v1593 = vunpack.c.l.b16 %v1504
      %v1594 = vunpack.c.h.b16 %v1504
      %v1595 = vunpack.c.l.b16 %v1505
      %v1596 = vunpack.c.h.b16 %v1505
      %v1597 = vunpack.c.l.b16 %v1506
      %v1598 = vunpack.c.h.b16 %v1506
      %v1599 = vunpack.c.l.b16 %v1507
      %v1600 = vunpack.c.h.b16 %v1507
      %v1601 = vunpack.c.l.b16 %v1508
      %v1602 = vunpack.c.h.b16 %v1508
      %v1603 = vunpack.c.l.b16 %v1509
      %v1604 = vunpack.c.h.b16 %v1509
      %v1605 = vunpack.c.l.b16 %v1510
      %v1606 = vunpack.c.h.b16 %v1510
      %v1607 = vpack.c.b16 %v1545, %v1543
      %v1608 = vpack.c.b16 %v1546, %v1544
      %v1609 = vpack.c.b16 %v1549, %v1547
      %v1610 = vpack.c.b16 %v1550, %v1548
      %v1611 = vpack.c.b16 %v1553, %v1551
      %v1612 = vpack.c.b16 %v1554, %v1552
      %v1613 = vpack.c.b16 %v1557, %v1555
      %v1614 = vpack.c.b16 %v1558, %v1556
      %v1615 = vpack.c.b16 %v1561, %v1559
      %v1616 = vpack.c.b16 %v1562, %v1560
      %v1617 = vpack.c.b16 %v1565, %v1563
      %v1618 = vpack.c.b16 %v1566, %v1564
      %v1619 = vpack.c.b16 %v1569, %v1567
      %v1620 = vpack.c.b16 %v1570, %v1568
      %v1621 = vpack.c.b16 %v1573, %v1571
      %v1622 = vpack.c.b16 %v1574, %v1572
      %v1623 = vpack.c.b16 %v1577, %v1575
      %v1624 = vpack.c.b16 %v1578, %v1576
      %v1625 = vpack.c.b16 %v1581, %v1579
      %v1626 = vpack.c.b16 %v1582, %v1580
      %v1627 = vpack.c.b16 %v1585, %v1583
      %v1628 = vpack.c.b16 %v1586, %v1584
      %v1629 = vpack.c.b16 %v1589, %v1587
      %v1630 = vpack.c.b16 %v1590, %v1588
      %v1631 = vpack.c.b16 %v1593, %v1591
      %v1632 = vpack.c.b16 %v1594, %v1592
      %v1633 = vpack.c.b16 %v1597, %v1595
      %v1634 = vpack.c.b16 %v1598, %v1596
      %v1635 = vpack.c.b16 %v1601, %v1599
      %v1636 = vpack.c.b16 %v1602, %v1600
      %v1637 = vpack.c.b16 %v1605, %v1603
      %v1638 = vpack.c.b16 %v1606, %v1604
      %1671 = vmatprep.subr.bf16.mxu0 %v1608
      %1672 = vmatpush1.bf16.msra.mxu0 %v1607
      %1673 = vmatprep.subr.bf16.mxu0 %v1610
      %1674 = vmatpush1.bf16.msra.mxu0 %v1609
      %1675 = vmatprep.subr.bf16.mxu0 %v1612
      %1676 = vmatpush1.bf16.msra.mxu0 %v1611
      %1677 = vmatprep.subr.bf16.mxu0 %v1614
      %1678 = vmatpush1.bf16.msra.mxu0 %v1613
      %1679 = vmatprep.subr.bf16.mxu0 %v1616
      %1680 = vmatpush1.bf16.msra.mxu0 %v1615
      %1681 = vmatprep.subr.bf16.mxu0 %v1618
      %1682 = vmatpush1.bf16.msra.mxu0 %v1617
      %1683 = vmatprep.subr.bf16.mxu0 %v1620
      %1684 = vmatpush1.bf16.msra.mxu0 %v1619
      %1685 = vmatprep.subr.bf16.mxu0 %v1622
      %1686 = vmatpush1.bf16.msra.mxu0 %v1621
      %1687 = vmatprep.subr.bf16.mxu0 %v1624
      %1688 = vmatpush1.bf16.msra.mxu0 %v1623
      %1689 = vmatprep.subr.bf16.mxu0 %v1626
      %1690 = vmatpush1.bf16.msra.mxu0 %v1625
      %1691 = vmatprep.subr.bf16.mxu0 %v1628
      %1692 = vmatpush1.bf16.msra.mxu0 %v1627
      %1693 = vmatprep.subr.bf16.mxu0 %v1630
      %1694 = vmatpush1.bf16.msra.mxu0 %v1629
      %1695 = vmatprep.subr.bf16.mxu0 %v1632
      %1696 = vmatpush1.bf16.msra.mxu0 %v1631
      %1697 = vmatprep.subr.bf16.mxu0 %v1634
      %1698 = vmatpush1.bf16.msra.mxu0 %v1633
      %1699 = vmatprep.subr.bf16.mxu0 %v1636
      %1700 = vmatpush1.bf16.msra.mxu0 %v1635
      %1701 = vmatprep.subr.bf16.mxu0 %v1638
      %1702 = vmatpush1.bf16.msra.mxu0 %v1637
      %1703 = vmatprep.mubr.bf16.mxu0 %v1447
      %1704 = vmatmul.mubr.bf16.gmra.mrb[0].mxu0 %v1446
      %v1705 = vpop.f32.mrb[0].mxu0
      %v1706 = vadd.f32 0.0, %v1705
      %v1707 = vpop.f32.mrb[0].mxu0
      %v1708 = vadd.f32 0.0, %v1707
      %v1709 = vpop.f32.mrb[0].mxu0
      %v1710 = vadd.f32 0.0, %v1709
      %v1711 = vpop.f32.mrb[0].mxu0
      %v1712 = vadd.f32 0.0, %v1711
      %1713 = vmatprep.mubr.bf16.mxu0 %v1449
      %1714 = vmatmul.mubr.bf16.gmra.mrb[0].mxu0 %v1448
      %v1715 = vpop.f32.mrb[0].mxu0
      %v1716 = vadd.f32 0.0, %v1715
      %v1717 = vpop.f32.mrb[0].mxu0
      %v1718 = vadd.f32 0.0, %v1717
      %v1719 = vpop.f32.mrb[0].mxu0
      %v1720 = vadd.f32 0.0, %v1719
      %v1721 = vpop.f32.mrb[0].mxu0
      %v1722 = vadd.f32 0.0, %v1721
      %1723 = vmatprep.mubr.bf16.mxu0 %v1451
      %1724 = vmatmul.mubr.bf16.gmra.mrb[0].mxu0 %v1450
      %v1725 = vpop.f32.mrb[0].mxu0
      %v1726 = vadd.f32 0.0, %v1725
      %v1727 = vpop.f32.mrb[0].mxu0
      %v1728 = vadd.f32 0.0, %v1727
      %v1729 = vpop.f32.mrb[0].mxu0
      %v1730 = vadd.f32 0.0, %v1729
      %v1731 = vpop.f32.mrb[0].mxu0
      %v1732 = vadd.f32 0.0, %v1731
      %1733 = vmatprep.mubr.bf16.mxu0 %v1453
      %1734 = vmatmul.mubr.bf16.gmra.mrb[0].mxu0 %v1452
      %v1735 = vpop.f32.mrb[0].mxu0
      %v1736 = vadd.f32 0.0, %v1735
      %v1737 = vpop.f32.mrb[0].mxu0
      %v1738 = vadd.f32 0.0, %v1737
      %v1739 = vpop.f32.mrb[0].mxu0
      %v1740 = vadd.f32 0.0, %v1739
      %v1741 = vpop.f32.mrb[0].mxu0
      %v1742 = vadd.f32 0.0, %v1741
      %1743 = vmatprep.mubr.bf16.mxu0 %v1455
      %1744 = vmatmul.mubr.bf16.gmra.mrb[0].mxu0 %v1454
      %v1745 = vpop.f32.mrb[0].mxu0
      %v1746 = vadd.f32 0.0, %v1745
      %v1747 = vpop.f32.mrb[0].mxu0
      %v1748 = vadd.f32 0.0, %v1747
      %v1749 = vpop.f32.mrb[0].mxu0
      %v1750 = vadd.f32 0.0, %v1749
      %v1751 = vpop.f32.mrb[0].mxu0
      %v1752 = vadd.f32 0.0, %v1751
      %1753 = vmatprep.mubr.bf16.mxu0 %v1457
      %1754 = vmatmul.mubr.bf16.gmra.mrb[0].mxu0 %v1456
      %v1755 = vpop.f32.mrb[0].mxu0
      %v1756 = vadd.f32 0.0, %v1755
      %v1757 = vpop.f32.mrb[0].mxu0
      %v1758 = vadd.f32 0.0, %v1757
      %v1759 = vpop.f32.mrb[0].mxu0
      %v1760 = vadd.f32 0.0, %v1759
      %v1761 = vpop.f32.mrb[0].mxu0
      %v1762 = vadd.f32 0.0, %v1761
      %1763 = vmatprep.mubr.bf16.mxu0 %v1459
      %1764 = vmatmul.mubr.bf16.gmra.mrb[0].mxu0 %v1458
      %v1765 = vpop.f32.mrb[0].mxu0
      %v1766 = vadd.f32 0.0, %v1765
      %v1767 = vpop.f32.mrb[0].mxu0
      %v1768 = vadd.f32 0.0, %v1767
      %v1769 = vpop.f32.mrb[0].mxu0
      %v1770 = vadd.f32 0.0, %v1769
      %v1771 = vpop.f32.mrb[0].mxu0
      %v1772 = vadd.f32 0.0, %v1771
      %1773 = vmatprep.mubr.bf16.mxu0 %v1461
      %1774 = vmatmul.mubr.bf16.gmra.mrb[0].mxu0 %v1460
      %v1775 = vpop.f32.mrb[0].mxu0
      %v1776 = vadd.f32 0.0, %v1775
      %v1777 = vpop.f32.mrb[0].mxu0
      %v1778 = vadd.f32 0.0, %v1777
      %v1779 = vpop.f32.mrb[0].mxu0
      %v1780 = vadd.f32 0.0, %v1779
      %v1781 = vpop.f32.mrb[0].mxu0
      %v1782 = vadd.f32 0.0, %v1781
      %1783 = vmatprep.mubr.bf16.mxu0 %v1463
      %1784 = vmatmul.mubr.bf16.gmra.mrb[0].mxu0 %v1462
      %v1785 = vpop.f32.mrb[0].mxu0
      %v1786 = vadd.f32 0.0, %v1785
      %v1787 = vpop.f32.mrb[0].mxu0
      %v1788 = vadd.f32 0.0, %v1787
      %v1789 = vpop.f32.mrb[0].mxu0
      %v1790 = vadd.f32 0.0, %v1789
      %v1791 = vpop.f32.mrb[0].mxu0
      %v1792 = vadd.f32 0.0, %v1791
      %1793 = vmatprep.mubr.bf16.mxu0 %v1465
      %1794 = vmatmul.mubr.bf16.gmra.mrb[0].mxu0 %v1464
      %v1795 = vpop.f32.mrb[0].mxu0
      %v1796 = vadd.f32 0.0, %v1795
      %v1797 = vpop.f32.mrb[0].mxu0
      %v1798 = vadd.f32 0.0, %v1797
      %v1799 = vpop.f32.mrb[0].mxu0
      %v1800 = vadd.f32 0.0, %v1799
      %v1801 = vpop.f32.mrb[0].mxu0
      %v1802 = vadd.f32 0.0, %v1801
      %1803 = vmatprep.mubr.bf16.mxu0 %v1467
      %1804 = vmatmul.mubr.bf16.gmra.mrb[0].mxu0 %v1466
      %v1805 = vpop.f32.mrb[0].mxu0
      %v1806 = vadd.f32 0.0, %v1805
      %v1807 = vpop.f32.mrb[0].mxu0
      %v1808 = vadd.f32 0.0, %v1807
      %v1809 = vpop.f32.mrb[0].mxu0
      %v1810 = vadd.f32 0.0, %v1809
      %v1811 = vpop.f32.mrb[0].mxu0
      %v1812 = vadd.f32 0.0, %v1811
      %1813 = vmatprep.mubr.bf16.mxu0 %v1469
      %1814 = vmatmul.mubr.bf16.gmra.mrb[0].mxu0 %v1468
      %v1815 = vpop.f32.mrb[0].mxu0
      %v1816 = vadd.f32 0.0, %v1815
      %v1817 = vpop.f32.mrb[0].mxu0
      %v1818 = vadd.f32 0.0, %v1817
      %v1819 = vpop.f32.mrb[0].mxu0
      %v1820 = vadd.f32 0.0, %v1819
      %v1821 = vpop.f32.mrb[0].mxu0
      %v1822 = vadd.f32 0.0, %v1821
      %1823 = vmatprep.mubr.bf16.mxu0 %v1471
      %1824 = vmatmul.mubr.bf16.gmra.mrb[0].mxu0 %v1470
      %v1825 = vpop.f32.mrb[0].mxu0
      %v1826 = vadd.f32 0.0, %v1825
      %v1827 = vpop.f32.mrb[0].mxu0
      %v1828 = vadd.f32 0.0, %v1827
      %v1829 = vpop.f32.mrb[0].mxu0
      %v1830 = vadd.f32 0.0, %v1829
      %v1831 = vpop.f32.mrb[0].mxu0
      %v1832 = vadd.f32 0.0, %v1831
      %1833 = vmatprep.mubr.bf16.mxu0 %v1473
      %1834 = vmatmul.mubr.bf16.gmra.mrb[0].mxu0 %v1472
      %v1835 = vpop.f32.mrb[0].mxu0
      %v1836 = vadd.f32 0.0, %v1835
      %v1837 = vpop.f32.mrb[0].mxu0
      %v1838 = vadd.f32 0.0, %v1837
      %v1839 = vpop.f32.mrb[0].mxu0
      %v1840 = vadd.f32 0.0, %v1839
      %v1841 = vpop.f32.mrb[0].mxu0
      %v1842 = vadd.f32 0.0, %v1841
      %1843 = vmatprep.mubr.bf16.mxu0 %v1475
      %1844 = vmatmul.mubr.bf16.gmra.mrb[0].mxu0 %v1474
      %v1845 = vpop.f32.mrb[0].mxu0
      %v1846 = vadd.f32 0.0, %v1845
      %v1847 = vpop.f32.mrb[0].mxu0
      %v1848 = vadd.f32 0.0, %v1847
      %v1849 = vpop.f32.mrb[0].mxu0
      %v1850 = vadd.f32 0.0, %v1849
      %v1851 = vpop.f32.mrb[0].mxu0
      %v1852 = vadd.f32 0.0, %v1851
      %1853 = vmatprep.mubr.bf16.mxu0 %v1477
      %1854 = vmatmul.mubr.bf16.gmra.mrb[0].mxu0 %v1476
      %v1855 = vpop.f32.mrb[0].mxu0
      %v1856 = vadd.f32 0.0, %v1855
      %v1857 = vpop.f32.mrb[0].mxu0
      %v1858 = vadd.f32 0.0, %v1857
      %v1859 = vpop.f32.mrb[0].mxu0
      %v1860 = vadd.f32 0.0, %v1859
      %v1861 = vpop.f32.mrb[0].mxu0
      %v1862 = vadd.f32 0.0, %v1861
      %1863 = vdwg.mxu0
      %vm1864 = vsmask.f32 4352
      %v1866 = vshrl.u32 %v1378, 16
      %v1868 = vrot.slane %v1866, 3
      %v1869 = vshll.u32 %v1378, 16
      %v1871 = vrot.slane %v1869, 4
      %v1872 = vor.u32 %v1868, %v1871
      %v1874 = vshrl.u32 %v1380, 16
      %v1876 = vrot.slane %v1874, 3
      %v1877 = vshll.u32 %v1380, 16
      %v1879 = vrot.slane %v1877, 4
      %v1880 = vor.u32 %v1876, %v1879
      %v1881 = vsel %vm1864, %v1872, %v1880
      %v1883 = vshrl.u32 %v1379, 16
      %v1885 = vrot.slane %v1883, 3
      %v1886 = vshll.u32 %v1379, 16
      %v1888 = vrot.slane %v1886, 4
      %v1889 = vor.u32 %v1885, %v1888
      %v1891 = vshrl.u32 %v1381, 16
      %v1893 = vrot.slane %v1891, 3
      %v1894 = vshll.u32 %v1381, 16
      %v1896 = vrot.slane %v1894, 4
      %v1897 = vor.u32 %v1893, %v1896
      %v1898 = vsel %vm1864, %v1889, %v1897
      %v1900 = vshrl.u32 %v1382, 16
      %v1902 = vrot.slane %v1900, 3
      %v1903 = vshll.u32 %v1382, 16
      %v1905 = vrot.slane %v1903, 4
      %v1906 = vor.u32 %v1902, %v1905
      %v1907 = vsel %vm1864, %v1880, %v1906
      %v1909 = vshrl.u32 %v1383, 16
      %v1911 = vrot.slane %v1909, 3
      %v1912 = vshll.u32 %v1383, 16
      %v1914 = vrot.slane %v1912, 4
      %v1915 = vor.u32 %v1911, %v1914
      %v1916 = vsel %vm1864, %v1897, %v1915
      %v1918 = vshrl.u32 %v1384, 16
      %v1920 = vrot.slane %v1918, 3
      %v1921 = vshll.u32 %v1384, 16
      %v1923 = vrot.slane %v1921, 4
      %v1924 = vor.u32 %v1920, %v1923
      %v1925 = vsel %vm1864, %v1906, %v1924
      %v1927 = vshrl.u32 %v1385, 16
      %v1929 = vrot.slane %v1927, 3
      %v1930 = vshll.u32 %v1385, 16
      %v1932 = vrot.slane %v1930, 4
      %v1933 = vor.u32 %v1929, %v1932
      %v1934 = vsel %vm1864, %v1915, %v1933
      %v1936 = vshrl.u32 %v1386, 16
      %v1938 = vrot.slane %v1936, 3
      %v1939 = vshll.u32 %v1386, 16
      %v1941 = vrot.slane %v1939, 4
      %v1942 = vor.u32 %v1938, %v1941
      %v1943 = vsel %vm1864, %v1924, %v1942
      %v1945 = vshrl.u32 %v1387, 16
      %v1947 = vrot.slane %v1945, 3
      %v1948 = vshll.u32 %v1387, 16
      %v1950 = vrot.slane %v1948, 4
      %v1951 = vor.u32 %v1947, %v1950
      %v1952 = vsel %vm1864, %v1933, %v1951
      %v1954 = vshrl.u32 %v1388, 16
      %v1956 = vrot.slane %v1954, 3
      %v1957 = vshll.u32 %v1388, 16
      %v1959 = vrot.slane %v1957, 4
      %v1960 = vor.u32 %v1956, %v1959
      %v1961 = vsel %vm1864, %v1942, %v1960
      %v1963 = vshrl.u32 %v1389, 16
      %v1965 = vrot.slane %v1963, 3
      %v1966 = vshll.u32 %v1389, 16
      %v1968 = vrot.slane %v1966, 4
      %v1969 = vor.u32 %v1965, %v1968
      %v1970 = vsel %vm1864, %v1951, %v1969
      %v1972 = vshrl.u32 %v1390, 16
      %v1974 = vrot.slane %v1972, 3
      %v1975 = vshll.u32 %v1390, 16
      %v1977 = vrot.slane %v1975, 4
      %v1978 = vor.u32 %v1974, %v1977
      %v1979 = vsel %vm1864, %v1960, %v1978
      %v1981 = vshrl.u32 %v1391, 16
      %v1983 = vrot.slane %v1981, 3
      %v1984 = vshll.u32 %v1391, 16
      %v1986 = vrot.slane %v1984, 4
      %v1987 = vor.u32 %v1983, %v1986
      %v1988 = vsel %vm1864, %v1969, %v1987
      %v1990 = vshrl.u32 %v1392, 16
      %v1992 = vrot.slane %v1990, 3
      %v1993 = vshll.u32 %v1392, 16
      %v1995 = vrot.slane %v1993, 4
      %v1996 = vor.u32 %v1992, %v1995
      %v1997 = vsel %vm1864, %v1978, %v1996
      %v1999 = vshrl.u32 %v1393, 16
      %v2001 = vrot.slane %v1999, 3
      %v2002 = vshll.u32 %v1393, 16
      %v2004 = vrot.slane %v2002, 4
      %v2005 = vor.u32 %v2001, %v2004
      %v2006 = vsel %vm1864, %v1987, %v2005
      %v2008 = vshrl.u32 %v1394, 16
      %v2010 = vrot.slane %v2008, 3
      %v2011 = vshll.u32 %v1394, 16
      %v2013 = vrot.slane %v2011, 4
      %v2014 = vor.u32 %v2010, %v2013
      %v2015 = vsel %vm1864, %v1996, %v2014
      %v2017 = vshrl.u32 %v1395, 16
      %v2019 = vrot.slane %v2017, 3
      %v2020 = vshll.u32 %v1395, 16
      %v2022 = vrot.slane %v2020, 4
      %v2023 = vor.u32 %v2019, %v2022
      %v2024 = vsel %vm1864, %v2005, %v2023
      %v2026 = vshrl.u32 %v1396, 16
      %v2028 = vrot.slane %v2026, 3
      %v2029 = vshll.u32 %v1396, 16
      %v2031 = vrot.slane %v2029, 4
      %v2032 = vor.u32 %v2028, %v2031
      %v2033 = vsel %vm1864, %v2014, %v2032
      %v2035 = vshrl.u32 %v1397, 16
      %v2037 = vrot.slane %v2035, 3
      %v2038 = vshll.u32 %v1397, 16
      %v2040 = vrot.slane %v2038, 4
      %v2041 = vor.u32 %v2037, %v2040
      %v2042 = vsel %vm1864, %v2023, %v2041
      %v2044 = vshrl.u32 %v1398, 16
      %v2046 = vrot.slane %v2044, 3
      %v2047 = vshll.u32 %v1398, 16
      %v2049 = vrot.slane %v2047, 4
      %v2050 = vor.u32 %v2046, %v2049
      %v2051 = vsel %vm1864, %v2032, %v2050
      %v2053 = vshrl.u32 %v1399, 16
      %v2055 = vrot.slane %v2053, 3
      %v2056 = vshll.u32 %v1399, 16
      %v2058 = vrot.slane %v2056, 4
      %v2059 = vor.u32 %v2055, %v2058
      %v2060 = vsel %vm1864, %v2041, %v2059
      %v2062 = vshrl.u32 %v1400, 16
      %v2064 = vrot.slane %v2062, 3
      %v2065 = vshll.u32 %v1400, 16
      %v2067 = vrot.slane %v2065, 4
      %v2068 = vor.u32 %v2064, %v2067
      %v2069 = vsel %vm1864, %v2050, %v2068
      %v2071 = vshrl.u32 %v1401, 16
      %v2073 = vrot.slane %v2071, 3
      %v2074 = vshll.u32 %v1401, 16
      %v2076 = vrot.slane %v2074, 4
      %v2077 = vor.u32 %v2073, %v2076
      %v2078 = vsel %vm1864, %v2059, %v2077
      %v2080 = vshrl.u32 %v1402, 16
      %v2082 = vrot.slane %v2080, 3
      %v2083 = vshll.u32 %v1402, 16
      %v2085 = vrot.slane %v2083, 4
      %v2086 = vor.u32 %v2082, %v2085
      %v2087 = vsel %vm1864, %v2068, %v2086
      %v2089 = vshrl.u32 %v1403, 16
      %v2091 = vrot.slane %v2089, 3
      %v2092 = vshll.u32 %v1403, 16
      %v2094 = vrot.slane %v2092, 4
      %v2095 = vor.u32 %v2091, %v2094
      %v2096 = vsel %vm1864, %v2077, %v2095
      %v2098 = vshrl.u32 %v1404, 16
      %v2100 = vrot.slane %v2098, 3
      %v2101 = vshll.u32 %v1404, 16
      %v2103 = vrot.slane %v2101, 4
      %v2104 = vor.u32 %v2100, %v2103
      %v2105 = vsel %vm1864, %v2086, %v2104
      %v2107 = vshrl.u32 %v1405, 16
      %v2109 = vrot.slane %v2107, 3
      %v2110 = vshll.u32 %v1405, 16
      %v2112 = vrot.slane %v2110, 4
      %v2113 = vor.u32 %v2109, %v2112
      %v2114 = vsel %vm1864, %v2095, %v2113
      %v2116 = vshrl.u32 %v1406, 16
      %v2118 = vrot.slane %v2116, 3
      %v2119 = vshll.u32 %v1406, 16
      %v2121 = vrot.slane %v2119, 4
      %v2122 = vor.u32 %v2118, %v2121
      %v2123 = vsel %vm1864, %v2104, %v2122
      %v2125 = vshrl.u32 %v1407, 16
      %v2127 = vrot.slane %v2125, 3
      %v2128 = vshll.u32 %v1407, 16
      %v2130 = vrot.slane %v2128, 4
      %v2131 = vor.u32 %v2127, %v2130
      %v2132 = vsel %vm1864, %v2113, %v2131
      %v2134 = vshrl.u32 %v1408, 16
      %v2136 = vrot.slane %v2134, 3
      %v2137 = vshll.u32 %v1408, 16
      %v2139 = vrot.slane %v2137, 4
      %v2140 = vor.u32 %v2136, %v2139
      %v2141 = vsel %vm1864, %v2122, %v2140
      %v2143 = vshrl.u32 %v1409, 16
      %v2145 = vrot.slane %v2143, 3
      %v2146 = vshll.u32 %v1409, 16
      %v2148 = vrot.slane %v2146, 4
      %v2149 = vor.u32 %v2145, %v2148
      %v2150 = vsel %vm1864, %v2131, %v2149
      %v2152 = vshrl.u32 %v1410, 16
      %v2154 = vrot.slane %v2152, 3
      %v2155 = vshll.u32 %v1410, 16
      %v2157 = vrot.slane %v2155, 4
      %v2158 = vor.u32 %v2154, %v2157
      %v2159 = vsel %vm1864, %v2140, %v2158
      %v2161 = vshrl.u32 %v1411, 16
      %v2163 = vrot.slane %v2161, 3
      %v2164 = vshll.u32 %v1411, 16
      %v2166 = vrot.slane %v2164, 4
      %v2167 = vor.u32 %v2163, %v2166
      %v2168 = vsel %vm1864, %v2149, %v2167
      %v2233 = vunpack.c.l.b16 %v1412
      %v2234 = vunpack.c.h.b16 %v1412
      %v2235 = vunpack.c.l.b16 %v1413
      %v2236 = vunpack.c.h.b16 %v1413
      %v2237 = vunpack.c.l.b16 %v1414
      %v2238 = vunpack.c.h.b16 %v1414
      %v2239 = vunpack.c.l.b16 %v1415
      %v2240 = vunpack.c.h.b16 %v1415
      %v2241 = vunpack.c.l.b16 %v1416
      %v2242 = vunpack.c.h.b16 %v1416
      %v2243 = vunpack.c.l.b16 %v1417
      %v2244 = vunpack.c.h.b16 %v1417
      %v2245 = vunpack.c.l.b16 %v1418
      %v2246 = vunpack.c.h.b16 %v1418
      %v2247 = vunpack.c.l.b16 %v1419
      %v2248 = vunpack.c.h.b16 %v1419
      %v2249 = vunpack.c.l.b16 %v1420
      %v2250 = vunpack.c.h.b16 %v1420
      %v2251 = vunpack.c.l.b16 %v1421
      %v2252 = vunpack.c.h.b16 %v1421
      %v2253 = vunpack.c.l.b16 %v1422
      %v2254 = vunpack.c.h.b16 %v1422
      %v2255 = vunpack.c.l.b16 %v1423
      %v2256 = vunpack.c.h.b16 %v1423
      %v2257 = vunpack.c.l.b16 %v1424
      %v2258 = vunpack.c.h.b16 %v1424
      %v2259 = vunpack.c.l.b16 %v1425
      %v2260 = vunpack.c.h.b16 %v1425
      %v2261 = vunpack.c.l.b16 %v1426
      %v2262 = vunpack.c.h.b16 %v1426
      %v2263 = vunpack.c.l.b16 %v1427
      %v2264 = vunpack.c.h.b16 %v1427
      %v2265 = vunpack.c.l.b16 %v1428
      %v2266 = vunpack.c.h.b16 %v1428
      %v2267 = vunpack.c.l.b16 %v1429
      %v2268 = vunpack.c.h.b16 %v1429
      %v2269 = vunpack.c.l.b16 %v1430
      %v2270 = vunpack.c.h.b16 %v1430
      %v2271 = vunpack.c.l.b16 %v1431
      %v2272 = vunpack.c.h.b16 %v1431
      %v2273 = vunpack.c.l.b16 %v1432
      %v2274 = vunpack.c.h.b16 %v1432
      %v2275 = vunpack.c.l.b16 %v1433
      %v2276 = vunpack.c.h.b16 %v1433
      %v2277 = vunpack.c.l.b16 %v1434
      %v2278 = vunpack.c.h.b16 %v1434
      %v2279 = vunpack.c.l.b16 %v1435
      %v2280 = vunpack.c.h.b16 %v1435
      %v2281 = vunpack.c.l.b16 %v1436
      %v2282 = vunpack.c.h.b16 %v1436
      %v2283 = vunpack.c.l.b16 %v1437
      %v2284 = vunpack.c.h.b16 %v1437
      %v2285 = vunpack.c.l.b16 %v1438
      %v2286 = vunpack.c.h.b16 %v1438
      %v2287 = vunpack.c.l.b16 %v1439
      %v2288 = vunpack.c.h.b16 %v1439
      %v2289 = vunpack.c.l.b16 %v1440
      %v2290 = vunpack.c.h.b16 %v1440
      %v2291 = vunpack.c.l.b16 %v1441
      %v2292 = vunpack.c.h.b16 %v1441
      %v2293 = vunpack.c.l.b16 %v1442
      %v2294 = vunpack.c.h.b16 %v1442
      %v2295 = vunpack.c.l.b16 %v1443
      %v2296 = vunpack.c.h.b16 %v1443
      %v2297 = vpack.c.b16 %v2235, %v2233
      %v2298 = vpack.c.b16 %v2236, %v2234
      %v2299 = vpack.c.b16 %v2239, %v2237
      %v2300 = vpack.c.b16 %v2240, %v2238
      %v2301 = vpack.c.b16 %v2243, %v2241
      %v2302 = vpack.c.b16 %v2244, %v2242
      %v2303 = vpack.c.b16 %v2247, %v2245
      %v2304 = vpack.c.b16 %v2248, %v2246
      %v2305 = vpack.c.b16 %v2251, %v2249
      %v2306 = vpack.c.b16 %v2252, %v2250
      %v2307 = vpack.c.b16 %v2255, %v2253
      %v2308 = vpack.c.b16 %v2256, %v2254
      %v2309 = vpack.c.b16 %v2259, %v2257
      %v2310 = vpack.c.b16 %v2260, %v2258
      %v2311 = vpack.c.b16 %v2263, %v2261
      %v2312 = vpack.c.b16 %v2264, %v2262
      %v2313 = vpack.c.b16 %v2267, %v2265
      %v2314 = vpack.c.b16 %v2268, %v2266
      %v2315 = vpack.c.b16 %v2271, %v2269
      %v2316 = vpack.c.b16 %v2272, %v2270
      %v2317 = vpack.c.b16 %v2275, %v2273
      %v2318 = vpack.c.b16 %v2276, %v2274
      %v2319 = vpack.c.b16 %v2279, %v2277
      %v2320 = vpack.c.b16 %v2280, %v2278
      %v2321 = vpack.c.b16 %v2283, %v2281
      %v2322 = vpack.c.b16 %v2284, %v2282
      %v2323 = vpack.c.b16 %v2287, %v2285
      %v2324 = vpack.c.b16 %v2288, %v2286
      %v2325 = vpack.c.b16 %v2291, %v2289
      %v2326 = vpack.c.b16 %v2292, %v2290
      %v2327 = vpack.c.b16 %v2295, %v2293
      %v2328 = vpack.c.b16 %v2296, %v2294
      %2361 = vmatprep.subr.bf16.mxu0 %v2298
      %2362 = vmatpush1.bf16.msra.mxu0 %v2297
      %2363 = vmatprep.subr.bf16.mxu0 %v2300
      %2364 = vmatpush1.bf16.msra.mxu0 %v2299
      %2365 = vmatprep.subr.bf16.mxu0 %v2302
      %2366 = vmatpush1.bf16.msra.mxu0 %v2301
      %2367 = vmatprep.subr.bf16.mxu0 %v2304
      %2368 = vmatpush1.bf16.msra.mxu0 %v2303
      %2369 = vmatprep.subr.bf16.mxu0 %v2306
      %2370 = vmatpush1.bf16.msra.mxu0 %v2305
      %2371 = vmatprep.subr.bf16.mxu0 %v2308
      %2372 = vmatpush1.bf16.msra.mxu0 %v2307
      %2373 = vmatprep.subr.bf16.mxu0 %v2310
      %2374 = vmatpush1.bf16.msra.mxu0 %v2309
      %2375 = vmatprep.subr.bf16.mxu0 %v2312
      %2376 = vmatpush1.bf16.msra.mxu0 %v2311
      %2377 = vmatprep.subr.bf16.mxu0 %v2314
      %2378 = vmatpush1.bf16.msra.mxu0 %v2313
      %2379 = vmatprep.subr.bf16.mxu0 %v2316
      %2380 = vmatpush1.bf16.msra.mxu0 %v2315
      %2381 = vmatprep.subr.bf16.mxu0 %v2318
      %2382 = vmatpush1.bf16.msra.mxu0 %v2317
      %2383 = vmatprep.subr.bf16.mxu0 %v2320
      %2384 = vmatpush1.bf16.msra.mxu0 %v2319
      %2385 = vmatprep.subr.bf16.mxu0 %v2322
      %2386 = vmatpush1.bf16.msra.mxu0 %v2321
      %2387 = vmatprep.subr.bf16.mxu0 %v2324
      %2388 = vmatpush1.bf16.msra.mxu0 %v2323
      %2389 = vmatprep.subr.bf16.mxu0 %v2326
      %2390 = vmatpush1.bf16.msra.mxu0 %v2325
      %2391 = vmatprep.subr.bf16.mxu0 %v2328
      %2392 = vmatpush1.bf16.msra.mxu0 %v2327
      %2393 = vmatprep.mubr.bf16.mxu0 %v1898
      %2394 = vmatmul.mubr.bf16.gmra.mrb[0].mxu0 %v1881
      %v2395 = vpop.f32.mrb[0].mxu0
      %v2396 = vadd.f32 %v1706, %v2395
      %v2397 = vpop.f32.mrb[0].mxu0
      %v2398 = vadd.f32 %v1708, %v2397
      %v2399 = vpop.f32.mrb[0].mxu0
      %v2400 = vadd.f32 %v1710, %v2399
      %v2401 = vpop.f32.mrb[0].mxu0
      %v2402 = vadd.f32 %v1712, %v2401
      %2403 = vmatprep.mubr.bf16.mxu0 %v1916
      %2404 = vmatmul.mubr.bf16.gmra.mrb[0].mxu0 %v1907
      %v2405 = vpop.f32.mrb[0].mxu0
      %v2406 = vadd.f32 %v1716, %v2405
      %v2407 = vpop.f32.mrb[0].mxu0
      %v2408 = vadd.f32 %v1718, %v2407
      %v2409 = vpop.f32.mrb[0].mxu0
      %v2410 = vadd.f32 %v1720, %v2409
      %v2411 = vpop.f32.mrb[0].mxu0
      %v2412 = vadd.f32 %v1722, %v2411
      %2413 = vmatprep.mubr.bf16.mxu0 %v1934
      %2414 = vmatmul.mubr.bf16.gmra.mrb[0].mxu0 %v1925
      %v2415 = vpop.f32.mrb[0].mxu0
      %v2416 = vadd.f32 %v1726, %v2415
      %v2417 = vpop.f32.mrb[0].mxu0
      %v2418 = vadd.f32 %v1728, %v2417
      %v2419 = vpop.f32.mrb[0].mxu0
      %v2420 = vadd.f32 %v1730, %v2419
      %v2421 = vpop.f32.mrb[0].mxu0
      %v2422 = vadd.f32 %v1732, %v2421
      %2423 = vmatprep.mubr.bf16.mxu0 %v1952
      %2424 = vmatmul.mubr.bf16.gmra.mrb[0].mxu0 %v1943
      %v2425 = vpop.f32.mrb[0].mxu0
      %v2426 = vadd.f32 %v1736, %v2425
      %v2427 = vpop.f32.mrb[0].mxu0
      %v2428 = vadd.f32 %v1738, %v2427
      %v2429 = vpop.f32.mrb[0].mxu0
      %v2430 = vadd.f32 %v1740, %v2429
      %v2431 = vpop.f32.mrb[0].mxu0
      %v2432 = vadd.f32 %v1742, %v2431
      %2433 = vmatprep.mubr.bf16.mxu0 %v1970
      %2434 = vmatmul.mubr.bf16.gmra.mrb[0].mxu0 %v1961
      %v2435 = vpop.f32.mrb[0].mxu0
      %v2436 = vadd.f32 %v1746, %v2435
      %v2437 = vpop.f32.mrb[0].mxu0
      %v2438 = vadd.f32 %v1748, %v2437
      %v2439 = vpop.f32.mrb[0].mxu0
      %v2440 = vadd.f32 %v1750, %v2439
      %v2441 = vpop.f32.mrb[0].mxu0
      %v2442 = vadd.f32 %v1752, %v2441
      %2443 = vmatprep.mubr.bf16.mxu0 %v1988
      %2444 = vmatmul.mubr.bf16.gmra.mrb[0].mxu0 %v1979
      %v2445 = vpop.f32.mrb[0].mxu0
      %v2446 = vadd.f32 %v1756, %v2445
      %v2447 = vpop.f32.mrb[0].mxu0
      %v2448 = vadd.f32 %v1758, %v2447
      %v2449 = vpop.f32.mrb[0].mxu0
      %v2450 = vadd.f32 %v1760, %v2449
      %v2451 = vpop.f32.mrb[0].mxu0
      %v2452 = vadd.f32 %v1762, %v2451
      %2453 = vmatprep.mubr.bf16.mxu0 %v2006
      %2454 = vmatmul.mubr.bf16.gmra.mrb[0].mxu0 %v1997
      %v2455 = vpop.f32.mrb[0].mxu0
      %v2456 = vadd.f32 %v1766, %v2455
      %v2457 = vpop.f32.mrb[0].mxu0
      %v2458 = vadd.f32 %v1768, %v2457
      %v2459 = vpop.f32.mrb[0].mxu0
      %v2460 = vadd.f32 %v1770, %v2459
      %v2461 = vpop.f32.mrb[0].mxu0
      %v2462 = vadd.f32 %v1772, %v2461
      %2463 = vmatprep.mubr.bf16.mxu0 %v2024
      %2464 = vmatmul.mubr.bf16.gmra.mrb[0].mxu0 %v2015
      %v2465 = vpop.f32.mrb[0].mxu0
      %v2466 = vadd.f32 %v1776, %v2465
      %v2467 = vpop.f32.mrb[0].mxu0
      %v2468 = vadd.f32 %v1778, %v2467
      %v2469 = vpop.f32.mrb[0].mxu0
      %v2470 = vadd.f32 %v1780, %v2469
      %v2471 = vpop.f32.mrb[0].mxu0
      %v2472 = vadd.f32 %v1782, %v2471
      %2473 = vmatprep.mubr.bf16.mxu0 %v2042
      %2474 = vmatmul.mubr.bf16.gmra.mrb[0].mxu0 %v2033
      %v2475 = vpop.f32.mrb[0].mxu0
      %v2476 = vadd.f32 %v1786, %v2475
      %v2477 = vpop.f32.mrb[0].mxu0
      %v2478 = vadd.f32 %v1788, %v2477
      %v2479 = vpop.f32.mrb[0].mxu0
      %v2480 = vadd.f32 %v1790, %v2479
      %v2481 = vpop.f32.mrb[0].mxu0
      %v2482 = vadd.f32 %v1792, %v2481
      %2483 = vmatprep.mubr.bf16.mxu0 %v2060
      %2484 = vmatmul.mubr.bf16.gmra.mrb[0].mxu0 %v2051
      %v2485 = vpop.f32.mrb[0].mxu0
      %v2486 = vadd.f32 %v1796, %v2485
      %v2487 = vpop.f32.mrb[0].mxu0
      %v2488 = vadd.f32 %v1798, %v2487
      %v2489 = vpop.f32.mrb[0].mxu0
      %v2490 = vadd.f32 %v1800, %v2489
      %v2491 = vpop.f32.mrb[0].mxu0
      %v2492 = vadd.f32 %v1802, %v2491
      %2493 = vmatprep.mubr.bf16.mxu0 %v2078
      %2494 = vmatmul.mubr.bf16.gmra.mrb[0].mxu0 %v2069
      %v2495 = vpop.f32.mrb[0].mxu0
      %v2496 = vadd.f32 %v1806, %v2495
      %v2497 = vpop.f32.mrb[0].mxu0
      %v2498 = vadd.f32 %v1808, %v2497
      %v2499 = vpop.f32.mrb[0].mxu0
      %v2500 = vadd.f32 %v1810, %v2499
      %v2501 = vpop.f32.mrb[0].mxu0
      %v2502 = vadd.f32 %v1812, %v2501
      %2503 = vmatprep.mubr.bf16.mxu0 %v2096
      %2504 = vmatmul.mubr.bf16.gmra.mrb[0].mxu0 %v2087
      %v2505 = vpop.f32.mrb[0].mxu0
      %v2506 = vadd.f32 %v1816, %v2505
      %v2507 = vpop.f32.mrb[0].mxu0
      %v2508 = vadd.f32 %v1818, %v2507
      %v2509 = vpop.f32.mrb[0].mxu0
      %v2510 = vadd.f32 %v1820, %v2509
      %v2511 = vpop.f32.mrb[0].mxu0
      %v2512 = vadd.f32 %v1822, %v2511
      %2513 = vmatprep.mubr.bf16.mxu0 %v2114
      %2514 = vmatmul.mubr.bf16.gmra.mrb[0].mxu0 %v2105
      %v2515 = vpop.f32.mrb[0].mxu0
      %v2516 = vadd.f32 %v1826, %v2515
      %v2517 = vpop.f32.mrb[0].mxu0
      %v2518 = vadd.f32 %v1828, %v2517
      %v2519 = vpop.f32.mrb[0].mxu0
      %v2520 = vadd.f32 %v1830, %v2519
      %v2521 = vpop.f32.mrb[0].mxu0
      %v2522 = vadd.f32 %v1832, %v2521
      %2523 = vmatprep.mubr.bf16.mxu0 %v2132
      %2524 = vmatmul.mubr.bf16.gmra.mrb[0].mxu0 %v2123
      %v2525 = vpop.f32.mrb[0].mxu0
      %v2526 = vadd.f32 %v1836, %v2525
      %v2527 = vpop.f32.mrb[0].mxu0
      %v2528 = vadd.f32 %v1838, %v2527
      %v2529 = vpop.f32.mrb[0].mxu0
      %v2530 = vadd.f32 %v1840, %v2529
      %v2531 = vpop.f32.mrb[0].mxu0
      %v2532 = vadd.f32 %v1842, %v2531
      %2533 = vmatprep.mubr.bf16.mxu0 %v2150
      %2534 = vmatmul.mubr.bf16.gmra.mrb[0].mxu0 %v2141
      %v2535 = vpop.f32.mrb[0].mxu0
      %v2536 = vadd.f32 %v1846, %v2535
      %v2537 = vpop.f32.mrb[0].mxu0
      %v2538 = vadd.f32 %v1848, %v2537
      %v2539 = vpop.f32.mrb[0].mxu0
      %v2540 = vadd.f32 %v1850, %v2539
      %v2541 = vpop.f32.mrb[0].mxu0
      %v2542 = vadd.f32 %v1852, %v2541
      %2543 = vmatprep.mubr.bf16.mxu0 %v2168
      %2544 = vmatmul.mubr.bf16.gmra.mrb[0].mxu0 %v2159
      %v2545 = vpop.f32.mrb[0].mxu0
      %v2546 = vadd.f32 %v1856, %v2545
      %v2547 = vpop.f32.mrb[0].mxu0
      %v2548 = vadd.f32 %v1858, %v2547
      %v2549 = vpop.f32.mrb[0].mxu0
      %v2550 = vadd.f32 %v1860, %v2549
      %v2551 = vpop.f32.mrb[0].mxu0
      %v2552 = vadd.f32 %v1862, %v2551
      %2553 = vdwg.mxu0
      %v2554 = vld [vmem:[#allocation2 + $0x10] sm:$0xfe]
      %v2555 = vld [vmem:[#allocation2 + $0x18] sm:$0xfe]
      %v2556 = vld [vmem:[#allocation2 + $0x20] sm:$0xff]
      %v2557 = vld [vmem:[#allocation2 + $0x28] sm:$0xff]
      %v2558 = vld [vmem:[#allocation2 + $0x30] sm:$0xff]
      %v2559 = vld [vmem:[#allocation2 + $0x38] sm:$0xff]
      %v2560 = vld [vmem:[#allocation2 + $0x40] sm:$0xff]
      %v2561 = vld [vmem:[#allocation2 + $0x48] sm:$0xff]
      %v2562 = vld [vmem:[#allocation2 + $0x50] sm:$0xff]
      %v2563 = vld [vmem:[#allocation2 + $0x58] sm:$0xff]
      %v2564 = vld [vmem:[#allocation2 + $0x60] sm:$0xff]
      %v2565 = vld [vmem:[#allocation2 + $0x68] sm:$0xff]
      %v2566 = vld [vmem:[#allocation2 + $0x70] sm:$0xff]
      %v2567 = vld [vmem:[#allocation2 + $0x78] sm:$0xff]
      %v2568 = vld [vmem:[#allocation2 + $0x80] sm:$0xff]
      %v2569 = vld [vmem:[#allocation2 + $0x88] sm:$0xff]
      %v2570 = vld [vmem:[#allocation2 + $0x90] sm:$0xff]
      %v2571 = vld [vmem:[#allocation2 + $0x98] sm:$0xff]
      %v2572 = vld [vmem:[#allocation2 + $0xa0] sm:$0xff]
      %v2573 = vld [vmem:[#allocation2 + $0xa8] sm:$0xff]
      %v2574 = vld [vmem:[#allocation2 + $0xb0] sm:$0xff]
      %v2575 = vld [vmem:[#allocation2 + $0xb8] sm:$0xff]
      %v2576 = vld [vmem:[#allocation2 + $0xc0] sm:$0xff]
      %v2577 = vld [vmem:[#allocation2 + $0xc8] sm:$0xff]
      %v2578 = vld [vmem:[#allocation2 + $0xd0] sm:$0xff]
      %v2579 = vld [vmem:[#allocation2 + $0xd8] sm:$0xff]
      %v2580 = vld [vmem:[#allocation2 + $0xe0] sm:$0xff]
      %v2581 = vld [vmem:[#allocation2 + $0xe8] sm:$0xff]
      %v2582 = vld [vmem:[#allocation2 + $0xf0] sm:$0xff]
      %v2583 = vld [vmem:[#allocation2 + $0xf8] sm:$0xff]
      %v2584 = vld [vmem:[#allocation2 + $0x100] sm:$0xff]
      %v2585 = vld [vmem:[#allocation2 + $0x108] sm:$0xff]
      %v2586 = vld [vmem:[#allocation2 + $0x110] sm:$0xff]
      %v2587 = vld [vmem:[#allocation2 + $0x118] sm:$0xff]
      %v2588 = vld [vmem:[#allocation2 + $0x120] sm:$0xff]
      %v2589 = vld [vmem:[#allocation2 + $0x128] sm:$0xff]
      %v2590 = vld [vmem:[#allocation2 + $0x130] sm:$0xff]
      %v2591 = vld [vmem:[#allocation2 + $0x138] sm:$0xff]
      %v2592 = vld [vmem:[#allocation2 + $0x140] sm:$0xff]
      %v2593 = vld [vmem:[#allocation2 + $0x148] sm:$0xff]
      %v2594 = vld [vmem:[#allocation2 + $0x150] sm:$0xff]
      %v2595 = vld [vmem:[#allocation2 + $0x158] sm:$0xff]
      %v2596 = vld [vmem:[#allocation2 + $0x160] sm:$0xff]
      %v2597 = vld [vmem:[#allocation2 + $0x168] sm:$0xff]
      %v2598 = vld [vmem:[#allocation2 + $0x170] sm:$0xff]
      %v2599 = vld [vmem:[#allocation2 + $0x178] sm:$0xff]
      %v2600 = vld [vmem:[#allocation2 + $0x180] sm:$0xff]
      %v2601 = vld [vmem:[#allocation2 + $0x188] sm:$0xff]
      %v2602 = vld [vmem:[#allocation2 + $0x190] sm:$0xff]
      %v2603 = vld [vmem:[#allocation2 + $0x198] sm:$0xff]
      %v2604 = vld [vmem:[#allocation2 + $0x1a0] sm:$0xff]
      %v2605 = vld [vmem:[#allocation2 + $0x1a8] sm:$0xff]
      %v2606 = vld [vmem:[#allocation2 + $0x1b0] sm:$0xff]
      %v2607 = vld [vmem:[#allocation2 + $0x1b8] sm:$0xff]
      %v2608 = vld [vmem:[#allocation2 + $0x1c0] sm:$0xff]
      %v2609 = vld [vmem:[#allocation2 + $0x1c8] sm:$0xff]
      %v2610 = vld [vmem:[#allocation2 + $0x1d0] sm:$0xff]
      %v2611 = vld [vmem:[#allocation2 + $0x1d8] sm:$0xff]
      %v2612 = vld [vmem:[#allocation2 + $0x1e0] sm:$0xff]
      %v2613 = vld [vmem:[#allocation2 + $0x1e8] sm:$0xff]
      %v2614 = vld [vmem:[#allocation2 + $0x1f0] sm:$0xff]
      %v2615 = vld [vmem:[#allocation2 + $0x1f8] sm:$0xff]
      %v2616 = vld [vmem:[#allocation2 + $0x200] sm:$0xff]
      %v2617 = vld [vmem:[#allocation2 + $0x208] sm:$0xff]
      %v2618 = vld [vmem:[#allocation2 + $0x210] sm:$0x1]
      %v2619 = vld [vmem:[#allocation2 + $0x218] sm:$0x1]
      %2621 = vset.pattern.permute.xlu0 0
      %2622 = vperm.xlu0 %2621, %v989
      %v2623 = vpop.permute.xlu0 %2622
      %2625 = vset.pattern.permute.xlu0 0
      %2626 = vperm.xlu0 %2625, %v990
      %v2627 = vpop.permute.xlu0 %2626
      %2629 = vset.pattern.permute.xlu0 0
      %2630 = vperm.xlu0 %2629, %v991
      %v2631 = vpop.permute.xlu0 %2630
      %2633 = vset.pattern.permute.xlu0 0
      %2634 = vperm.xlu0 %2633, %v992
      %v2635 = vpop.permute.xlu0 %2634
      %2637 = vset.pattern.permute.xlu0 0
      %2638 = vperm.xlu0 %2637, %v993
      %v2639 = vpop.permute.xlu0 %2638
      %2641 = vset.pattern.permute.xlu0 0
      %2642 = vperm.xlu0 %2641, %v994
      %v2643 = vpop.permute.xlu0 %2642
      %2645 = vset.pattern.permute.xlu0 0
      %2646 = vperm.xlu0 %2645, %v995
      %v2647 = vpop.permute.xlu0 %2646
      %2649 = vset.pattern.permute.xlu0 0
      %2650 = vperm.xlu0 %2649, %v996
      %v2651 = vpop.permute.xlu0 %2650
      %2653 = vset.pattern.permute.xlu0 0
      %2654 = vperm.xlu0 %2653, %v997
      %v2655 = vpop.permute.xlu0 %2654
      %2657 = vset.pattern.permute.xlu0 0
      %2658 = vperm.xlu0 %2657, %v998
      %v2659 = vpop.permute.xlu0 %2658
      %2661 = vset.pattern.permute.xlu0 0
      %2662 = vperm.xlu0 %2661, %v999
      %v2663 = vpop.permute.xlu0 %2662
      %2665 = vset.pattern.permute.xlu0 0
      %2666 = vperm.xlu0 %2665, %v1000
      %v2667 = vpop.permute.xlu0 %2666
      %2669 = vset.pattern.permute.xlu0 0
      %2670 = vperm.xlu0 %2669, %v1001
      %v2671 = vpop.permute.xlu0 %2670
      %2673 = vset.pattern.permute.xlu0 0
      %2674 = vperm.xlu0 %2673, %v1002
      %v2675 = vpop.permute.xlu0 %2674
      %2677 = vset.pattern.permute.xlu0 0
      %2678 = vperm.xlu0 %2677, %v1003
      %v2679 = vpop.permute.xlu0 %2678
      %2681 = vset.pattern.permute.xlu0 0
      %2682 = vperm.xlu0 %2681, %v1004
      %v2683 = vpop.permute.xlu0 %2682
      %2685 = vset.pattern.permute.xlu0 0
      %2686 = vperm.xlu0 %2685, %v1005
      %v2687 = vpop.permute.xlu0 %2686
      %2689 = vset.pattern.permute.xlu0 0
      %2690 = vperm.xlu0 %2689, %v1006
      %v2691 = vpop.permute.xlu0 %2690
      %2693 = vset.pattern.permute.xlu0 0
      %2694 = vperm.xlu0 %2693, %v1007
      %v2695 = vpop.permute.xlu0 %2694
      %2697 = vset.pattern.permute.xlu0 0
      %2698 = vperm.xlu0 %2697, %v1008
      %v2699 = vpop.permute.xlu0 %2698
      %2701 = vset.pattern.permute.xlu0 0
      %2702 = vperm.xlu0 %2701, %v1009
      %v2703 = vpop.permute.xlu0 %2702
      %2705 = vset.pattern.permute.xlu0 0
      %2706 = vperm.xlu0 %2705, %v1010
      %v2707 = vpop.permute.xlu0 %2706
      %2709 = vset.pattern.permute.xlu0 0
      %2710 = vperm.xlu0 %2709, %v1011
      %v2711 = vpop.permute.xlu0 %2710
      %2713 = vset.pattern.permute.xlu0 0
      %2714 = vperm.xlu0 %2713, %v1012
      %v2715 = vpop.permute.xlu0 %2714
      %2717 = vset.pattern.permute.xlu0 0
      %2718 = vperm.xlu0 %2717, %v1013
      %v2719 = vpop.permute.xlu0 %2718
      %2721 = vset.pattern.permute.xlu0 0
      %2722 = vperm.xlu0 %2721, %v1014
      %v2723 = vpop.permute.xlu0 %2722
      %2725 = vset.pattern.permute.xlu0 0
      %2726 = vperm.xlu0 %2725, %v1015
      %v2727 = vpop.permute.xlu0 %2726
      %2729 = vset.pattern.permute.xlu0 0
      %2730 = vperm.xlu0 %2729, %v1016
      %v2731 = vpop.permute.xlu0 %2730
      %2733 = vset.pattern.permute.xlu0 0
      %2734 = vperm.xlu0 %2733, %v1017
      %v2735 = vpop.permute.xlu0 %2734
      %2737 = vset.pattern.permute.xlu0 0
      %2738 = vperm.xlu0 %2737, %v1018
      %v2739 = vpop.permute.xlu0 %2738
      %2741 = vset.pattern.permute.xlu0 0
      %2742 = vperm.xlu0 %2741, %v1019
      %v2743 = vpop.permute.xlu0 %2742
      %2745 = vset.pattern.permute.xlu0 0
      %2746 = vperm.xlu0 %2745, %v1020
      %v2747 = vpop.permute.xlu0 %2746
      %vm2748 = vcmask 1040384
      %v2749 = vrot.slane %v2623, 7
      %v2750 = vrot.slane %v2627, 7
      %v2751 = vsel %vm2748, %v2749, %v2750
      %v2752 = vrot.slane %v2631, 7
      %v2753 = vsel %vm2748, %v2750, %v2752
      %v2754 = vrot.slane %v2635, 7
      %v2755 = vsel %vm2748, %v2752, %v2754
      %v2756 = vrot.slane %v2639, 7
      %v2757 = vsel %vm2748, %v2754, %v2756
      %v2758 = vrot.slane %v2643, 7
      %v2759 = vsel %vm2748, %v2756, %v2758
      %v2760 = vrot.slane %v2647, 7
      %v2761 = vsel %vm2748, %v2758, %v2760
      %v2762 = vrot.slane %v2651, 7
      %v2763 = vsel %vm2748, %v2760, %v2762
      %v2764 = vrot.slane %v2655, 7
      %v2765 = vsel %vm2748, %v2762, %v2764
      %v2766 = vrot.slane %v2659, 7
      %v2767 = vsel %vm2748, %v2764, %v2766
      %v2768 = vrot.slane %v2663, 7
      %v2769 = vsel %vm2748, %v2766, %v2768
      %v2770 = vrot.slane %v2667, 7
      %v2771 = vsel %vm2748, %v2768, %v2770
      %v2772 = vrot.slane %v2671, 7
      %v2773 = vsel %vm2748, %v2770, %v2772
      %v2774 = vrot.slane %v2675, 7
      %v2775 = vsel %vm2748, %v2772, %v2774
      %v2776 = vrot.slane %v2679, 7
      %v2777 = vsel %vm2748, %v2774, %v2776
      %v2778 = vrot.slane %v2683, 7
      %v2779 = vsel %vm2748, %v2776, %v2778
      %v2780 = vrot.slane %v2687, 7
      %v2781 = vsel %vm2748, %v2778, %v2780
      %v2782 = vrot.slane %v2691, 7
      %v2783 = vsel %vm2748, %v2780, %v2782
      %v2784 = vrot.slane %v2695, 7
      %v2785 = vsel %vm2748, %v2782, %v2784
      %v2786 = vrot.slane %v2699, 7
      %v2787 = vsel %vm2748, %v2784, %v2786
      %v2788 = vrot.slane %v2703, 7
      %v2789 = vsel %vm2748, %v2786, %v2788
      %v2790 = vrot.slane %v2707, 7
      %v2791 = vsel %vm2748, %v2788, %v2790
      %v2792 = vrot.slane %v2711, 7
      %v2793 = vsel %vm2748, %v2790, %v2792
      %v2794 = vrot.slane %v2715, 7
      %v2795 = vsel %vm2748, %v2792, %v2794
      %v2796 = vrot.slane %v2719, 7
      %v2797 = vsel %vm2748, %v2794, %v2796
      %v2798 = vrot.slane %v2723, 7
      %v2799 = vsel %vm2748, %v2796, %v2798
      %v2800 = vrot.slane %v2727, 7
      %v2801 = vsel %vm2748, %v2798, %v2800
      %v2802 = vrot.slane %v2731, 7
      %v2803 = vsel %vm2748, %v2800, %v2802
      %v2804 = vrot.slane %v2735, 7
      %v2805 = vsel %vm2748, %v2802, %v2804
      %v2806 = vrot.slane %v2739, 7
      %v2807 = vsel %vm2748, %v2804, %v2806
      %v2808 = vrot.slane %v2743, 7
      %v2809 = vsel %vm2748, %v2806, %v2808
      %v2810 = vrot.slane %v2747, 7
      %v2811 = vsel %vm2748, %v2808, %v2810
      %v2845 = vmul.f32 %v2554, %v2749
      %v2846 = vmul.f32 %v2555, %v2749
      %v2847 = vmul.f32 %v2556, %v2751
      %v2848 = vmul.f32 %v2557, %v2751
      %v2849 = vmul.f32 %v2558, %v2753
      %v2850 = vmul.f32 %v2559, %v2753
      %v2851 = vmul.f32 %v2560, %v2755
      %v2852 = vmul.f32 %v2561, %v2755
      %v2853 = vmul.f32 %v2562, %v2757
      %v2854 = vmul.f32 %v2563, %v2757
      %v2855 = vmul.f32 %v2564, %v2759
      %v2856 = vmul.f32 %v2565, %v2759
      %v2857 = vmul.f32 %v2566, %v2761
      %v2858 = vmul.f32 %v2567, %v2761
      %v2859 = vmul.f32 %v2568, %v2763
      %v2860 = vmul.f32 %v2569, %v2763
      %v2861 = vmul.f32 %v2570, %v2765
      %v2862 = vmul.f32 %v2571, %v2765
      %v2863 = vmul.f32 %v2572, %v2767
      %v2864 = vmul.f32 %v2573, %v2767
      %v2865 = vmul.f32 %v2574, %v2769
      %v2866 = vmul.f32 %v2575, %v2769
      %v2867 = vmul.f32 %v2576, %v2771
      %v2868 = vmul.f32 %v2577, %v2771
      %v2869 = vmul.f32 %v2578, %v2773
      %v2870 = vmul.f32 %v2579, %v2773
      %v2871 = vmul.f32 %v2580, %v2775
      %v2872 = vmul.f32 %v2581, %v2775
      %v2873 = vmul.f32 %v2582, %v2777
      %v2874 = vmul.f32 %v2583, %v2777
      %v2875 = vmul.f32 %v2584, %v2779
      %v2876 = vmul.f32 %v2585, %v2779
      %v2877 = vmul.f32 %v2586, %v2781
      %v2878 = vmul.f32 %v2587, %v2781
      %v2879 = vmul.f32 %v2588, %v2783
      %v2880 = vmul.f32 %v2589, %v2783
      %v2881 = vmul.f32 %v2590, %v2785
      %v2882 = vmul.f32 %v2591, %v2785
      %v2883 = vmul.f32 %v2592, %v2787
      %v2884 = vmul.f32 %v2593, %v2787
      %v2885 = vmul.f32 %v2594, %v2789
      %v2886 = vmul.f32 %v2595, %v2789
      %v2887 = vmul.f32 %v2596, %v2791
      %v2888 = vmul.f32 %v2597, %v2791
      %v2889 = vmul.f32 %v2598, %v2793
      %v2890 = vmul.f32 %v2599, %v2793
      %v2891 = vmul.f32 %v2600, %v2795
      %v2892 = vmul.f32 %v2601, %v2795
      %v2893 = vmul.f32 %v2602, %v2797
      %v2894 = vmul.f32 %v2603, %v2797
      %v2895 = vmul.f32 %v2604, %v2799
      %v2896 = vmul.f32 %v2605, %v2799
      %v2897 = vmul.f32 %v2606, %v2801
      %v2898 = vmul.f32 %v2607, %v2801
      %v2899 = vmul.f32 %v2608, %v2803
      %v2900 = vmul.f32 %v2609, %v2803
      %v2901 = vmul.f32 %v2610, %v2805
      %v2902 = vmul.f32 %v2611, %v2805
      %v2903 = vmul.f32 %v2612, %v2807
      %v2904 = vmul.f32 %v2613, %v2807
      %v2905 = vmul.f32 %v2614, %v2809
      %v2906 = vmul.f32 %v2615, %v2809
      %v2907 = vmul.f32 %v2616, %v2811
      %v2908 = vmul.f32 %v2617, %v2811
      %v2909 = vmul.f32 %v2618, %v2810
      %v2910 = vmul.f32 %v2619, %v2810
      %v2911 = vpack.c.bf16 %v2847, %v2845
      %v2912 = vpack.c.bf16 %v2848, %v2846
      %v2913 = vpack.c.bf16 %v2851, %v2849
      %v2914 = vpack.c.bf16 %v2852, %v2850
      %v2915 = vpack.c.bf16 %v2855, %v2853
      %v2916 = vpack.c.bf16 %v2856, %v2854
      %v2917 = vpack.c.bf16 %v2859, %v2857
      %v2918 = vpack.c.bf16 %v2860, %v2858
      %v2919 = vpack.c.bf16 %v2863, %v2861
      %v2920 = vpack.c.bf16 %v2864, %v2862
      %v2921 = vpack.c.bf16 %v2867, %v2865
      %v2922 = vpack.c.bf16 %v2868, %v2866
      %v2923 = vpack.c.bf16 %v2871, %v2869
      %v2924 = vpack.c.bf16 %v2872, %v2870
      %v2925 = vpack.c.bf16 %v2875, %v2873
      %v2926 = vpack.c.bf16 %v2876, %v2874
      %v2927 = vpack.c.bf16 %v2879, %v2877
      %v2928 = vpack.c.bf16 %v2880, %v2878
      %v2929 = vpack.c.bf16 %v2883, %v2881
      %v2930 = vpack.c.bf16 %v2884, %v2882
      %v2931 = vpack.c.bf16 %v2887, %v2885
      %v2932 = vpack.c.bf16 %v2888, %v2886
      %v2933 = vpack.c.bf16 %v2891, %v2889
      %v2934 = vpack.c.bf16 %v2892, %v2890
      %v2935 = vpack.c.bf16 %v2895, %v2893
      %v2936 = vpack.c.bf16 %v2896, %v2894
      %v2937 = vpack.c.bf16 %v2899, %v2897
      %v2938 = vpack.c.bf16 %v2900, %v2898
      %v2939 = vpack.c.bf16 %v2903, %v2901
      %v2940 = vpack.c.bf16 %v2904, %v2902
      %v2941 = vpack.c.bf16 %v2907, %v2905
      %v2942 = vpack.c.bf16 %v2908, %v2906
      %v2943 = vpack.c.bf16 %v2909, %v2909
      %v2944 = vpack.c.bf16 %v2910, %v2910
      %s2945 = scalar_lea.vmem %s3, 512
      %v2946 = vld [vmem:[%s2945] sm:$0xff]
      %v2947 = vld [vmem:[%s2945 + $0x8] sm:$0xff]
      %v2948 = vld [vmem:[%s2945 + $0x10] sm:$0xff]
      %v2949 = vld [vmem:[%s2945 + $0x18] sm:$0xff]
      %v2950 = vld [vmem:[%s2945 + $0x20] sm:$0xff]
      %v2951 = vld [vmem:[%s2945 + $0x28] sm:$0xff]
      %v2952 = vld [vmem:[%s2945 + $0x30] sm:$0xff]
      %v2953 = vld [vmem:[%s2945 + $0x38] sm:$0xff]
      %v2954 = vld [vmem:[%s2945 + $0x40] sm:$0xff]
      %v2955 = vld [vmem:[%s2945 + $0x48] sm:$0xff]
      %v2956 = vld [vmem:[%s2945 + $0x50] sm:$0xff]
      %v2957 = vld [vmem:[%s2945 + $0x58] sm:$0xff]
      %v2958 = vld [vmem:[%s2945 + $0x60] sm:$0xff]
      %v2959 = vld [vmem:[%s2945 + $0x68] sm:$0xff]
      %v2960 = vld [vmem:[%s2945 + $0x70] sm:$0xff]
      %v2961 = vld [vmem:[%s2945 + $0x78] sm:$0xff]
      %v2962 = vld [vmem:[%s2945 + $0x80] sm:$0xff]
      %v2963 = vld [vmem:[%s2945 + $0x88] sm:$0xff]
      %v2964 = vld [vmem:[%s2945 + $0x90] sm:$0xff]
      %v2965 = vld [vmem:[%s2945 + $0x98] sm:$0xff]
      %v2966 = vld [vmem:[%s2945 + $0xa0] sm:$0xff]
      %v2967 = vld [vmem:[%s2945 + $0xa8] sm:$0xff]
      %v2968 = vld [vmem:[%s2945 + $0xb0] sm:$0xff]
      %v2969 = vld [vmem:[%s2945 + $0xb8] sm:$0xff]
      %v2970 = vld [vmem:[%s2945 + $0xc0] sm:$0xff]
      %v2971 = vld [vmem:[%s2945 + $0xc8] sm:$0xff]
      %v2972 = vld [vmem:[%s2945 + $0xd0] sm:$0xff]
      %v2973 = vld [vmem:[%s2945 + $0xd8] sm:$0xff]
      %v2974 = vld [vmem:[%s2945 + $0xe0] sm:$0xff]
      %v2975 = vld [vmem:[%s2945 + $0xe8] sm:$0xff]
      %v2976 = vld [vmem:[%s2945 + $0xf0] sm:$0xff]
      %v2977 = vld [vmem:[%s2945 + $0xf8] sm:$0xff]
      %vm2978 = vsmask.f32 7424
      %v2980 = vshrl.u32 %v2911, 16
      %v2982 = vshll.u32 %v2911, 16
      %v2984 = vrot.slane %v2982, 1
      %v2985 = vor.u32 %v2980, %v2984
      %v2987 = vshll.u32 %v2913, 16
      %v2989 = vrot.slane %v2987, 1
      %v2990 = vsel %vm2978, %v2985, %v2989
      %v2992 = vshrl.u32 %v2912, 16
      %v2994 = vshll.u32 %v2912, 16
      %v2996 = vrot.slane %v2994, 1
      %v2997 = vor.u32 %v2992, %v2996
      %v2999 = vshll.u32 %v2914, 16
      %v3001 = vrot.slane %v2999, 1
      %v3002 = vsel %vm2978, %v2997, %v3001
      %v3003 = vshrl.u32 %v2913, 16
      %v3005 = vor.u32 %v3003, %v2989
      %v3007 = vshll.u32 %v2915, 16
      %v3009 = vrot.slane %v3007, 1
      %v3010 = vsel %vm2978, %v3005, %v3009
      %v3011 = vshrl.u32 %v2914, 16
      %v3013 = vor.u32 %v3011, %v3001
      %v3015 = vshll.u32 %v2916, 16
      %v3017 = vrot.slane %v3015, 1
      %v3018 = vsel %vm2978, %v3013, %v3017
      %v3019 = vshrl.u32 %v2915, 16
      %v3021 = vor.u32 %v3019, %v3009
      %v3023 = vshll.u32 %v2917, 16
      %v3025 = vrot.slane %v3023, 1
      %v3026 = vsel %vm2978, %v3021, %v3025
      %v3027 = vshrl.u32 %v2916, 16
      %v3029 = vor.u32 %v3027, %v3017
      %v3031 = vshll.u32 %v2918, 16
      %v3033 = vrot.slane %v3031, 1
      %v3034 = vsel %vm2978, %v3029, %v3033
      %v3035 = vshrl.u32 %v2917, 16
      %v3037 = vor.u32 %v3035, %v3025
      %v3039 = vshll.u32 %v2919, 16
      %v3041 = vrot.slane %v3039, 1
      %v3042 = vsel %vm2978, %v3037, %v3041
      %v3043 = vshrl.u32 %v2918, 16
      %v3045 = vor.u32 %v3043, %v3033
      %v3047 = vshll.u32 %v2920, 16
      %v3049 = vrot.slane %v3047, 1
      %v3050 = vsel %vm2978, %v3045, %v3049
      %v3051 = vshrl.u32 %v2919, 16
      %v3053 = vor.u32 %v3051, %v3041
      %v3055 = vshll.u32 %v2921, 16
      %v3057 = vrot.slane %v3055, 1
      %v3058 = vsel %vm2978, %v3053, %v3057
      %v3059 = vshrl.u32 %v2920, 16
      %v3061 = vor.u32 %v3059, %v3049
      %v3063 = vshll.u32 %v2922, 16
      %v3065 = vrot.slane %v3063, 1
      %v3066 = vsel %vm2978, %v3061, %v3065
      %v3067 = vshrl.u32 %v2921, 16
      %v3069 = vor.u32 %v3067, %v3057
      %v3071 = vshll.u32 %v2923, 16
      %v3073 = vrot.slane %v3071, 1
      %v3074 = vsel %vm2978, %v3069, %v3073
      %v3075 = vshrl.u32 %v2922, 16
      %v3077 = vor.u32 %v3075, %v3065
      %v3079 = vshll.u32 %v2924, 16
      %v3081 = vrot.slane %v3079, 1
      %v3082 = vsel %vm2978, %v3077, %v3081
      %v3083 = vshrl.u32 %v2923, 16
      %v3085 = vor.u32 %v3083, %v3073
      %v3087 = vshll.u32 %v2925, 16
      %v3089 = vrot.slane %v3087, 1
      %v3090 = vsel %vm2978, %v3085, %v3089
      %v3091 = vshrl.u32 %v2924, 16
      %v3093 = vor.u32 %v3091, %v3081
      %v3095 = vshll.u32 %v2926, 16
      %v3097 = vrot.slane %v3095, 1
      %v3098 = vsel %vm2978, %v3093, %v3097
      %v3099 = vshrl.u32 %v2925, 16
      %v3101 = vor.u32 %v3099, %v3089
      %v3103 = vshll.u32 %v2927, 16
      %v3105 = vrot.slane %v3103, 1
      %v3106 = vsel %vm2978, %v3101, %v3105
      %v3107 = vshrl.u32 %v2926, 16
      %v3109 = vor.u32 %v3107, %v3097
      %v3111 = vshll.u32 %v2928, 16
      %v3113 = vrot.slane %v3111, 1
      %v3114 = vsel %vm2978, %v3109, %v3113
      %v3115 = vshrl.u32 %v2927, 16
      %v3117 = vor.u32 %v3115, %v3105
      %v3119 = vshll.u32 %v2929, 16
      %v3121 = vrot.slane %v3119, 1
      %v3122 = vsel %vm2978, %v3117, %v3121
      %v3123 = vshrl.u32 %v2928, 16
      %v3125 = vor.u32 %v3123, %v3113
      %v3127 = vshll.u32 %v2930, 16
      %v3129 = vrot.slane %v3127, 1
      %v3130 = vsel %vm2978, %v3125, %v3129
      %v3131 = vshrl.u32 %v2929, 16
      %v3133 = vor.u32 %v3131, %v3121
      %v3135 = vshll.u32 %v2931, 16
      %v3137 = vrot.slane %v3135, 1
      %v3138 = vsel %vm2978, %v3133, %v3137
      %v3139 = vshrl.u32 %v2930, 16
      %v3141 = vor.u32 %v3139, %v3129
      %v3143 = vshll.u32 %v2932, 16
      %v3145 = vrot.slane %v3143, 1
      %v3146 = vsel %vm2978, %v3141, %v3145
      %v3147 = vshrl.u32 %v2931, 16
      %v3149 = vor.u32 %v3147, %v3137
      %v3151 = vshll.u32 %v2933, 16
      %v3153 = vrot.slane %v3151, 1
      %v3154 = vsel %vm2978, %v3149, %v3153
      %v3155 = vshrl.u32 %v2932, 16
      %v3157 = vor.u32 %v3155, %v3145
      %v3159 = vshll.u32 %v2934, 16
      %v3161 = vrot.slane %v3159, 1
      %v3162 = vsel %vm2978, %v3157, %v3161
      %v3163 = vshrl.u32 %v2933, 16
      %v3165 = vor.u32 %v3163, %v3153
      %v3167 = vshll.u32 %v2935, 16
      %v3169 = vrot.slane %v3167, 1
      %v3170 = vsel %vm2978, %v3165, %v3169
      %v3171 = vshrl.u32 %v2934, 16
      %v3173 = vor.u32 %v3171, %v3161
      %v3175 = vshll.u32 %v2936, 16
      %v3177 = vrot.slane %v3175, 1
      %v3178 = vsel %vm2978, %v3173, %v3177
      %v3179 = vshrl.u32 %v2935, 16
      %v3181 = vor.u32 %v3179, %v3169
      %v3183 = vshll.u32 %v2937, 16
      %v3185 = vrot.slane %v3183, 1
      %v3186 = vsel %vm2978, %v3181, %v3185
      %v3187 = vshrl.u32 %v2936, 16
      %v3189 = vor.u32 %v3187, %v3177
      %v3191 = vshll.u32 %v2938, 16
      %v3193 = vrot.slane %v3191, 1
      %v3194 = vsel %vm2978, %v3189, %v3193
      %v3195 = vshrl.u32 %v2937, 16
      %v3197 = vor.u32 %v3195, %v3185
      %v3199 = vshll.u32 %v2939, 16
      %v3201 = vrot.slane %v3199, 1
      %v3202 = vsel %vm2978, %v3197, %v3201
      %v3203 = vshrl.u32 %v2938, 16
      %v3205 = vor.u32 %v3203, %v3193
      %v3207 = vshll.u32 %v2940, 16
      %v3209 = vrot.slane %v3207, 1
      %v3210 = vsel %vm2978, %v3205, %v3209
      %v3211 = vshrl.u32 %v2939, 16
      %v3213 = vor.u32 %v3211, %v3201
      %v3215 = vshll.u32 %v2941, 16
      %v3217 = vrot.slane %v3215, 1
      %v3218 = vsel %vm2978, %v3213, %v3217
      %v3219 = vshrl.u32 %v2940, 16
      %v3221 = vor.u32 %v3219, %v3209
      %v3223 = vshll.u32 %v2942, 16
      %v3225 = vrot.slane %v3223, 1
      %v3226 = vsel %vm2978, %v3221, %v3225
      %v3227 = vshrl.u32 %v2941, 16
      %v3229 = vor.u32 %v3227, %v3217
      %v3231 = vshll.u32 %v2943, 16
      %v3233 = vrot.slane %v3231, 1
      %v3234 = vsel %vm2978, %v3229, %v3233
      %v3235 = vshrl.u32 %v2942, 16
      %v3237 = vor.u32 %v3235, %v3225
      %v3239 = vshll.u32 %v2944, 16
      %v3241 = vrot.slane %v3239, 1
      %v3242 = vsel %vm2978, %v3237, %v3241
      %v3307 = vunpack.c.l.b16 %v2946
      %v3308 = vunpack.c.h.b16 %v2946
      %v3309 = vunpack.c.l.b16 %v2947
      %v3310 = vunpack.c.h.b16 %v2947
      %v3311 = vunpack.c.l.b16 %v2948
      %v3312 = vunpack.c.h.b16 %v2948
      %v3313 = vunpack.c.l.b16 %v2949
      %v3314 = vunpack.c.h.b16 %v2949
      %v3315 = vunpack.c.l.b16 %v2950
      %v3316 = vunpack.c.h.b16 %v2950
      %v3317 = vunpack.c.l.b16 %v2951
      %v3318 = vunpack.c.h.b16 %v2951
      %v3319 = vunpack.c.l.b16 %v2952
      %v3320 = vunpack.c.h.b16 %v2952
      %v3321 = vunpack.c.l.b16 %v2953
      %v3322 = vunpack.c.h.b16 %v2953
      %v3323 = vunpack.c.l.b16 %v2954
      %v3324 = vunpack.c.h.b16 %v2954
      %v3325 = vunpack.c.l.b16 %v2955
      %v3326 = vunpack.c.h.b16 %v2955
      %v3327 = vunpack.c.l.b16 %v2956
      %v3328 = vunpack.c.h.b16 %v2956
      %v3329 = vunpack.c.l.b16 %v2957
      %v3330 = vunpack.c.h.b16 %v2957
      %v3331 = vunpack.c.l.b16 %v2958
      %v3332 = vunpack.c.h.b16 %v2958
      %v3333 = vunpack.c.l.b16 %v2959
      %v3334 = vunpack.c.h.b16 %v2959
      %v3335 = vunpack.c.l.b16 %v2960
      %v3336 = vunpack.c.h.b16 %v2960
      %v3337 = vunpack.c.l.b16 %v2961
      %v3338 = vunpack.c.h.b16 %v2961
      %v3339 = vunpack.c.l.b16 %v2962
      %v3340 = vunpack.c.h.b16 %v2962
      %v3341 = vunpack.c.l.b16 %v2963
      %v3342 = vunpack.c.h.b16 %v2963
      %v3343 = vunpack.c.l.b16 %v2964
      %v3344 = vunpack.c.h.b16 %v2964
      %v3345 = vunpack.c.l.b16 %v2965
      %v3346 = vunpack.c.h.b16 %v2965
      %v3347 = vunpack.c.l.b16 %v2966
      %v3348 = vunpack.c.h.b16 %v2966
      %v3349 = vunpack.c.l.b16 %v2967
      %v3350 = vunpack.c.h.b16 %v2967
      %v3351 = vunpack.c.l.b16 %v2968
      %v3352 = vunpack.c.h.b16 %v2968
      %v3353 = vunpack.c.l.b16 %v2969
      %v3354 = vunpack.c.h.b16 %v2969
      %v3355 = vunpack.c.l.b16 %v2970
      %v3356 = vunpack.c.h.b16 %v2970
      %v3357 = vunpack.c.l.b16 %v2971
      %v3358 = vunpack.c.h.b16 %v2971
      %v3359 = vunpack.c.l.b16 %v2972
      %v3360 = vunpack.c.h.b16 %v2972
      %v3361 = vunpack.c.l.b16 %v2973
      %v3362 = vunpack.c.h.b16 %v2973
      %v3363 = vunpack.c.l.b16 %v2974
      %v3364 = vunpack.c.h.b16 %v2974
      %v3365 = vunpack.c.l.b16 %v2975
      %v3366 = vunpack.c.h.b16 %v2975
      %v3367 = vunpack.c.l.b16 %v2976
      %v3368 = vunpack.c.h.b16 %v2976
      %v3369 = vunpack.c.l.b16 %v2977
      %v3370 = vunpack.c.h.b16 %v2977
      %v3371 = vpack.c.b16 %v3309, %v3307
      %v3372 = vpack.c.b16 %v3310, %v3308
      %v3373 = vpack.c.b16 %v3313, %v3311
      %v3374 = vpack.c.b16 %v3314, %v3312
      %v3375 = vpack.c.b16 %v3317, %v3315
      %v3376 = vpack.c.b16 %v3318, %v3316
      %v3377 = vpack.c.b16 %v3321, %v3319
      %v3378 = vpack.c.b16 %v3322, %v3320
      %v3379 = vpack.c.b16 %v3325, %v3323
      %v3380 = vpack.c.b16 %v3326, %v3324
      %v3381 = vpack.c.b16 %v3329, %v3327
      %v3382 = vpack.c.b16 %v3330, %v3328
      %v3383 = vpack.c.b16 %v3333, %v3331
      %v3384 = vpack.c.b16 %v3334, %v3332
      %v3385 = vpack.c.b16 %v3337, %v3335
      %v3386 = vpack.c.b16 %v3338, %v3336
      %v3387 = vpack.c.b16 %v3341, %v3339
      %v3388 = vpack.c.b16 %v3342, %v3340
      %v3389 = vpack.c.b16 %v3345, %v3343
      %v3390 = vpack.c.b16 %v3346, %v3344
      %v3391 = vpack.c.b16 %v3349, %v3347
      %v3392 = vpack.c.b16 %v3350, %v3348
      %v3393 = vpack.c.b16 %v3353, %v3351
      %v3394 = vpack.c.b16 %v3354, %v3352
      %v3395 = vpack.c.b16 %v3357, %v3355
      %v3396 = vpack.c.b16 %v3358, %v3356
      %v3397 = vpack.c.b16 %v3361, %v3359
      %v3398 = vpack.c.b16 %v3362, %v3360
      %v3399 = vpack.c.b16 %v3365, %v3363
      %v3400 = vpack.c.b16 %v3366, %v3364
      %v3401 = vpack.c.b16 %v3369, %v3367
      %v3402 = vpack.c.b16 %v3370, %v3368
      %3435 = vmatprep.subr.bf16.mxu0 %v3372
      %3436 = vmatpush1.bf16.msra.mxu0 %v3371
      %3437 = vmatprep.subr.bf16.mxu0 %v3374
      %3438 = vmatpush1.bf16.msra.mxu0 %v3373
      %3439 = vmatprep.subr.bf16.mxu0 %v3376
      %3440 = vmatpush1.bf16.msra.mxu0 %v3375
      %3441 = vmatprep.subr.bf16.mxu0 %v3378
      %3442 = vmatpush1.bf16.msra.mxu0 %v3377
      %3443 = vmatprep.subr.bf16.mxu0 %v3380
      %3444 = vmatpush1.bf16.msra.mxu0 %v3379
      %3445 = vmatprep.subr.bf16.mxu0 %v3382
      %3446 = vmatpush1.bf16.msra.mxu0 %v3381
      %3447 = vmatprep.subr.bf16.mxu0 %v3384
      %3448 = vmatpush1.bf16.msra.mxu0 %v3383
      %3449 = vmatprep.subr.bf16.mxu0 %v3386
      %3450 = vmatpush1.bf16.msra.mxu0 %v3385
      %3451 = vmatprep.subr.bf16.mxu0 %v3388
      %3452 = vmatpush1.bf16.msra.mxu0 %v3387
      %3453 = vmatprep.subr.bf16.mxu0 %v3390
      %3454 = vmatpush1.bf16.msra.mxu0 %v3389
      %3455 = vmatprep.subr.bf16.mxu0 %v3392
      %3456 = vmatpush1.bf16.msra.mxu0 %v3391
      %3457 = vmatprep.subr.bf16.mxu0 %v3394
      %3458 = vmatpush1.bf16.msra.mxu0 %v3393
      %3459 = vmatprep.subr.bf16.mxu0 %v3396
      %3460 = vmatpush1.bf16.msra.mxu0 %v3395
      %3461 = vmatprep.subr.bf16.mxu0 %v3398
      %3462 = vmatpush1.bf16.msra.mxu0 %v3397
      %3463 = vmatprep.subr.bf16.mxu0 %v3400
      %3464 = vmatpush1.bf16.msra.mxu0 %v3399
      %3465 = vmatprep.subr.bf16.mxu0 %v3402
      %3466 = vmatpush1.bf16.msra.mxu0 %v3401
      %3467 = vmatprep.mubr.bf16.mxu0 %v3002
      %3468 = vmatmul.mubr.bf16.gmra.mrb[0].mxu0 %v2990
      %v3469 = vpop.f32.mrb[0].mxu0
      %v3470 = vadd.f32 0.0, %v3469
      %v3471 = vpop.f32.mrb[0].mxu0
      %v3472 = vadd.f32 0.0, %v3471
      %v3473 = vpop.f32.mrb[0].mxu0
      %v3474 = vadd.f32 0.0, %v3473
      %v3475 = vpop.f32.mrb[0].mxu0
      %v3476 = vadd.f32 0.0, %v3475
      %3477 = vmatprep.mubr.bf16.mxu0 %v3018
      %3478 = vmatmul.mubr.bf16.gmra.mrb[0].mxu0 %v3010
      %v3479 = vpop.f32.mrb[0].mxu0
      %v3480 = vadd.f32 0.0, %v3479
      %v3481 = vpop.f32.mrb[0].mxu0
      %v3482 = vadd.f32 0.0, %v3481
      %v3483 = vpop.f32.mrb[0].mxu0
      %v3484 = vadd.f32 0.0, %v3483
      %v3485 = vpop.f32.mrb[0].mxu0
      %v3486 = vadd.f32 0.0, %v3485
      %3487 = vmatprep.mubr.bf16.mxu0 %v3034
      %3488 = vmatmul.mubr.bf16.gmra.mrb[0].mxu0 %v3026
      %v3489 = vpop.f32.mrb[0].mxu0
      %v3490 = vadd.f32 0.0, %v3489
      %v3491 = vpop.f32.mrb[0].mxu0
      %v3492 = vadd.f32 0.0, %v3491
      %v3493 = vpop.f32.mrb[0].mxu0
      %v3494 = vadd.f32 0.0, %v3493
      %v3495 = vpop.f32.mrb[0].mxu0
      %v3496 = vadd.f32 0.0, %v3495
      %3497 = vmatprep.mubr.bf16.mxu0 %v3050
      %3498 = vmatmul.mubr.bf16.gmra.mrb[0].mxu0 %v3042
      %v3499 = vpop.f32.mrb[0].mxu0
      %v3500 = vadd.f32 0.0, %v3499
      %v3501 = vpop.f32.mrb[0].mxu0
      %v3502 = vadd.f32 0.0, %v3501
      %v3503 = vpop.f32.mrb[0].mxu0
      %v3504 = vadd.f32 0.0, %v3503
      %v3505 = vpop.f32.mrb[0].mxu0
      %v3506 = vadd.f32 0.0, %v3505
      %3507 = vmatprep.mubr.bf16.mxu0 %v3066
      %3508 = vmatmul.mubr.bf16.gmra.mrb[0].mxu0 %v3058
      %v3509 = vpop.f32.mrb[0].mxu0
      %v3510 = vadd.f32 0.0, %v3509
      %v3511 = vpop.f32.mrb[0].mxu0
      %v3512 = vadd.f32 0.0, %v3511
      %v3513 = vpop.f32.mrb[0].mxu0
      %v3514 = vadd.f32 0.0, %v3513
      %v3515 = vpop.f32.mrb[0].mxu0
      %v3516 = vadd.f32 0.0, %v3515
      %3517 = vmatprep.mubr.bf16.mxu0 %v3082
      %3518 = vmatmul.mubr.bf16.gmra.mrb[0].mxu0 %v3074
      %v3519 = vpop.f32.mrb[0].mxu0
      %v3520 = vadd.f32 0.0, %v3519
      %v3521 = vpop.f32.mrb[0].mxu0
      %v3522 = vadd.f32 0.0, %v3521
      %v3523 = vpop.f32.mrb[0].mxu0
      %v3524 = vadd.f32 0.0, %v3523
      %v3525 = vpop.f32.mrb[0].mxu0
      %v3526 = vadd.f32 0.0, %v3525
      %3527 = vmatprep.mubr.bf16.mxu0 %v3098
      %3528 = vmatmul.mubr.bf16.gmra.mrb[0].mxu0 %v3090
      %v3529 = vpop.f32.mrb[0].mxu0
      %v3530 = vadd.f32 0.0, %v3529
      %v3531 = vpop.f32.mrb[0].mxu0
      %v3532 = vadd.f32 0.0, %v3531
      %v3533 = vpop.f32.mrb[0].mxu0
      %v3534 = vadd.f32 0.0, %v3533
      %v3535 = vpop.f32.mrb[0].mxu0
      %v3536 = vadd.f32 0.0, %v3535
      %3537 = vmatprep.mubr.bf16.mxu0 %v3114
      %3538 = vmatmul.mubr.bf16.gmra.mrb[0].mxu0 %v3106
      %v3539 = vpop.f32.mrb[0].mxu0
      %v3540 = vadd.f32 0.0, %v3539
      %v3541 = vpop.f32.mrb[0].mxu0
      %v3542 = vadd.f32 0.0, %v3541
      %v3543 = vpop.f32.mrb[0].mxu0
      %v3544 = vadd.f32 0.0, %v3543
      %v3545 = vpop.f32.mrb[0].mxu0
      %v3546 = vadd.f32 0.0, %v3545
      %3547 = vmatprep.mubr.bf16.mxu0 %v3130
      %3548 = vmatmul.mubr.bf16.gmra.mrb[0].mxu0 %v3122
      %v3549 = vpop.f32.mrb[0].mxu0
      %v3550 = vadd.f32 0.0, %v3549
      %v3551 = vpop.f32.mrb[0].mxu0
      %v3552 = vadd.f32 0.0, %v3551
      %v3553 = vpop.f32.mrb[0].mxu0
      %v3554 = vadd.f32 0.0, %v3553
      %v3555 = vpop.f32.mrb[0].mxu0
      %v3556 = vadd.f32 0.0, %v3555
      %3557 = vmatprep.mubr.bf16.mxu0 %v3146
      %3558 = vmatmul.mubr.bf16.gmra.mrb[0].mxu0 %v3138
      %v3559 = vpop.f32.mrb[0].mxu0
      %v3560 = vadd.f32 0.0, %v3559
      %v3561 = vpop.f32.mrb[0].mxu0
      %v3562 = vadd.f32 0.0, %v3561
      %v3563 = vpop.f32.mrb[0].mxu0
      %v3564 = vadd.f32 0.0, %v3563
      %v3565 = vpop.f32.mrb[0].mxu0
      %v3566 = vadd.f32 0.0, %v3565
      %3567 = vmatprep.mubr.bf16.mxu0 %v3162
      %3568 = vmatmul.mubr.bf16.gmra.mrb[0].mxu0 %v3154
      %v3569 = vpop.f32.mrb[0].mxu0
      %v3570 = vadd.f32 0.0, %v3569
      %v3571 = vpop.f32.mrb[0].mxu0
      %v3572 = vadd.f32 0.0, %v3571
      %v3573 = vpop.f32.mrb[0].mxu0
      %v3574 = vadd.f32 0.0, %v3573
      %v3575 = vpop.f32.mrb[0].mxu0
      %v3576 = vadd.f32 0.0, %v3575
      %3577 = vmatprep.mubr.bf16.mxu0 %v3178
      %3578 = vmatmul.mubr.bf16.gmra.mrb[0].mxu0 %v3170
      %v3579 = vpop.f32.mrb[0].mxu0
      %v3580 = vadd.f32 0.0, %v3579
      %v3581 = vpop.f32.mrb[0].mxu0
      %v3582 = vadd.f32 0.0, %v3581
      %v3583 = vpop.f32.mrb[0].mxu0
      %v3584 = vadd.f32 0.0, %v3583
      %v3585 = vpop.f32.mrb[0].mxu0
      %v3586 = vadd.f32 0.0, %v3585
      %3587 = vmatprep.mubr.bf16.mxu0 %v3194
      %3588 = vmatmul.mubr.bf16.gmra.mrb[0].mxu0 %v3186
      %v3589 = vpop.f32.mrb[0].mxu0
      %v3590 = vadd.f32 0.0, %v3589
      %v3591 = vpop.f32.mrb[0].mxu0
      %v3592 = vadd.f32 0.0, %v3591
      %v3593 = vpop.f32.mrb[0].mxu0
      %v3594 = vadd.f32 0.0, %v3593
      %v3595 = vpop.f32.mrb[0].mxu0
      %v3596 = vadd.f32 0.0, %v3595
      %3597 = vmatprep.mubr.bf16.mxu0 %v3210
      %3598 = vmatmul.mubr.bf16.gmra.mrb[0].mxu0 %v3202
      %v3599 = vpop.f32.mrb[0].mxu0
      %v3600 = vadd.f32 0.0, %v3599
      %v3601 = vpop.f32.mrb[0].mxu0
      %v3602 = vadd.f32 0.0, %v3601
      %v3603 = vpop.f32.mrb[0].mxu0
      %v3604 = vadd.f32 0.0, %v3603
      %v3605 = vpop.f32.mrb[0].mxu0
      %v3606 = vadd.f32 0.0, %v3605
      %3607 = vmatprep.mubr.bf16.mxu0 %v3226
      %3608 = vmatmul.mubr.bf16.gmra.mrb[0].mxu0 %v3218
      %v3609 = vpop.f32.mrb[0].mxu0
      %v3610 = vadd.f32 0.0, %v3609
      %v3611 = vpop.f32.mrb[0].mxu0
      %v3612 = vadd.f32 0.0, %v3611
      %v3613 = vpop.f32.mrb[0].mxu0
      %v3614 = vadd.f32 0.0, %v3613
      %v3615 = vpop.f32.mrb[0].mxu0
      %v3616 = vadd.f32 0.0, %v3615
      %3617 = vmatprep.mubr.bf16.mxu0 %v3242
      %3618 = vmatmul.mubr.bf16.gmra.mrb[0].mxu0 %v3234
      %v3619 = vpop.f32.mrb[0].mxu0
      %v3620 = vadd.f32 0.0, %v3619
      %v3621 = vpop.f32.mrb[0].mxu0
      %v3622 = vadd.f32 0.0, %v3621
      %v3623 = vpop.f32.mrb[0].mxu0
      %v3624 = vadd.f32 0.0, %v3623
      %v3625 = vpop.f32.mrb[0].mxu0
      %v3626 = vadd.f32 0.0, %v3625
      %3627 = vdwg.mxu0
      %v3628 = vadd.f32 %v2396, %v3470
      %v3629 = vadd.f32 %v2398, %v3472
      %v3630 = vadd.f32 %v2400, %v3474
      %v3631 = vadd.f32 %v2402, %v3476
      %v3632 = vadd.f32 %v2406, %v3480
      %v3633 = vadd.f32 %v2408, %v3482
      %v3634 = vadd.f32 %v2410, %v3484
      %v3635 = vadd.f32 %v2412, %v3486
      %v3636 = vadd.f32 %v2416, %v3490
      %v3637 = vadd.f32 %v2418, %v3492
      %v3638 = vadd.f32 %v2420, %v3494
      %v3639 = vadd.f32 %v2422, %v3496
      %v3640 = vadd.f32 %v2426, %v3500
      %v3641 = vadd.f32 %v2428, %v3502
      %v3642 = vadd.f32 %v2430, %v3504
      %v3643 = vadd.f32 %v2432, %v3506
      %v3644 = vadd.f32 %v2436, %v3510
      %v3645 = vadd.f32 %v2438, %v3512
      %v3646 = vadd.f32 %v2440, %v3514
      %v3647 = vadd.f32 %v2442, %v3516
      %v3648 = vadd.f32 %v2446, %v3520
      %v3649 = vadd.f32 %v2448, %v3522
      %v3650 = vadd.f32 %v2450, %v3524
      %v3651 = vadd.f32 %v2452, %v3526
      %v3652 = vadd.f32 %v2456, %v3530
      %v3653 = vadd.f32 %v2458, %v3532
      %v3654 = vadd.f32 %v2460, %v3534
      %v3655 = vadd.f32 %v2462, %v3536
      %v3656 = vadd.f32 %v2466, %v3540
      %v3657 = vadd.f32 %v2468, %v3542
      %v3658 = vadd.f32 %v2470, %v3544
      %v3659 = vadd.f32 %v2472, %v3546
      %v3660 = vadd.f32 %v2476, %v3550
      %v3661 = vadd.f32 %v2478, %v3552
      %v3662 = vadd.f32 %v2480, %v3554
      %v3663 = vadd.f32 %v2482, %v3556
      %v3664 = vadd.f32 %v2486, %v3560
      %v3665 = vadd.f32 %v2488, %v3562
      %v3666 = vadd.f32 %v2490, %v3564
      %v3667 = vadd.f32 %v2492, %v3566
      %v3668 = vadd.f32 %v2496, %v3570
      %v3669 = vadd.f32 %v2498, %v3572
      %v3670 = vadd.f32 %v2500, %v3574
      %v3671 = vadd.f32 %v2502, %v3576
      %v3672 = vadd.f32 %v2506, %v3580
      %v3673 = vadd.f32 %v2508, %v3582
      %v3674 = vadd.f32 %v2510, %v3584
      %v3675 = vadd.f32 %v2512, %v3586
      %v3676 = vadd.f32 %v2516, %v3590
      %v3677 = vadd.f32 %v2518, %v3592
      %v3678 = vadd.f32 %v2520, %v3594
      %v3679 = vadd.f32 %v2522, %v3596
      %v3680 = vadd.f32 %v2526, %v3600
      %v3681 = vadd.f32 %v2528, %v3602
      %v3682 = vadd.f32 %v2530, %v3604
      %v3683 = vadd.f32 %v2532, %v3606
      %v3684 = vadd.f32 %v2536, %v3610
      %v3685 = vadd.f32 %v2538, %v3612
      %v3686 = vadd.f32 %v2540, %v3614
      %v3687 = vadd.f32 %v2542, %v3616
      %v3688 = vadd.f32 %v2546, %v3620
      %v3689 = vadd.f32 %v2548, %v3622
      %v3690 = vadd.f32 %v2550, %v3624
      %v3691 = vadd.f32 %v2552, %v3626
      %v3692 = vld [vmem:[#allocation2 + $0x20] sm:$0x80]
      %v3693 = vld [vmem:[#allocation2 + $0x28] sm:$0x80]
      %v3694 = vld [vmem:[#allocation2 + $0x30] sm:$0xff]
      %v3695 = vld [vmem:[#allocation2 + $0x38] sm:$0xff]
      %v3696 = vld [vmem:[#allocation2 + $0x40] sm:$0xff]
      %v3697 = vld [vmem:[#allocation2 + $0x48] sm:$0xff]
      %v3698 = vld [vmem:[#allocation2 + $0x50] sm:$0xff]
      %v3699 = vld [vmem:[#allocation2 + $0x58] sm:$0xff]
      %v3700 = vld [vmem:[#allocation2 + $0x60] sm:$0xff]
      %v3701 = vld [vmem:[#allocation2 + $0x68] sm:$0xff]
      %v3702 = vld [vmem:[#allocation2 + $0x70] sm:$0xff]
      %v3703 = vld [vmem:[#allocation2 + $0x78] sm:$0xff]
      %v3704 = vld [vmem:[#allocation2 + $0x80] sm:$0xff]
      %v3705 = vld [vmem:[#allocation2 + $0x88] sm:$0xff]
      %v3706 = vld [vmem:[#allocation2 + $0x90] sm:$0xff]
      %v3707 = vld [vmem:[#allocation2 + $0x98] sm:$0xff]
      %v3708 = vld [vmem:[#allocation2 + $0xa0] sm:$0xff]
      %v3709 = vld [vmem:[#allocation2 + $0xa8] sm:$0xff]
      %v3710 = vld [vmem:[#allocation2 + $0xb0] sm:$0xff]
      %v3711 = vld [vmem:[#allocation2 + $0xb8] sm:$0xff]
      %v3712 = vld [vmem:[#allocation2 + $0xc0] sm:$0xff]
      %v3713 = vld [vmem:[#allocation2 + $0xc8] sm:$0xff]
      %v3714 = vld [vmem:[#allocation2 + $0xd0] sm:$0xff]
      %v3715 = vld [vmem:[#allocation2 + $0xd8] sm:$0xff]
      %v3716 = vld [vmem:[#allocation2 + $0xe0] sm:$0xff]
      %v3717 = vld [vmem:[#allocation2 + $0xe8] sm:$0xff]
      %v3718 = vld [vmem:[#allocation2 + $0xf0] sm:$0xff]
      %v3719 = vld [vmem:[#allocation2 + $0xf8] sm:$0xff]
      %v3720 = vld [vmem:[#allocation2 + $0x100] sm:$0xff]
      %v3721 = vld [vmem:[#allocation2 + $0x108] sm:$0xff]
      %v3722 = vld [vmem:[#allocation2 + $0x110] sm:$0xff]
      %v3723 = vld [vmem:[#allocation2 + $0x118] sm:$0xff]
      %v3724 = vld [vmem:[#allocation2 + $0x120] sm:$0xff]
      %v3725 = vld [vmem:[#allocation2 + $0x128] sm:$0xff]
      %v3726 = vld [vmem:[#allocation2 + $0x130] sm:$0xff]
      %v3727 = vld [vmem:[#allocation2 + $0x138] sm:$0xff]
      %v3728 = vld [vmem:[#allocation2 + $0x140] sm:$0xff]
      %v3729 = vld [vmem:[#allocation2 + $0x148] sm:$0xff]
      %v3730 = vld [vmem:[#allocation2 + $0x150] sm:$0xff]
      %v3731 = vld [vmem:[#allocation2 + $0x158] sm:$0xff]
      %v3732 = vld [vmem:[#allocation2 + $0x160] sm:$0xff]
      %v3733 = vld [vmem:[#allocation2 + $0x168] sm:$0xff]
      %v3734 = vld [vmem:[#allocation2 + $0x170] sm:$0xff]
      %v3735 = vld [vmem:[#allocation2 + $0x178] sm:$0xff]
      %v3736 = vld [vmem:[#allocation2 + $0x180] sm:$0xff]
      %v3737 = vld [vmem:[#allocation2 + $0x188] sm:$0xff]
      %v3738 = vld [vmem:[#allocation2 + $0x190] sm:$0xff]
      %v3739 = vld [vmem:[#allocation2 + $0x198] sm:$0xff]
      %v3740 = vld [vmem:[#allocation2 + $0x1a0] sm:$0xff]
      %v3741 = vld [vmem:[#allocation2 + $0x1a8] sm:$0xff]
      %v3742 = vld [vmem:[#allocation2 + $0x1b0] sm:$0xff]
      %v3743 = vld [vmem:[#allocation2 + $0x1b8] sm:$0xff]
      %v3744 = vld [vmem:[#allocation2 + $0x1c0] sm:$0xff]
      %v3745 = vld [vmem:[#allocation2 + $0x1c8] sm:$0xff]
      %v3746 = vld [vmem:[#allocation2 + $0x1d0] sm:$0xff]
      %v3747 = vld [vmem:[#allocation2 + $0x1d8] sm:$0xff]
      %v3748 = vld [vmem:[#allocation2 + $0x1e0] sm:$0xff]
      %v3749 = vld [vmem:[#allocation2 + $0x1e8] sm:$0xff]
      %v3750 = vld [vmem:[#allocation2 + $0x1f0] sm:$0xff]
      %v3751 = vld [vmem:[#allocation2 + $0x1f8] sm:$0xff]
      %v3752 = vld [vmem:[#allocation2 + $0x200] sm:$0xff]
      %v3753 = vld [vmem:[#allocation2 + $0x208] sm:$0xff]
      %v3754 = vld [vmem:[#allocation2 + $0x210] sm:$0xff]
      %v3755 = vld [vmem:[#allocation2 + $0x218] sm:$0xff]
      %v3756 = vld [vmem:[#allocation2 + $0x220] sm:$0x7f]
      %v3757 = vld [vmem:[#allocation2 + $0x228] sm:$0x7f]
      %v3758 = vmul.f32 %v3692, %v1216
      %v3759 = vmul.f32 %v3693, %v1216
      %v3760 = vmul.f32 %v3694, %v1218
      %v3761 = vmul.f32 %v3695, %v1218
      %v3762 = vmul.f32 %v3696, %v1220
      %v3763 = vmul.f32 %v3697, %v1220
      %v3764 = vmul.f32 %v3698, %v1222
      %v3765 = vmul.f32 %v3699, %v1222
      %v3766 = vmul.f32 %v3700, %v1224
      %v3767 = vmul.f32 %v3701, %v1224
      %v3768 = vmul.f32 %v3702, %v1226
      %v3769 = vmul.f32 %v3703, %v1226
      %v3770 = vmul.f32 %v3704, %v1228
      %v3771 = vmul.f32 %v3705, %v1228
      %v3772 = vmul.f32 %v3706, %v1230
      %v3773 = vmul.f32 %v3707, %v1230
      %v3774 = vmul.f32 %v3708, %v1232
      %v3775 = vmul.f32 %v3709, %v1232
      %v3776 = vmul.f32 %v3710, %v1234
      %v3777 = vmul.f32 %v3711, %v1234
      %v3778 = vmul.f32 %v3712, %v1236
      %v3779 = vmul.f32 %v3713, %v1236
      %v3780 = vmul.f32 %v3714, %v1238
      %v3781 = vmul.f32 %v3715, %v1238
      %v3782 = vmul.f32 %v3716, %v1240
      %v3783 = vmul.f32 %v3717, %v1240
      %v3784 = vmul.f32 %v3718, %v1242
      %v3785 = vmul.f32 %v3719, %v1242
      %v3786 = vmul.f32 %v3720, %v1244
      %v3787 = vmul.f32 %v3721, %v1244
      %v3788 = vmul.f32 %v3722, %v1246
      %v3789 = vmul.f32 %v3723, %v1246
      %v3790 = vmul.f32 %v3724, %v1248
      %v3791 = vmul.f32 %v3725, %v1248
      %v3792 = vmul.f32 %v3726, %v1250
      %v3793 = vmul.f32 %v3727, %v1250
      %v3794 = vmul.f32 %v3728, %v1252
      %v3795 = vmul.f32 %v3729, %v1252
      %v3796 = vmul.f32 %v3730, %v1254
      %v3797 = vmul.f32 %v3731, %v1254
      %v3798 = vmul.f32 %v3732, %v1256
      %v3799 = vmul.f32 %v3733, %v1256
      %v3800 = vmul.f32 %v3734, %v1258
      %v3801 = vmul.f32 %v3735, %v1258
      %v3802 = vmul.f32 %v3736, %v1260
      %v3803 = vmul.f32 %v3737, %v1260
      %v3804 = vmul.f32 %v3738, %v1262
      %v3805 = vmul.f32 %v3739, %v1262
      %v3806 = vmul.f32 %v3740, %v1264
      %v3807 = vmul.f32 %v3741, %v1264
      %v3808 = vmul.f32 %v3742, %v1266
      %v3809 = vmul.f32 %v3743, %v1266
      %v3810 = vmul.f32 %v3744, %v1268
      %v3811 = vmul.f32 %v3745, %v1268
      %v3812 = vmul.f32 %v3746, %v1270
      %v3813 = vmul.f32 %v3747, %v1270
      %v3814 = vmul.f32 %v3748, %v1272
      %v3815 = vmul.f32 %v3749, %v1272
      %v3816 = vmul.f32 %v3750, %v1274
      %v3817 = vmul.f32 %v3751, %v1274
      %v3818 = vmul.f32 %v3752, %v1276
      %v3819 = vmul.f32 %v3753, %v1276
      %v3820 = vmul.f32 %v3754, %v1278
      %v3821 = vmul.f32 %v3755, %v1278
      %v3822 = vmul.f32 %v3756, %v1277
      %v3823 = vmul.f32 %v3757, %v1277
      %v3824 = vpack.c.bf16 %v3760, %v3758
      %v3825 = vpack.c.bf16 %v3761, %v3759
      %v3826 = vpack.c.bf16 %v3764, %v3762
      %v3827 = vpack.c.bf16 %v3765, %v3763
      %v3828 = vpack.c.bf16 %v3768, %v3766
      %v3829 = vpack.c.bf16 %v3769, %v3767
      %v3830 = vpack.c.bf16 %v3772, %v3770
      %v3831 = vpack.c.bf16 %v3773, %v3771
      %v3832 = vpack.c.bf16 %v3776, %v3774
      %v3833 = vpack.c.bf16 %v3777, %v3775
      %v3834 = vpack.c.bf16 %v3780, %v3778
      %v3835 = vpack.c.bf16 %v3781, %v3779
      %v3836 = vpack.c.bf16 %v3784, %v3782
      %v3837 = vpack.c.bf16 %v3785, %v3783
      %v3838 = vpack.c.bf16 %v3788, %v3786
      %v3839 = vpack.c.bf16 %v3789, %v3787
      %v3840 = vpack.c.bf16 %v3792, %v3790
      %v3841 = vpack.c.bf16 %v3793, %v3791
      %v3842 = vpack.c.bf16 %v3796, %v3794
      %v3843 = vpack.c.bf16 %v3797, %v3795
      %v3844 = vpack.c.bf16 %v3800, %v3798
      %v3845 = vpack.c.bf16 %v3801, %v3799
      %v3846 = vpack.c.bf16 %v3804, %v3802
      %v3847 = vpack.c.bf16 %v3805, %v3803
      %v3848 = vpack.c.bf16 %v3808, %v3806
      %v3849 = vpack.c.bf16 %v3809, %v3807
      %v3850 = vpack.c.bf16 %v3812, %v3810
      %v3851 = vpack.c.bf16 %v3813, %v3811
      %v3852 = vpack.c.bf16 %v3816, %v3814
      %v3853 = vpack.c.bf16 %v3817, %v3815
      %v3854 = vpack.c.bf16 %v3820, %v3818
      %v3855 = vpack.c.bf16 %v3821, %v3819
      %v3856 = vpack.c.bf16 %v3822, %v3822
      %v3857 = vpack.c.bf16 %v3823, %v3823
      %s3858 = scalar_lea.vmem %s3, 768
      %v3859 = vld [vmem:[%s3858] sm:$0xff]
      %v3860 = vld [vmem:[%s3858 + $0x8] sm:$0xff]
      %v3861 = vld [vmem:[%s3858 + $0x10] sm:$0xff]
      %v3862 = vld [vmem:[%s3858 + $0x18] sm:$0xff]
      %v3863 = vld [vmem:[%s3858 + $0x20] sm:$0xff]
      %v3864 = vld [vmem:[%s3858 + $0x28] sm:$0xff]
      %v3865 = vld [vmem:[%s3858 + $0x30] sm:$0xff]
      %v3866 = vld [vmem:[%s3858 + $0x38] sm:$0xff]
      %v3867 = vld [vmem:[%s3858 + $0x40] sm:$0xff]
      %v3868 = vld [vmem:[%s3858 + $0x48] sm:$0xff]
      %v3869 = vld [vmem:[%s3858 + $0x50] sm:$0xff]
      %v3870 = vld [vmem:[%s3858 + $0x58] sm:$0xff]
      %v3871 = vld [vmem:[%s3858 + $0x60] sm:$0xff]
      %v3872 = vld [vmem:[%s3858 + $0x68] sm:$0xff]
      %v3873 = vld [vmem:[%s3858 + $0x70] sm:$0xff]
      %v3874 = vld [vmem:[%s3858 + $0x78] sm:$0xff]
      %v3875 = vld [vmem:[%s3858 + $0x80] sm:$0xff]
      %v3876 = vld [vmem:[%s3858 + $0x88] sm:$0xff]
      %v3877 = vld [vmem:[%s3858 + $0x90] sm:$0xff]
      %v3878 = vld [vmem:[%s3858 + $0x98] sm:$0xff]
      %v3879 = vld [vmem:[%s3858 + $0xa0] sm:$0xff]
      %v3880 = vld [vmem:[%s3858 + $0xa8] sm:$0xff]
      %v3881 = vld [vmem:[%s3858 + $0xb0] sm:$0xff]
      %v3882 = vld [vmem:[%s3858 + $0xb8] sm:$0xff]
      %v3883 = vld [vmem:[%s3858 + $0xc0] sm:$0xff]
      %v3884 = vld [vmem:[%s3858 + $0xc8] sm:$0xff]
      %v3885 = vld [vmem:[%s3858 + $0xd0] sm:$0xff]
      %v3886 = vld [vmem:[%s3858 + $0xd8] sm:$0xff]
      %v3887 = vld [vmem:[%s3858 + $0xe0] sm:$0xff]
      %v3888 = vld [vmem:[%s3858 + $0xe8] sm:$0xff]
      %v3889 = vld [vmem:[%s3858 + $0xf0] sm:$0xff]
      %v3890 = vld [vmem:[%s3858 + $0xf8] sm:$0xff]
      %v3892 = vshrl.u32 %v3824, 16
      %v3894 = vrot.slane %v3892, 3
      %v3895 = vshll.u32 %v3824, 16
      %v3897 = vrot.slane %v3895, 4
      %v3898 = vor.u32 %v3894, %v3897
      %v3900 = vshrl.u32 %v3826, 16
      %v3902 = vrot.slane %v3900, 3
      %v3903 = vshll.u32 %v3826, 16
      %v3905 = vrot.slane %v3903, 4
      %v3906 = vor.u32 %v3902, %v3905
      %v3907 = vsel %vm1864, %v3898, %v3906
      %v3909 = vshrl.u32 %v3825, 16
      %v3911 = vrot.slane %v3909, 3
      %v3912 = vshll.u32 %v3825, 16
      %v3914 = vrot.slane %v3912, 4
      %v3915 = vor.u32 %v3911, %v3914
      %v3917 = vshrl.u32 %v3827, 16
      %v3919 = vrot.slane %v3917, 3
      %v3920 = vshll.u32 %v3827, 16
      %v3922 = vrot.slane %v3920, 4
      %v3923 = vor.u32 %v3919, %v3922
      %v3924 = vsel %vm1864, %v3915, %v3923
      %v3926 = vshrl.u32 %v3828, 16
      %v3928 = vrot.slane %v3926, 3
      %v3929 = vshll.u32 %v3828, 16
      %v3931 = vrot.slane %v3929, 4
      %v3932 = vor.u32 %v3928, %v3931
      %v3933 = vsel %vm1864, %v3906, %v3932
      %v3935 = vshrl.u32 %v3829, 16
      %v3937 = vrot.slane %v3935, 3
      %v3938 = vshll.u32 %v3829, 16
      %v3940 = vrot.slane %v3938, 4
      %v3941 = vor.u32 %v3937, %v3940
      %v3942 = vsel %vm1864, %v3923, %v3941
      %v3944 = vshrl.u32 %v3830, 16
      %v3946 = vrot.slane %v3944, 3
      %v3947 = vshll.u32 %v3830, 16
      %v3949 = vrot.slane %v3947, 4
      %v3950 = vor.u32 %v3946, %v3949
      %v3951 = vsel %vm1864, %v3932, %v3950
      %v3953 = vshrl.u32 %v3831, 16
      %v3955 = vrot.slane %v3953, 3
      %v3956 = vshll.u32 %v3831, 16
      %v3958 = vrot.slane %v3956, 4
      %v3959 = vor.u32 %v3955, %v3958
      %v3960 = vsel %vm1864, %v3941, %v3959
      %v3962 = vshrl.u32 %v3832, 16
      %v3964 = vrot.slane %v3962, 3
      %v3965 = vshll.u32 %v3832, 16
      %v3967 = vrot.slane %v3965, 4
      %v3968 = vor.u32 %v3964, %v3967
      %v3969 = vsel %vm1864, %v3950, %v3968
      %v3971 = vshrl.u32 %v3833, 16
      %v3973 = vrot.slane %v3971, 3
      %v3974 = vshll.u32 %v3833, 16
      %v3976 = vrot.slane %v3974, 4
      %v3977 = vor.u32 %v3973, %v3976
      %v3978 = vsel %vm1864, %v3959, %v3977
      %v3980 = vshrl.u32 %v3834, 16
      %v3982 = vrot.slane %v3980, 3
      %v3983 = vshll.u32 %v3834, 16
      %v3985 = vrot.slane %v3983, 4
      %v3986 = vor.u32 %v3982, %v3985
      %v3987 = vsel %vm1864, %v3968, %v3986
      %v3989 = vshrl.u32 %v3835, 16
      %v3991 = vrot.slane %v3989, 3
      %v3992 = vshll.u32 %v3835, 16
      %v3994 = vrot.slane %v3992, 4
      %v3995 = vor.u32 %v3991, %v3994
      %v3996 = vsel %vm1864, %v3977, %v3995
      %v3998 = vshrl.u32 %v3836, 16
      %v4000 = vrot.slane %v3998, 3
      %v4001 = vshll.u32 %v3836, 16
      %v4003 = vrot.slane %v4001, 4
      %v4004 = vor.u32 %v4000, %v4003
      %v4005 = vsel %vm1864, %v3986, %v4004
      %v4007 = vshrl.u32 %v3837, 16
      %v4009 = vrot.slane %v4007, 3
      %v4010 = vshll.u32 %v3837, 16
      %v4012 = vrot.slane %v4010, 4
      %v4013 = vor.u32 %v4009, %v4012
      %v4014 = vsel %vm1864, %v3995, %v4013
      %v4016 = vshrl.u32 %v3838, 16
      %v4018 = vrot.slane %v4016, 3
      %v4019 = vshll.u32 %v3838, 16
      %v4021 = vrot.slane %v4019, 4
      %v4022 = vor.u32 %v4018, %v4021
      %v4023 = vsel %vm1864, %v4004, %v4022
      %v4025 = vshrl.u32 %v3839, 16
      %v4027 = vrot.slane %v4025, 3
      %v4028 = vshll.u32 %v3839, 16
      %v4030 = vrot.slane %v4028, 4
      %v4031 = vor.u32 %v4027, %v4030
      %v4032 = vsel %vm1864, %v4013, %v4031
      %v4034 = vshrl.u32 %v3840, 16
      %v4036 = vrot.slane %v4034, 3
      %v4037 = vshll.u32 %v3840, 16
      %v4039 = vrot.slane %v4037, 4
      %v4040 = vor.u32 %v4036, %v4039
      %v4041 = vsel %vm1864, %v4022, %v4040
      %v4043 = vshrl.u32 %v3841, 16
      %v4045 = vrot.slane %v4043, 3
      %v4046 = vshll.u32 %v3841, 16
      %v4048 = vrot.slane %v4046, 4
      %v4049 = vor.u32 %v4045, %v4048
      %v4050 = vsel %vm1864, %v4031, %v4049
      %v4052 = vshrl.u32 %v3842, 16
      %v4054 = vrot.slane %v4052, 3
      %v4055 = vshll.u32 %v3842, 16
      %v4057 = vrot.slane %v4055, 4
      %v4058 = vor.u32 %v4054, %v4057
      %v4059 = vsel %vm1864, %v4040, %v4058
      %v4061 = vshrl.u32 %v3843, 16
      %v4063 = vrot.slane %v4061, 3
      %v4064 = vshll.u32 %v3843, 16
      %v4066 = vrot.slane %v4064, 4
      %v4067 = vor.u32 %v4063, %v4066
      %v4068 = vsel %vm1864, %v4049, %v4067
      %v4070 = vshrl.u32 %v3844, 16
      %v4072 = vrot.slane %v4070, 3
      %v4073 = vshll.u32 %v3844, 16
      %v4075 = vrot.slane %v4073, 4
      %v4076 = vor.u32 %v4072, %v4075
      %v4077 = vsel %vm1864, %v4058, %v4076
      %v4079 = vshrl.u32 %v3845, 16
      %v4081 = vrot.slane %v4079, 3
      %v4082 = vshll.u32 %v3845, 16
      %v4084 = vrot.slane %v4082, 4
      %v4085 = vor.u32 %v4081, %v4084
      %v4086 = vsel %vm1864, %v4067, %v4085
      %v4088 = vshrl.u32 %v3846, 16
      %v4090 = vrot.slane %v4088, 3
      %v4091 = vshll.u32 %v3846, 16
      %v4093 = vrot.slane %v4091, 4
      %v4094 = vor.u32 %v4090, %v4093
      %v4095 = vsel %vm1864, %v4076, %v4094
      %v4097 = vshrl.u32 %v3847, 16
      %v4099 = vrot.slane %v4097, 3
      %v4100 = vshll.u32 %v3847, 16
      %v4102 = vrot.slane %v4100, 4
      %v4103 = vor.u32 %v4099, %v4102
      %v4104 = vsel %vm1864, %v4085, %v4103
      %v4106 = vshrl.u32 %v3848, 16
      %v4108 = vrot.slane %v4106, 3
      %v4109 = vshll.u32 %v3848, 16
      %v4111 = vrot.slane %v4109, 4
      %v4112 = vor.u32 %v4108, %v4111
      %v4113 = vsel %vm1864, %v4094, %v4112
      %v4115 = vshrl.u32 %v3849, 16
      %v4117 = vrot.slane %v4115, 3
      %v4118 = vshll.u32 %v3849, 16
      %v4120 = vrot.slane %v4118, 4
      %v4121 = vor.u32 %v4117, %v4120
      %v4122 = vsel %vm1864, %v4103, %v4121
      %v4124 = vshrl.u32 %v3850, 16
      %v4126 = vrot.slane %v4124, 3
      %v4127 = vshll.u32 %v3850, 16
      %v4129 = vrot.slane %v4127, 4
      %v4130 = vor.u32 %v4126, %v4129
      %v4131 = vsel %vm1864, %v4112, %v4130
      %v4133 = vshrl.u32 %v3851, 16
      %v4135 = vrot.slane %v4133, 3
      %v4136 = vshll.u32 %v3851, 16
      %v4138 = vrot.slane %v4136, 4
      %v4139 = vor.u32 %v4135, %v4138
      %v4140 = vsel %vm1864, %v4121, %v4139
      %v4142 = vshrl.u32 %v3852, 16
      %v4144 = vrot.slane %v4142, 3
      %v4145 = vshll.u32 %v3852, 16
      %v4147 = vrot.slane %v4145, 4
      %v4148 = vor.u32 %v4144, %v4147
      %v4149 = vsel %vm1864, %v4130, %v4148
      %v4151 = vshrl.u32 %v3853, 16
      %v4153 = vrot.slane %v4151, 3
      %v4154 = vshll.u32 %v3853, 16
      %v4156 = vrot.slane %v4154, 4
      %v4157 = vor.u32 %v4153, %v4156
      %v4158 = vsel %vm1864, %v4139, %v4157
      %v4160 = vshrl.u32 %v3854, 16
      %v4162 = vrot.slane %v4160, 3
      %v4163 = vshll.u32 %v3854, 16
      %v4165 = vrot.slane %v4163, 4
      %v4166 = vor.u32 %v4162, %v4165
      %v4167 = vsel %vm1864, %v4148, %v4166
      %v4169 = vshrl.u32 %v3855, 16
      %v4171 = vrot.slane %v4169, 3
      %v4172 = vshll.u32 %v3855, 16
      %v4174 = vrot.slane %v4172, 4
      %v4175 = vor.u32 %v4171, %v4174
      %v4176 = vsel %vm1864, %v4157, %v4175
      %v4178 = vshrl.u32 %v3856, 16
      %v4180 = vrot.slane %v4178, 3
      %v4181 = vshll.u32 %v3856, 16
      %v4183 = vrot.slane %v4181, 4
      %v4184 = vor.u32 %v4180, %v4183
      %v4185 = vsel %vm1864, %v4166, %v4184
      %v4187 = vshrl.u32 %v3857, 16
      %v4189 = vrot.slane %v4187, 3
      %v4190 = vshll.u32 %v3857, 16
      %v4192 = vrot.slane %v4190, 4
      %v4193 = vor.u32 %v4189, %v4192
      %v4194 = vsel %vm1864, %v4175, %v4193
      %v4259 = vunpack.c.l.b16 %v3859
      %v4260 = vunpack.c.h.b16 %v3859
      %v4261 = vunpack.c.l.b16 %v3860
      %v4262 = vunpack.c.h.b16 %v3860
      %v4263 = vunpack.c.l.b16 %v3861
      %v4264 = vunpack.c.h.b16 %v3861
      %v4265 = vunpack.c.l.b16 %v3862
      %v4266 = vunpack.c.h.b16 %v3862
      %v4267 = vunpack.c.l.b16 %v3863
      %v4268 = vunpack.c.h.b16 %v3863
      %v4269 = vunpack.c.l.b16 %v3864
      %v4270 = vunpack.c.h.b16 %v3864
      %v4271 = vunpack.c.l.b16 %v3865
      %v4272 = vunpack.c.h.b16 %v3865
      %v4273 = vunpack.c.l.b16 %v3866
      %v4274 = vunpack.c.h.b16 %v3866
      %v4275 = vunpack.c.l.b16 %v3867
      %v4276 = vunpack.c.h.b16 %v3867
      %v4277 = vunpack.c.l.b16 %v3868
      %v4278 = vunpack.c.h.b16 %v3868
      %v4279 = vunpack.c.l.b16 %v3869
      %v4280 = vunpack.c.h.b16 %v3869
      %v4281 = vunpack.c.l.b16 %v3870
      %v4282 = vunpack.c.h.b16 %v3870
      %v4283 = vunpack.c.l.b16 %v3871
      %v4284 = vunpack.c.h.b16 %v3871
      %v4285 = vunpack.c.l.b16 %v3872
      %v4286 = vunpack.c.h.b16 %v3872
      %v4287 = vunpack.c.l.b16 %v3873
      %v4288 = vunpack.c.h.b16 %v3873
      %v4289 = vunpack.c.l.b16 %v3874
      %v4290 = vunpack.c.h.b16 %v3874
      %v4291 = vunpack.c.l.b16 %v3875
      %v4292 = vunpack.c.h.b16 %v3875
      %v4293 = vunpack.c.l.b16 %v3876
      %v4294 = vunpack.c.h.b16 %v3876
      %v4295 = vunpack.c.l.b16 %v3877
      %v4296 = vunpack.c.h.b16 %v3877
      %v4297 = vunpack.c.l.b16 %v3878
      %v4298 = vunpack.c.h.b16 %v3878
      %v4299 = vunpack.c.l.b16 %v3879
      %v4300 = vunpack.c.h.b16 %v3879
      %v4301 = vunpack.c.l.b16 %v3880
      %v4302 = vunpack.c.h.b16 %v3880
      %v4303 = vunpack.c.l.b16 %v3881
      %v4304 = vunpack.c.h.b16 %v3881
      %v4305 = vunpack.c.l.b16 %v3882
      %v4306 = vunpack.c.h.b16 %v3882
      %v4307 = vunpack.c.l.b16 %v3883
      %v4308 = vunpack.c.h.b16 %v3883
      %v4309 = vunpack.c.l.b16 %v3884
      %v4310 = vunpack.c.h.b16 %v3884
      %v4311 = vunpack.c.l.b16 %v3885
      %v4312 = vunpack.c.h.b16 %v3885
      %v4313 = vunpack.c.l.b16 %v3886
      %v4314 = vunpack.c.h.b16 %v3886
      %v4315 = vunpack.c.l.b16 %v3887
      %v4316 = vunpack.c.h.b16 %v3887
      %v4317 = vunpack.c.l.b16 %v3888
      %v4318 = vunpack.c.h.b16 %v3888
      %v4319 = vunpack.c.l.b16 %v3889
      %v4320 = vunpack.c.h.b16 %v3889
      %v4321 = vunpack.c.l.b16 %v3890
      %v4322 = vunpack.c.h.b16 %v3890
      %v4323 = vpack.c.b16 %v4261, %v4259
      %v4324 = vpack.c.b16 %v4262, %v4260
      %v4325 = vpack.c.b16 %v4265, %v4263
      %v4326 = vpack.c.b16 %v4266, %v4264
      %v4327 = vpack.c.b16 %v4269, %v4267
      %v4328 = vpack.c.b16 %v4270, %v4268
      %v4329 = vpack.c.b16 %v4273, %v4271
      %v4330 = vpack.c.b16 %v4274, %v4272
      %v4331 = vpack.c.b16 %v4277, %v4275
      %v4332 = vpack.c.b16 %v4278, %v4276
      %v4333 = vpack.c.b16 %v4281, %v4279
      %v4334 = vpack.c.b16 %v4282, %v4280
      %v4335 = vpack.c.b16 %v4285, %v4283
      %v4336 = vpack.c.b16 %v4286, %v4284
      %v4337 = vpack.c.b16 %v4289, %v4287
      %v4338 = vpack.c.b16 %v4290, %v4288
      %v4339 = vpack.c.b16 %v4293, %v4291
      %v4340 = vpack.c.b16 %v4294, %v4292
      %v4341 = vpack.c.b16 %v4297, %v4295
      %v4342 = vpack.c.b16 %v4298, %v4296
      %v4343 = vpack.c.b16 %v4301, %v4299
      %v4344 = vpack.c.b16 %v4302, %v4300
      %v4345 = vpack.c.b16 %v4305, %v4303
      %v4346 = vpack.c.b16 %v4306, %v4304
      %v4347 = vpack.c.b16 %v4309, %v4307
      %v4348 = vpack.c.b16 %v4310, %v4308
      %v4349 = vpack.c.b16 %v4313, %v4311
      %v4350 = vpack.c.b16 %v4314, %v4312
      %v4351 = vpack.c.b16 %v4317, %v4315
      %v4352 = vpack.c.b16 %v4318, %v4316
      %v4353 = vpack.c.b16 %v4321, %v4319
      %v4354 = vpack.c.b16 %v4322, %v4320
      %4387 = vmatprep.subr.bf16.mxu0 %v4324
      %4388 = vmatpush1.bf16.msra.mxu0 %v4323
      %4389 = vmatprep.subr.bf16.mxu0 %v4326
      %4390 = vmatpush1.bf16.msra.mxu0 %v4325
      %4391 = vmatprep.subr.bf16.mxu0 %v4328
      %4392 = vmatpush1.bf16.msra.mxu0 %v4327
      %4393 = vmatprep.subr.bf16.mxu0 %v4330
      %4394 = vmatpush1.bf16.msra.mxu0 %v4329
      %4395 = vmatprep.subr.bf16.mxu0 %v4332
      %4396 = vmatpush1.bf16.msra.mxu0 %v4331
      %4397 = vmatprep.subr.bf16.mxu0 %v4334
      %4398 = vmatpush1.bf16.msra.mxu0 %v4333
      %4399 = vmatprep.subr.bf16.mxu0 %v4336
      %4400 = vmatpush1.bf16.msra.mxu0 %v4335
      %4401 = vmatprep.subr.bf16.mxu0 %v4338
      %4402 = vmatpush1.bf16.msra.mxu0 %v4337
      %4403 = vmatprep.subr.bf16.mxu0 %v4340
      %4404 = vmatpush1.bf16.msra.mxu0 %v4339
      %4405 = vmatprep.subr.bf16.mxu0 %v4342
      %4406 = vmatpush1.bf16.msra.mxu0 %v4341
      %4407 = vmatprep.subr.bf16.mxu0 %v4344
      %4408 = vmatpush1.bf16.msra.mxu0 %v4343
      %4409 = vmatprep.subr.bf16.mxu0 %v4346
      %4410 = vmatpush1.bf16.msra.mxu0 %v4345
      %4411 = vmatprep.subr.bf16.mxu0 %v4348
      %4412 = vmatpush1.bf16.msra.mxu0 %v4347
      %4413 = vmatprep.subr.bf16.mxu0 %v4350
      %4414 = vmatpush1.bf16.msra.mxu0 %v4349
      %4415 = vmatprep.subr.bf16.mxu0 %v4352
      %4416 = vmatpush1.bf16.msra.mxu0 %v4351
      %4417 = vmatprep.subr.bf16.mxu0 %v4354
      %4418 = vmatpush1.bf16.msra.mxu0 %v4353
      %4419 = vmatprep.mubr.bf16.mxu0 %v3924
      %4420 = vmatmul.mubr.bf16.gmra.mrb[0].mxu0 %v3907
      %v4421 = vpop.f32.mrb[0].mxu0
      %v4422 = vadd.f32 0.0, %v4421
      %v4423 = vpop.f32.mrb[0].mxu0
      %v4424 = vadd.f32 0.0, %v4423
      %v4425 = vpop.f32.mrb[0].mxu0
      %v4426 = vadd.f32 0.0, %v4425
      %v4427 = vpop.f32.mrb[0].mxu0
      %v4428 = vadd.f32 0.0, %v4427
      %4429 = vmatprep.mubr.bf16.mxu0 %v3942
      %4430 = vmatmul.mubr.bf16.gmra.mrb[0].mxu0 %v3933
      %v4431 = vpop.f32.mrb[0].mxu0
      %v4432 = vadd.f32 0.0, %v4431
      %v4433 = vpop.f32.mrb[0].mxu0
      %v4434 = vadd.f32 0.0, %v4433
      %v4435 = vpop.f32.mrb[0].mxu0
      %v4436 = vadd.f32 0.0, %v4435
      %v4437 = vpop.f32.mrb[0].mxu0
      %v4438 = vadd.f32 0.0, %v4437
      %4439 = vmatprep.mubr.bf16.mxu0 %v3960
      %4440 = vmatmul.mubr.bf16.gmra.mrb[0].mxu0 %v3951
      %v4441 = vpop.f32.mrb[0].mxu0
      %v4442 = vadd.f32 0.0, %v4441
      %v4443 = vpop.f32.mrb[0].mxu0
      %v4444 = vadd.f32 0.0, %v4443
      %v4445 = vpop.f32.mrb[0].mxu0
      %v4446 = vadd.f32 0.0, %v4445
      %v4447 = vpop.f32.mrb[0].mxu0
      %v4448 = vadd.f32 0.0, %v4447
      %4449 = vmatprep.mubr.bf16.mxu0 %v3978
      %4450 = vmatmul.mubr.bf16.gmra.mrb[0].mxu0 %v3969
      %v4451 = vpop.f32.mrb[0].mxu0
      %v4452 = vadd.f32 0.0, %v4451
      %v4453 = vpop.f32.mrb[0].mxu0
      %v4454 = vadd.f32 0.0, %v4453
      %v4455 = vpop.f32.mrb[0].mxu0
      %v4456 = vadd.f32 0.0, %v4455
      %v4457 = vpop.f32.mrb[0].mxu0
      %v4458 = vadd.f32 0.0, %v4457
      %4459 = vmatprep.mubr.bf16.mxu0 %v3996
      %4460 = vmatmul.mubr.bf16.gmra.mrb[0].mxu0 %v3987
      %v4461 = vpop.f32.mrb[0].mxu0
      %v4462 = vadd.f32 0.0, %v4461
      %v4463 = vpop.f32.mrb[0].mxu0
      %v4464 = vadd.f32 0.0, %v4463
      %v4465 = vpop.f32.mrb[0].mxu0
      %v4466 = vadd.f32 0.0, %v4465
      %v4467 = vpop.f32.mrb[0].mxu0
      %v4468 = vadd.f32 0.0, %v4467
      %4469 = vmatprep.mubr.bf16.mxu0 %v4014
      %4470 = vmatmul.mubr.bf16.gmra.mrb[0].mxu0 %v4005
      %v4471 = vpop.f32.mrb[0].mxu0
      %v4472 = vadd.f32 0.0, %v4471
      %v4473 = vpop.f32.mrb[0].mxu0
      %v4474 = vadd.f32 0.0, %v4473
      %v4475 = vpop.f32.mrb[0].mxu0
      %v4476 = vadd.f32 0.0, %v4475
      %v4477 = vpop.f32.mrb[0].mxu0
      %v4478 = vadd.f32 0.0, %v4477
      %4479 = vmatprep.mubr.bf16.mxu0 %v4032
      %4480 = vmatmul.mubr.bf16.gmra.mrb[0].mxu0 %v4023
      %v4481 = vpop.f32.mrb[0].mxu0
      %v4482 = vadd.f32 0.0, %v4481
      %v4483 = vpop.f32.mrb[0].mxu0
      %v4484 = vadd.f32 0.0, %v4483
      %v4485 = vpop.f32.mrb[0].mxu0
      %v4486 = vadd.f32 0.0, %v4485
      %v4487 = vpop.f32.mrb[0].mxu0
      %v4488 = vadd.f32 0.0, %v4487
      %4489 = vmatprep.mubr.bf16.mxu0 %v4050
      %4490 = vmatmul.mubr.bf16.gmra.mrb[0].mxu0 %v4041
      %v4491 = vpop.f32.mrb[0].mxu0
      %v4492 = vadd.f32 0.0, %v4491
      %v4493 = vpop.f32.mrb[0].mxu0
      %v4494 = vadd.f32 0.0, %v4493
      %v4495 = vpop.f32.mrb[0].mxu0
      %v4496 = vadd.f32 0.0, %v4495
      %v4497 = vpop.f32.mrb[0].mxu0
      %v4498 = vadd.f32 0.0, %v4497
      %4499 = vmatprep.mubr.bf16.mxu0 %v4068
      %4500 = vmatmul.mubr.bf16.gmra.mrb[0].mxu0 %v4059
      %v4501 = vpop.f32.mrb[0].mxu0
      %v4502 = vadd.f32 0.0, %v4501
      %v4503 = vpop.f32.mrb[0].mxu0
      %v4504 = vadd.f32 0.0, %v4503
      %v4505 = vpop.f32.mrb[0].mxu0
      %v4506 = vadd.f32 0.0, %v4505
      %v4507 = vpop.f32.mrb[0].mxu0
      %v4508 = vadd.f32 0.0, %v4507
      %4509 = vmatprep.mubr.bf16.mxu0 %v4086
      %4510 = vmatmul.mubr.bf16.gmra.mrb[0].mxu0 %v4077
      %v4511 = vpop.f32.mrb[0].mxu0
      %v4512 = vadd.f32 0.0, %v4511
      %v4513 = vpop.f32.mrb[0].mxu0
      %v4514 = vadd.f32 0.0, %v4513
      %v4515 = vpop.f32.mrb[0].mxu0
      %v4516 = vadd.f32 0.0, %v4515
      %v4517 = vpop.f32.mrb[0].mxu0
      %v4518 = vadd.f32 0.0, %v4517
      %4519 = vmatprep.mubr.bf16.mxu0 %v4104
      %4520 = vmatmul.mubr.bf16.gmra.mrb[0].mxu0 %v4095
      %v4521 = vpop.f32.mrb[0].mxu0
      %v4522 = vadd.f32 0.0, %v4521
      %v4523 = vpop.f32.mrb[0].mxu0
      %v4524 = vadd.f32 0.0, %v4523
      %v4525 = vpop.f32.mrb[0].mxu0
      %v4526 = vadd.f32 0.0, %v4525
      %v4527 = vpop.f32.mrb[0].mxu0
      %v4528 = vadd.f32 0.0, %v4527
      %4529 = vmatprep.mubr.bf16.mxu0 %v4122
      %4530 = vmatmul.mubr.bf16.gmra.mrb[0].mxu0 %v4113
      %v4531 = vpop.f32.mrb[0].mxu0
      %v4532 = vadd.f32 0.0, %v4531
      %v4533 = vpop.f32.mrb[0].mxu0
      %v4534 = vadd.f32 0.0, %v4533
      %v4535 = vpop.f32.mrb[0].mxu0
      %v4536 = vadd.f32 0.0, %v4535
      %v4537 = vpop.f32.mrb[0].mxu0
      %v4538 = vadd.f32 0.0, %v4537
      %4539 = vmatprep.mubr.bf16.mxu0 %v4140
      %4540 = vmatmul.mubr.bf16.gmra.mrb[0].mxu0 %v4131
      %v4541 = vpop.f32.mrb[0].mxu0
      %v4542 = vadd.f32 0.0, %v4541
      %v4543 = vpop.f32.mrb[0].mxu0
      %v4544 = vadd.f32 0.0, %v4543
      %v4545 = vpop.f32.mrb[0].mxu0
      %v4546 = vadd.f32 0.0, %v4545
      %v4547 = vpop.f32.mrb[0].mxu0
      %v4548 = vadd.f32 0.0, %v4547
      %4549 = vmatprep.mubr.bf16.mxu0 %v4158
      %4550 = vmatmul.mubr.bf16.gmra.mrb[0].mxu0 %v4149
      %v4551 = vpop.f32.mrb[0].mxu0
      %v4552 = vadd.f32 0.0, %v4551
      %v4553 = vpop.f32.mrb[0].mxu0
      %v4554 = vadd.f32 0.0, %v4553
      %v4555 = vpop.f32.mrb[0].mxu0
      %v4556 = vadd.f32 0.0, %v4555
      %v4557 = vpop.f32.mrb[0].mxu0
      %v4558 = vadd.f32 0.0, %v4557
      %4559 = vmatprep.mubr.bf16.mxu0 %v4176
      %4560 = vmatmul.mubr.bf16.gmra.mrb[0].mxu0 %v4167
      %v4561 = vpop.f32.mrb[0].mxu0
      %v4562 = vadd.f32 0.0, %v4561
      %v4563 = vpop.f32.mrb[0].mxu0
      %v4564 = vadd.f32 0.0, %v4563
      %v4565 = vpop.f32.mrb[0].mxu0
      %v4566 = vadd.f32 0.0, %v4565
      %v4567 = vpop.f32.mrb[0].mxu0
      %v4568 = vadd.f32 0.0, %v4567
      %4569 = vmatprep.mubr.bf16.mxu0 %v4194
      %4570 = vmatmul.mubr.bf16.gmra.mrb[0].mxu0 %v4185
      %v4571 = vpop.f32.mrb[0].mxu0
      %v4572 = vadd.f32 0.0, %v4571
      %v4573 = vpop.f32.mrb[0].mxu0
      %v4574 = vadd.f32 0.0, %v4573
      %v4575 = vpop.f32.mrb[0].mxu0
      %v4576 = vadd.f32 0.0, %v4575
      %v4577 = vpop.f32.mrb[0].mxu0
      %v4578 = vadd.f32 0.0, %v4577
      %4579 = vdwg.mxu0
      %v4580 = vadd.f32 %v3628, %v4422
      %v4581 = vadd.f32 %v3629, %v4424
      %v4582 = vadd.f32 %v3630, %v4426
      %v4583 = vadd.f32 %v3631, %v4428
      %v4584 = vadd.f32 %v3632, %v4432
      %v4585 = vadd.f32 %v3633, %v4434
      %v4586 = vadd.f32 %v3634, %v4436
      %v4587 = vadd.f32 %v3635, %v4438
      %v4588 = vadd.f32 %v3636, %v4442
      %v4589 = vadd.f32 %v3637, %v4444
      %v4590 = vadd.f32 %v3638, %v4446
      %v4591 = vadd.f32 %v3639, %v4448
      %v4592 = vadd.f32 %v3640, %v4452
      %v4593 = vadd.f32 %v3641, %v4454
      %v4594 = vadd.f32 %v3642, %v4456
      %v4595 = vadd.f32 %v3643, %v4458
      %v4596 = vadd.f32 %v3644, %v4462
      %v4597 = vadd.f32 %v3645, %v4464
      %v4598 = vadd.f32 %v3646, %v4466
      %v4599 = vadd.f32 %v3647, %v4468
      %v4600 = vadd.f32 %v3648, %v4472
      %v4601 = vadd.f32 %v3649, %v4474
      %v4602 = vadd.f32 %v3650, %v4476
      %v4603 = vadd.f32 %v3651, %v4478
      %v4604 = vadd.f32 %v3652, %v4482
      %v4605 = vadd.f32 %v3653, %v4484
      %v4606 = vadd.f32 %v3654, %v4486
      %v4607 = vadd.f32 %v3655, %v4488
      %v4608 = vadd.f32 %v3656, %v4492
      %v4609 = vadd.f32 %v3657, %v4494
      %v4610 = vadd.f32 %v3658, %v4496
      %v4611 = vadd.f32 %v3659, %v4498
      %v4612 = vadd.f32 %v3660, %v4502
      %v4613 = vadd.f32 %v3661, %v4504
      %v4614 = vadd.f32 %v3662, %v4506
      %v4615 = vadd.f32 %v3663, %v4508
      %v4616 = vadd.f32 %v3664, %v4512
      %v4617 = vadd.f32 %v3665, %v4514
      %v4618 = vadd.f32 %v3666, %v4516
      %v4619 = vadd.f32 %v3667, %v4518
      %v4620 = vadd.f32 %v3668, %v4522
      %v4621 = vadd.f32 %v3669, %v4524
      %v4622 = vadd.f32 %v3670, %v4526
      %v4623 = vadd.f32 %v3671, %v4528
      %v4624 = vadd.f32 %v3672, %v4532
      %v4625 = vadd.f32 %v3673, %v4534
      %v4626 = vadd.f32 %v3674, %v4536
      %v4627 = vadd.f32 %v3675, %v4538
      %v4628 = vadd.f32 %v3676, %v4542
      %v4629 = vadd.f32 %v3677, %v4544
      %v4630 = vadd.f32 %v3678, %v4546
      %v4631 = vadd.f32 %v3679, %v4548
      %v4632 = vadd.f32 %v3680, %v4552
      %v4633 = vadd.f32 %v3681, %v4554
      %v4634 = vadd.f32 %v3682, %v4556
      %v4635 = vadd.f32 %v3683, %v4558
      %v4636 = vadd.f32 %v3684, %v4562
      %v4637 = vadd.f32 %v3685, %v4564
      %v4638 = vadd.f32 %v3686, %v4566
      %v4639 = vadd.f32 %v3687, %v4568
      %v4640 = vadd.f32 %v3688, %v4572
      %v4641 = vadd.f32 %v3689, %v4574
      %v4642 = vadd.f32 %v3690, %v4576
      %v4643 = vadd.f32 %v3691, %v4578
      %v4644 = vld [vmem:[#allocation2 + $0x220] sm:$0xff]
      %v4645 = vld [vmem:[#allocation2 + $0x228] sm:$0xff]
      %v4646 = vpack.c.bf16 %v3696, %v3694
      %v4647 = vpack.c.bf16 %v3697, %v3695
      %v4648 = vpack.c.bf16 %v3700, %v3698
      %v4649 = vpack.c.bf16 %v3701, %v3699
      %v4650 = vpack.c.bf16 %v3704, %v3702
      %v4651 = vpack.c.bf16 %v3705, %v3703
      %v4652 = vpack.c.bf16 %v3708, %v3706
      %v4653 = vpack.c.bf16 %v3709, %v3707
      %v4654 = vpack.c.bf16 %v3712, %v3710
      %v4655 = vpack.c.bf16 %v3713, %v3711
      %v4656 = vpack.c.bf16 %v3716, %v3714
      %v4657 = vpack.c.bf16 %v3717, %v3715
      %v4658 = vpack.c.bf16 %v3720, %v3718
      %v4659 = vpack.c.bf16 %v3721, %v3719
      %v4660 = vpack.c.bf16 %v3724, %v3722
      %v4661 = vpack.c.bf16 %v3725, %v3723
      %v4662 = vpack.c.bf16 %v3728, %v3726
      %v4663 = vpack.c.bf16 %v3729, %v3727
      %v4664 = vpack.c.bf16 %v3732, %v3730
      %v4665 = vpack.c.bf16 %v3733, %v3731
      %v4666 = vpack.c.bf16 %v3736, %v3734
      %v4667 = vpack.c.bf16 %v3737, %v3735
      %v4668 = vpack.c.bf16 %v3740, %v3738
      %v4669 = vpack.c.bf16 %v3741, %v3739
      %v4670 = vpack.c.bf16 %v3744, %v3742
      %v4671 = vpack.c.bf16 %v3745, %v3743
      %v4672 = vpack.c.bf16 %v3748, %v3746
      %v4673 = vpack.c.bf16 %v3749, %v3747
      %v4674 = vpack.c.bf16 %v3752, %v3750
      %v4675 = vpack.c.bf16 %v3753, %v3751
      %v4676 = vpack.c.bf16 %v4644, %v3754
      %v4677 = vpack.c.bf16 %v4645, %v3755
      %s4678 = scalar_lea.vmem %s3, 1024
      %v4679 = vld [vmem:[%s4678] sm:$0xff]
      %v4680 = vld [vmem:[%s4678 + $0x8] sm:$0xff]
      %v4681 = vld [vmem:[%s4678 + $0x10] sm:$0xff]
      %v4682 = vld [vmem:[%s4678 + $0x18] sm:$0xff]
      %v4683 = vld [vmem:[%s4678 + $0x20] sm:$0xff]
      %v4684 = vld [vmem:[%s4678 + $0x28] sm:$0xff]
      %v4685 = vld [vmem:[%s4678 + $0x30] sm:$0xff]
      %v4686 = vld [vmem:[%s4678 + $0x38] sm:$0xff]
      %v4687 = vld [vmem:[%s4678 + $0x40] sm:$0xff]
      %v4688 = vld [vmem:[%s4678 + $0x48] sm:$0xff]
      %v4689 = vld [vmem:[%s4678 + $0x50] sm:$0xff]
      %v4690 = vld [vmem:[%s4678 + $0x58] sm:$0xff]
      %v4691 = vld [vmem:[%s4678 + $0x60] sm:$0xff]
      %v4692 = vld [vmem:[%s4678 + $0x68] sm:$0xff]
      %v4693 = vld [vmem:[%s4678 + $0x70] sm:$0xff]
      %v4694 = vld [vmem:[%s4678 + $0x78] sm:$0xff]
      %v4695 = vld [vmem:[%s4678 + $0x80] sm:$0xff]
      %v4696 = vld [vmem:[%s4678 + $0x88] sm:$0xff]
      %v4697 = vld [vmem:[%s4678 + $0x90] sm:$0xff]
      %v4698 = vld [vmem:[%s4678 + $0x98] sm:$0xff]
      %v4699 = vld [vmem:[%s4678 + $0xa0] sm:$0xff]
      %v4700 = vld [vmem:[%s4678 + $0xa8] sm:$0xff]
      %v4701 = vld [vmem:[%s4678 + $0xb0] sm:$0xff]
      %v4702 = vld [vmem:[%s4678 + $0xb8] sm:$0xff]
      %v4703 = vld [vmem:[%s4678 + $0xc0] sm:$0xff]
      %v4704 = vld [vmem:[%s4678 + $0xc8] sm:$0xff]
      %v4705 = vld [vmem:[%s4678 + $0xd0] sm:$0xff]
      %v4706 = vld [vmem:[%s4678 + $0xd8] sm:$0xff]
      %v4707 = vld [vmem:[%s4678 + $0xe0] sm:$0xff]
      %v4708 = vld [vmem:[%s4678 + $0xe8] sm:$0xff]
      %v4709 = vld [vmem:[%s4678 + $0xf0] sm:$0xff]
      %v4710 = vld [vmem:[%s4678 + $0xf8] sm:$0xff]
      %v4743 = vunpack.c.l.b16 %v4679
      %v4744 = vunpack.c.h.b16 %v4679
      %v4745 = vunpack.c.l.b16 %v4680
      %v4746 = vunpack.c.h.b16 %v4680
      %v4747 = vunpack.c.l.b16 %v4681
      %v4748 = vunpack.c.h.b16 %v4681
      %v4749 = vunpack.c.l.b16 %v4682
      %v4750 = vunpack.c.h.b16 %v4682
      %v4751 = vunpack.c.l.b16 %v4683
      %v4752 = vunpack.c.h.b16 %v4683
      %v4753 = vunpack.c.l.b16 %v4684
      %v4754 = vunpack.c.h.b16 %v4684
      %v4755 = vunpack.c.l.b16 %v4685
      %v4756 = vunpack.c.h.b16 %v4685
      %v4757 = vunpack.c.l.b16 %v4686
      %v4758 = vunpack.c.h.b16 %v4686
      %v4759 = vunpack.c.l.b16 %v4687
      %v4760 = vunpack.c.h.b16 %v4687
      %v4761 = vunpack.c.l.b16 %v4688
      %v4762 = vunpack.c.h.b16 %v4688
      %v4763 = vunpack.c.l.b16 %v4689
      %v4764 = vunpack.c.h.b16 %v4689
      %v4765 = vunpack.c.l.b16 %v4690
      %v4766 = vunpack.c.h.b16 %v4690
      %v4767 = vunpack.c.l.b16 %v4691
      %v4768 = vunpack.c.h.b16 %v4691
      %v4769 = vunpack.c.l.b16 %v4692
      %v4770 = vunpack.c.h.b16 %v4692
      %v4771 = vunpack.c.l.b16 %v4693
      %v4772 = vunpack.c.h.b16 %v4693
      %v4773 = vunpack.c.l.b16 %v4694
      %v4774 = vunpack.c.h.b16 %v4694
      %v4775 = vunpack.c.l.b16 %v4695
      %v4776 = vunpack.c.h.b16 %v4695
      %v4777 = vunpack.c.l.b16 %v4696
      %v4778 = vunpack.c.h.b16 %v4696
      %v4779 = vunpack.c.l.b16 %v4697
      %v4780 = vunpack.c.h.b16 %v4697
      %v4781 = vunpack.c.l.b16 %v4698
      %v4782 = vunpack.c.h.b16 %v4698
      %v4783 = vunpack.c.l.b16 %v4699
      %v4784 = vunpack.c.h.b16 %v4699
      %v4785 = vunpack.c.l.b16 %v4700
      %v4786 = vunpack.c.h.b16 %v4700
      %v4787 = vunpack.c.l.b16 %v4701
      %v4788 = vunpack.c.h.b16 %v4701
      %v4789 = vunpack.c.l.b16 %v4702
      %v4790 = vunpack.c.h.b16 %v4702
      %v4791 = vunpack.c.l.b16 %v4703
      %v4792 = vunpack.c.h.b16 %v4703
      %v4793 = vunpack.c.l.b16 %v4704
      %v4794 = vunpack.c.h.b16 %v4704
      %v4795 = vunpack.c.l.b16 %v4705
      %v4796 = vunpack.c.h.b16 %v4705
      %v4797 = vunpack.c.l.b16 %v4706
      %v4798 = vunpack.c.h.b16 %v4706
      %v4799 = vunpack.c.l.b16 %v4707
      %v4800 = vunpack.c.h.b16 %v4707
      %v4801 = vunpack.c.l.b16 %v4708
      %v4802 = vunpack.c.h.b16 %v4708
      %v4803 = vunpack.c.l.b16 %v4709
      %v4804 = vunpack.c.h.b16 %v4709
      %v4805 = vunpack.c.l.b16 %v4710
      %v4806 = vunpack.c.h.b16 %v4710
      %v4807 = vpack.c.b16 %v4745, %v4743
      %v4808 = vpack.c.b16 %v4746, %v4744
      %v4809 = vpack.c.b16 %v4749, %v4747
      %v4810 = vpack.c.b16 %v4750, %v4748
      %v4811 = vpack.c.b16 %v4753, %v4751
      %v4812 = vpack.c.b16 %v4754, %v4752
      %v4813 = vpack.c.b16 %v4757, %v4755
      %v4814 = vpack.c.b16 %v4758, %v4756
      %v4815 = vpack.c.b16 %v4761, %v4759
      %v4816 = vpack.c.b16 %v4762, %v4760
      %v4817 = vpack.c.b16 %v4765, %v4763
      %v4818 = vpack.c.b16 %v4766, %v4764
      %v4819 = vpack.c.b16 %v4769, %v4767
      %v4820 = vpack.c.b16 %v4770, %v4768
      %v4821 = vpack.c.b16 %v4773, %v4771
      %v4822 = vpack.c.b16 %v4774, %v4772
      %v4823 = vpack.c.b16 %v4777, %v4775
      %v4824 = vpack.c.b16 %v4778, %v4776
      %v4825 = vpack.c.b16 %v4781, %v4779
      %v4826 = vpack.c.b16 %v4782, %v4780
      %v4827 = vpack.c.b16 %v4785, %v4783
      %v4828 = vpack.c.b16 %v4786, %v4784
      %v4829 = vpack.c.b16 %v4789, %v4787
      %v4830 = vpack.c.b16 %v4790, %v4788
      %v4831 = vpack.c.b16 %v4793, %v4791
      %v4832 = vpack.c.b16 %v4794, %v4792
      %v4833 = vpack.c.b16 %v4797, %v4795
      %v4834 = vpack.c.b16 %v4798, %v4796
      %v4835 = vpack.c.b16 %v4801, %v4799
      %v4836 = vpack.c.b16 %v4802, %v4800
      %v4837 = vpack.c.b16 %v4805, %v4803
      %v4838 = vpack.c.b16 %v4806, %v4804
      %4871 = vmatprep.subr.bf16.mxu0 %v4808
      %4872 = vmatpush1.bf16.msra.mxu0 %v4807
      %4873 = vmatprep.subr.bf16.mxu0 %v4810
      %4874 = vmatpush1.bf16.msra.mxu0 %v4809
      %4875 = vmatprep.subr.bf16.mxu0 %v4812
      %4876 = vmatpush1.bf16.msra.mxu0 %v4811
      %4877 = vmatprep.subr.bf16.mxu0 %v4814
      %4878 = vmatpush1.bf16.msra.mxu0 %v4813
      %4879 = vmatprep.subr.bf16.mxu0 %v4816
      %4880 = vmatpush1.bf16.msra.mxu0 %v4815
      %4881 = vmatprep.subr.bf16.mxu0 %v4818
      %4882 = vmatpush1.bf16.msra.mxu0 %v4817
      %4883 = vmatprep.subr.bf16.mxu0 %v4820
      %4884 = vmatpush1.bf16.msra.mxu0 %v4819
      %4885 = vmatprep.subr.bf16.mxu0 %v4822
      %4886 = vmatpush1.bf16.msra.mxu0 %v4821
      %4887 = vmatprep.subr.bf16.mxu0 %v4824
      %4888 = vmatpush1.bf16.msra.mxu0 %v4823
      %4889 = vmatprep.subr.bf16.mxu0 %v4826
      %4890 = vmatpush1.bf16.msra.mxu0 %v4825
      %4891 = vmatprep.subr.bf16.mxu0 %v4828
      %4892 = vmatpush1.bf16.msra.mxu0 %v4827
      %4893 = vmatprep.subr.bf16.mxu0 %v4830
      %4894 = vmatpush1.bf16.msra.mxu0 %v4829
      %4895 = vmatprep.subr.bf16.mxu0 %v4832
      %4896 = vmatpush1.bf16.msra.mxu0 %v4831
      %4897 = vmatprep.subr.bf16.mxu0 %v4834
      %4898 = vmatpush1.bf16.msra.mxu0 %v4833
      %4899 = vmatprep.subr.bf16.mxu0 %v4836
      %4900 = vmatpush1.bf16.msra.mxu0 %v4835
      %4901 = vmatprep.subr.bf16.mxu0 %v4838
      %4902 = vmatpush1.bf16.msra.mxu0 %v4837
      %4903 = vmatprep.mubr.bf16.mxu0 %v4647
      %4904 = vmatmul.mubr.bf16.gmra.mrb[0].mxu0 %v4646
      %v4905 = vpop.f32.mrb[0].mxu0
      %v4906 = vadd.f32 0.0, %v4905
      %v4907 = vpop.f32.mrb[0].mxu0
      %v4908 = vadd.f32 0.0, %v4907
      %v4909 = vpop.f32.mrb[0].mxu0
      %v4910 = vadd.f32 0.0, %v4909
      %v4911 = vpop.f32.mrb[0].mxu0
      %v4912 = vadd.f32 0.0, %v4911
      %4913 = vmatprep.mubr.bf16.mxu0 %v4649
      %4914 = vmatmul.mubr.bf16.gmra.mrb[0].mxu0 %v4648
      %v4915 = vpop.f32.mrb[0].mxu0
      %v4916 = vadd.f32 0.0, %v4915
      %v4917 = vpop.f32.mrb[0].mxu0
      %v4918 = vadd.f32 0.0, %v4917
      %v4919 = vpop.f32.mrb[0].mxu0
      %v4920 = vadd.f32 0.0, %v4919
      %v4921 = vpop.f32.mrb[0].mxu0
      %v4922 = vadd.f32 0.0, %v4921
      %4923 = vmatprep.mubr.bf16.mxu0 %v4651
      %4924 = vmatmul.mubr.bf16.gmra.mrb[0].mxu0 %v4650
      %v4925 = vpop.f32.mrb[0].mxu0
      %v4926 = vadd.f32 0.0, %v4925
      %v4927 = vpop.f32.mrb[0].mxu0
      %v4928 = vadd.f32 0.0, %v4927
      %v4929 = vpop.f32.mrb[0].mxu0
      %v4930 = vadd.f32 0.0, %v4929
      %v4931 = vpop.f32.mrb[0].mxu0
      %v4932 = vadd.f32 0.0, %v4931
      %4933 = vmatprep.mubr.bf16.mxu0 %v4653
      %4934 = vmatmul.mubr.bf16.gmra.mrb[0].mxu0 %v4652
      %v4935 = vpop.f32.mrb[0].mxu0
      %v4936 = vadd.f32 0.0, %v4935
      %v4937 = vpop.f32.mrb[0].mxu0
      %v4938 = vadd.f32 0.0, %v4937
      %v4939 = vpop.f32.mrb[0].mxu0
      %v4940 = vadd.f32 0.0, %v4939
      %v4941 = vpop.f32.mrb[0].mxu0
      %v4942 = vadd.f32 0.0, %v4941
      %4943 = vmatprep.mubr.bf16.mxu0 %v4655
      %4944 = vmatmul.mubr.bf16.gmra.mrb[0].mxu0 %v4654
      %v4945 = vpop.f32.mrb[0].mxu0
      %v4946 = vadd.f32 0.0, %v4945
      %v4947 = vpop.f32.mrb[0].mxu0
      %v4948 = vadd.f32 0.0, %v4947
      %v4949 = vpop.f32.mrb[0].mxu0
      %v4950 = vadd.f32 0.0, %v4949
      %v4951 = vpop.f32.mrb[0].mxu0
      %v4952 = vadd.f32 0.0, %v4951
      %4953 = vmatprep.mubr.bf16.mxu0 %v4657
      %4954 = vmatmul.mubr.bf16.gmra.mrb[0].mxu0 %v4656
      %v4955 = vpop.f32.mrb[0].mxu0
      %v4956 = vadd.f32 0.0, %v4955
      %v4957 = vpop.f32.mrb[0].mxu0
      %v4958 = vadd.f32 0.0, %v4957
      %v4959 = vpop.f32.mrb[0].mxu0
      %v4960 = vadd.f32 0.0, %v4959
      %v4961 = vpop.f32.mrb[0].mxu0
      %v4962 = vadd.f32 0.0, %v4961
      %4963 = vmatprep.mubr.bf16.mxu0 %v4659
      %4964 = vmatmul.mubr.bf16.gmra.mrb[0].mxu0 %v4658
      %v4965 = vpop.f32.mrb[0].mxu0
      %v4966 = vadd.f32 0.0, %v4965
      %v4967 = vpop.f32.mrb[0].mxu0
      %v4968 = vadd.f32 0.0, %v4967
      %v4969 = vpop.f32.mrb[0].mxu0
      %v4970 = vadd.f32 0.0, %v4969
      %v4971 = vpop.f32.mrb[0].mxu0
      %v4972 = vadd.f32 0.0, %v4971
      %4973 = vmatprep.mubr.bf16.mxu0 %v4661
      %4974 = vmatmul.mubr.bf16.gmra.mrb[0].mxu0 %v4660
      %v4975 = vpop.f32.mrb[0].mxu0
      %v4976 = vadd.f32 0.0, %v4975
      %v4977 = vpop.f32.mrb[0].mxu0
      %v4978 = vadd.f32 0.0, %v4977
      %v4979 = vpop.f32.mrb[0].mxu0
      %v4980 = vadd.f32 0.0, %v4979
      %v4981 = vpop.f32.mrb[0].mxu0
      %v4982 = vadd.f32 0.0, %v4981
      %4983 = vmatprep.mubr.bf16.mxu0 %v4663
      %4984 = vmatmul.mubr.bf16.gmra.mrb[0].mxu0 %v4662
      %v4985 = vpop.f32.mrb[0].mxu0
      %v4986 = vadd.f32 0.0, %v4985
      %v4987 = vpop.f32.mrb[0].mxu0
      %v4988 = vadd.f32 0.0, %v4987
      %v4989 = vpop.f32.mrb[0].mxu0
      %v4990 = vadd.f32 0.0, %v4989
      %v4991 = vpop.f32.mrb[0].mxu0
      %v4992 = vadd.f32 0.0, %v4991
      %4993 = vmatprep.mubr.bf16.mxu0 %v4665
      %4994 = vmatmul.mubr.bf16.gmra.mrb[0].mxu0 %v4664
      %v4995 = vpop.f32.mrb[0].mxu0
      %v4996 = vadd.f32 0.0, %v4995
      %v4997 = vpop.f32.mrb[0].mxu0
      %v4998 = vadd.f32 0.0, %v4997
      %v4999 = vpop.f32.mrb[0].mxu0
      %v5000 = vadd.f32 0.0, %v4999
      %v5001 = vpop.f32.mrb[0].mxu0
      %v5002 = vadd.f32 0.0, %v5001
      %5003 = vmatprep.mubr.bf16.mxu0 %v4667
      %5004 = vmatmul.mubr.bf16.gmra.mrb[0].mxu0 %v4666
      %v5005 = vpop.f32.mrb[0].mxu0
      %v5006 = vadd.f32 0.0, %v5005
      %v5007 = vpop.f32.mrb[0].mxu0
      %v5008 = vadd.f32 0.0, %v5007
      %v5009 = vpop.f32.mrb[0].mxu0
      %v5010 = vadd.f32 0.0, %v5009
      %v5011 = vpop.f32.mrb[0].mxu0
      %v5012 = vadd.f32 0.0, %v5011
      %5013 = vmatprep.mubr.bf16.mxu0 %v4669
      %5014 = vmatmul.mubr.bf16.gmra.mrb[0].mxu0 %v4668
      %v5015 = vpop.f32.mrb[0].mxu0
      %v5016 = vadd.f32 0.0, %v5015
      %v5017 = vpop.f32.mrb[0].mxu0
      %v5018 = vadd.f32 0.0, %v5017
      %v5019 = vpop.f32.mrb[0].mxu0
      %v5020 = vadd.f32 0.0, %v5019
      %v5021 = vpop.f32.mrb[0].mxu0
      %v5022 = vadd.f32 0.0, %v5021
      %5023 = vmatprep.mubr.bf16.mxu0 %v4671
      %5024 = vmatmul.mubr.bf16.gmra.mrb[0].mxu0 %v4670
      %v5025 = vpop.f32.mrb[0].mxu0
      %v5026 = vadd.f32 0.0, %v5025
      %v5027 = vpop.f32.mrb[0].mxu0
      %v5028 = vadd.f32 0.0, %v5027
      %v5029 = vpop.f32.mrb[0].mxu0
      %v5030 = vadd.f32 0.0, %v5029
      %v5031 = vpop.f32.mrb[0].mxu0
      %v5032 = vadd.f32 0.0, %v5031
      %5033 = vmatprep.mubr.bf16.mxu0 %v4673
      %5034 = vmatmul.mubr.bf16.gmra.mrb[0].mxu0 %v4672
      %v5035 = vpop.f32.mrb[0].mxu0
      %v5036 = vadd.f32 0.0, %v5035
      %v5037 = vpop.f32.mrb[0].mxu0
      %v5038 = vadd.f32 0.0, %v5037
      %v5039 = vpop.f32.mrb[0].mxu0
      %v5040 = vadd.f32 0.0, %v5039
      %v5041 = vpop.f32.mrb[0].mxu0
      %v5042 = vadd.f32 0.0, %v5041
      %5043 = vmatprep.mubr.bf16.mxu0 %v4675
      %5044 = vmatmul.mubr.bf16.gmra.mrb[0].mxu0 %v4674
      %v5045 = vpop.f32.mrb[0].mxu0
      %v5046 = vadd.f32 0.0, %v5045
      %v5047 = vpop.f32.mrb[0].mxu0
      %v5048 = vadd.f32 0.0, %v5047
      %v5049 = vpop.f32.mrb[0].mxu0
      %v5050 = vadd.f32 0.0, %v5049
      %v5051 = vpop.f32.mrb[0].mxu0
      %v5052 = vadd.f32 0.0, %v5051
      %5053 = vmatprep.mubr.bf16.mxu0 %v4677
      %5054 = vmatmul.mubr.bf16.gmra.mrb[0].mxu0 %v4676
      %v5055 = vpop.f32.mrb[0].mxu0
      %v5056 = vadd.f32 0.0, %v5055
      %v5057 = vpop.f32.mrb[0].mxu0
      %v5058 = vadd.f32 0.0, %v5057
      %v5059 = vpop.f32.mrb[0].mxu0
      %v5060 = vadd.f32 0.0, %v5059
      %v5061 = vpop.f32.mrb[0].mxu0
      %v5062 = vadd.f32 0.0, %v5061
      %5063 = vdwg.mxu0
      %v5064 = vadd.f32 %v4580, %v4906
      %v5065 = vadd.f32 %v4581, %v4908
      %v5066 = vadd.f32 %v4582, %v4910
      %v5067 = vadd.f32 %v4583, %v4912
      %v5068 = vadd.f32 %v4584, %v4916
      %v5069 = vadd.f32 %v4585, %v4918
      %v5070 = vadd.f32 %v4586, %v4920
      %v5071 = vadd.f32 %v4587, %v4922
      %v5072 = vadd.f32 %v4588, %v4926
      %v5073 = vadd.f32 %v4589, %v4928
      %v5074 = vadd.f32 %v4590, %v4930
      %v5075 = vadd.f32 %v4591, %v4932
      %v5076 = vadd.f32 %v4592, %v4936
      %v5077 = vadd.f32 %v4593, %v4938
      %v5078 = vadd.f32 %v4594, %v4940
      %v5079 = vadd.f32 %v4595, %v4942
      %v5080 = vadd.f32 %v4596, %v4946
      %v5081 = vadd.f32 %v4597, %v4948
      %v5082 = vadd.f32 %v4598, %v4950
      %v5083 = vadd.f32 %v4599, %v4952
      %v5084 = vadd.f32 %v4600, %v4956
      %v5085 = vadd.f32 %v4601, %v4958
      %v5086 = vadd.f32 %v4602, %v4960
      %v5087 = vadd.f32 %v4603, %v4962
      %v5088 = vadd.f32 %v4604, %v4966
      %v5089 = vadd.f32 %v4605, %v4968
      %v5090 = vadd.f32 %v4606, %v4970
      %v5091 = vadd.f32 %v4607, %v4972
      %v5092 = vadd.f32 %v4608, %v4976
      %v5093 = vadd.f32 %v4609, %v4978
      %v5094 = vadd.f32 %v4610, %v4980
      %v5095 = vadd.f32 %v4611, %v4982
      %v5096 = vadd.f32 %v4612, %v4986
      %v5097 = vadd.f32 %v4613, %v4988
      %v5098 = vadd.f32 %v4614, %v4990
      %v5099 = vadd.f32 %v4615, %v4992
      %v5100 = vadd.f32 %v4616, %v4996
      %v5101 = vadd.f32 %v4617, %v4998
      %v5102 = vadd.f32 %v4618, %v5000
      %v5103 = vadd.f32 %v4619, %v5002
      %v5104 = vadd.f32 %v4620, %v5006
      %v5105 = vadd.f32 %v4621, %v5008
      %v5106 = vadd.f32 %v4622, %v5010
      %v5107 = vadd.f32 %v4623, %v5012
      %v5108 = vadd.f32 %v4624, %v5016
      %v5109 = vadd.f32 %v4625, %v5018
      %v5110 = vadd.f32 %v4626, %v5020
      %v5111 = vadd.f32 %v4627, %v5022
      %v5112 = vadd.f32 %v4628, %v5026
      %v5113 = vadd.f32 %v4629, %v5028
      %v5114 = vadd.f32 %v4630, %v5030
      %v5115 = vadd.f32 %v4631, %v5032
      %v5116 = vadd.f32 %v4632, %v5036
      %v5117 = vadd.f32 %v4633, %v5038
      %v5118 = vadd.f32 %v4634, %v5040
      %v5119 = vadd.f32 %v4635, %v5042
      %v5120 = vadd.f32 %v4636, %v5046
      %v5121 = vadd.f32 %v4637, %v5048
      %v5122 = vadd.f32 %v4638, %v5050
      %v5123 = vadd.f32 %v4639, %v5052
      %v5124 = vadd.f32 %v4640, %v5056
      %v5125 = vadd.f32 %v4641, %v5058
      %v5126 = vadd.f32 %v4642, %v5060
      %v5127 = vadd.f32 %v4643, %v5062
      %v5128 = vld [vmem:[#allocation2 + $0x30] sm:$0xfe]
      %v5129 = vld [vmem:[#allocation2 + $0x38] sm:$0xfe]
      %v5130 = vld [vmem:[#allocation2 + $0x40] sm:$0xff]
      %v5131 = vld [vmem:[#allocation2 + $0x48] sm:$0xff]
      %v5132 = vld [vmem:[#allocation2 + $0x50] sm:$0xff]
      %v5133 = vld [vmem:[#allocation2 + $0x58] sm:$0xff]
      %v5134 = vld [vmem:[#allocation2 + $0x60] sm:$0xff]
      %v5135 = vld [vmem:[#allocation2 + $0x68] sm:$0xff]
      %v5136 = vld [vmem:[#allocation2 + $0x70] sm:$0xff]
      %v5137 = vld [vmem:[#allocation2 + $0x78] sm:$0xff]
      %v5138 = vld [vmem:[#allocation2 + $0x80] sm:$0xff]
      %v5139 = vld [vmem:[#allocation2 + $0x88] sm:$0xff]
      %v5140 = vld [vmem:[#allocation2 + $0x90] sm:$0xff]
      %v5141 = vld [vmem:[#allocation2 + $0x98] sm:$0xff]
      %v5142 = vld [vmem:[#allocation2 + $0xa0] sm:$0xff]
      %v5143 = vld [vmem:[#allocation2 + $0xa8] sm:$0xff]
      %v5144 = vld [vmem:[#allocation2 + $0xb0] sm:$0xff]
      %v5145 = vld [vmem:[#allocation2 + $0xb8] sm:$0xff]
      %v5146 = vld [vmem:[#allocation2 + $0xc0] sm:$0xff]
      %v5147 = vld [vmem:[#allocation2 + $0xc8] sm:$0xff]
      %v5148 = vld [vmem:[#allocation2 + $0xd0] sm:$0xff]
      %v5149 = vld [vmem:[#allocation2 + $0xd8] sm:$0xff]
      %v5150 = vld [vmem:[#allocation2 + $0xe0] sm:$0xff]
      %v5151 = vld [vmem:[#allocation2 + $0xe8] sm:$0xff]
      %v5152 = vld [vmem:[#allocation2 + $0xf0] sm:$0xff]
      %v5153 = vld [vmem:[#allocation2 + $0xf8] sm:$0xff]
      %v5154 = vld [vmem:[#allocation2 + $0x100] sm:$0xff]
      %v5155 = vld [vmem:[#allocation2 + $0x108] sm:$0xff]
      %v5156 = vld [vmem:[#allocation2 + $0x110] sm:$0xff]
      %v5157 = vld [vmem:[#allocation2 + $0x118] sm:$0xff]
      %v5158 = vld [vmem:[#allocation2 + $0x120] sm:$0xff]
      %v5159 = vld [vmem:[#allocation2 + $0x128] sm:$0xff]
      %v5160 = vld [vmem:[#allocation2 + $0x130] sm:$0xff]
      %v5161 = vld [vmem:[#allocation2 + $0x138] sm:$0xff]
      %v5162 = vld [vmem:[#allocation2 + $0x140] sm:$0xff]
      %v5163 = vld [vmem:[#allocation2 + $0x148] sm:$0xff]
      %v5164 = vld [vmem:[#allocation2 + $0x150] sm:$0xff]
      %v5165 = vld [vmem:[#allocation2 + $0x158] sm:$0xff]
      %v5166 = vld [vmem:[#allocation2 + $0x160] sm:$0xff]
      %v5167 = vld [vmem:[#allocation2 + $0x168] sm:$0xff]
      %v5168 = vld [vmem:[#allocation2 + $0x170] sm:$0xff]
      %v5169 = vld [vmem:[#allocation2 + $0x178] sm:$0xff]
      %v5170 = vld [vmem:[#allocation2 + $0x180] sm:$0xff]
      %v5171 = vld [vmem:[#allocation2 + $0x188] sm:$0xff]
      %v5172 = vld [vmem:[#allocation2 + $0x190] sm:$0xff]
      %v5173 = vld [vmem:[#allocation2 + $0x198] sm:$0xff]
      %v5174 = vld [vmem:[#allocation2 + $0x1a0] sm:$0xff]
      %v5175 = vld [vmem:[#allocation2 + $0x1a8] sm:$0xff]
      %v5176 = vld [vmem:[#allocation2 + $0x1b0] sm:$0xff]
      %v5177 = vld [vmem:[#allocation2 + $0x1b8] sm:$0xff]
      %v5178 = vld [vmem:[#allocation2 + $0x1c0] sm:$0xff]
      %v5179 = vld [vmem:[#allocation2 + $0x1c8] sm:$0xff]
      %v5180 = vld [vmem:[#allocation2 + $0x1d0] sm:$0xff]
      %v5181 = vld [vmem:[#allocation2 + $0x1d8] sm:$0xff]
      %v5182 = vld [vmem:[#allocation2 + $0x1e0] sm:$0xff]
      %v5183 = vld [vmem:[#allocation2 + $0x1e8] sm:$0xff]
      %v5184 = vld [vmem:[#allocation2 + $0x1f0] sm:$0xff]
      %v5185 = vld [vmem:[#allocation2 + $0x1f8] sm:$0xff]
      %v5186 = vld [vmem:[#allocation2 + $0x200] sm:$0xff]
      %v5187 = vld [vmem:[#allocation2 + $0x208] sm:$0xff]
      %v5188 = vld [vmem:[#allocation2 + $0x210] sm:$0xff]
      %v5189 = vld [vmem:[#allocation2 + $0x218] sm:$0xff]
      %v5190 = vld [vmem:[#allocation2 + $0x220] sm:$0xff]
      %v5191 = vld [vmem:[#allocation2 + $0x228] sm:$0xff]
      %v5192 = vld [vmem:[#allocation2 + $0x230] sm:$0x1]
      %v5193 = vld [vmem:[#allocation2 + $0x238] sm:$0x1]
      %v5194 = vmul.f32 %v5128, %v2749
      %v5195 = vmul.f32 %v5129, %v2749
      %v5196 = vmul.f32 %v5130, %v2751
      %v5197 = vmul.f32 %v5131, %v2751
      %v5198 = vmul.f32 %v5132, %v2753
      %v5199 = vmul.f32 %v5133, %v2753
      %v5200 = vmul.f32 %v5134, %v2755
      %v5201 = vmul.f32 %v5135, %v2755
      %v5202 = vmul.f32 %v5136, %v2757
      %v5203 = vmul.f32 %v5137, %v2757
      %v5204 = vmul.f32 %v5138, %v2759
      %v5205 = vmul.f32 %v5139, %v2759
      %v5206 = vmul.f32 %v5140, %v2761
      %v5207 = vmul.f32 %v5141, %v2761
      %v5208 = vmul.f32 %v5142, %v2763
      %v5209 = vmul.f32 %v5143, %v2763
      %v5210 = vmul.f32 %v5144, %v2765
      %v5211 = vmul.f32 %v5145, %v2765
      %v5212 = vmul.f32 %v5146, %v2767
      %v5213 = vmul.f32 %v5147, %v2767
      %v5214 = vmul.f32 %v5148, %v2769
      %v5215 = vmul.f32 %v5149, %v2769
      %v5216 = vmul.f32 %v5150, %v2771
      %v5217 = vmul.f32 %v5151, %v2771
      %v5218 = vmul.f32 %v5152, %v2773
      %v5219 = vmul.f32 %v5153, %v2773
      %v5220 = vmul.f32 %v5154, %v2775
      %v5221 = vmul.f32 %v5155, %v2775
      %v5222 = vmul.f32 %v5156, %v2777
      %v5223 = vmul.f32 %v5157, %v2777
      %v5224 = vmul.f32 %v5158, %v2779
      %v5225 = vmul.f32 %v5159, %v2779
      %v5226 = vmul.f32 %v5160, %v2781
      %v5227 = vmul.f32 %v5161, %v2781
      %v5228 = vmul.f32 %v5162, %v2783
      %v5229 = vmul.f32 %v5163, %v2783
      %v5230 = vmul.f32 %v5164, %v2785
      %v5231 = vmul.f32 %v5165, %v2785
      %v5232 = vmul.f32 %v5166, %v2787
      %v5233 = vmul.f32 %v5167, %v2787
      %v5234 = vmul.f32 %v5168, %v2789
      %v5235 = vmul.f32 %v5169, %v2789
      %v5236 = vmul.f32 %v5170, %v2791
      %v5237 = vmul.f32 %v5171, %v2791
      %v5238 = vmul.f32 %v5172, %v2793
      %v5239 = vmul.f32 %v5173, %v2793
      %v5240 = vmul.f32 %v5174, %v2795
      %v5241 = vmul.f32 %v5175, %v2795
      %v5242 = vmul.f32 %v5176, %v2797
      %v5243 = vmul.f32 %v5177, %v2797
      %v5244 = vmul.f32 %v5178, %v2799
      %v5245 = vmul.f32 %v5179, %v2799
      %v5246 = vmul.f32 %v5180, %v2801
      %v5247 = vmul.f32 %v5181, %v2801
      %v5248 = vmul.f32 %v5182, %v2803
      %v5249 = vmul.f32 %v5183, %v2803
      %v5250 = vmul.f32 %v5184, %v2805
      %v5251 = vmul.f32 %v5185, %v2805
      %v5252 = vmul.f32 %v5186, %v2807
      %v5253 = vmul.f32 %v5187, %v2807
      %v5254 = vmul.f32 %v5188, %v2809
      %v5255 = vmul.f32 %v5189, %v2809
      %v5256 = vmul.f32 %v5190, %v2811
      %v5257 = vmul.f32 %v5191, %v2811
      %v5258 = vmul.f32 %v5192, %v2810
      %v5259 = vmul.f32 %v5193, %v2810
      %v5260 = vpack.c.bf16 %v5196, %v5194
      %v5261 = vpack.c.bf16 %v5197, %v5195
      %v5262 = vpack.c.bf16 %v5200, %v5198
      %v5263 = vpack.c.bf16 %v5201, %v5199
      %v5264 = vpack.c.bf16 %v5204, %v5202
      %v5265 = vpack.c.bf16 %v5205, %v5203
      %v5266 = vpack.c.bf16 %v5208, %v5206
      %v5267 = vpack.c.bf16 %v5209, %v5207
      %v5268 = vpack.c.bf16 %v5212, %v5210
      %v5269 = vpack.c.bf16 %v5213, %v5211
      %v5270 = vpack.c.bf16 %v5216, %v5214
      %v5271 = vpack.c.bf16 %v5217, %v5215
      %v5272 = vpack.c.bf16 %v5220, %v5218
      %v5273 = vpack.c.bf16 %v5221, %v5219
      %v5274 = vpack.c.bf16 %v5224, %v5222
      %v5275 = vpack.c.bf16 %v5225, %v5223
      %v5276 = vpack.c.bf16 %v5228, %v5226
      %v5277 = vpack.c.bf16 %v5229, %v5227
      %v5278 = vpack.c.bf16 %v5232, %v5230
      %v5279 = vpack.c.bf16 %v5233, %v5231
      %v5280 = vpack.c.bf16 %v5236, %v5234
      %v5281 = vpack.c.bf16 %v5237, %v5235
      %v5282 = vpack.c.bf16 %v5240, %v5238
      %v5283 = vpack.c.bf16 %v5241, %v5239
      %v5284 = vpack.c.bf16 %v5244, %v5242
      %v5285 = vpack.c.bf16 %v5245, %v5243
      %v5286 = vpack.c.bf16 %v5248, %v5246
      %v5287 = vpack.c.bf16 %v5249, %v5247
      %v5288 = vpack.c.bf16 %v5252, %v5250
      %v5289 = vpack.c.bf16 %v5253, %v5251
      %v5290 = vpack.c.bf16 %v5256, %v5254
      %v5291 = vpack.c.bf16 %v5257, %v5255
      %v5292 = vpack.c.bf16 %v5258, %v5258
      %v5293 = vpack.c.bf16 %v5259, %v5259
      %s5294 = scalar_lea.vmem %s3, 1280
      %v5295 = vld [vmem:[%s5294] sm:$0xff]
      %v5296 = vld [vmem:[%s5294 + $0x8] sm:$0xff]
      %v5297 = vld [vmem:[%s5294 + $0x10] sm:$0xff]
      %v5298 = vld [vmem:[%s5294 + $0x18] sm:$0xff]
      %v5299 = vld [vmem:[%s5294 + $0x20] sm:$0xff]
      %v5300 = vld [vmem:[%s5294 + $0x28] sm:$0xff]
      %v5301 = vld [vmem:[%s5294 + $0x30] sm:$0xff]
      %v5302 = vld [vmem:[%s5294 + $0x38] sm:$0xff]
      %v5303 = vld [vmem:[%s5294 + $0x40] sm:$0xff]
      %v5304 = vld [vmem:[%s5294 + $0x48] sm:$0xff]
      %v5305 = vld [vmem:[%s5294 + $0x50] sm:$0xff]
      %v5306 = vld [vmem:[%s5294 + $0x58] sm:$0xff]
      %v5307 = vld [vmem:[%s5294 + $0x60] sm:$0xff]
      %v5308 = vld [vmem:[%s5294 + $0x68] sm:$0xff]
      %v5309 = vld [vmem:[%s5294 + $0x70] sm:$0xff]
      %v5310 = vld [vmem:[%s5294 + $0x78] sm:$0xff]
      %v5311 = vld [vmem:[%s5294 + $0x80] sm:$0xff]
      %v5312 = vld [vmem:[%s5294 + $0x88] sm:$0xff]
      %v5313 = vld [vmem:[%s5294 + $0x90] sm:$0xff]
      %v5314 = vld [vmem:[%s5294 + $0x98] sm:$0xff]
      %v5315 = vld [vmem:[%s5294 + $0xa0] sm:$0xff]
      %v5316 = vld [vmem:[%s5294 + $0xa8] sm:$0xff]
      %v5317 = vld [vmem:[%s5294 + $0xb0] sm:$0xff]
      %v5318 = vld [vmem:[%s5294 + $0xb8] sm:$0xff]
      %v5319 = vld [vmem:[%s5294 + $0xc0] sm:$0xff]
      %v5320 = vld [vmem:[%s5294 + $0xc8] sm:$0xff]
      %v5321 = vld [vmem:[%s5294 + $0xd0] sm:$0xff]
      %v5322 = vld [vmem:[%s5294 + $0xd8] sm:$0xff]
      %v5323 = vld [vmem:[%s5294 + $0xe0] sm:$0xff]
      %v5324 = vld [vmem:[%s5294 + $0xe8] sm:$0xff]
      %v5325 = vld [vmem:[%s5294 + $0xf0] sm:$0xff]
      %v5326 = vld [vmem:[%s5294 + $0xf8] sm:$0xff]
      %v5328 = vshrl.u32 %v5260, 16
      %v5330 = vshll.u32 %v5260, 16
      %v5332 = vrot.slane %v5330, 1
      %v5333 = vor.u32 %v5328, %v5332
      %v5335 = vshll.u32 %v5262, 16
      %v5337 = vrot.slane %v5335, 1
      %v5338 = vsel %vm2978, %v5333, %v5337
      %v5340 = vshrl.u32 %v5261, 16
      %v5342 = vshll.u32 %v5261, 16
      %v5344 = vrot.slane %v5342, 1
      %v5345 = vor.u32 %v5340, %v5344
      %v5347 = vshll.u32 %v5263, 16
      %v5349 = vrot.slane %v5347, 1
      %v5350 = vsel %vm2978, %v5345, %v5349
      %v5351 = vshrl.u32 %v5262, 16
      %v5353 = vor.u32 %v5351, %v5337
      %v5355 = vshll.u32 %v5264, 16
      %v5357 = vrot.slane %v5355, 1
      %v5358 = vsel %vm2978, %v5353, %v5357
      %v5359 = vshrl.u32 %v5263, 16
      %v5361 = vor.u32 %v5359, %v5349
      %v5363 = vshll.u32 %v5265, 16
      %v5365 = vrot.slane %v5363, 1
      %v5366 = vsel %vm2978, %v5361, %v5365
      %v5367 = vshrl.u32 %v5264, 16
      %v5369 = vor.u32 %v5367, %v5357
      %v5371 = vshll.u32 %v5266, 16
      %v5373 = vrot.slane %v5371, 1
      %v5374 = vsel %vm2978, %v5369, %v5373
      %v5375 = vshrl.u32 %v5265, 16
      %v5377 = vor.u32 %v5375, %v5365
      %v5379 = vshll.u32 %v5267, 16
      %v5381 = vrot.slane %v5379, 1
      %v5382 = vsel %vm2978, %v5377, %v5381
      %v5383 = vshrl.u32 %v5266, 16
      %v5385 = vor.u32 %v5383, %v5373
      %v5387 = vshll.u32 %v5268, 16
      %v5389 = vrot.slane %v5387, 1
      %v5390 = vsel %vm2978, %v5385, %v5389
      %v5391 = vshrl.u32 %v5267, 16
      %v5393 = vor.u32 %v5391, %v5381
      %v5395 = vshll.u32 %v5269, 16
      %v5397 = vrot.slane %v5395, 1
      %v5398 = vsel %vm2978, %v5393, %v5397
      %v5399 = vshrl.u32 %v5268, 16
      %v5401 = vor.u32 %v5399, %v5389
      %v5403 = vshll.u32 %v5270, 16
      %v5405 = vrot.slane %v5403, 1
      %v5406 = vsel %vm2978, %v5401, %v5405
      %v5407 = vshrl.u32 %v5269, 16
      %v5409 = vor.u32 %v5407, %v5397
      %v5411 = vshll.u32 %v5271, 16
      %v5413 = vrot.slane %v5411, 1
      %v5414 = vsel %vm2978, %v5409, %v5413
      %v5415 = vshrl.u32 %v5270, 16
      %v5417 = vor.u32 %v5415, %v5405
      %v5419 = vshll.u32 %v5272, 16
      %v5421 = vrot.slane %v5419, 1
      %v5422 = vsel %vm2978, %v5417, %v5421
      %v5423 = vshrl.u32 %v5271, 16
      %v5425 = vor.u32 %v5423, %v5413
      %v5427 = vshll.u32 %v5273, 16
      %v5429 = vrot.slane %v5427, 1
      %v5430 = vsel %vm2978, %v5425, %v5429
      %v5431 = vshrl.u32 %v5272, 16
      %v5433 = vor.u32 %v5431, %v5421
      %v5435 = vshll.u32 %v5274, 16
      %v5437 = vrot.slane %v5435, 1
      %v5438 = vsel %vm2978, %v5433, %v5437
      %v5439 = vshrl.u32 %v5273, 16
      %v5441 = vor.u32 %v5439, %v5429
      %v5443 = vshll.u32 %v5275, 16
      %v5445 = vrot.slane %v5443, 1
      %v5446 = vsel %vm2978, %v5441, %v5445
      %v5447 = vshrl.u32 %v5274, 16
      %v5449 = vor.u32 %v5447, %v5437
      %v5451 = vshll.u32 %v5276, 16
      %v5453 = vrot.slane %v5451, 1
      %v5454 = vsel %vm2978, %v5449, %v5453
      %v5455 = vshrl.u32 %v5275, 16
      %v5457 = vor.u32 %v5455, %v5445
      %v5459 = vshll.u32 %v5277, 16
      %v5461 = vrot.slane %v5459, 1
      %v5462 = vsel %vm2978, %v5457, %v5461
      %v5463 = vshrl.u32 %v5276, 16
      %v5465 = vor.u32 %v5463, %v5453
      %v5467 = vshll.u32 %v5278, 16
      %v5469 = vrot.slane %v5467, 1
      %v5470 = vsel %vm2978, %v5465, %v5469
      %v5471 = vshrl.u32 %v5277, 16
      %v5473 = vor.u32 %v5471, %v5461
      %v5475 = vshll.u32 %v5279, 16
      %v5477 = vrot.slane %v5475, 1
      %v5478 = vsel %vm2978, %v5473, %v5477
      %v5479 = vshrl.u32 %v5278, 16
      %v5481 = vor.u32 %v5479, %v5469
      %v5483 = vshll.u32 %v5280, 16
      %v5485 = vrot.slane %v5483, 1
      %v5486 = vsel %vm2978, %v5481, %v5485
      %v5487 = vshrl.u32 %v5279, 16
      %v5489 = vor.u32 %v5487, %v5477
      %v5491 = vshll.u32 %v5281, 16
      %v5493 = vrot.slane %v5491, 1
      %v5494 = vsel %vm2978, %v5489, %v5493
      %v5495 = vshrl.u32 %v5280, 16
      %v5497 = vor.u32 %v5495, %v5485
      %v5499 = vshll.u32 %v5282, 16
      %v5501 = vrot.slane %v5499, 1
      %v5502 = vsel %vm2978, %v5497, %v5501
      %v5503 = vshrl.u32 %v5281, 16
      %v5505 = vor.u32 %v5503, %v5493
      %v5507 = vshll.u32 %v5283, 16
      %v5509 = vrot.slane %v5507, 1
      %v5510 = vsel %vm2978, %v5505, %v5509
      %v5511 = vshrl.u32 %v5282, 16
      %v5513 = vor.u32 %v5511, %v5501
      %v5515 = vshll.u32 %v5284, 16
      %v5517 = vrot.slane %v5515, 1
      %v5518 = vsel %vm2978, %v5513, %v5517
      %v5519 = vshrl.u32 %v5283, 16
      %v5521 = vor.u32 %v5519, %v5509
      %v5523 = vshll.u32 %v5285, 16
      %v5525 = vrot.slane %v5523, 1
      %v5526 = vsel %vm2978, %v5521, %v5525
      %v5527 = vshrl.u32 %v5284, 16
      %v5529 = vor.u32 %v5527, %v5517
      %v5531 = vshll.u32 %v5286, 16
      %v5533 = vrot.slane %v5531, 1
      %v5534 = vsel %vm2978, %v5529, %v5533
      %v5535 = vshrl.u32 %v5285, 16
      %v5537 = vor.u32 %v5535, %v5525
      %v5539 = vshll.u32 %v5287, 16
      %v5541 = vrot.slane %v5539, 1
      %v5542 = vsel %vm2978, %v5537, %v5541
      %v5543 = vshrl.u32 %v5286, 16
      %v5545 = vor.u32 %v5543, %v5533
      %v5547 = vshll.u32 %v5288, 16
      %v5549 = vrot.slane %v5547, 1
      %v5550 = vsel %vm2978, %v5545, %v5549
      %v5551 = vshrl.u32 %v5287, 16
      %v5553 = vor.u32 %v5551, %v5541
      %v5555 = vshll.u32 %v5289, 16
      %v5557 = vrot.slane %v5555, 1
      %v5558 = vsel %vm2978, %v5553, %v5557
      %v5559 = vshrl.u32 %v5288, 16
      %v5561 = vor.u32 %v5559, %v5549
      %v5563 = vshll.u32 %v5290, 16
      %v5565 = vrot.slane %v5563, 1
      %v5566 = vsel %vm2978, %v5561, %v5565
      %v5567 = vshrl.u32 %v5289, 16
      %v5569 = vor.u32 %v5567, %v5557
      %v5571 = vshll.u32 %v5291, 16
      %v5573 = vrot.slane %v5571, 1
      %v5574 = vsel %vm2978, %v5569, %v5573
      %v5575 = vshrl.u32 %v5290, 16
      %v5577 = vor.u32 %v5575, %v5565
      %v5579 = vshll.u32 %v5292, 16
      %v5581 = vrot.slane %v5579, 1
      %v5582 = vsel %vm2978, %v5577, %v5581
      %v5583 = vshrl.u32 %v5291, 16
      %v5585 = vor.u32 %v5583, %v5573
      %v5587 = vshll.u32 %v5293, 16
      %v5589 = vrot.slane %v5587, 1
      %v5590 = vsel %vm2978, %v5585, %v5589
      %v5655 = vunpack.c.l.b16 %v5295
      %v5656 = vunpack.c.h.b16 %v5295
      %v5657 = vunpack.c.l.b16 %v5296
      %v5658 = vunpack.c.h.b16 %v5296
      %v5659 = vunpack.c.l.b16 %v5297
      %v5660 = vunpack.c.h.b16 %v5297
      %v5661 = vunpack.c.l.b16 %v5298
      %v5662 = vunpack.c.h.b16 %v5298
      %v5663 = vunpack.c.l.b16 %v5299
      %v5664 = vunpack.c.h.b16 %v5299
      %v5665 = vunpack.c.l.b16 %v5300
      %v5666 = vunpack.c.h.b16 %v5300
      %v5667 = vunpack.c.l.b16 %v5301
      %v5668 = vunpack.c.h.b16 %v5301
      %v5669 = vunpack.c.l.b16 %v5302
      %v5670 = vunpack.c.h.b16 %v5302
      %v5671 = vunpack.c.l.b16 %v5303
      %v5672 = vunpack.c.h.b16 %v5303
      %v5673 = vunpack.c.l.b16 %v5304
      %v5674 = vunpack.c.h.b16 %v5304
      %v5675 = vunpack.c.l.b16 %v5305
      %v5676 = vunpack.c.h.b16 %v5305
      %v5677 = vunpack.c.l.b16 %v5306
      %v5678 = vunpack.c.h.b16 %v5306
      %v5679 = vunpack.c.l.b16 %v5307
      %v5680 = vunpack.c.h.b16 %v5307
      %v5681 = vunpack.c.l.b16 %v5308
      %v5682 = vunpack.c.h.b16 %v5308
      %v5683 = vunpack.c.l.b16 %v5309
      %v5684 = vunpack.c.h.b16 %v5309
      %v5685 = vunpack.c.l.b16 %v5310
      %v5686 = vunpack.c.h.b16 %v5310
      %v5687 = vunpack.c.l.b16 %v5311
      %v5688 = vunpack.c.h.b16 %v5311
      %v5689 = vunpack.c.l.b16 %v5312
      %v5690 = vunpack.c.h.b16 %v5312
      %v5691 = vunpack.c.l.b16 %v5313
      %v5692 = vunpack.c.h.b16 %v5313
      %v5693 = vunpack.c.l.b16 %v5314
      %v5694 = vunpack.c.h.b16 %v5314
      %v5695 = vunpack.c.l.b16 %v5315
      %v5696 = vunpack.c.h.b16 %v5315
      %v5697 = vunpack.c.l.b16 %v5316
      %v5698 = vunpack.c.h.b16 %v5316
      %v5699 = vunpack.c.l.b16 %v5317
      %v5700 = vunpack.c.h.b16 %v5317
      %v5701 = vunpack.c.l.b16 %v5318
      %v5702 = vunpack.c.h.b16 %v5318
      %v5703 = vunpack.c.l.b16 %v5319
      %v5704 = vunpack.c.h.b16 %v5319
      %v5705 = vunpack.c.l.b16 %v5320
      %v5706 = vunpack.c.h.b16 %v5320
      %v5707 = vunpack.c.l.b16 %v5321
      %v5708 = vunpack.c.h.b16 %v5321
      %v5709 = vunpack.c.l.b16 %v5322
      %v5710 = vunpack.c.h.b16 %v5322
      %v5711 = vunpack.c.l.b16 %v5323
      %v5712 = vunpack.c.h.b16 %v5323
      %v5713 = vunpack.c.l.b16 %v5324
      %v5714 = vunpack.c.h.b16 %v5324
      %v5715 = vunpack.c.l.b16 %v5325
      %v5716 = vunpack.c.h.b16 %v5325
      %v5717 = vunpack.c.l.b16 %v5326
      %v5718 = vunpack.c.h.b16 %v5326
      %v5719 = vpack.c.b16 %v5657, %v5655
      %v5720 = vpack.c.b16 %v5658, %v5656
      %v5721 = vpack.c.b16 %v5661, %v5659
      %v5722 = vpack.c.b16 %v5662, %v5660
      %v5723 = vpack.c.b16 %v5665, %v5663
      %v5724 = vpack.c.b16 %v5666, %v5664
      %v5725 = vpack.c.b16 %v5669, %v5667
      %v5726 = vpack.c.b16 %v5670, %v5668
      %v5727 = vpack.c.b16 %v5673, %v5671
      %v5728 = vpack.c.b16 %v5674, %v5672
      %v5729 = vpack.c.b16 %v5677, %v5675
      %v5730 = vpack.c.b16 %v5678, %v5676
      %v5731 = vpack.c.b16 %v5681, %v5679
      %v5732 = vpack.c.b16 %v5682, %v5680
      %v5733 = vpack.c.b16 %v5685, %v5683
      %v5734 = vpack.c.b16 %v5686, %v5684
      %v5735 = vpack.c.b16 %v5689, %v5687
      %v5736 = vpack.c.b16 %v5690, %v5688
      %v5737 = vpack.c.b16 %v5693, %v5691
      %v5738 = vpack.c.b16 %v5694, %v5692
      %v5739 = vpack.c.b16 %v5697, %v5695
      %v5740 = vpack.c.b16 %v5698, %v5696
      %v5741 = vpack.c.b16 %v5701, %v5699
      %v5742 = vpack.c.b16 %v5702, %v5700
      %v5743 = vpack.c.b16 %v5705, %v5703
      %v5744 = vpack.c.b16 %v5706, %v5704
      %v5745 = vpack.c.b16 %v5709, %v5707
      %v5746 = vpack.c.b16 %v5710, %v5708
      %v5747 = vpack.c.b16 %v5713, %v5711
      %v5748 = vpack.c.b16 %v5714, %v5712
      %v5749 = vpack.c.b16 %v5717, %v5715
      %v5750 = vpack.c.b16 %v5718, %v5716
      %5783 = vmatprep.subr.bf16.mxu0 %v5720
      %5784 = vmatpush1.bf16.msra.mxu0 %v5719
      %5785 = vmatprep.subr.bf16.mxu0 %v5722
      %5786 = vmatpush1.bf16.msra.mxu0 %v5721
      %5787 = vmatprep.subr.bf16.mxu0 %v5724
      %5788 = vmatpush1.bf16.msra.mxu0 %v5723
      %5789 = vmatprep.subr.bf16.mxu0 %v5726
      %5790 = vmatpush1.bf16.msra.mxu0 %v5725
      %5791 = vmatprep.subr.bf16.mxu0 %v5728
      %5792 = vmatpush1.bf16.msra.mxu0 %v5727
      %5793 = vmatprep.subr.bf16.mxu0 %v5730
      %5794 = vmatpush1.bf16.msra.mxu0 %v5729
      %5795 = vmatprep.subr.bf16.mxu0 %v5732
      %5796 = vmatpush1.bf16.msra.mxu0 %v5731
      %5797 = vmatprep.subr.bf16.mxu0 %v5734
      %5798 = vmatpush1.bf16.msra.mxu0 %v5733
      %5799 = vmatprep.subr.bf16.mxu0 %v5736
      %5800 = vmatpush1.bf16.msra.mxu0 %v5735
      %5801 = vmatprep.subr.bf16.mxu0 %v5738
      %5802 = vmatpush1.bf16.msra.mxu0 %v5737
      %5803 = vmatprep.subr.bf16.mxu0 %v5740
      %5804 = vmatpush1.bf16.msra.mxu0 %v5739
      %5805 = vmatprep.subr.bf16.mxu0 %v5742
      %5806 = vmatpush1.bf16.msra.mxu0 %v5741
      %5807 = vmatprep.subr.bf16.mxu0 %v5744
      %5808 = vmatpush1.bf16.msra.mxu0 %v5743
      %5809 = vmatprep.subr.bf16.mxu0 %v5746
      %5810 = vmatpush1.bf16.msra.mxu0 %v5745
      %5811 = vmatprep.subr.bf16.mxu0 %v5748
      %5812 = vmatpush1.bf16.msra.mxu0 %v5747
      %5813 = vmatprep.subr.bf16.mxu0 %v5750
      %5814 = vmatpush1.bf16.msra.mxu0 %v5749
      %5815 = vmatprep.mubr.bf16.mxu0 %v5350
      %5816 = vmatmul.mubr.bf16.gmra.mrb[0].mxu0 %v5338
      %v5817 = vpop.f32.mrb[0].mxu0
      %v5818 = vadd.f32 0.0, %v5817
      %v5819 = vpop.f32.mrb[0].mxu0
      %v5820 = vadd.f32 0.0, %v5819
      %v5821 = vpop.f32.mrb[0].mxu0
      %v5822 = vadd.f32 0.0, %v5821
      %v5823 = vpop.f32.mrb[0].mxu0
      %v5824 = vadd.f32 0.0, %v5823
      %5825 = vmatprep.mubr.bf16.mxu0 %v5366
      %5826 = vmatmul.mubr.bf16.gmra.mrb[0].mxu0 %v5358
      %v5827 = vpop.f32.mrb[0].mxu0
      %v5828 = vadd.f32 0.0, %v5827
      %v5829 = vpop.f32.mrb[0].mxu0
      %v5830 = vadd.f32 0.0, %v5829
      %v5831 = vpop.f32.mrb[0].mxu0
      %v5832 = vadd.f32 0.0, %v5831
      %v5833 = vpop.f32.mrb[0].mxu0
      %v5834 = vadd.f32 0.0, %v5833
      %5835 = vmatprep.mubr.bf16.mxu0 %v5382
      %5836 = vmatmul.mubr.bf16.gmra.mrb[0].mxu0 %v5374
      %v5837 = vpop.f32.mrb[0].mxu0
      %v5838 = vadd.f32 0.0, %v5837
      %v5839 = vpop.f32.mrb[0].mxu0
      %v5840 = vadd.f32 0.0, %v5839
      %v5841 = vpop.f32.mrb[0].mxu0
      %v5842 = vadd.f32 0.0, %v5841
      %v5843 = vpop.f32.mrb[0].mxu0
      %v5844 = vadd.f32 0.0, %v5843
      %5845 = vmatprep.mubr.bf16.mxu0 %v5398
      %5846 = vmatmul.mubr.bf16.gmra.mrb[0].mxu0 %v5390
      %v5847 = vpop.f32.mrb[0].mxu0
      %v5848 = vadd.f32 0.0, %v5847
      %v5849 = vpop.f32.mrb[0].mxu0
      %v5850 = vadd.f32 0.0, %v5849
      %v5851 = vpop.f32.mrb[0].mxu0
      %v5852 = vadd.f32 0.0, %v5851
      %v5853 = vpop.f32.mrb[0].mxu0
      %v5854 = vadd.f32 0.0, %v5853
      %5855 = vmatprep.mubr.bf16.mxu0 %v5414
      %5856 = vmatmul.mubr.bf16.gmra.mrb[0].mxu0 %v5406
      %v5857 = vpop.f32.mrb[0].mxu0
      %v5858 = vadd.f32 0.0, %v5857
      %v5859 = vpop.f32.mrb[0].mxu0
      %v5860 = vadd.f32 0.0, %v5859
      %v5861 = vpop.f32.mrb[0].mxu0
      %v5862 = vadd.f32 0.0, %v5861
      %v5863 = vpop.f32.mrb[0].mxu0
      %v5864 = vadd.f32 0.0, %v5863
      %5865 = vmatprep.mubr.bf16.mxu0 %v5430
      %5866 = vmatmul.mubr.bf16.gmra.mrb[0].mxu0 %v5422
      %v5867 = vpop.f32.mrb[0].mxu0
      %v5868 = vadd.f32 0.0, %v5867
      %v5869 = vpop.f32.mrb[0].mxu0
      %v5870 = vadd.f32 0.0, %v5869
      %v5871 = vpop.f32.mrb[0].mxu0
      %v5872 = vadd.f32 0.0, %v5871
      %v5873 = vpop.f32.mrb[0].mxu0
      %v5874 = vadd.f32 0.0, %v5873
      %5875 = vmatprep.mubr.bf16.mxu0 %v5446
      %5876 = vmatmul.mubr.bf16.gmra.mrb[0].mxu0 %v5438
      %v5877 = vpop.f32.mrb[0].mxu0
      %v5878 = vadd.f32 0.0, %v5877
      %v5879 = vpop.f32.mrb[0].mxu0
      %v5880 = vadd.f32 0.0, %v5879
      %v5881 = vpop.f32.mrb[0].mxu0
      %v5882 = vadd.f32 0.0, %v5881
      %v5883 = vpop.f32.mrb[0].mxu0
      %v5884 = vadd.f32 0.0, %v5883
      %5885 = vmatprep.mubr.bf16.mxu0 %v5462
      %5886 = vmatmul.mubr.bf16.gmra.mrb[0].mxu0 %v5454
      %v5887 = vpop.f32.mrb[0].mxu0
      %v5888 = vadd.f32 0.0, %v5887
      %v5889 = vpop.f32.mrb[0].mxu0
      %v5890 = vadd.f32 0.0, %v5889
      %v5891 = vpop.f32.mrb[0].mxu0
      %v5892 = vadd.f32 0.0, %v5891
      %v5893 = vpop.f32.mrb[0].mxu0
      %v5894 = vadd.f32 0.0, %v5893
      %5895 = vmatprep.mubr.bf16.mxu0 %v5478
      %5896 = vmatmul.mubr.bf16.gmra.mrb[0].mxu0 %v5470
      %v5897 = vpop.f32.mrb[0].mxu0
      %v5898 = vadd.f32 0.0, %v5897
      %v5899 = vpop.f32.mrb[0].mxu0
      %v5900 = vadd.f32 0.0, %v5899
      %v5901 = vpop.f32.mrb[0].mxu0
      %v5902 = vadd.f32 0.0, %v5901
      %v5903 = vpop.f32.mrb[0].mxu0
      %v5904 = vadd.f32 0.0, %v5903
      %5905 = vmatprep.mubr.bf16.mxu0 %v5494
      %5906 = vmatmul.mubr.bf16.gmra.mrb[0].mxu0 %v5486
      %v5907 = vpop.f32.mrb[0].mxu0
      %v5908 = vadd.f32 0.0, %v5907
      %v5909 = vpop.f32.mrb[0].mxu0
      %v5910 = vadd.f32 0.0, %v5909
      %v5911 = vpop.f32.mrb[0].mxu0
      %v5912 = vadd.f32 0.0, %v5911
      %v5913 = vpop.f32.mrb[0].mxu0
      %v5914 = vadd.f32 0.0, %v5913
      %5915 = vmatprep.mubr.bf16.mxu0 %v5510
      %5916 = vmatmul.mubr.bf16.gmra.mrb[0].mxu0 %v5502
      %v5917 = vpop.f32.mrb[0].mxu0
      %v5918 = vadd.f32 0.0, %v5917
      %v5919 = vpop.f32.mrb[0].mxu0
      %v5920 = vadd.f32 0.0, %v5919
      %v5921 = vpop.f32.mrb[0].mxu0
      %v5922 = vadd.f32 0.0, %v5921
      %v5923 = vpop.f32.mrb[0].mxu0
      %v5924 = vadd.f32 0.0, %v5923
      %5925 = vmatprep.mubr.bf16.mxu0 %v5526
      %5926 = vmatmul.mubr.bf16.gmra.mrb[0].mxu0 %v5518
      %v5927 = vpop.f32.mrb[0].mxu0
      %v5928 = vadd.f32 0.0, %v5927
      %v5929 = vpop.f32.mrb[0].mxu0
      %v5930 = vadd.f32 0.0, %v5929
      %v5931 = vpop.f32.mrb[0].mxu0
      %v5932 = vadd.f32 0.0, %v5931
      %v5933 = vpop.f32.mrb[0].mxu0
      %v5934 = vadd.f32 0.0, %v5933
      %5935 = vmatprep.mubr.bf16.mxu0 %v5542
      %5936 = vmatmul.mubr.bf16.gmra.mrb[0].mxu0 %v5534
      %v5937 = vpop.f32.mrb[0].mxu0
      %v5938 = vadd.f32 0.0, %v5937
      %v5939 = vpop.f32.mrb[0].mxu0
      %v5940 = vadd.f32 0.0, %v5939
      %v5941 = vpop.f32.mrb[0].mxu0
      %v5942 = vadd.f32 0.0, %v5941
      %v5943 = vpop.f32.mrb[0].mxu0
      %v5944 = vadd.f32 0.0, %v5943
      %5945 = vmatprep.mubr.bf16.mxu0 %v5558
      %5946 = vmatmul.mubr.bf16.gmra.mrb[0].mxu0 %v5550
      %v5947 = vpop.f32.mrb[0].mxu0
      %v5948 = vadd.f32 0.0, %v5947
      %v5949 = vpop.f32.mrb[0].mxu0
      %v5950 = vadd.f32 0.0, %v5949
      %v5951 = vpop.f32.mrb[0].mxu0
      %v5952 = vadd.f32 0.0, %v5951
      %v5953 = vpop.f32.mrb[0].mxu0
      %v5954 = vadd.f32 0.0, %v5953
      %5955 = vmatprep.mubr.bf16.mxu0 %v5574
      %5956 = vmatmul.mubr.bf16.gmra.mrb[0].mxu0 %v5566
      %v5957 = vpop.f32.mrb[0].mxu0
      %v5958 = vadd.f32 0.0, %v5957
      %v5959 = vpop.f32.mrb[0].mxu0
      %v5960 = vadd.f32 0.0, %v5959
      %v5961 = vpop.f32.mrb[0].mxu0
      %v5962 = vadd.f32 0.0, %v5961
      %v5963 = vpop.f32.mrb[0].mxu0
      %v5964 = vadd.f32 0.0, %v5963
      %5965 = vmatprep.mubr.bf16.mxu0 %v5590
      %5966 = vmatmul.mubr.bf16.gmra.mrb[0].mxu0 %v5582
      %v5967 = vpop.f32.mrb[0].mxu0
      %v5968 = vadd.f32 0.0, %v5967
      %v5969 = vpop.f32.mrb[0].mxu0
      %v5970 = vadd.f32 0.0, %v5969
      %v5971 = vpop.f32.mrb[0].mxu0
      %v5972 = vadd.f32 0.0, %v5971
      %v5973 = vpop.f32.mrb[0].mxu0
      %v5974 = vadd.f32 0.0, %v5973
      %5975 = vdwg.mxu0
      %v5976 = vadd.f32 %v5064, %v5818
      %v5977 = vadd.f32 %v5065, %v5820
      %v5978 = vadd.f32 %v5066, %v5822
      %v5979 = vadd.f32 %v5067, %v5824
      %v5980 = vadd.f32 %v5068, %v5828
      %v5981 = vadd.f32 %v5069, %v5830
      %v5982 = vadd.f32 %v5070, %v5832
      %v5983 = vadd.f32 %v5071, %v5834
      %v5984 = vadd.f32 %v5072, %v5838
      %v5985 = vadd.f32 %v5073, %v5840
      %v5986 = vadd.f32 %v5074, %v5842
      %v5987 = vadd.f32 %v5075, %v5844
      %v5988 = vadd.f32 %v5076, %v5848
      %v5989 = vadd.f32 %v5077, %v5850
      %v5990 = vadd.f32 %v5078, %v5852
      %v5991 = vadd.f32 %v5079, %v5854
      %v5992 = vadd.f32 %v5080, %v5858
      %v5993 = vadd.f32 %v5081, %v5860
      %v5994 = vadd.f32 %v5082, %v5862
      %v5995 = vadd.f32 %v5083, %v5864
      %v5996 = vadd.f32 %v5084, %v5868
      %v5997 = vadd.f32 %v5085, %v5870
      %v5998 = vadd.f32 %v5086, %v5872
      %v5999 = vadd.f32 %v5087, %v5874
      %v6000 = vadd.f32 %v5088, %v5878
      %v6001 = vadd.f32 %v5089, %v5880
      %v6002 = vadd.f32 %v5090, %v5882
      %v6003 = vadd.f32 %v5091, %v5884
      %v6004 = vadd.f32 %v5092, %v5888
      %v6005 = vadd.f32 %v5093, %v5890
      %v6006 = vadd.f32 %v5094, %v5892
      %v6007 = vadd.f32 %v5095, %v5894
      %v6008 = vadd.f32 %v5096, %v5898
      %v6009 = vadd.f32 %v5097, %v5900
      %v6010 = vadd.f32 %v5098, %v5902
      %v6011 = vadd.f32 %v5099, %v5904
      %v6012 = vadd.f32 %v5100, %v5908
      %v6013 = vadd.f32 %v5101, %v5910
      %v6014 = vadd.f32 %v5102, %v5912
      %v6015 = vadd.f32 %v5103, %v5914
      %v6016 = vadd.f32 %v5104, %v5918
      %v6017 = vadd.f32 %v5105, %v5920
      %v6018 = vadd.f32 %v5106, %v5922
      %v6019 = vadd.f32 %v5107, %v5924
      %v6020 = vadd.f32 %v5108, %v5928
      %v6021 = vadd.f32 %v5109, %v5930
      %v6022 = vadd.f32 %v5110, %v5932
      %v6023 = vadd.f32 %v5111, %v5934
      %v6024 = vadd.f32 %v5112, %v5938
      %v6025 = vadd.f32 %v5113, %v5940
      %v6026 = vadd.f32 %v5114, %v5942
      %v6027 = vadd.f32 %v5115, %v5944
      %v6028 = vadd.f32 %v5116, %v5948
      %v6029 = vadd.f32 %v5117, %v5950
      %v6030 = vadd.f32 %v5118, %v5952
      %v6031 = vadd.f32 %v5119, %v5954
      %v6032 = vadd.f32 %v5120, %v5958
      %v6033 = vadd.f32 %v5121, %v5960
      %v6034 = vadd.f32 %v5122, %v5962
      %v6035 = vadd.f32 %v5123, %v5964
      %v6036 = vadd.f32 %v5124, %v5968
      %v6037 = vadd.f32 %v5125, %v5970
      %v6038 = vadd.f32 %v5126, %v5972
      %v6039 = vadd.f32 %v5127, %v5974
      %v6040 = vld [vmem:[#allocation2 + $0x40] sm:$0x80]
      %v6041 = vld [vmem:[#allocation2 + $0x48] sm:$0x80]
      %v6042 = vld [vmem:[#allocation2 + $0x50] sm:$0xff]
      %v6043 = vld [vmem:[#allocation2 + $0x58] sm:$0xff]
      %v6044 = vld [vmem:[#allocation2 + $0x60] sm:$0xff]
      %v6045 = vld [vmem:[#allocation2 + $0x68] sm:$0xff]
      %v6046 = vld [vmem:[#allocation2 + $0x70] sm:$0xff]
      %v6047 = vld [vmem:[#allocation2 + $0x78] sm:$0xff]
      %v6048 = vld [vmem:[#allocation2 + $0x80] sm:$0xff]
      %v6049 = vld [vmem:[#allocation2 + $0x88] sm:$0xff]
      %v6050 = vld [vmem:[#allocation2 + $0x90] sm:$0xff]
      %v6051 = vld [vmem:[#allocation2 + $0x98] sm:$0xff]
      %v6052 = vld [vmem:[#allocation2 + $0xa0] sm:$0xff]
      %v6053 = vld [vmem:[#allocation2 + $0xa8] sm:$0xff]
      %v6054 = vld [vmem:[#allocation2 + $0xb0] sm:$0xff]
      %v6055 = vld [vmem:[#allocation2 + $0xb8] sm:$0xff]
      %v6056 = vld [vmem:[#allocation2 + $0xc0] sm:$0xff]
      %v6057 = vld [vmem:[#allocation2 + $0xc8] sm:$0xff]
      %v6058 = vld [vmem:[#allocation2 + $0xd0] sm:$0xff]
      %v6059 = vld [vmem:[#allocation2 + $0xd8] sm:$0xff]
      %v6060 = vld [vmem:[#allocation2 + $0xe0] sm:$0xff]
      %v6061 = vld [vmem:[#allocation2 + $0xe8] sm:$0xff]
      %v6062 = vld [vmem:[#allocation2 + $0xf0] sm:$0xff]
      %v6063 = vld [vmem:[#allocation2 + $0xf8] sm:$0xff]
      %v6064 = vld [vmem:[#allocation2 + $0x100] sm:$0xff]
      %v6065 = vld [vmem:[#allocation2 + $0x108] sm:$0xff]
      %v6066 = vld [vmem:[#allocation2 + $0x110] sm:$0xff]
      %v6067 = vld [vmem:[#allocation2 + $0x118] sm:$0xff]
      %v6068 = vld [vmem:[#allocation2 + $0x120] sm:$0xff]
      %v6069 = vld [vmem:[#allocation2 + $0x128] sm:$0xff]
      %v6070 = vld [vmem:[#allocation2 + $0x130] sm:$0xff]
      %v6071 = vld [vmem:[#allocation2 + $0x138] sm:$0xff]
      %v6072 = vld [vmem:[#allocation2 + $0x140] sm:$0xff]
      %v6073 = vld [vmem:[#allocation2 + $0x148] sm:$0xff]
      %v6074 = vld [vmem:[#allocation2 + $0x150] sm:$0xff]
      %v6075 = vld [vmem:[#allocation2 + $0x158] sm:$0xff]
      %v6076 = vld [vmem:[#allocation2 + $0x160] sm:$0xff]
      %v6077 = vld [vmem:[#allocation2 + $0x168] sm:$0xff]
      %v6078 = vld [vmem:[#allocation2 + $0x170] sm:$0xff]
      %v6079 = vld [vmem:[#allocation2 + $0x178] sm:$0xff]
      %v6080 = vld [vmem:[#allocation2 + $0x180] sm:$0xff]
      %v6081 = vld [vmem:[#allocation2 + $0x188] sm:$0xff]
      %v6082 = vld [vmem:[#allocation2 + $0x190] sm:$0xff]
      %v6083 = vld [vmem:[#allocation2 + $0x198] sm:$0xff]
      %v6084 = vld [vmem:[#allocation2 + $0x1a0] sm:$0xff]
      %v6085 = vld [vmem:[#allocation2 + $0x1a8] sm:$0xff]
      %v6086 = vld [vmem:[#allocation2 + $0x1b0] sm:$0xff]
      %v6087 = vld [vmem:[#allocation2 + $0x1b8] sm:$0xff]
      %v6088 = vld [vmem:[#allocation2 + $0x1c0] sm:$0xff]
      %v6089 = vld [vmem:[#allocation2 + $0x1c8] sm:$0xff]
      %v6090 = vld [vmem:[#allocation2 + $0x1d0] sm:$0xff]
      %v6091 = vld [vmem:[#allocation2 + $0x1d8] sm:$0xff]
      %v6092 = vld [vmem:[#allocation2 + $0x1e0] sm:$0xff]
      %v6093 = vld [vmem:[#allocation2 + $0x1e8] sm:$0xff]
      %v6094 = vld [vmem:[#allocation2 + $0x1f0] sm:$0xff]
      %v6095 = vld [vmem:[#allocation2 + $0x1f8] sm:$0xff]
      %v6096 = vld [vmem:[#allocation2 + $0x200] sm:$0xff]
      %v6097 = vld [vmem:[#allocation2 + $0x208] sm:$0xff]
      %v6098 = vld [vmem:[#allocation2 + $0x210] sm:$0xff]
      %v6099 = vld [vmem:[#allocation2 + $0x218] sm:$0xff]
      %v6100 = vld [vmem:[#allocation2 + $0x220] sm:$0xff]
      %v6101 = vld [vmem:[#allocation2 + $0x228] sm:$0xff]
      %v6102 = vld [vmem:[#allocation2 + $0x230] sm:$0xff]
      %v6103 = vld [vmem:[#allocation2 + $0x238] sm:$0xff]
      %v6104 = vld [vmem:[#allocation2 + $0x240] sm:$0x7f]
      %v6105 = vld [vmem:[#allocation2 + $0x248] sm:$0x7f]
      %v6106 = vmul.f32 %v6040, %v1216
      %v6107 = vmul.f32 %v6041, %v1216
      %v6108 = vmul.f32 %v6042, %v1218
      %v6109 = vmul.f32 %v6043, %v1218
      %v6110 = vmul.f32 %v6044, %v1220
      %v6111 = vmul.f32 %v6045, %v1220
      %v6112 = vmul.f32 %v6046, %v1222
      %v6113 = vmul.f32 %v6047, %v1222
      %v6114 = vmul.f32 %v6048, %v1224
      %v6115 = vmul.f32 %v6049, %v1224
      %v6116 = vmul.f32 %v6050, %v1226
      %v6117 = vmul.f32 %v6051, %v1226
      %v6118 = vmul.f32 %v6052, %v1228
      %v6119 = vmul.f32 %v6053, %v1228
      %v6120 = vmul.f32 %v6054, %v1230
      %v6121 = vmul.f32 %v6055, %v1230
      %v6122 = vmul.f32 %v6056, %v1232
      %v6123 = vmul.f32 %v6057, %v1232
      %v6124 = vmul.f32 %v6058, %v1234
      %v6125 = vmul.f32 %v6059, %v1234
      %v6126 = vmul.f32 %v6060, %v1236
      %v6127 = vmul.f32 %v6061, %v1236
      %v6128 = vmul.f32 %v6062, %v1238
      %v6129 = vmul.f32 %v6063, %v1238
      %v6130 = vmul.f32 %v6064, %v1240
      %v6131 = vmul.f32 %v6065, %v1240
      %v6132 = vmul.f32 %v6066, %v1242
      %v6133 = vmul.f32 %v6067, %v1242
      %v6134 = vmul.f32 %v6068, %v1244
      %v6135 = vmul.f32 %v6069, %v1244
      %v6136 = vmul.f32 %v6070, %v1246
      %v6137 = vmul.f32 %v6071, %v1246
      %v6138 = vmul.f32 %v6072, %v1248
      %v6139 = vmul.f32 %v6073, %v1248
      %v6140 = vmul.f32 %v6074, %v1250
      %v6141 = vmul.f32 %v6075, %v1250
      %v6142 = vmul.f32 %v6076, %v1252
      %v6143 = vmul.f32 %v6077, %v1252
      %v6144 = vmul.f32 %v6078, %v1254
      %v6145 = vmul.f32 %v6079, %v1254
      %v6146 = vmul.f32 %v6080, %v1256
      %v6147 = vmul.f32 %v6081, %v1256
      %v6148 = vmul.f32 %v6082, %v1258
      %v6149 = vmul.f32 %v6083, %v1258
      %v6150 = vmul.f32 %v6084, %v1260
      %v6151 = vmul.f32 %v6085, %v1260
      %v6152 = vmul.f32 %v6086, %v1262
      %v6153 = vmul.f32 %v6087, %v1262
      %v6154 = vmul.f32 %v6088, %v1264
      %v6155 = vmul.f32 %v6089, %v1264
      %v6156 = vmul.f32 %v6090, %v1266
      %v6157 = vmul.f32 %v6091, %v1266
      %v6158 = vmul.f32 %v6092, %v1268
      %v6159 = vmul.f32 %v6093, %v1268
      %v6160 = vmul.f32 %v6094, %v1270
      %v6161 = vmul.f32 %v6095, %v1270
      %v6162 = vmul.f32 %v6096, %v1272
      %v6163 = vmul.f32 %v6097, %v1272
      %v6164 = vmul.f32 %v6098, %v1274
      %v6165 = vmul.f32 %v6099, %v1274
      %v6166 = vmul.f32 %v6100, %v1276
      %v6167 = vmul.f32 %v6101, %v1276
      %v6168 = vmul.f32 %v6102, %v1278
      %v6169 = vmul.f32 %v6103, %v1278
      %v6170 = vmul.f32 %v6104, %v1277
      %v6171 = vmul.f32 %v6105, %v1277
      %v6172 = vpack.c.bf16 %v6108, %v6106
      %v6173 = vpack.c.bf16 %v6109, %v6107
      %v6174 = vpack.c.bf16 %v6112, %v6110
      %v6175 = vpack.c.bf16 %v6113, %v6111
      %v6176 = vpack.c.bf16 %v6116, %v6114
      %v6177 = vpack.c.bf16 %v6117, %v6115
      %v6178 = vpack.c.bf16 %v6120, %v6118
      %v6179 = vpack.c.bf16 %v6121, %v6119
      %v6180 = vpack.c.bf16 %v6124, %v6122
      %v6181 = vpack.c.bf16 %v6125, %v6123
      %v6182 = vpack.c.bf16 %v6128, %v6126
      %v6183 = vpack.c.bf16 %v6129, %v6127
      %v6184 = vpack.c.bf16 %v6132, %v6130
      %v6185 = vpack.c.bf16 %v6133, %v6131
      %v6186 = vpack.c.bf16 %v6136, %v6134
      %v6187 = vpack.c.bf16 %v6137, %v6135
      %v6188 = vpack.c.bf16 %v6140, %v6138
      %v6189 = vpack.c.bf16 %v6141, %v6139
      %v6190 = vpack.c.bf16 %v6144, %v6142
      %v6191 = vpack.c.bf16 %v6145, %v6143
      %v6192 = vpack.c.bf16 %v6148, %v6146
      %v6193 = vpack.c.bf16 %v6149, %v6147
      %v6194 = vpack.c.bf16 %v6152, %v6150
      %v6195 = vpack.c.bf16 %v6153, %v6151
      %v6196 = vpack.c.bf16 %v6156, %v6154
      %v6197 = vpack.c.bf16 %v6157, %v6155
      %v6198 = vpack.c.bf16 %v6160, %v6158
      %v6199 = vpack.c.bf16 %v6161, %v6159
      %v6200 = vpack.c.bf16 %v6164, %v6162
      %v6201 = vpack.c.bf16 %v6165, %v6163
      %v6202 = vpack.c.bf16 %v6168, %v6166
      %v6203 = vpack.c.bf16 %v6169, %v6167
      %v6204 = vpack.c.bf16 %v6170, %v6170
      %v6205 = vpack.c.bf16 %v6171, %v6171
      %s6206 = scalar_lea.vmem %s3, 1536
      %v6207 = vld [vmem:[%s6206] sm:$0xff]
      %v6208 = vld [vmem:[%s6206 + $0x8] sm:$0xff]
      %v6209 = vld [vmem:[%s6206 + $0x10] sm:$0xff]
      %v6210 = vld [vmem:[%s6206 + $0x18] sm:$0xff]
      %v6211 = vld [vmem:[%s6206 + $0x20] sm:$0xff]
      %v6212 = vld [vmem:[%s6206 + $0x28] sm:$0xff]
      %v6213 = vld [vmem:[%s6206 + $0x30] sm:$0xff]
      %v6214 = vld [vmem:[%s6206 + $0x38] sm:$0xff]
      %v6215 = vld [vmem:[%s6206 + $0x40] sm:$0xff]
      %v6216 = vld [vmem:[%s6206 + $0x48] sm:$0xff]
      %v6217 = vld [vmem:[%s6206 + $0x50] sm:$0xff]
      %v6218 = vld [vmem:[%s6206 + $0x58] sm:$0xff]
      %v6219 = vld [vmem:[%s6206 + $0x60] sm:$0xff]
      %v6220 = vld [vmem:[%s6206 + $0x68] sm:$0xff]
      %v6221 = vld [vmem:[%s6206 + $0x70] sm:$0xff]
      %v6222 = vld [vmem:[%s6206 + $0x78] sm:$0xff]
      %v6223 = vld [vmem:[%s6206 + $0x80] sm:$0xff]
      %v6224 = vld [vmem:[%s6206 + $0x88] sm:$0xff]
      %v6225 = vld [vmem:[%s6206 + $0x90] sm:$0xff]
      %v6226 = vld [vmem:[%s6206 + $0x98] sm:$0xff]
      %v6227 = vld [vmem:[%s6206 + $0xa0] sm:$0xff]
      %v6228 = vld [vmem:[%s6206 + $0xa8] sm:$0xff]
      %v6229 = vld [vmem:[%s6206 + $0xb0] sm:$0xff]
      %v6230 = vld [vmem:[%s6206 + $0xb8] sm:$0xff]
      %v6231 = vld [vmem:[%s6206 + $0xc0] sm:$0xff]
      %v6232 = vld [vmem:[%s6206 + $0xc8] sm:$0xff]
      %v6233 = vld [vmem:[%s6206 + $0xd0] sm:$0xff]
      %v6234 = vld [vmem:[%s6206 + $0xd8] sm:$0xff]
      %v6235 = vld [vmem:[%s6206 + $0xe0] sm:$0xff]
      %v6236 = vld [vmem:[%s6206 + $0xe8] sm:$0xff]
      %v6237 = vld [vmem:[%s6206 + $0xf0] sm:$0xff]
      %v6238 = vld [vmem:[%s6206 + $0xf8] sm:$0xff]
      %v6240 = vshrl.u32 %v6172, 16
      %v6242 = vrot.slane %v6240, 3
      %v6243 = vshll.u32 %v6172, 16
      %v6245 = vrot.slane %v6243, 4
      %v6246 = vor.u32 %v6242, %v6245
      %v6248 = vshrl.u32 %v6174, 16
      %v6250 = vrot.slane %v6248, 3
      %v6251 = vshll.u32 %v6174, 16
      %v6253 = vrot.slane %v6251, 4
      %v6254 = vor.u32 %v6250, %v6253
      %v6255 = vsel %vm1864, %v6246, %v6254
      %v6257 = vshrl.u32 %v6173, 16
      %v6259 = vrot.slane %v6257, 3
      %v6260 = vshll.u32 %v6173, 16
      %v6262 = vrot.slane %v6260, 4
      %v6263 = vor.u32 %v6259, %v6262
      %v6265 = vshrl.u32 %v6175, 16
      %v6267 = vrot.slane %v6265, 3
      %v6268 = vshll.u32 %v6175, 16
      %v6270 = vrot.slane %v6268, 4
      %v6271 = vor.u32 %v6267, %v6270
      %v6272 = vsel %vm1864, %v6263, %v6271
      %v6274 = vshrl.u32 %v6176, 16
      %v6276 = vrot.slane %v6274, 3
      %v6277 = vshll.u32 %v6176, 16
      %v6279 = vrot.slane %v6277, 4
      %v6280 = vor.u32 %v6276, %v6279
      %v6281 = vsel %vm1864, %v6254, %v6280
      %v6283 = vshrl.u32 %v6177, 16
      %v6285 = vrot.slane %v6283, 3
      %v6286 = vshll.u32 %v6177, 16
      %v6288 = vrot.slane %v6286, 4
      %v6289 = vor.u32 %v6285, %v6288
      %v6290 = vsel %vm1864, %v6271, %v6289
      %v6292 = vshrl.u32 %v6178, 16
      %v6294 = vrot.slane %v6292, 3
      %v6295 = vshll.u32 %v6178, 16
      %v6297 = vrot.slane %v6295, 4
      %v6298 = vor.u32 %v6294, %v6297
      %v6299 = vsel %vm1864, %v6280, %v6298
      %v6301 = vshrl.u32 %v6179, 16
      %v6303 = vrot.slane %v6301, 3
      %v6304 = vshll.u32 %v6179, 16
      %v6306 = vrot.slane %v6304, 4
      %v6307 = vor.u32 %v6303, %v6306
      %v6308 = vsel %vm1864, %v6289, %v6307
      %v6310 = vshrl.u32 %v6180, 16
      %v6312 = vrot.slane %v6310, 3
      %v6313 = vshll.u32 %v6180, 16
      %v6315 = vrot.slane %v6313, 4
      %v6316 = vor.u32 %v6312, %v6315
      %v6317 = vsel %vm1864, %v6298, %v6316
      %v6319 = vshrl.u32 %v6181, 16
      %v6321 = vrot.slane %v6319, 3
      %v6322 = vshll.u32 %v6181, 16
      %v6324 = vrot.slane %v6322, 4
      %v6325 = vor.u32 %v6321, %v6324
      %v6326 = vsel %vm1864, %v6307, %v6325
      %v6328 = vshrl.u32 %v6182, 16
      %v6330 = vrot.slane %v6328, 3
      %v6331 = vshll.u32 %v6182, 16
      %v6333 = vrot.slane %v6331, 4
      %v6334 = vor.u32 %v6330, %v6333
      %v6335 = vsel %vm1864, %v6316, %v6334
      %v6337 = vshrl.u32 %v6183, 16
      %v6339 = vrot.slane %v6337, 3
      %v6340 = vshll.u32 %v6183, 16
      %v6342 = vrot.slane %v6340, 4
      %v6343 = vor.u32 %v6339, %v6342
      %v6344 = vsel %vm1864, %v6325, %v6343
      %v6346 = vshrl.u32 %v6184, 16
      %v6348 = vrot.slane %v6346, 3
      %v6349 = vshll.u32 %v6184, 16
      %v6351 = vrot.slane %v6349, 4
      %v6352 = vor.u32 %v6348, %v6351
      %v6353 = vsel %vm1864, %v6334, %v6352
      %v6355 = vshrl.u32 %v6185, 16
      %v6357 = vrot.slane %v6355, 3
      %v6358 = vshll.u32 %v6185, 16
      %v6360 = vrot.slane %v6358, 4
      %v6361 = vor.u32 %v6357, %v6360
      %v6362 = vsel %vm1864, %v6343, %v6361
      %v6364 = vshrl.u32 %v6186, 16
      %v6366 = vrot.slane %v6364, 3
      %v6367 = vshll.u32 %v6186, 16
      %v6369 = vrot.slane %v6367, 4
      %v6370 = vor.u32 %v6366, %v6369
      %v6371 = vsel %vm1864, %v6352, %v6370
      %v6373 = vshrl.u32 %v6187, 16
      %v6375 = vrot.slane %v6373, 3
      %v6376 = vshll.u32 %v6187, 16
      %v6378 = vrot.slane %v6376, 4
      %v6379 = vor.u32 %v6375, %v6378
      %v6380 = vsel %vm1864, %v6361, %v6379
      %v6382 = vshrl.u32 %v6188, 16
      %v6384 = vrot.slane %v6382, 3
      %v6385 = vshll.u32 %v6188, 16
      %v6387 = vrot.slane %v6385, 4
      %v6388 = vor.u32 %v6384, %v6387
      %v6389 = vsel %vm1864, %v6370, %v6388
      %v6391 = vshrl.u32 %v6189, 16
      %v6393 = vrot.slane %v6391, 3
      %v6394 = vshll.u32 %v6189, 16
      %v6396 = vrot.slane %v6394, 4
      %v6397 = vor.u32 %v6393, %v6396
      %v6398 = vsel %vm1864, %v6379, %v6397
      %v6400 = vshrl.u32 %v6190, 16
      %v6402 = vrot.slane %v6400, 3
      %v6403 = vshll.u32 %v6190, 16
      %v6405 = vrot.slane %v6403, 4
      %v6406 = vor.u32 %v6402, %v6405
      %v6407 = vsel %vm1864, %v6388, %v6406
      %v6409 = vshrl.u32 %v6191, 16
      %v6411 = vrot.slane %v6409, 3
      %v6412 = vshll.u32 %v6191, 16
      %v6414 = vrot.slane %v6412, 4
      %v6415 = vor.u32 %v6411, %v6414
      %v6416 = vsel %vm1864, %v6397, %v6415
      %v6418 = vshrl.u32 %v6192, 16
      %v6420 = vrot.slane %v6418, 3
      %v6421 = vshll.u32 %v6192, 16
      %v6423 = vrot.slane %v6421, 4
      %v6424 = vor.u32 %v6420, %v6423
      %v6425 = vsel %vm1864, %v6406, %v6424
      %v6427 = vshrl.u32 %v6193, 16
      %v6429 = vrot.slane %v6427, 3
      %v6430 = vshll.u32 %v6193, 16
      %v6432 = vrot.slane %v6430, 4
      %v6433 = vor.u32 %v6429, %v6432
      %v6434 = vsel %vm1864, %v6415, %v6433
      %v6436 = vshrl.u32 %v6194, 16
      %v6438 = vrot.slane %v6436, 3
      %v6439 = vshll.u32 %v6194, 16
      %v6441 = vrot.slane %v6439, 4
      %v6442 = vor.u32 %v6438, %v6441
      %v6443 = vsel %vm1864, %v6424, %v6442
      %v6445 = vshrl.u32 %v6195, 16
      %v6447 = vrot.slane %v6445, 3
      %v6448 = vshll.u32 %v6195, 16
      %v6450 = vrot.slane %v6448, 4
      %v6451 = vor.u32 %v6447, %v6450
      %v6452 = vsel %vm1864, %v6433, %v6451
      %v6454 = vshrl.u32 %v6196, 16
      %v6456 = vrot.slane %v6454, 3
      %v6457 = vshll.u32 %v6196, 16
      %v6459 = vrot.slane %v6457, 4
      %v6460 = vor.u32 %v6456, %v6459
      %v6461 = vsel %vm1864, %v6442, %v6460
      %v6463 = vshrl.u32 %v6197, 16
      %v6465 = vrot.slane %v6463, 3
      %v6466 = vshll.u32 %v6197, 16
      %v6468 = vrot.slane %v6466, 4
      %v6469 = vor.u32 %v6465, %v6468
      %v6470 = vsel %vm1864, %v6451, %v6469
      %v6472 = vshrl.u32 %v6198, 16
      %v6474 = vrot.slane %v6472, 3
      %v6475 = vshll.u32 %v6198, 16
      %v6477 = vrot.slane %v6475, 4
      %v6478 = vor.u32 %v6474, %v6477
      %v6479 = vsel %vm1864, %v6460, %v6478
      %v6481 = vshrl.u32 %v6199, 16
      %v6483 = vrot.slane %v6481, 3
      %v6484 = vshll.u32 %v6199, 16
      %v6486 = vrot.slane %v6484, 4
      %v6487 = vor.u32 %v6483, %v6486
      %v6488 = vsel %vm1864, %v6469, %v6487
      %v6490 = vshrl.u32 %v6200, 16
      %v6492 = vrot.slane %v6490, 3
      %v6493 = vshll.u32 %v6200, 16
      %v6495 = vrot.slane %v6493, 4
      %v6496 = vor.u32 %v6492, %v6495
      %v6497 = vsel %vm1864, %v6478, %v6496
      %v6499 = vshrl.u32 %v6201, 16
      %v6501 = vrot.slane %v6499, 3
      %v6502 = vshll.u32 %v6201, 16
      %v6504 = vrot.slane %v6502, 4
      %v6505 = vor.u32 %v6501, %v6504
      %v6506 = vsel %vm1864, %v6487, %v6505
      %v6508 = vshrl.u32 %v6202, 16
      %v6510 = vrot.slane %v6508, 3
      %v6511 = vshll.u32 %v6202, 16
      %v6513 = vrot.slane %v6511, 4
      %v6514 = vor.u32 %v6510, %v6513
      %v6515 = vsel %vm1864, %v6496, %v6514
      %v6517 = vshrl.u32 %v6203, 16
      %v6519 = vrot.slane %v6517, 3
      %v6520 = vshll.u32 %v6203, 16
      %v6522 = vrot.slane %v6520, 4
      %v6523 = vor.u32 %v6519, %v6522
      %v6524 = vsel %vm1864, %v6505, %v6523
      %v6526 = vshrl.u32 %v6204, 16
      %v6528 = vrot.slane %v6526, 3
      %v6529 = vshll.u32 %v6204, 16
      %v6531 = vrot.slane %v6529, 4
      %v6532 = vor.u32 %v6528, %v6531
      %v6533 = vsel %vm1864, %v6514, %v6532
      %v6535 = vshrl.u32 %v6205, 16
      %v6537 = vrot.slane %v6535, 3
      %v6538 = vshll.u32 %v6205, 16
      %v6540 = vrot.slane %v6538, 4
      %v6541 = vor.u32 %v6537, %v6540
      %v6542 = vsel %vm1864, %v6523, %v6541
      %v6607 = vunpack.c.l.b16 %v6207
      %v6608 = vunpack.c.h.b16 %v6207
      %v6609 = vunpack.c.l.b16 %v6208
      %v6610 = vunpack.c.h.b16 %v6208
      %v6611 = vunpack.c.l.b16 %v6209
      %v6612 = vunpack.c.h.b16 %v6209
      %v6613 = vunpack.c.l.b16 %v6210
      %v6614 = vunpack.c.h.b16 %v6210
      %v6615 = vunpack.c.l.b16 %v6211
      %v6616 = vunpack.c.h.b16 %v6211
      %v6617 = vunpack.c.l.b16 %v6212
      %v6618 = vunpack.c.h.b16 %v6212
      %v6619 = vunpack.c.l.b16 %v6213
      %v6620 = vunpack.c.h.b16 %v6213
      %v6621 = vunpack.c.l.b16 %v6214
      %v6622 = vunpack.c.h.b16 %v6214
      %v6623 = vunpack.c.l.b16 %v6215
      %v6624 = vunpack.c.h.b16 %v6215
      %v6625 = vunpack.c.l.b16 %v6216
      %v6626 = vunpack.c.h.b16 %v6216
      %v6627 = vunpack.c.l.b16 %v6217
      %v6628 = vunpack.c.h.b16 %v6217
      %v6629 = vunpack.c.l.b16 %v6218
      %v6630 = vunpack.c.h.b16 %v6218
      %v6631 = vunpack.c.l.b16 %v6219
      %v6632 = vunpack.c.h.b16 %v6219
      %v6633 = vunpack.c.l.b16 %v6220
      %v6634 = vunpack.c.h.b16 %v6220
      %v6635 = vunpack.c.l.b16 %v6221
      %v6636 = vunpack.c.h.b16 %v6221
      %v6637 = vunpack.c.l.b16 %v6222
      %v6638 = vunpack.c.h.b16 %v6222
      %v6639 = vunpack.c.l.b16 %v6223
      %v6640 = vunpack.c.h.b16 %v6223
      %v6641 = vunpack.c.l.b16 %v6224
      %v6642 = vunpack.c.h.b16 %v6224
      %v6643 = vunpack.c.l.b16 %v6225
      %v6644 = vunpack.c.h.b16 %v6225
      %v6645 = vunpack.c.l.b16 %v6226
      %v6646 = vunpack.c.h.b16 %v6226
      %v6647 = vunpack.c.l.b16 %v6227
      %v6648 = vunpack.c.h.b16 %v6227
      %v6649 = vunpack.c.l.b16 %v6228
      %v6650 = vunpack.c.h.b16 %v6228
      %v6651 = vunpack.c.l.b16 %v6229
      %v6652 = vunpack.c.h.b16 %v6229
      %v6653 = vunpack.c.l.b16 %v6230
      %v6654 = vunpack.c.h.b16 %v6230
      %v6655 = vunpack.c.l.b16 %v6231
      %v6656 = vunpack.c.h.b16 %v6231
      %v6657 = vunpack.c.l.b16 %v6232
      %v6658 = vunpack.c.h.b16 %v6232
      %v6659 = vunpack.c.l.b16 %v6233
      %v6660 = vunpack.c.h.b16 %v6233
      %v6661 = vunpack.c.l.b16 %v6234
      %v6662 = vunpack.c.h.b16 %v6234
      %v6663 = vunpack.c.l.b16 %v6235
      %v6664 = vunpack.c.h.b16 %v6235
      %v6665 = vunpack.c.l.b16 %v6236
      %v6666 = vunpack.c.h.b16 %v6236
      %v6667 = vunpack.c.l.b16 %v6237
      %v6668 = vunpack.c.h.b16 %v6237
      %v6669 = vunpack.c.l.b16 %v6238
      %v6670 = vunpack.c.h.b16 %v6238
      %v6671 = vpack.c.b16 %v6609, %v6607
      %v6672 = vpack.c.b16 %v6610, %v6608
      %v6673 = vpack.c.b16 %v6613, %v6611
      %v6674 = vpack.c.b16 %v6614, %v6612
      %v6675 = vpack.c.b16 %v6617, %v6615
      %v6676 = vpack.c.b16 %v6618, %v6616
      %v6677 = vpack.c.b16 %v6621, %v6619
      %v6678 = vpack.c.b16 %v6622, %v6620
      %v6679 = vpack.c.b16 %v6625, %v6623
      %v6680 = vpack.c.b16 %v6626, %v6624
      %v6681 = vpack.c.b16 %v6629, %v6627
      %v6682 = vpack.c.b16 %v6630, %v6628
      %v6683 = vpack.c.b16 %v6633, %v6631
      %v6684 = vpack.c.b16 %v6634, %v6632
      %v6685 = vpack.c.b16 %v6637, %v6635
      %v6686 = vpack.c.b16 %v6638, %v6636
      %v6687 = vpack.c.b16 %v6641, %v6639
      %v6688 = vpack.c.b16 %v6642, %v6640
      %v6689 = vpack.c.b16 %v6645, %v6643
      %v6690 = vpack.c.b16 %v6646, %v6644
      %v6691 = vpack.c.b16 %v6649, %v6647
      %v6692 = vpack.c.b16 %v6650, %v6648
      %v6693 = vpack.c.b16 %v6653, %v6651
      %v6694 = vpack.c.b16 %v6654, %v6652
      %v6695 = vpack.c.b16 %v6657, %v6655
      %v6696 = vpack.c.b16 %v6658, %v6656
      %v6697 = vpack.c.b16 %v6661, %v6659
      %v6698 = vpack.c.b16 %v6662, %v6660
      %v6699 = vpack.c.b16 %v6665, %v6663
      %v6700 = vpack.c.b16 %v6666, %v6664
      %v6701 = vpack.c.b16 %v6669, %v6667
      %v6702 = vpack.c.b16 %v6670, %v6668
      %6735 = vmatprep.subr.bf16.mxu0 %v6672
      %6736 = vmatpush1.bf16.msra.mxu0 %v6671
      %6737 = vmatprep.subr.bf16.mxu0 %v6674
      %6738 = vmatpush1.bf16.msra.mxu0 %v6673
      %6739 = vmatprep.subr.bf16.mxu0 %v6676
      %6740 = vmatpush1.bf16.msra.mxu0 %v6675
      %6741 = vmatprep.subr.bf16.mxu0 %v6678
      %6742 = vmatpush1.bf16.msra.mxu0 %v6677
      %6743 = vmatprep.subr.bf16.mxu0 %v6680
      %6744 = vmatpush1.bf16.msra.mxu0 %v6679
      %6745 = vmatprep.subr.bf16.mxu0 %v6682
      %6746 = vmatpush1.bf16.msra.mxu0 %v6681
      %6747 = vmatprep.subr.bf16.mxu0 %v6684
      %6748 = vmatpush1.bf16.msra.mxu0 %v6683
      %6749 = vmatprep.subr.bf16.mxu0 %v6686
      %6750 = vmatpush1.bf16.msra.mxu0 %v6685
      %6751 = vmatprep.subr.bf16.mxu0 %v6688
      %6752 = vmatpush1.bf16.msra.mxu0 %v6687
      %6753 = vmatprep.subr.bf16.mxu0 %v6690
      %6754 = vmatpush1.bf16.msra.mxu0 %v6689
      %6755 = vmatprep.subr.bf16.mxu0 %v6692
      %6756 = vmatpush1.bf16.msra.mxu0 %v6691
      %6757 = vmatprep.subr.bf16.mxu0 %v6694
      %6758 = vmatpush1.bf16.msra.mxu0 %v6693
      %6759 = vmatprep.subr.bf16.mxu0 %v6696
      %6760 = vmatpush1.bf16.msra.mxu0 %v6695
      %6761 = vmatprep.subr.bf16.mxu0 %v6698
      %6762 = vmatpush1.bf16.msra.mxu0 %v6697
      %6763 = vmatprep.subr.bf16.mxu0 %v6700
      %6764 = vmatpush1.bf16.msra.mxu0 %v6699
      %6765 = vmatprep.subr.bf16.mxu0 %v6702
      %6766 = vmatpush1.bf16.msra.mxu0 %v6701
      %6767 = vmatprep.mubr.bf16.mxu0 %v6272
      %6768 = vmatmul.mubr.bf16.gmra.mrb[0].mxu0 %v6255
      %v6769 = vpop.f32.mrb[0].mxu0
      %v6770 = vadd.f32 0.0, %v6769
      %v6771 = vpop.f32.mrb[0].mxu0
      %v6772 = vadd.f32 0.0, %v6771
      %v6773 = vpop.f32.mrb[0].mxu0
      %v6774 = vadd.f32 0.0, %v6773
      %v6775 = vpop.f32.mrb[0].mxu0
      %v6776 = vadd.f32 0.0, %v6775
      %6777 = vmatprep.mubr.bf16.mxu0 %v6290
      %6778 = vmatmul.mubr.bf16.gmra.mrb[0].mxu0 %v6281
      %v6779 = vpop.f32.mrb[0].mxu0
      %v6780 = vadd.f32 0.0, %v6779
      %v6781 = vpop.f32.mrb[0].mxu0
      %v6782 = vadd.f32 0.0, %v6781
      %v6783 = vpop.f32.mrb[0].mxu0
      %v6784 = vadd.f32 0.0, %v6783
      %v6785 = vpop.f32.mrb[0].mxu0
      %v6786 = vadd.f32 0.0, %v6785
      %6787 = vmatprep.mubr.bf16.mxu0 %v6308
      %6788 = vmatmul.mubr.bf16.gmra.mrb[0].mxu0 %v6299
      %v6789 = vpop.f32.mrb[0].mxu0
      %v6790 = vadd.f32 0.0, %v6789
      %v6791 = vpop.f32.mrb[0].mxu0
      %v6792 = vadd.f32 0.0, %v6791
      %v6793 = vpop.f32.mrb[0].mxu0
      %v6794 = vadd.f32 0.0, %v6793
      %v6795 = vpop.f32.mrb[0].mxu0
      %v6796 = vadd.f32 0.0, %v6795
      %6797 = vmatprep.mubr.bf16.mxu0 %v6326
      %6798 = vmatmul.mubr.bf16.gmra.mrb[0].mxu0 %v6317
      %v6799 = vpop.f32.mrb[0].mxu0
      %v6800 = vadd.f32 0.0, %v6799
      %v6801 = vpop.f32.mrb[0].mxu0
      %v6802 = vadd.f32 0.0, %v6801
      %v6803 = vpop.f32.mrb[0].mxu0
      %v6804 = vadd.f32 0.0, %v6803
      %v6805 = vpop.f32.mrb[0].mxu0
      %v6806 = vadd.f32 0.0, %v6805
      %6807 = vmatprep.mubr.bf16.mxu0 %v6344
      %6808 = vmatmul.mubr.bf16.gmra.mrb[0].mxu0 %v6335
      %v6809 = vpop.f32.mrb[0].mxu0
      %v6810 = vadd.f32 0.0, %v6809
      %v6811 = vpop.f32.mrb[0].mxu0
      %v6812 = vadd.f32 0.0, %v6811
      %v6813 = vpop.f32.mrb[0].mxu0
      %v6814 = vadd.f32 0.0, %v6813
      %v6815 = vpop.f32.mrb[0].mxu0
      %v6816 = vadd.f32 0.0, %v6815
      %6817 = vmatprep.mubr.bf16.mxu0 %v6362
      %6818 = vmatmul.mubr.bf16.gmra.mrb[0].mxu0 %v6353
      %v6819 = vpop.f32.mrb[0].mxu0
      %v6820 = vadd.f32 0.0, %v6819
      %v6821 = vpop.f32.mrb[0].mxu0
      %v6822 = vadd.f32 0.0, %v6821
      %v6823 = vpop.f32.mrb[0].mxu0
      %v6824 = vadd.f32 0.0, %v6823
      %v6825 = vpop.f32.mrb[0].mxu0
      %v6826 = vadd.f32 0.0, %v6825
      %6827 = vmatprep.mubr.bf16.mxu0 %v6380
      %6828 = vmatmul.mubr.bf16.gmra.mrb[0].mxu0 %v6371
      %v6829 = vpop.f32.mrb[0].mxu0
      %v6830 = vadd.f32 0.0, %v6829
      %v6831 = vpop.f32.mrb[0].mxu0
      %v6832 = vadd.f32 0.0, %v6831
      %v6833 = vpop.f32.mrb[0].mxu0
      %v6834 = vadd.f32 0.0, %v6833
      %v6835 = vpop.f32.mrb[0].mxu0
      %v6836 = vadd.f32 0.0, %v6835
      %6837 = vmatprep.mubr.bf16.mxu0 %v6398
      %6838 = vmatmul.mubr.bf16.gmra.mrb[0].mxu0 %v6389
      %v6839 = vpop.f32.mrb[0].mxu0
      %v6840 = vadd.f32 0.0, %v6839
      %v6841 = vpop.f32.mrb[0].mxu0
      %v6842 = vadd.f32 0.0, %v6841
      %v6843 = vpop.f32.mrb[0].mxu0
      %v6844 = vadd.f32 0.0, %v6843
      %v6845 = vpop.f32.mrb[0].mxu0
      %v6846 = vadd.f32 0.0, %v6845
      %6847 = vmatprep.mubr.bf16.mxu0 %v6416
      %6848 = vmatmul.mubr.bf16.gmra.mrb[0].mxu0 %v6407
      %v6849 = vpop.f32.mrb[0].mxu0
      %v6850 = vadd.f32 0.0, %v6849
      %v6851 = vpop.f32.mrb[0].mxu0
      %v6852 = vadd.f32 0.0, %v6851
      %v6853 = vpop.f32.mrb[0].mxu0
      %v6854 = vadd.f32 0.0, %v6853
      %v6855 = vpop.f32.mrb[0].mxu0
      %v6856 = vadd.f32 0.0, %v6855
      %6857 = vmatprep.mubr.bf16.mxu0 %v6434
      %6858 = vmatmul.mubr.bf16.gmra.mrb[0].mxu0 %v6425
      %v6859 = vpop.f32.mrb[0].mxu0
      %v6860 = vadd.f32 0.0, %v6859
      %v6861 = vpop.f32.mrb[0].mxu0
      %v6862 = vadd.f32 0.0, %v6861
      %v6863 = vpop.f32.mrb[0].mxu0
      %v6864 = vadd.f32 0.0, %v6863
      %v6865 = vpop.f32.mrb[0].mxu0
      %v6866 = vadd.f32 0.0, %v6865
      %6867 = vmatprep.mubr.bf16.mxu0 %v6452
      %6868 = vmatmul.mubr.bf16.gmra.mrb[0].mxu0 %v6443
      %v6869 = vpop.f32.mrb[0].mxu0
      %v6870 = vadd.f32 0.0, %v6869
      %v6871 = vpop.f32.mrb[0].mxu0
      %v6872 = vadd.f32 0.0, %v6871
      %v6873 = vpop.f32.mrb[0].mxu0
      %v6874 = vadd.f32 0.0, %v6873
      %v6875 = vpop.f32.mrb[0].mxu0
      %v6876 = vadd.f32 0.0, %v6875
      %6877 = vmatprep.mubr.bf16.mxu0 %v6470
      %6878 = vmatmul.mubr.bf16.gmra.mrb[0].mxu0 %v6461
      %v6879 = vpop.f32.mrb[0].mxu0
      %v6880 = vadd.f32 0.0, %v6879
      %v6881 = vpop.f32.mrb[0].mxu0
      %v6882 = vadd.f32 0.0, %v6881
      %v6883 = vpop.f32.mrb[0].mxu0
      %v6884 = vadd.f32 0.0, %v6883
      %v6885 = vpop.f32.mrb[0].mxu0
      %v6886 = vadd.f32 0.0, %v6885
      %6887 = vmatprep.mubr.bf16.mxu0 %v6488
      %6888 = vmatmul.mubr.bf16.gmra.mrb[0].mxu0 %v6479
      %v6889 = vpop.f32.mrb[0].mxu0
      %v6890 = vadd.f32 0.0, %v6889
      %v6891 = vpop.f32.mrb[0].mxu0
      %v6892 = vadd.f32 0.0, %v6891
      %v6893 = vpop.f32.mrb[0].mxu0
      %v6894 = vadd.f32 0.0, %v6893
      %v6895 = vpop.f32.mrb[0].mxu0
      %v6896 = vadd.f32 0.0, %v6895
      %6897 = vmatprep.mubr.bf16.mxu0 %v6506
      %6898 = vmatmul.mubr.bf16.gmra.mrb[0].mxu0 %v6497
      %v6899 = vpop.f32.mrb[0].mxu0
      %v6900 = vadd.f32 0.0, %v6899
      %v6901 = vpop.f32.mrb[0].mxu0
      %v6902 = vadd.f32 0.0, %v6901
      %v6903 = vpop.f32.mrb[0].mxu0
      %v6904 = vadd.f32 0.0, %v6903
      %v6905 = vpop.f32.mrb[0].mxu0
      %v6906 = vadd.f32 0.0, %v6905
      %6907 = vmatprep.mubr.bf16.mxu0 %v6524
      %6908 = vmatmul.mubr.bf16.gmra.mrb[0].mxu0 %v6515
      %v6909 = vpop.f32.mrb[0].mxu0
      %v6910 = vadd.f32 0.0, %v6909
      %v6911 = vpop.f32.mrb[0].mxu0
      %v6912 = vadd.f32 0.0, %v6911
      %v6913 = vpop.f32.mrb[0].mxu0
      %v6914 = vadd.f32 0.0, %v6913
      %v6915 = vpop.f32.mrb[0].mxu0
      %v6916 = vadd.f32 0.0, %v6915
      %6917 = vmatprep.mubr.bf16.mxu0 %v6542
      %6918 = vmatmul.mubr.bf16.gmra.mrb[0].mxu0 %v6533
      %v6919 = vpop.f32.mrb[0].mxu0
      %v6920 = vadd.f32 0.0, %v6919
      %v6921 = vpop.f32.mrb[0].mxu0
      %v6922 = vadd.f32 0.0, %v6921
      %v6923 = vpop.f32.mrb[0].mxu0
      %v6924 = vadd.f32 0.0, %v6923
      %v6925 = vpop.f32.mrb[0].mxu0
      %v6926 = vadd.f32 0.0, %v6925
      %6927 = vdwg.mxu0
      %v6928 = vadd.f32 %v5976, %v6770
      %v6929 = vadd.f32 %v5977, %v6772
      %v6930 = vadd.f32 %v5978, %v6774
      %v6931 = vadd.f32 %v5979, %v6776
      %v6932 = vadd.f32 %v5980, %v6780
      %v6933 = vadd.f32 %v5981, %v6782
      %v6934 = vadd.f32 %v5982, %v6784
      %v6935 = vadd.f32 %v5983, %v6786
      %v6936 = vadd.f32 %v5984, %v6790
      %v6937 = vadd.f32 %v5985, %v6792
      %v6938 = vadd.f32 %v5986, %v6794
      %v6939 = vadd.f32 %v5987, %v6796
      %v6940 = vadd.f32 %v5988, %v6800
      %v6941 = vadd.f32 %v5989, %v6802
      %v6942 = vadd.f32 %v5990, %v6804
      %v6943 = vadd.f32 %v5991, %v6806
      %v6944 = vadd.f32 %v5992, %v6810
      %v6945 = vadd.f32 %v5993, %v6812
      %v6946 = vadd.f32 %v5994, %v6814
      %v6947 = vadd.f32 %v5995, %v6816
      %v6948 = vadd.f32 %v5996, %v6820
      %v6949 = vadd.f32 %v5997, %v6822
      %v6950 = vadd.f32 %v5998, %v6824
      %v6951 = vadd.f32 %v5999, %v6826
      %v6952 = vadd.f32 %v6000, %v6830
      %v6953 = vadd.f32 %v6001, %v6832
      %v6954 = vadd.f32 %v6002, %v6834
      %v6955 = vadd.f32 %v6003, %v6836
      %v6956 = vadd.f32 %v6004, %v6840
      %v6957 = vadd.f32 %v6005, %v6842
      %v6958 = vadd.f32 %v6006, %v6844
      %v6959 = vadd.f32 %v6007, %v6846
      %v6960 = vadd.f32 %v6008, %v6850
      %v6961 = vadd.f32 %v6009, %v6852
      %v6962 = vadd.f32 %v6010, %v6854
      %v6963 = vadd.f32 %v6011, %v6856
      %v6964 = vadd.f32 %v6012, %v6860
      %v6965 = vadd.f32 %v6013, %v6862
      %v6966 = vadd.f32 %v6014, %v6864
      %v6967 = vadd.f32 %v6015, %v6866
      %v6968 = vadd.f32 %v6016, %v6870
      %v6969 = vadd.f32 %v6017, %v6872
      %v6970 = vadd.f32 %v6018, %v6874
      %v6971 = vadd.f32 %v6019, %v6876
      %v6972 = vadd.f32 %v6020, %v6880
      %v6973 = vadd.f32 %v6021, %v6882
      %v6974 = vadd.f32 %v6022, %v6884
      %v6975 = vadd.f32 %v6023, %v6886
      %v6976 = vadd.f32 %v6024, %v6890
      %v6977 = vadd.f32 %v6025, %v6892
      %v6978 = vadd.f32 %v6026, %v6894
      %v6979 = vadd.f32 %v6027, %v6896
      %v6980 = vadd.f32 %v6028, %v6900
      %v6981 = vadd.f32 %v6029, %v6902
      %v6982 = vadd.f32 %v6030, %v6904
      %v6983 = vadd.f32 %v6031, %v6906
      %v6984 = vadd.f32 %v6032, %v6910
      %v6985 = vadd.f32 %v6033, %v6912
      %v6986 = vadd.f32 %v6034, %v6914
      %v6987 = vadd.f32 %v6035, %v6916
      %v6988 = vadd.f32 %v6036, %v6920
      %v6989 = vadd.f32 %v6037, %v6922
      %v6990 = vadd.f32 %v6038, %v6924
      %v6991 = vadd.f32 %v6039, %v6926
      %v6992 = vld [vmem:[#allocation2 + $0x240] sm:$0xff]
      %v6993 = vld [vmem:[#allocation2 + $0x248] sm:$0xff]
      %v6994 = vpack.c.bf16 %v6044, %v6042
      %v6995 = vpack.c.bf16 %v6045, %v6043
      %v6996 = vpack.c.bf16 %v6048, %v6046
      %v6997 = vpack.c.bf16 %v6049, %v6047
      %v6998 = vpack.c.bf16 %v6052, %v6050
      %v6999 = vpack.c.bf16 %v6053, %v6051
      %v7000 = vpack.c.bf16 %v6056, %v6054
      %v7001 = vpack.c.bf16 %v6057, %v6055
      %v7002 = vpack.c.bf16 %v6060, %v6058
      %v7003 = vpack.c.bf16 %v6061, %v6059
      %v7004 = vpack.c.bf16 %v6064, %v6062
      %v7005 = vpack.c.bf16 %v6065, %v6063
      %v7006 = vpack.c.bf16 %v6068, %v6066
      %v7007 = vpack.c.bf16 %v6069, %v6067
      %v7008 = vpack.c.bf16 %v6072, %v6070
      %v7009 = vpack.c.bf16 %v6073, %v6071
      %v7010 = vpack.c.bf16 %v6076, %v6074
      %v7011 = vpack.c.bf16 %v6077, %v6075
      %v7012 = vpack.c.bf16 %v6080, %v6078
      %v7013 = vpack.c.bf16 %v6081, %v6079
      %v7014 = vpack.c.bf16 %v6084, %v6082
      %v7015 = vpack.c.bf16 %v6085, %v6083
      %v7016 = vpack.c.bf16 %v6088, %v6086
      %v7017 = vpack.c.bf16 %v6089, %v6087
      %v7018 = vpack.c.bf16 %v6092, %v6090
      %v7019 = vpack.c.bf16 %v6093, %v6091
      %v7020 = vpack.c.bf16 %v6096, %v6094
      %v7021 = vpack.c.bf16 %v6097, %v6095
      %v7022 = vpack.c.bf16 %v6100, %v6098
      %v7023 = vpack.c.bf16 %v6101, %v6099
      %v7024 = vpack.c.bf16 %v6992, %v6102
      %v7025 = vpack.c.bf16 %v6993, %v6103
      %s7026 = scalar_lea.vmem %s3, 1792
      %v7027 = vld [vmem:[%s7026] sm:$0xff]
      %v7028 = vld [vmem:[%s7026 + $0x8] sm:$0xff]
      %v7029 = vld [vmem:[%s7026 + $0x10] sm:$0xff]
      %v7030 = vld [vmem:[%s7026 + $0x18] sm:$0xff]
      %v7031 = vld [vmem:[%s7026 + $0x20] sm:$0xff]
      %v7032 = vld [vmem:[%s7026 + $0x28] sm:$0xff]
      %v7033 = vld [vmem:[%s7026 + $0x30] sm:$0xff]
      %v7034 = vld [vmem:[%s7026 + $0x38] sm:$0xff]
      %v7035 = vld [vmem:[%s7026 + $0x40] sm:$0xff]
      %v7036 = vld [vmem:[%s7026 + $0x48] sm:$0xff]
      %v7037 = vld [vmem:[%s7026 + $0x50] sm:$0xff]
      %v7038 = vld [vmem:[%s7026 + $0x58] sm:$0xff]
      %v7039 = vld [vmem:[%s7026 + $0x60] sm:$0xff]
      %v7040 = vld [vmem:[%s7026 + $0x68] sm:$0xff]
      %v7041 = vld [vmem:[%s7026 + $0x70] sm:$0xff]
      %v7042 = vld [vmem:[%s7026 + $0x78] sm:$0xff]
      %v7043 = vld [vmem:[%s7026 + $0x80] sm:$0xff]
      %v7044 = vld [vmem:[%s7026 + $0x88] sm:$0xff]
      %v7045 = vld [vmem:[%s7026 + $0x90] sm:$0xff]
      %v7046 = vld [vmem:[%s7026 + $0x98] sm:$0xff]
      %v7047 = vld [vmem:[%s7026 + $0xa0] sm:$0xff]
      %v7048 = vld [vmem:[%s7026 + $0xa8] sm:$0xff]
      %v7049 = vld [vmem:[%s7026 + $0xb0] sm:$0xff]
      %v7050 = vld [vmem:[%s7026 + $0xb8] sm:$0xff]
      %v7051 = vld [vmem:[%s7026 + $0xc0] sm:$0xff]
      %v7052 = vld [vmem:[%s7026 + $0xc8] sm:$0xff]
      %v7053 = vld [vmem:[%s7026 + $0xd0] sm:$0xff]
      %v7054 = vld [vmem:[%s7026 + $0xd8] sm:$0xff]
      %v7055 = vld [vmem:[%s7026 + $0xe0] sm:$0xff]
      %v7056 = vld [vmem:[%s7026 + $0xe8] sm:$0xff]
      %v7057 = vld [vmem:[%s7026 + $0xf0] sm:$0xff]
      %v7058 = vld [vmem:[%s7026 + $0xf8] sm:$0xff]
      %v7091 = vunpack.c.l.b16 %v7027
      %v7092 = vunpack.c.h.b16 %v7027
      %v7093 = vunpack.c.l.b16 %v7028
      %v7094 = vunpack.c.h.b16 %v7028
      %v7095 = vunpack.c.l.b16 %v7029
      %v7096 = vunpack.c.h.b16 %v7029
      %v7097 = vunpack.c.l.b16 %v7030
      %v7098 = vunpack.c.h.b16 %v7030
      %v7099 = vunpack.c.l.b16 %v7031
      %v7100 = vunpack.c.h.b16 %v7031
      %v7101 = vunpack.c.l.b16 %v7032
      %v7102 = vunpack.c.h.b16 %v7032
      %v7103 = vunpack.c.l.b16 %v7033
      %v7104 = vunpack.c.h.b16 %v7033
      %v7105 = vunpack.c.l.b16 %v7034
      %v7106 = vunpack.c.h.b16 %v7034
      %v7107 = vunpack.c.l.b16 %v7035
      %v7108 = vunpack.c.h.b16 %v7035
      %v7109 = vunpack.c.l.b16 %v7036
      %v7110 = vunpack.c.h.b16 %v7036
      %v7111 = vunpack.c.l.b16 %v7037
      %v7112 = vunpack.c.h.b16 %v7037
      %v7113 = vunpack.c.l.b16 %v7038
      %v7114 = vunpack.c.h.b16 %v7038
      %v7115 = vunpack.c.l.b16 %v7039
      %v7116 = vunpack.c.h.b16 %v7039
      %v7117 = vunpack.c.l.b16 %v7040
      %v7118 = vunpack.c.h.b16 %v7040
      %v7119 = vunpack.c.l.b16 %v7041
      %v7120 = vunpack.c.h.b16 %v7041
      %v7121 = vunpack.c.l.b16 %v7042
      %v7122 = vunpack.c.h.b16 %v7042
      %v7123 = vunpack.c.l.b16 %v7043
      %v7124 = vunpack.c.h.b16 %v7043
      %v7125 = vunpack.c.l.b16 %v7044
      %v7126 = vunpack.c.h.b16 %v7044
      %v7127 = vunpack.c.l.b16 %v7045
      %v7128 = vunpack.c.h.b16 %v7045
      %v7129 = vunpack.c.l.b16 %v7046
      %v7130 = vunpack.c.h.b16 %v7046
      %v7131 = vunpack.c.l.b16 %v7047
      %v7132 = vunpack.c.h.b16 %v7047
      %v7133 = vunpack.c.l.b16 %v7048
      %v7134 = vunpack.c.h.b16 %v7048
      %v7135 = vunpack.c.l.b16 %v7049
      %v7136 = vunpack.c.h.b16 %v7049
      %v7137 = vunpack.c.l.b16 %v7050
      %v7138 = vunpack.c.h.b16 %v7050
      %v7139 = vunpack.c.l.b16 %v7051
      %v7140 = vunpack.c.h.b16 %v7051
      %v7141 = vunpack.c.l.b16 %v7052
      %v7142 = vunpack.c.h.b16 %v7052
      %v7143 = vunpack.c.l.b16 %v7053
      %v7144 = vunpack.c.h.b16 %v7053
      %v7145 = vunpack.c.l.b16 %v7054
      %v7146 = vunpack.c.h.b16 %v7054
      %v7147 = vunpack.c.l.b16 %v7055
      %v7148 = vunpack.c.h.b16 %v7055
      %v7149 = vunpack.c.l.b16 %v7056
      %v7150 = vunpack.c.h.b16 %v7056
      %v7151 = vunpack.c.l.b16 %v7057
      %v7152 = vunpack.c.h.b16 %v7057
      %v7153 = vunpack.c.l.b16 %v7058
      %v7154 = vunpack.c.h.b16 %v7058
      %v7155 = vpack.c.b16 %v7093, %v7091
      %v7156 = vpack.c.b16 %v7094, %v7092
      %v7157 = vpack.c.b16 %v7097, %v7095
      %v7158 = vpack.c.b16 %v7098, %v7096
      %v7159 = vpack.c.b16 %v7101, %v7099
      %v7160 = vpack.c.b16 %v7102, %v7100
      %v7161 = vpack.c.b16 %v7105, %v7103
      %v7162 = vpack.c.b16 %v7106, %v7104
      %v7163 = vpack.c.b16 %v7109, %v7107
      %v7164 = vpack.c.b16 %v7110, %v7108
      %v7165 = vpack.c.b16 %v7113, %v7111
      %v7166 = vpack.c.b16 %v7114, %v7112
      %v7167 = vpack.c.b16 %v7117, %v7115
      %v7168 = vpack.c.b16 %v7118, %v7116
      %v7169 = vpack.c.b16 %v7121, %v7119
      %v7170 = vpack.c.b16 %v7122, %v7120
      %v7171 = vpack.c.b16 %v7125, %v7123
      %v7172 = vpack.c.b16 %v7126, %v7124
      %v7173 = vpack.c.b16 %v7129, %v7127
      %v7174 = vpack.c.b16 %v7130, %v7128
      %v7175 = vpack.c.b16 %v7133, %v7131
      %v7176 = vpack.c.b16 %v7134, %v7132
      %v7177 = vpack.c.b16 %v7137, %v7135
      %v7178 = vpack.c.b16 %v7138, %v7136
      %v7179 = vpack.c.b16 %v7141, %v7139
      %v7180 = vpack.c.b16 %v7142, %v7140
      %v7181 = vpack.c.b16 %v7145, %v7143
      %v7182 = vpack.c.b16 %v7146, %v7144
      %v7183 = vpack.c.b16 %v7149, %v7147
      %v7184 = vpack.c.b16 %v7150, %v7148
      %v7185 = vpack.c.b16 %v7153, %v7151
      %v7186 = vpack.c.b16 %v7154, %v7152
      %7219 = vmatprep.subr.bf16.mxu0 %v7156
      %7220 = vmatpush1.bf16.msra.mxu0 %v7155
      %7221 = vmatprep.subr.bf16.mxu0 %v7158
      %7222 = vmatpush1.bf16.msra.mxu0 %v7157
      %7223 = vmatprep.subr.bf16.mxu0 %v7160
      %7224 = vmatpush1.bf16.msra.mxu0 %v7159
      %7225 = vmatprep.subr.bf16.mxu0 %v7162
      %7226 = vmatpush1.bf16.msra.mxu0 %v7161
      %7227 = vmatprep.subr.bf16.mxu0 %v7164
      %7228 = vmatpush1.bf16.msra.mxu0 %v7163
      %7229 = vmatprep.subr.bf16.mxu0 %v7166
      %7230 = vmatpush1.bf16.msra.mxu0 %v7165
      %7231 = vmatprep.subr.bf16.mxu0 %v7168
      %7232 = vmatpush1.bf16.msra.mxu0 %v7167
      %7233 = vmatprep.subr.bf16.mxu0 %v7170
      %7234 = vmatpush1.bf16.msra.mxu0 %v7169
      %7235 = vmatprep.subr.bf16.mxu0 %v7172
      %7236 = vmatpush1.bf16.msra.mxu0 %v7171
      %7237 = vmatprep.subr.bf16.mxu0 %v7174
      %7238 = vmatpush1.bf16.msra.mxu0 %v7173
      %7239 = vmatprep.subr.bf16.mxu0 %v7176
      %7240 = vmatpush1.bf16.msra.mxu0 %v7175
      %7241 = vmatprep.subr.bf16.mxu0 %v7178
      %7242 = vmatpush1.bf16.msra.mxu0 %v7177
      %7243 = vmatprep.subr.bf16.mxu0 %v7180
      %7244 = vmatpush1.bf16.msra.mxu0 %v7179
      %7245 = vmatprep.subr.bf16.mxu0 %v7182
      %7246 = vmatpush1.bf16.msra.mxu0 %v7181
      %7247 = vmatprep.subr.bf16.mxu0 %v7184
      %7248 = vmatpush1.bf16.msra.mxu0 %v7183
      %7249 = vmatprep.subr.bf16.mxu0 %v7186
      %7250 = vmatpush1.bf16.msra.mxu0 %v7185
      %7251 = vmatprep.mubr.bf16.mxu0 %v6995
      %7252 = vmatmul.mubr.bf16.gmra.mrb[0].mxu0 %v6994
      %v7253 = vpop.f32.mrb[0].mxu0
      %v7254 = vadd.f32 0.0, %v7253
      %v7255 = vpop.f32.mrb[0].mxu0
      %v7256 = vadd.f32 0.0, %v7255
      %v7257 = vpop.f32.mrb[0].mxu0
      %v7258 = vadd.f32 0.0, %v7257
      %v7259 = vpop.f32.mrb[0].mxu0
      %v7260 = vadd.f32 0.0, %v7259
      %7261 = vmatprep.mubr.bf16.mxu0 %v6997
      %7262 = vmatmul.mubr.bf16.gmra.mrb[0].mxu0 %v6996
      %v7263 = vpop.f32.mrb[0].mxu0
      %v7264 = vadd.f32 0.0, %v7263
      %v7265 = vpop.f32.mrb[0].mxu0
      %v7266 = vadd.f32 0.0, %v7265
      %v7267 = vpop.f32.mrb[0].mxu0
      %v7268 = vadd.f32 0.0, %v7267
      %v7269 = vpop.f32.mrb[0].mxu0
      %v7270 = vadd.f32 0.0, %v7269
      %7271 = vmatprep.mubr.bf16.mxu0 %v6999
      %7272 = vmatmul.mubr.bf16.gmra.mrb[0].mxu0 %v6998
      %v7273 = vpop.f32.mrb[0].mxu0
      %v7274 = vadd.f32 0.0, %v7273
      %v7275 = vpop.f32.mrb[0].mxu0
      %v7276 = vadd.f32 0.0, %v7275
      %v7277 = vpop.f32.mrb[0].mxu0
      %v7278 = vadd.f32 0.0, %v7277
      %v7279 = vpop.f32.mrb[0].mxu0
      %v7280 = vadd.f32 0.0, %v7279
      %7281 = vmatprep.mubr.bf16.mxu0 %v7001
      %7282 = vmatmul.mubr.bf16.gmra.mrb[0].mxu0 %v7000
      %v7283 = vpop.f32.mrb[0].mxu0
      %v7284 = vadd.f32 0.0, %v7283
      %v7285 = vpop.f32.mrb[0].mxu0
      %v7286 = vadd.f32 0.0, %v7285
      %v7287 = vpop.f32.mrb[0].mxu0
      %v7288 = vadd.f32 0.0, %v7287
      %v7289 = vpop.f32.mrb[0].mxu0
      %v7290 = vadd.f32 0.0, %v7289
      %7291 = vmatprep.mubr.bf16.mxu0 %v7003
      %7292 = vmatmul.mubr.bf16.gmra.mrb[0].mxu0 %v7002
      %v7293 = vpop.f32.mrb[0].mxu0
      %v7294 = vadd.f32 0.0, %v7293
      %v7295 = vpop.f32.mrb[0].mxu0
      %v7296 = vadd.f32 0.0, %v7295
      %v7297 = vpop.f32.mrb[0].mxu0
      %v7298 = vadd.f32 0.0, %v7297
      %v7299 = vpop.f32.mrb[0].mxu0
      %v7300 = vadd.f32 0.0, %v7299
      %7301 = vmatprep.mubr.bf16.mxu0 %v7005
      %7302 = vmatmul.mubr.bf16.gmra.mrb[0].mxu0 %v7004
      %v7303 = vpop.f32.mrb[0].mxu0
      %v7304 = vadd.f32 0.0, %v7303
      %v7305 = vpop.f32.mrb[0].mxu0
      %v7306 = vadd.f32 0.0, %v7305
      %v7307 = vpop.f32.mrb[0].mxu0
      %v7308 = vadd.f32 0.0, %v7307
      %v7309 = vpop.f32.mrb[0].mxu0
      %v7310 = vadd.f32 0.0, %v7309
      %7311 = vmatprep.mubr.bf16.mxu0 %v7007
      %7312 = vmatmul.mubr.bf16.gmra.mrb[0].mxu0 %v7006
      %v7313 = vpop.f32.mrb[0].mxu0
      %v7314 = vadd.f32 0.0, %v7313
      %v7315 = vpop.f32.mrb[0].mxu0
      %v7316 = vadd.f32 0.0, %v7315
      %v7317 = vpop.f32.mrb[0].mxu0
      %v7318 = vadd.f32 0.0, %v7317
      %v7319 = vpop.f32.mrb[0].mxu0
      %v7320 = vadd.f32 0.0, %v7319
      %7321 = vmatprep.mubr.bf16.mxu0 %v7009
      %7322 = vmatmul.mubr.bf16.gmra.mrb[0].mxu0 %v7008
      %v7323 = vpop.f32.mrb[0].mxu0
      %v7324 = vadd.f32 0.0, %v7323
      %v7325 = vpop.f32.mrb[0].mxu0
      %v7326 = vadd.f32 0.0, %v7325
      %v7327 = vpop.f32.mrb[0].mxu0
      %v7328 = vadd.f32 0.0, %v7327
      %v7329 = vpop.f32.mrb[0].mxu0
      %v7330 = vadd.f32 0.0, %v7329
      %7331 = vmatprep.mubr.bf16.mxu0 %v7011
      %7332 = vmatmul.mubr.bf16.gmra.mrb[0].mxu0 %v7010
      %v7333 = vpop.f32.mrb[0].mxu0
      %v7334 = vadd.f32 0.0, %v7333
      %v7335 = vpop.f32.mrb[0].mxu0
      %v7336 = vadd.f32 0.0, %v7335
      %v7337 = vpop.f32.mrb[0].mxu0
      %v7338 = vadd.f32 0.0, %v7337
      %v7339 = vpop.f32.mrb[0].mxu0
      %v7340 = vadd.f32 0.0, %v7339
      %7341 = vmatprep.mubr.bf16.mxu0 %v7013
      %7342 = vmatmul.mubr.bf16.gmra.mrb[0].mxu0 %v7012
      %v7343 = vpop.f32.mrb[0].mxu0
      %v7344 = vadd.f32 0.0, %v7343
      %v7345 = vpop.f32.mrb[0].mxu0
      %v7346 = vadd.f32 0.0, %v7345
      %v7347 = vpop.f32.mrb[0].mxu0
      %v7348 = vadd.f32 0.0, %v7347
      %v7349 = vpop.f32.mrb[0].mxu0
      %v7350 = vadd.f32 0.0, %v7349
      %7351 = vmatprep.mubr.bf16.mxu0 %v7015
      %7352 = vmatmul.mubr.bf16.gmra.mrb[0].mxu0 %v7014
      %v7353 = vpop.f32.mrb[0].mxu0
      %v7354 = vadd.f32 0.0, %v7353
      %v7355 = vpop.f32.mrb[0].mxu0
      %v7356 = vadd.f32 0.0, %v7355
      %v7357 = vpop.f32.mrb[0].mxu0
      %v7358 = vadd.f32 0.0, %v7357
      %v7359 = vpop.f32.mrb[0].mxu0
      %v7360 = vadd.f32 0.0, %v7359
      %7361 = vmatprep.mubr.bf16.mxu0 %v7017
      %7362 = vmatmul.mubr.bf16.gmra.mrb[0].mxu0 %v7016
      %v7363 = vpop.f32.mrb[0].mxu0
      %v7364 = vadd.f32 0.0, %v7363
      %v7365 = vpop.f32.mrb[0].mxu0
      %v7366 = vadd.f32 0.0, %v7365
      %v7367 = vpop.f32.mrb[0].mxu0
      %v7368 = vadd.f32 0.0, %v7367
      %v7369 = vpop.f32.mrb[0].mxu0
      %v7370 = vadd.f32 0.0, %v7369
      %7371 = vmatprep.mubr.bf16.mxu0 %v7019
      %7372 = vmatmul.mubr.bf16.gmra.mrb[0].mxu0 %v7018
      %v7373 = vpop.f32.mrb[0].mxu0
      %v7374 = vadd.f32 0.0, %v7373
      %v7375 = vpop.f32.mrb[0].mxu0
      %v7376 = vadd.f32 0.0, %v7375
      %v7377 = vpop.f32.mrb[0].mxu0
      %v7378 = vadd.f32 0.0, %v7377
      %v7379 = vpop.f32.mrb[0].mxu0
      %v7380 = vadd.f32 0.0, %v7379
      %7381 = vmatprep.mubr.bf16.mxu0 %v7021
      %7382 = vmatmul.mubr.bf16.gmra.mrb[0].mxu0 %v7020
      %v7383 = vpop.f32.mrb[0].mxu0
      %v7384 = vadd.f32 0.0, %v7383
      %v7385 = vpop.f32.mrb[0].mxu0
      %v7386 = vadd.f32 0.0, %v7385
      %v7387 = vpop.f32.mrb[0].mxu0
      %v7388 = vadd.f32 0.0, %v7387
      %v7389 = vpop.f32.mrb[0].mxu0
      %v7390 = vadd.f32 0.0, %v7389
      %7391 = vmatprep.mubr.bf16.mxu0 %v7023
      %7392 = vmatmul.mubr.bf16.gmra.mrb[0].mxu0 %v7022
      %v7393 = vpop.f32.mrb[0].mxu0
      %v7394 = vadd.f32 0.0, %v7393
      %v7395 = vpop.f32.mrb[0].mxu0
      %v7396 = vadd.f32 0.0, %v7395
      %v7397 = vpop.f32.mrb[0].mxu0
      %v7398 = vadd.f32 0.0, %v7397
      %v7399 = vpop.f32.mrb[0].mxu0
      %v7400 = vadd.f32 0.0, %v7399
      %7401 = vmatprep.mubr.bf16.mxu0 %v7025
      %7402 = vmatmul.mubr.bf16.gmra.mrb[0].mxu0 %v7024
      %v7403 = vpop.f32.mrb[0].mxu0
      %v7404 = vadd.f32 0.0, %v7403
      %v7405 = vpop.f32.mrb[0].mxu0
      %v7406 = vadd.f32 0.0, %v7405
      %v7407 = vpop.f32.mrb[0].mxu0
      %v7408 = vadd.f32 0.0, %v7407
      %v7409 = vpop.f32.mrb[0].mxu0
      %v7410 = vadd.f32 0.0, %v7409
      %7411 = vdwg.mxu0
      %v7412 = vadd.f32 %v6928, %v7254
      %v7413 = vadd.f32 %v6929, %v7256
      %v7414 = vadd.f32 %v6930, %v7258
      %v7415 = vadd.f32 %v6931, %v7260
      %v7416 = vadd.f32 %v6932, %v7264
      %v7417 = vadd.f32 %v6933, %v7266
      %v7418 = vadd.f32 %v6934, %v7268
      %v7419 = vadd.f32 %v6935, %v7270
      %v7420 = vadd.f32 %v6936, %v7274
      %v7421 = vadd.f32 %v6937, %v7276
      %v7422 = vadd.f32 %v6938, %v7278
      %v7423 = vadd.f32 %v6939, %v7280
      %v7424 = vadd.f32 %v6940, %v7284
      %v7425 = vadd.f32 %v6941, %v7286
      %v7426 = vadd.f32 %v6942, %v7288
      %v7427 = vadd.f32 %v6943, %v7290
      %v7428 = vadd.f32 %v6944, %v7294
      %v7429 = vadd.f32 %v6945, %v7296
      %v7430 = vadd.f32 %v6946, %v7298
      %v7431 = vadd.f32 %v6947, %v7300
      %v7432 = vadd.f32 %v6948, %v7304
      %v7433 = vadd.f32 %v6949, %v7306
      %v7434 = vadd.f32 %v6950, %v7308
      %v7435 = vadd.f32 %v6951, %v7310
      %v7436 = vadd.f32 %v6952, %v7314
      %v7437 = vadd.f32 %v6953, %v7316
      %v7438 = vadd.f32 %v6954, %v7318
      %v7439 = vadd.f32 %v6955, %v7320
      %v7440 = vadd.f32 %v6956, %v7324
      %v7441 = vadd.f32 %v6957, %v7326
      %v7442 = vadd.f32 %v6958, %v7328
      %v7443 = vadd.f32 %v6959, %v7330
      %v7444 = vadd.f32 %v6960, %v7334
      %v7445 = vadd.f32 %v6961, %v7336
      %v7446 = vadd.f32 %v6962, %v7338
      %v7447 = vadd.f32 %v6963, %v7340
      %v7448 = vadd.f32 %v6964, %v7344
      %v7449 = vadd.f32 %v6965, %v7346
      %v7450 = vadd.f32 %v6966, %v7348
      %v7451 = vadd.f32 %v6967, %v7350
      %v7452 = vadd.f32 %v6968, %v7354
      %v7453 = vadd.f32 %v6969, %v7356
      %v7454 = vadd.f32 %v6970, %v7358
      %v7455 = vadd.f32 %v6971, %v7360
      %v7456 = vadd.f32 %v6972, %v7364
      %v7457 = vadd.f32 %v6973, %v7366
      %v7458 = vadd.f32 %v6974, %v7368
      %v7459 = vadd.f32 %v6975, %v7370
      %v7460 = vadd.f32 %v6976, %v7374
      %v7461 = vadd.f32 %v6977, %v7376
      %v7462 = vadd.f32 %v6978, %v7378
      %v7463 = vadd.f32 %v6979, %v7380
      %v7464 = vadd.f32 %v6980, %v7384
      %v7465 = vadd.f32 %v6981, %v7386
      %v7466 = vadd.f32 %v6982, %v7388
      %v7467 = vadd.f32 %v6983, %v7390
      %v7468 = vadd.f32 %v6984, %v7394
      %v7469 = vadd.f32 %v6985, %v7396
      %v7470 = vadd.f32 %v6986, %v7398
      %v7471 = vadd.f32 %v6987, %v7400
      %v7472 = vadd.f32 %v6988, %v7404
      %v7473 = vadd.f32 %v6989, %v7406
      %v7474 = vadd.f32 %v6990, %v7408
      %v7475 = vadd.f32 %v6991, %v7410
      %v7476 = vld [vmem:[#allocation2 + $0x50] sm:$0xfe]
      %v7477 = vld [vmem:[#allocation2 + $0x58] sm:$0xfe]
      %v7478 = vld [vmem:[#allocation2 + $0x60] sm:$0xff]
      %v7479 = vld [vmem:[#allocation2 + $0x68] sm:$0xff]
      %v7480 = vld [vmem:[#allocation2 + $0x70] sm:$0xff]
      %v7481 = vld [vmem:[#allocation2 + $0x78] sm:$0xff]
      %v7482 = vld [vmem:[#allocation2 + $0x80] sm:$0xff]
      %v7483 = vld [vmem:[#allocation2 + $0x88] sm:$0xff]
      %v7484 = vld [vmem:[#allocation2 + $0x90] sm:$0xff]
      %v7485 = vld [vmem:[#allocation2 + $0x98] sm:$0xff]
      %v7486 = vld [vmem:[#allocation2 + $0xa0] sm:$0xff]
      %v7487 = vld [vmem:[#allocation2 + $0xa8] sm:$0xff]
      %v7488 = vld [vmem:[#allocation2 + $0xb0] sm:$0xff]
      %v7489 = vld [vmem:[#allocation2 + $0xb8] sm:$0xff]
      %v7490 = vld [vmem:[#allocation2 + $0xc0] sm:$0xff]
      %v7491 = vld [vmem:[#allocation2 + $0xc8] sm:$0xff]
      %v7492 = vld [vmem:[#allocation2 + $0xd0] sm:$0xff]
      %v7493 = vld [vmem:[#allocation2 + $0xd8] sm:$0xff]
      %v7494 = vld [vmem:[#allocation2 + $0xe0] sm:$0xff]
      %v7495 = vld [vmem:[#allocation2 + $0xe8] sm:$0xff]
      %v7496 = vld [vmem:[#allocation2 + $0xf0] sm:$0xff]
      %v7497 = vld [vmem:[#allocation2 + $0xf8] sm:$0xff]
      %v7498 = vld [vmem:[#allocation2 + $0x100] sm:$0xff]
      %v7499 = vld [vmem:[#allocation2 + $0x108] sm:$0xff]
      %v7500 = vld [vmem:[#allocation2 + $0x110] sm:$0xff]
      %v7501 = vld [vmem:[#allocation2 + $0x118] sm:$0xff]
      %v7502 = vld [vmem:[#allocation2 + $0x120] sm:$0xff]
      %v7503 = vld [vmem:[#allocation2 + $0x128] sm:$0xff]
      %v7504 = vld [vmem:[#allocation2 + $0x130] sm:$0xff]
      %v7505 = vld [vmem:[#allocation2 + $0x138] sm:$0xff]
      %v7506 = vld [vmem:[#allocation2 + $0x140] sm:$0xff]
      %v7507 = vld [vmem:[#allocation2 + $0x148] sm:$0xff]
      %v7508 = vld [vmem:[#allocation2 + $0x150] sm:$0xff]
      %v7509 = vld [vmem:[#allocation2 + $0x158] sm:$0xff]
      %v7510 = vld [vmem:[#allocation2 + $0x160] sm:$0xff]
      %v7511 = vld [vmem:[#allocation2 + $0x168] sm:$0xff]
      %v7512 = vld [vmem:[#allocation2 + $0x170] sm:$0xff]
      %v7513 = vld [vmem:[#allocation2 + $0x178] sm:$0xff]
      %v7514 = vld [vmem:[#allocation2 + $0x180] sm:$0xff]
      %v7515 = vld [vmem:[#allocation2 + $0x188] sm:$0xff]
      %v7516 = vld [vmem:[#allocation2 + $0x190] sm:$0xff]
      %v7517 = vld [vmem:[#allocation2 + $0x198] sm:$0xff]
      %v7518 = vld [vmem:[#allocation2 + $0x1a0] sm:$0xff]
      %v7519 = vld [vmem:[#allocation2 + $0x1a8] sm:$0xff]
      %v7520 = vld [vmem:[#allocation2 + $0x1b0] sm:$0xff]
      %v7521 = vld [vmem:[#allocation2 + $0x1b8] sm:$0xff]
      %v7522 = vld [vmem:[#allocation2 + $0x1c0] sm:$0xff]
      %v7523 = vld [vmem:[#allocation2 + $0x1c8] sm:$0xff]
      %v7524 = vld [vmem:[#allocation2 + $0x1d0] sm:$0xff]
      %v7525 = vld [vmem:[#allocation2 + $0x1d8] sm:$0xff]
      %v7526 = vld [vmem:[#allocation2 + $0x1e0] sm:$0xff]
      %v7527 = vld [vmem:[#allocation2 + $0x1e8] sm:$0xff]
      %v7528 = vld [vmem:[#allocation2 + $0x1f0] sm:$0xff]
      %v7529 = vld [vmem:[#allocation2 + $0x1f8] sm:$0xff]
      %v7530 = vld [vmem:[#allocation2 + $0x200] sm:$0xff]
      %v7531 = vld [vmem:[#allocation2 + $0x208] sm:$0xff]
      %v7532 = vld [vmem:[#allocation2 + $0x210] sm:$0xff]
      %v7533 = vld [vmem:[#allocation2 + $0x218] sm:$0xff]
      %v7534 = vld [vmem:[#allocation2 + $0x220] sm:$0xff]
      %v7535 = vld [vmem:[#allocation2 + $0x228] sm:$0xff]
      %v7536 = vld [vmem:[#allocation2 + $0x230] sm:$0xff]
      %v7537 = vld [vmem:[#allocation2 + $0x238] sm:$0xff]
      %v7538 = vld [vmem:[#allocation2 + $0x240] sm:$0xff]
      %v7539 = vld [vmem:[#allocation2 + $0x248] sm:$0xff]
      %v7540 = vld [vmem:[#allocation2 + $0x250] sm:$0x1]
      %v7541 = vld [vmem:[#allocation2 + $0x258] sm:$0x1]
      %v7542 = vmul.f32 %v7476, %v2749
      %v7543 = vmul.f32 %v7477, %v2749
      %v7544 = vmul.f32 %v7478, %v2751
      %v7545 = vmul.f32 %v7479, %v2751
      %v7546 = vmul.f32 %v7480, %v2753
      %v7547 = vmul.f32 %v7481, %v2753
      %v7548 = vmul.f32 %v7482, %v2755
      %v7549 = vmul.f32 %v7483, %v2755
      %v7550 = vmul.f32 %v7484, %v2757
      %v7551 = vmul.f32 %v7485, %v2757
      %v7552 = vmul.f32 %v7486, %v2759
      %v7553 = vmul.f32 %v7487, %v2759
      %v7554 = vmul.f32 %v7488, %v2761
      %v7555 = vmul.f32 %v7489, %v2761
      %v7556 = vmul.f32 %v7490, %v2763
      %v7557 = vmul.f32 %v7491, %v2763
      %v7558 = vmul.f32 %v7492, %v2765
      %v7559 = vmul.f32 %v7493, %v2765
      %v7560 = vmul.f32 %v7494, %v2767
      %v7561 = vmul.f32 %v7495, %v2767
      %v7562 = vmul.f32 %v7496, %v2769
      %v7563 = vmul.f32 %v7497, %v2769
      %v7564 = vmul.f32 %v7498, %v2771
      %v7565 = vmul.f32 %v7499, %v2771
      %v7566 = vmul.f32 %v7500, %v2773
      %v7567 = vmul.f32 %v7501, %v2773
      %v7568 = vmul.f32 %v7502, %v2775
      %v7569 = vmul.f32 %v7503, %v2775
      %v7570 = vmul.f32 %v7504, %v2777
      %v7571 = vmul.f32 %v7505, %v2777
      %v7572 = vmul.f32 %v7506, %v2779
      %v7573 = vmul.f32 %v7507, %v2779
      %v7574 = vmul.f32 %v7508, %v2781
      %v7575 = vmul.f32 %v7509, %v2781
      %v7576 = vmul.f32 %v7510, %v2783
      %v7577 = vmul.f32 %v7511, %v2783
      %v7578 = vmul.f32 %v7512, %v2785
      %v7579 = vmul.f32 %v7513, %v2785
      %v7580 = vmul.f32 %v7514, %v2787
      %v7581 = vmul.f32 %v7515, %v2787
      %v7582 = vmul.f32 %v7516, %v2789
      %v7583 = vmul.f32 %v7517, %v2789
      %v7584 = vmul.f32 %v7518, %v2791
      %v7585 = vmul.f32 %v7519, %v2791
      %v7586 = vmul.f32 %v7520, %v2793
      %v7587 = vmul.f32 %v7521, %v2793
      %v7588 = vmul.f32 %v7522, %v2795
      %v7589 = vmul.f32 %v7523, %v2795
      %v7590 = vmul.f32 %v7524, %v2797
      %v7591 = vmul.f32 %v7525, %v2797
      %v7592 = vmul.f32 %v7526, %v2799
      %v7593 = vmul.f32 %v7527, %v2799
      %v7594 = vmul.f32 %v7528, %v2801
      %v7595 = vmul.f32 %v7529, %v2801
      %v7596 = vmul.f32 %v7530, %v2803
      %v7597 = vmul.f32 %v7531, %v2803
      %v7598 = vmul.f32 %v7532, %v2805
      %v7599 = vmul.f32 %v7533, %v2805
      %v7600 = vmul.f32 %v7534, %v2807
      %v7601 = vmul.f32 %v7535, %v2807
      %v7602 = vmul.f32 %v7536, %v2809
      %v7603 = vmul.f32 %v7537, %v2809
      %v7604 = vmul.f32 %v7538, %v2811
      %v7605 = vmul.f32 %v7539, %v2811
      %v7606 = vmul.f32 %v7540, %v2810
      %v7607 = vmul.f32 %v7541, %v2810
      %v7608 = vpack.c.bf16 %v7544, %v7542
      %v7609 = vpack.c.bf16 %v7545, %v7543
      %v7610 = vpack.c.bf16 %v7548, %v7546
      %v7611 = vpack.c.bf16 %v7549, %v7547
      %v7612 = vpack.c.bf16 %v7552, %v7550
      %v7613 = vpack.c.bf16 %v7553, %v7551
      %v7614 = vpack.c.bf16 %v7556, %v7554
      %v7615 = vpack.c.bf16 %v7557, %v7555
      %v7616 = vpack.c.bf16 %v7560, %v7558
      %v7617 = vpack.c.bf16 %v7561, %v7559
      %v7618 = vpack.c.bf16 %v7564, %v7562
      %v7619 = vpack.c.bf16 %v7565, %v7563
      %v7620 = vpack.c.bf16 %v7568, %v7566
      %v7621 = vpack.c.bf16 %v7569, %v7567
      %v7622 = vpack.c.bf16 %v7572, %v7570
      %v7623 = vpack.c.bf16 %v7573, %v7571
      %v7624 = vpack.c.bf16 %v7576, %v7574
      %v7625 = vpack.c.bf16 %v7577, %v7575
      %v7626 = vpack.c.bf16 %v7580, %v7578
      %v7627 = vpack.c.bf16 %v7581, %v7579
      %v7628 = vpack.c.bf16 %v7584, %v7582
      %v7629 = vpack.c.bf16 %v7585, %v7583
      %v7630 = vpack.c.bf16 %v7588, %v7586
      %v7631 = vpack.c.bf16 %v7589, %v7587
      %v7632 = vpack.c.bf16 %v7592, %v7590
      %v7633 = vpack.c.bf16 %v7593, %v7591
      %v7634 = vpack.c.bf16 %v7596, %v7594
      %v7635 = vpack.c.bf16 %v7597, %v7595
      %v7636 = vpack.c.bf16 %v7600, %v7598
      %v7637 = vpack.c.bf16 %v7601, %v7599
      %v7638 = vpack.c.bf16 %v7604, %v7602
      %v7639 = vpack.c.bf16 %v7605, %v7603
      %v7640 = vpack.c.bf16 %v7606, %v7606
      %v7641 = vpack.c.bf16 %v7607, %v7607
      %s7642 = scalar_lea.vmem %s3, 2048
      %v7643 = vld [vmem:[%s7642] sm:$0xff]
      %v7644 = vld [vmem:[%s7642 + $0x8] sm:$0xff]
      %v7645 = vld [vmem:[%s7642 + $0x10] sm:$0xff]
      %v7646 = vld [vmem:[%s7642 + $0x18] sm:$0xff]
      %v7647 = vld [vmem:[%s7642 + $0x20] sm:$0xff]
      %v7648 = vld [vmem:[%s7642 + $0x28] sm:$0xff]
      %v7649 = vld [vmem:[%s7642 + $0x30] sm:$0xff]
      %v7650 = vld [vmem:[%s7642 + $0x38] sm:$0xff]
      %v7651 = vld [vmem:[%s7642 + $0x40] sm:$0xff]
      %v7652 = vld [vmem:[%s7642 + $0x48] sm:$0xff]
      %v7653 = vld [vmem:[%s7642 + $0x50] sm:$0xff]
      %v7654 = vld [vmem:[%s7642 + $0x58] sm:$0xff]
      %v7655 = vld [vmem:[%s7642 + $0x60] sm:$0xff]
      %v7656 = vld [vmem:[%s7642 + $0x68] sm:$0xff]
      %v7657 = vld [vmem:[%s7642 + $0x70] sm:$0xff]
      %v7658 = vld [vmem:[%s7642 + $0x78] sm:$0xff]
      %v7659 = vld [vmem:[%s7642 + $0x80] sm:$0xff]
      %v7660 = vld [vmem:[%s7642 + $0x88] sm:$0xff]
      %v7661 = vld [vmem:[%s7642 + $0x90] sm:$0xff]
      %v7662 = vld [vmem:[%s7642 + $0x98] sm:$0xff]
      %v7663 = vld [vmem:[%s7642 + $0xa0] sm:$0xff]
      %v7664 = vld [vmem:[%s7642 + $0xa8] sm:$0xff]
      %v7665 = vld [vmem:[%s7642 + $0xb0] sm:$0xff]
      %v7666 = vld [vmem:[%s7642 + $0xb8] sm:$0xff]
      %v7667 = vld [vmem:[%s7642 + $0xc0] sm:$0xff]
      %v7668 = vld [vmem:[%s7642 + $0xc8] sm:$0xff]
      %v7669 = vld [vmem:[%s7642 + $0xd0] sm:$0xff]
      %v7670 = vld [vmem:[%s7642 + $0xd8] sm:$0xff]
      %v7671 = vld [vmem:[%s7642 + $0xe0] sm:$0xff]
      %v7672 = vld [vmem:[%s7642 + $0xe8] sm:$0xff]
      %v7673 = vld [vmem:[%s7642 + $0xf0] sm:$0xff]
      %v7674 = vld [vmem:[%s7642 + $0xf8] sm:$0xff]
      %v7676 = vshrl.u32 %v7608, 16
      %v7678 = vshll.u32 %v7608, 16
      %v7680 = vrot.slane %v7678, 1
      %v7681 = vor.u32 %v7676, %v7680
      %v7683 = vshll.u32 %v7610, 16
      %v7685 = vrot.slane %v7683, 1
      %v7686 = vsel %vm2978, %v7681, %v7685
      %v7688 = vshrl.u32 %v7609, 16
      %v7690 = vshll.u32 %v7609, 16
      %v7692 = vrot.slane %v7690, 1
      %v7693 = vor.u32 %v7688, %v7692
      %v7695 = vshll.u32 %v7611, 16
      %v7697 = vrot.slane %v7695, 1
      %v7698 = vsel %vm2978, %v7693, %v7697
      %v7699 = vshrl.u32 %v7610, 16
      %v7701 = vor.u32 %v7699, %v7685
      %v7703 = vshll.u32 %v7612, 16
      %v7705 = vrot.slane %v7703, 1
      %v7706 = vsel %vm2978, %v7701, %v7705
      %v7707 = vshrl.u32 %v7611, 16
      %v7709 = vor.u32 %v7707, %v7697
      %v7711 = vshll.u32 %v7613, 16
      %v7713 = vrot.slane %v7711, 1
      %v7714 = vsel %vm2978, %v7709, %v7713
      %v7715 = vshrl.u32 %v7612, 16
      %v7717 = vor.u32 %v7715, %v7705
      %v7719 = vshll.u32 %v7614, 16
      %v7721 = vrot.slane %v7719, 1
      %v7722 = vsel %vm2978, %v7717, %v7721
      %v7723 = vshrl.u32 %v7613, 16
      %v7725 = vor.u32 %v7723, %v7713
      %v7727 = vshll.u32 %v7615, 16
      %v7729 = vrot.slane %v7727, 1
      %v7730 = vsel %vm2978, %v7725, %v7729
      %v7731 = vshrl.u32 %v7614, 16
      %v7733 = vor.u32 %v7731, %v7721
      %v7735 = vshll.u32 %v7616, 16
      %v7737 = vrot.slane %v7735, 1
      %v7738 = vsel %vm2978, %v7733, %v7737
      %v7739 = vshrl.u32 %v7615, 16
      %v7741 = vor.u32 %v7739, %v7729
      %v7743 = vshll.u32 %v7617, 16
      %v7745 = vrot.slane %v7743, 1
      %v7746 = vsel %vm2978, %v7741, %v7745
      %v7747 = vshrl.u32 %v7616, 16
      %v7749 = vor.u32 %v7747, %v7737
      %v7751 = vshll.u32 %v7618, 16
      %v7753 = vrot.slane %v7751, 1
      %v7754 = vsel %vm2978, %v7749, %v7753
      %v7755 = vshrl.u32 %v7617, 16
      %v7757 = vor.u32 %v7755, %v7745
      %v7759 = vshll.u32 %v7619, 16
      %v7761 = vrot.slane %v7759, 1
      %v7762 = vsel %vm2978, %v7757, %v7761
      %v7763 = vshrl.u32 %v7618, 16
      %v7765 = vor.u32 %v7763, %v7753
      %v7767 = vshll.u32 %v7620, 16
      %v7769 = vrot.slane %v7767, 1
      %v7770 = vsel %vm2978, %v7765, %v7769
      %v7771 = vshrl.u32 %v7619, 16
      %v7773 = vor.u32 %v7771, %v7761
      %v7775 = vshll.u32 %v7621, 16
      %v7777 = vrot.slane %v7775, 1
      %v7778 = vsel %vm2978, %v7773, %v7777
      %v7779 = vshrl.u32 %v7620, 16
      %v7781 = vor.u32 %v7779, %v7769
      %v7783 = vshll.u32 %v7622, 16
      %v7785 = vrot.slane %v7783, 1
      %v7786 = vsel %vm2978, %v7781, %v7785
      %v7787 = vshrl.u32 %v7621, 16
      %v7789 = vor.u32 %v7787, %v7777
      %v7791 = vshll.u32 %v7623, 16
      %v7793 = vrot.slane %v7791, 1
      %v7794 = vsel %vm2978, %v7789, %v7793
      %v7795 = vshrl.u32 %v7622, 16
      %v7797 = vor.u32 %v7795, %v7785
      %v7799 = vshll.u32 %v7624, 16
      %v7801 = vrot.slane %v7799, 1
      %v7802 = vsel %vm2978, %v7797, %v7801
      %v7803 = vshrl.u32 %v7623, 16
      %v7805 = vor.u32 %v7803, %v7793
      %v7807 = vshll.u32 %v7625, 16
      %v7809 = vrot.slane %v7807, 1
      %v7810 = vsel %vm2978, %v7805, %v7809
      %v7811 = vshrl.u32 %v7624, 16
      %v7813 = vor.u32 %v7811, %v7801
      %v7815 = vshll.u32 %v7626, 16
      %v7817 = vrot.slane %v7815, 1
      %v7818 = vsel %vm2978, %v7813, %v7817
      %v7819 = vshrl.u32 %v7625, 16
      %v7821 = vor.u32 %v7819, %v7809
      %v7823 = vshll.u32 %v7627, 16
      %v7825 = vrot.slane %v7823, 1
      %v7826 = vsel %vm2978, %v7821, %v7825
      %v7827 = vshrl.u32 %v7626, 16
      %v7829 = vor.u32 %v7827, %v7817
      %v7831 = vshll.u32 %v7628, 16
      %v7833 = vrot.slane %v7831, 1
      %v7834 = vsel %vm2978, %v7829, %v7833
      %v7835 = vshrl.u32 %v7627, 16
      %v7837 = vor.u32 %v7835, %v7825
      %v7839 = vshll.u32 %v7629, 16
      %v7841 = vrot.slane %v7839, 1
      %v7842 = vsel %vm2978, %v7837, %v7841
      %v7843 = vshrl.u32 %v7628, 16
      %v7845 = vor.u32 %v7843, %v7833
      %v7847 = vshll.u32 %v7630, 16
      %v7849 = vrot.slane %v7847, 1
      %v7850 = vsel %vm2978, %v7845, %v7849
      %v7851 = vshrl.u32 %v7629, 16
      %v7853 = vor.u32 %v7851, %v7841
      %v7855 = vshll.u32 %v7631, 16
      %v7857 = vrot.slane %v7855, 1
      %v7858 = vsel %vm2978, %v7853, %v7857
      %v7859 = vshrl.u32 %v7630, 16
      %v7861 = vor.u32 %v7859, %v7849
      %v7863 = vshll.u32 %v7632, 16
      %v7865 = vrot.slane %v7863, 1
      %v7866 = vsel %vm2978, %v7861, %v7865
      %v7867 = vshrl.u32 %v7631, 16
      %v7869 = vor.u32 %v7867, %v7857
      %v7871 = vshll.u32 %v7633, 16
      %v7873 = vrot.slane %v7871, 1
      %v7874 = vsel %vm2978, %v7869, %v7873
      %v7875 = vshrl.u32 %v7632, 16
      %v7877 = vor.u32 %v7875, %v7865
      %v7879 = vshll.u32 %v7634, 16
      %v7881 = vrot.slane %v7879, 1
      %v7882 = vsel %vm2978, %v7877, %v7881
      %v7883 = vshrl.u32 %v7633, 16
      %v7885 = vor.u32 %v7883, %v7873
      %v7887 = vshll.u32 %v7635, 16
      %v7889 = vrot.slane %v7887, 1
      %v7890 = vsel %vm2978, %v7885, %v7889
      %v7891 = vshrl.u32 %v7634, 16
      %v7893 = vor.u32 %v7891, %v7881
      %v7895 = vshll.u32 %v7636, 16
      %v7897 = vrot.slane %v7895, 1
      %v7898 = vsel %vm2978, %v7893, %v7897
      %v7899 = vshrl.u32 %v7635, 16
      %v7901 = vor.u32 %v7899, %v7889
      %v7903 = vshll.u32 %v7637, 16
      %v7905 = vrot.slane %v7903, 1
      %v7906 = vsel %vm2978, %v7901, %v7905
      %v7907 = vshrl.u32 %v7636, 16
      %v7909 = vor.u32 %v7907, %v7897
      %v7911 = vshll.u32 %v7638, 16
      %v7913 = vrot.slane %v7911, 1
      %v7914 = vsel %vm2978, %v7909, %v7913
      %v7915 = vshrl.u32 %v7637, 16
      %v7917 = vor.u32 %v7915, %v7905
      %v7919 = vshll.u32 %v7639, 16
      %v7921 = vrot.slane %v7919, 1
      %v7922 = vsel %vm2978, %v7917, %v7921
      %v7923 = vshrl.u32 %v7638, 16
      %v7925 = vor.u32 %v7923, %v7913
      %v7927 = vshll.u32 %v7640, 16
      %v7929 = vrot.slane %v7927, 1
      %v7930 = vsel %vm2978, %v7925, %v7929
      %v7931 = vshrl.u32 %v7639, 16
      %v7933 = vor.u32 %v7931, %v7921
      %v7935 = vshll.u32 %v7641, 16
      %v7937 = vrot.slane %v7935, 1
      %v7938 = vsel %vm2978, %v7933, %v7937
      %v8003 = vunpack.c.l.b16 %v7643
      %v8004 = vunpack.c.h.b16 %v7643
      %v8005 = vunpack.c.l.b16 %v7644
      %v8006 = vunpack.c.h.b16 %v7644
      %v8007 = vunpack.c.l.b16 %v7645
      %v8008 = vunpack.c.h.b16 %v7645
      %v8009 = vunpack.c.l.b16 %v7646
      %v8010 = vunpack.c.h.b16 %v7646
      %v8011 = vunpack.c.l.b16 %v7647
      %v8012 = vunpack.c.h.b16 %v7647
      %v8013 = vunpack.c.l.b16 %v7648
      %v8014 = vunpack.c.h.b16 %v7648
      %v8015 = vunpack.c.l.b16 %v7649
      %v8016 = vunpack.c.h.b16 %v7649
      %v8017 = vunpack.c.l.b16 %v7650
      %v8018 = vunpack.c.h.b16 %v7650
      %v8019 = vunpack.c.l.b16 %v7651
      %v8020 = vunpack.c.h.b16 %v7651
      %v8021 = vunpack.c.l.b16 %v7652
      %v8022 = vunpack.c.h.b16 %v7652
      %v8023 = vunpack.c.l.b16 %v7653
      %v8024 = vunpack.c.h.b16 %v7653
      %v8025 = vunpack.c.l.b16 %v7654
      %v8026 = vunpack.c.h.b16 %v7654
      %v8027 = vunpack.c.l.b16 %v7655
      %v8028 = vunpack.c.h.b16 %v7655
      %v8029 = vunpack.c.l.b16 %v7656
      %v8030 = vunpack.c.h.b16 %v7656
      %v8031 = vunpack.c.l.b16 %v7657
      %v8032 = vunpack.c.h.b16 %v7657
      %v8033 = vunpack.c.l.b16 %v7658
      %v8034 = vunpack.c.h.b16 %v7658
      %v8035 = vunpack.c.l.b16 %v7659
      %v8036 = vunpack.c.h.b16 %v7659
      %v8037 = vunpack.c.l.b16 %v7660
      %v8038 = vunpack.c.h.b16 %v7660
      %v8039 = vunpack.c.l.b16 %v7661
      %v8040 = vunpack.c.h.b16 %v7661
      %v8041 = vunpack.c.l.b16 %v7662
      %v8042 = vunpack.c.h.b16 %v7662
      %v8043 = vunpack.c.l.b16 %v7663
      %v8044 = vunpack.c.h.b16 %v7663
      %v8045 = vunpack.c.l.b16 %v7664
      %v8046 = vunpack.c.h.b16 %v7664
      %v8047 = vunpack.c.l.b16 %v7665
      %v8048 = vunpack.c.h.b16 %v7665
      %v8049 = vunpack.c.l.b16 %v7666
      %v8050 = vunpack.c.h.b16 %v7666
      %v8051 = vunpack.c.l.b16 %v7667
      %v8052 = vunpack.c.h.b16 %v7667
      %v8053 = vunpack.c.l.b16 %v7668
      %v8054 = vunpack.c.h.b16 %v7668
      %v8055 = vunpack.c.l.b16 %v7669
      %v8056 = vunpack.c.h.b16 %v7669
      %v8057 = vunpack.c.l.b16 %v7670
      %v8058 = vunpack.c.h.b16 %v7670
      %v8059 = vunpack.c.l.b16 %v7671
      %v8060 = vunpack.c.h.b16 %v7671
      %v8061 = vunpack.c.l.b16 %v7672
      %v8062 = vunpack.c.h.b16 %v7672
      %v8063 = vunpack.c.l.b16 %v7673
      %v8064 = vunpack.c.h.b16 %v7673
      %v8065 = vunpack.c.l.b16 %v7674
      %v8066 = vunpack.c.h.b16 %v7674
      %v8067 = vpack.c.b16 %v8005, %v8003
      %v8068 = vpack.c.b16 %v8006, %v8004
      %v8069 = vpack.c.b16 %v8009, %v8007
      %v8070 = vpack.c.b16 %v8010, %v8008
      %v8071 = vpack.c.b16 %v8013, %v8011
      %v8072 = vpack.c.b16 %v8014, %v8012
      %v8073 = vpack.c.b16 %v8017, %v8015
      %v8074 = vpack.c.b16 %v8018, %v8016
      %v8075 = vpack.c.b16 %v8021, %v8019
      %v8076 = vpack.c.b16 %v8022, %v8020
      %v8077 = vpack.c.b16 %v8025, %v8023
      %v8078 = vpack.c.b16 %v8026, %v8024
      %v8079 = vpack.c.b16 %v8029, %v8027
      %v8080 = vpack.c.b16 %v8030, %v8028
      %v8081 = vpack.c.b16 %v8033, %v8031
      %v8082 = vpack.c.b16 %v8034, %v8032
      %v8083 = vpack.c.b16 %v8037, %v8035
      %v8084 = vpack.c.b16 %v8038, %v8036
      %v8085 = vpack.c.b16 %v8041, %v8039
      %v8086 = vpack.c.b16 %v8042, %v8040
      %v8087 = vpack.c.b16 %v8045, %v8043
      %v8088 = vpack.c.b16 %v8046, %v8044
      %v8089 = vpack.c.b16 %v8049, %v8047
      %v8090 = vpack.c.b16 %v8050, %v8048
      %v8091 = vpack.c.b16 %v8053, %v8051
      %v8092 = vpack.c.b16 %v8054, %v8052
      %v8093 = vpack.c.b16 %v8057, %v8055
      %v8094 = vpack.c.b16 %v8058, %v8056
      %v8095 = vpack.c.b16 %v8061, %v8059
      %v8096 = vpack.c.b16 %v8062, %v8060
      %v8097 = vpack.c.b16 %v8065, %v8063
      %v8098 = vpack.c.b16 %v8066, %v8064
      %8131 = vmatprep.subr.bf16.mxu0 %v8068
      %8132 = vmatpush1.bf16.msra.mxu0 %v8067
      %8133 = vmatprep.subr.bf16.mxu0 %v8070
      %8134 = vmatpush1.bf16.msra.mxu0 %v8069
      %8135 = vmatprep.subr.bf16.mxu0 %v8072
      %8136 = vmatpush1.bf16.msra.mxu0 %v8071
      %8137 = vmatprep.subr.bf16.mxu0 %v8074
      %8138 = vmatpush1.bf16.msra.mxu0 %v8073
      %8139 = vmatprep.subr.bf16.mxu0 %v8076
      %8140 = vmatpush1.bf16.msra.mxu0 %v8075
      %8141 = vmatprep.subr.bf16.mxu0 %v8078
      %8142 = vmatpush1.bf16.msra.mxu0 %v8077
      %8143 = vmatprep.subr.bf16.mxu0 %v8080
      %8144 = vmatpush1.bf16.msra.mxu0 %v8079
      %8145 = vmatprep.subr.bf16.mxu0 %v8082
      %8146 = vmatpush1.bf16.msra.mxu0 %v8081
      %8147 = vmatprep.subr.bf16.mxu0 %v8084
      %8148 = vmatpush1.bf16.msra.mxu0 %v8083
      %8149 = vmatprep.subr.bf16.mxu0 %v8086
      %8150 = vmatpush1.bf16.msra.mxu0 %v8085
      %8151 = vmatprep.subr.bf16.mxu0 %v8088
      %8152 = vmatpush1.bf16.msra.mxu0 %v8087
      %8153 = vmatprep.subr.bf16.mxu0 %v8090
      %8154 = vmatpush1.bf16.msra.mxu0 %v8089
      %8155 = vmatprep.subr.bf16.mxu0 %v8092
      %8156 = vmatpush1.bf16.msra.mxu0 %v8091
      %8157 = vmatprep.subr.bf16.mxu0 %v8094
      %8158 = vmatpush1.bf16.msra.mxu0 %v8093
      %8159 = vmatprep.subr.bf16.mxu0 %v8096
      %8160 = vmatpush1.bf16.msra.mxu0 %v8095
      %8161 = vmatprep.subr.bf16.mxu0 %v8098
      %8162 = vmatpush1.bf16.msra.mxu0 %v8097
      %8163 = vmatprep.mubr.bf16.mxu0 %v7698
      %8164 = vmatmul.mubr.bf16.gmra.mrb[0].mxu0 %v7686
      %v8165 = vpop.f32.mrb[0].mxu0
      %v8166 = vadd.f32 0.0, %v8165
      %v8167 = vpop.f32.mrb[0].mxu0
      %v8168 = vadd.f32 0.0, %v8167
      %v8169 = vpop.f32.mrb[0].mxu0
      %v8170 = vadd.f32 0.0, %v8169
      %v8171 = vpop.f32.mrb[0].mxu0
      %v8172 = vadd.f32 0.0, %v8171
      %8173 = vmatprep.mubr.bf16.mxu0 %v7714
      %8174 = vmatmul.mubr.bf16.gmra.mrb[0].mxu0 %v7706
      %v8175 = vpop.f32.mrb[0].mxu0
      %v8176 = vadd.f32 0.0, %v8175
      %v8177 = vpop.f32.mrb[0].mxu0
      %v8178 = vadd.f32 0.0, %v8177
      %v8179 = vpop.f32.mrb[0].mxu0
      %v8180 = vadd.f32 0.0, %v8179
      %v8181 = vpop.f32.mrb[0].mxu0
      %v8182 = vadd.f32 0.0, %v8181
      %8183 = vmatprep.mubr.bf16.mxu0 %v7730
      %8184 = vmatmul.mubr.bf16.gmra.mrb[0].mxu0 %v7722
      %v8185 = vpop.f32.mrb[0].mxu0
      %v8186 = vadd.f32 0.0, %v8185
      %v8187 = vpop.f32.mrb[0].mxu0
      %v8188 = vadd.f32 0.0, %v8187
      %v8189 = vpop.f32.mrb[0].mxu0
      %v8190 = vadd.f32 0.0, %v8189
      %v8191 = vpop.f32.mrb[0].mxu0
      %v8192 = vadd.f32 0.0, %v8191
      %8193 = vmatprep.mubr.bf16.mxu0 %v7746
      %8194 = vmatmul.mubr.bf16.gmra.mrb[0].mxu0 %v7738
      %v8195 = vpop.f32.mrb[0].mxu0
      %v8196 = vadd.f32 0.0, %v8195
      %v8197 = vpop.f32.mrb[0].mxu0
      %v8198 = vadd.f32 0.0, %v8197
      %v8199 = vpop.f32.mrb[0].mxu0
      %v8200 = vadd.f32 0.0, %v8199
      %v8201 = vpop.f32.mrb[0].mxu0
      %v8202 = vadd.f32 0.0, %v8201
      %8203 = vmatprep.mubr.bf16.mxu0 %v7762
      %8204 = vmatmul.mubr.bf16.gmra.mrb[0].mxu0 %v7754
      %v8205 = vpop.f32.mrb[0].mxu0
      %v8206 = vadd.f32 0.0, %v8205
      %v8207 = vpop.f32.mrb[0].mxu0
      %v8208 = vadd.f32 0.0, %v8207
      %v8209 = vpop.f32.mrb[0].mxu0
      %v8210 = vadd.f32 0.0, %v8209
      %v8211 = vpop.f32.mrb[0].mxu0
      %v8212 = vadd.f32 0.0, %v8211
      %8213 = vmatprep.mubr.bf16.mxu0 %v7778
      %8214 = vmatmul.mubr.bf16.gmra.mrb[0].mxu0 %v7770
      %v8215 = vpop.f32.mrb[0].mxu0
      %v8216 = vadd.f32 0.0, %v8215
      %v8217 = vpop.f32.mrb[0].mxu0
      %v8218 = vadd.f32 0.0, %v8217
      %v8219 = vpop.f32.mrb[0].mxu0
      %v8220 = vadd.f32 0.0, %v8219
      %v8221 = vpop.f32.mrb[0].mxu0
      %v8222 = vadd.f32 0.0, %v8221
      %8223 = vmatprep.mubr.bf16.mxu0 %v7794
      %8224 = vmatmul.mubr.bf16.gmra.mrb[0].mxu0 %v7786
      %v8225 = vpop.f32.mrb[0].mxu0
      %v8226 = vadd.f32 0.0, %v8225
      %v8227 = vpop.f32.mrb[0].mxu0
      %v8228 = vadd.f32 0.0, %v8227
      %v8229 = vpop.f32.mrb[0].mxu0
      %v8230 = vadd.f32 0.0, %v8229
      %v8231 = vpop.f32.mrb[0].mxu0
      %v8232 = vadd.f32 0.0, %v8231
      %8233 = vmatprep.mubr.bf16.mxu0 %v7810
      %8234 = vmatmul.mubr.bf16.gmra.mrb[0].mxu0 %v7802
      %v8235 = vpop.f32.mrb[0].mxu0
      %v8236 = vadd.f32 0.0, %v8235
      %v8237 = vpop.f32.mrb[0].mxu0
      %v8238 = vadd.f32 0.0, %v8237
      %v8239 = vpop.f32.mrb[0].mxu0
      %v8240 = vadd.f32 0.0, %v8239
      %v8241 = vpop.f32.mrb[0].mxu0
      %v8242 = vadd.f32 0.0, %v8241
      %8243 = vmatprep.mubr.bf16.mxu0 %v7826
      %8244 = vmatmul.mubr.bf16.gmra.mrb[0].mxu0 %v7818
      %v8245 = vpop.f32.mrb[0].mxu0
      %v8246 = vadd.f32 0.0, %v8245
      %v8247 = vpop.f32.mrb[0].mxu0
      %v8248 = vadd.f32 0.0, %v8247
      %v8249 = vpop.f32.mrb[0].mxu0
      %v8250 = vadd.f32 0.0, %v8249
      %v8251 = vpop.f32.mrb[0].mxu0
      %v8252 = vadd.f32 0.0, %v8251
      %8253 = vmatprep.mubr.bf16.mxu0 %v7842
      %8254 = vmatmul.mubr.bf16.gmra.mrb[0].mxu0 %v7834
      %v8255 = vpop.f32.mrb[0].mxu0
      %v8256 = vadd.f32 0.0, %v8255
      %v8257 = vpop.f32.mrb[0].mxu0
      %v8258 = vadd.f32 0.0, %v8257
      %v8259 = vpop.f32.mrb[0].mxu0
      %v8260 = vadd.f32 0.0, %v8259
      %v8261 = vpop.f32.mrb[0].mxu0
      %v8262 = vadd.f32 0.0, %v8261
      %8263 = vmatprep.mubr.bf16.mxu0 %v7858
      %8264 = vmatmul.mubr.bf16.gmra.mrb[0].mxu0 %v7850
      %v8265 = vpop.f32.mrb[0].mxu0
      %v8266 = vadd.f32 0.0, %v8265
      %v8267 = vpop.f32.mrb[0].mxu0
      %v8268 = vadd.f32 0.0, %v8267
      %v8269 = vpop.f32.mrb[0].mxu0
      %v8270 = vadd.f32 0.0, %v8269
      %v8271 = vpop.f32.mrb[0].mxu0
      %v8272 = vadd.f32 0.0, %v8271
      %8273 = vmatprep.mubr.bf16.mxu0 %v7874
      %8274 = vmatmul.mubr.bf16.gmra.mrb[0].mxu0 %v7866
      %v8275 = vpop.f32.mrb[0].mxu0
      %v8276 = vadd.f32 0.0, %v8275
      %v8277 = vpop.f32.mrb[0].mxu0
      %v8278 = vadd.f32 0.0, %v8277
      %v8279 = vpop.f32.mrb[0].mxu0
      %v8280 = vadd.f32 0.0, %v8279
      %v8281 = vpop.f32.mrb[0].mxu0
      %v8282 = vadd.f32 0.0, %v8281
      %8283 = vmatprep.mubr.bf16.mxu0 %v7890
      %8284 = vmatmul.mubr.bf16.gmra.mrb[0].mxu0 %v7882
      %v8285 = vpop.f32.mrb[0].mxu0
      %v8286 = vadd.f32 0.0, %v8285
      %v8287 = vpop.f32.mrb[0].mxu0
      %v8288 = vadd.f32 0.0, %v8287
      %v8289 = vpop.f32.mrb[0].mxu0
      %v8290 = vadd.f32 0.0, %v8289
      %v8291 = vpop.f32.mrb[0].mxu0
      %v8292 = vadd.f32 0.0, %v8291
      %8293 = vmatprep.mubr.bf16.mxu0 %v7906
      %8294 = vmatmul.mubr.bf16.gmra.mrb[0].mxu0 %v7898
      %v8295 = vpop.f32.mrb[0].mxu0
      %v8296 = vadd.f32 0.0, %v8295
      %v8297 = vpop.f32.mrb[0].mxu0
      %v8298 = vadd.f32 0.0, %v8297
      %v8299 = vpop.f32.mrb[0].mxu0
      %v8300 = vadd.f32 0.0, %v8299
      %v8301 = vpop.f32.mrb[0].mxu0
      %v8302 = vadd.f32 0.0, %v8301
      %8303 = vmatprep.mubr.bf16.mxu0 %v7922
      %8304 = vmatmul.mubr.bf16.gmra.mrb[0].mxu0 %v7914
      %v8305 = vpop.f32.mrb[0].mxu0
      %v8306 = vadd.f32 0.0, %v8305
      %v8307 = vpop.f32.mrb[0].mxu0
      %v8308 = vadd.f32 0.0, %v8307
      %v8309 = vpop.f32.mrb[0].mxu0
      %v8310 = vadd.f32 0.0, %v8309
      %v8311 = vpop.f32.mrb[0].mxu0
      %v8312 = vadd.f32 0.0, %v8311
      %8313 = vmatprep.mubr.bf16.mxu0 %v7938
      %8314 = vmatmul.mubr.bf16.gmra.mrb[0].mxu0 %v7930
      %v8315 = vpop.f32.mrb[0].mxu0
      %v8316 = vadd.f32 0.0, %v8315
      %v8317 = vpop.f32.mrb[0].mxu0
      %v8318 = vadd.f32 0.0, %v8317
      %v8319 = vpop.f32.mrb[0].mxu0
      %v8320 = vadd.f32 0.0, %v8319
      %v8321 = vpop.f32.mrb[0].mxu0
      %v8322 = vadd.f32 0.0, %v8321
      %8323 = vdwg.mxu0
      %v8324 = vadd.f32 %v7412, %v8166
      %v8325 = vadd.f32 %v7413, %v8168
      %v8326 = vadd.f32 %v7414, %v8170
      %v8327 = vadd.f32 %v7415, %v8172
      %v8328 = vadd.f32 %v7416, %v8176
      %v8329 = vadd.f32 %v7417, %v8178
      %v8330 = vadd.f32 %v7418, %v8180
      %v8331 = vadd.f32 %v7419, %v8182
      %v8332 = vadd.f32 %v7420, %v8186
      %v8333 = vadd.f32 %v7421, %v8188
      %v8334 = vadd.f32 %v7422, %v8190
      %v8335 = vadd.f32 %v7423, %v8192
      %v8336 = vadd.f32 %v7424, %v8196
      %v8337 = vadd.f32 %v7425, %v8198
      %v8338 = vadd.f32 %v7426, %v8200
      %v8339 = vadd.f32 %v7427, %v8202
      %v8340 = vadd.f32 %v7428, %v8206
      %v8341 = vadd.f32 %v7429, %v8208
      %v8342 = vadd.f32 %v7430, %v8210
      %v8343 = vadd.f32 %v7431, %v8212
      %v8344 = vadd.f32 %v7432, %v8216
      %v8345 = vadd.f32 %v7433, %v8218
      %v8346 = vadd.f32 %v7434, %v8220
      %v8347 = vadd.f32 %v7435, %v8222
      %v8348 = vadd.f32 %v7436, %v8226
      %v8349 = vadd.f32 %v7437, %v8228
      %v8350 = vadd.f32 %v7438, %v8230
      %v8351 = vadd.f32 %v7439, %v8232
      %v8352 = vadd.f32 %v7440, %v8236
      %v8353 = vadd.f32 %v7441, %v8238
      %v8354 = vadd.f32 %v7442, %v8240
      %v8355 = vadd.f32 %v7443, %v8242
      %v8356 = vadd.f32 %v7444, %v8246
      %v8357 = vadd.f32 %v7445, %v8248
      %v8358 = vadd.f32 %v7446, %v8250
      %v8359 = vadd.f32 %v7447, %v8252
      %v8360 = vadd.f32 %v7448, %v8256
      %v8361 = vadd.f32 %v7449, %v8258
      %v8362 = vadd.f32 %v7450, %v8260
      %v8363 = vadd.f32 %v7451, %v8262
      %v8364 = vadd.f32 %v7452, %v8266
      %v8365 = vadd.f32 %v7453, %v8268
      %v8366 = vadd.f32 %v7454, %v8270
      %v8367 = vadd.f32 %v7455, %v8272
      %v8368 = vadd.f32 %v7456, %v8276
      %v8369 = vadd.f32 %v7457, %v8278
      %v8370 = vadd.f32 %v7458, %v8280
      %v8371 = vadd.f32 %v7459, %v8282
      %v8372 = vadd.f32 %v7460, %v8286
      %v8373 = vadd.f32 %v7461, %v8288
      %v8374 = vadd.f32 %v7462, %v8290
      %v8375 = vadd.f32 %v7463, %v8292
      %v8376 = vadd.f32 %v7464, %v8296
      %v8377 = vadd.f32 %v7465, %v8298
      %v8378 = vadd.f32 %v7466, %v8300
      %v8379 = vadd.f32 %v7467, %v8302
      %v8380 = vadd.f32 %v7468, %v8306
      %v8381 = vadd.f32 %v7469, %v8308
      %v8382 = vadd.f32 %v7470, %v8310
      %v8383 = vadd.f32 %v7471, %v8312
      %v8384 = vadd.f32 %v7472, %v8316
      %v8385 = vadd.f32 %v7473, %v8318
      %v8386 = vadd.f32 %v7474, %v8320
      %v8387 = vadd.f32 %v7475, %v8322
      %v8388 = vld [vmem:[%s4] sm:$0x3]
      %v8390 = vlaneseq
      %v8391 = vshrl.u32 %v8390, 7
      %v8392 = vsub.s32 0, %v8391
      %v8393 = vrot.slane %v8388, %v8392
      %v8394 = vlaneseq
      %v8395 = vshrl.u32 %v8394, 7
      %v8396 = vsub.s32 1, %v8395
      %v8397 = vrot.slane %v8388, %v8396
      %v8400 = vadd.f32 %v8324, %v8393
      %v8401 = vadd.f32 %v8325, %v8397
      %v8402 = vadd.f32 %v8326, %v8393
      %v8403 = vadd.f32 %v8327, %v8397
      %v8404 = vadd.f32 %v8328, %v8393
      %v8405 = vadd.f32 %v8329, %v8397
      %v8406 = vadd.f32 %v8330, %v8393
      %v8407 = vadd.f32 %v8331, %v8397
      %v8408 = vadd.f32 %v8332, %v8393
      %v8409 = vadd.f32 %v8333, %v8397
      %v8410 = vadd.f32 %v8334, %v8393
      %v8411 = vadd.f32 %v8335, %v8397
      %v8412 = vadd.f32 %v8336, %v8393
      %v8413 = vadd.f32 %v8337, %v8397
      %v8414 = vadd.f32 %v8338, %v8393
      %v8415 = vadd.f32 %v8339, %v8397
      %v8416 = vadd.f32 %v8340, %v8393
      %v8417 = vadd.f32 %v8341, %v8397
      %v8418 = vadd.f32 %v8342, %v8393
      %v8419 = vadd.f32 %v8343, %v8397
      %v8420 = vadd.f32 %v8344, %v8393
      %v8421 = vadd.f32 %v8345, %v8397
      %v8422 = vadd.f32 %v8346, %v8393
      %v8423 = vadd.f32 %v8347, %v8397
      %v8424 = vadd.f32 %v8348, %v8393
      %v8425 = vadd.f32 %v8349, %v8397
      %v8426 = vadd.f32 %v8350, %v8393
      %v8427 = vadd.f32 %v8351, %v8397
      %v8428 = vadd.f32 %v8352, %v8393
      %v8429 = vadd.f32 %v8353, %v8397
      %v8430 = vadd.f32 %v8354, %v8393
      %v8431 = vadd.f32 %v8355, %v8397
      %v8432 = vadd.f32 %v8356, %v8393
      %v8433 = vadd.f32 %v8357, %v8397
      %v8434 = vadd.f32 %v8358, %v8393
      %v8435 = vadd.f32 %v8359, %v8397
      %v8436 = vadd.f32 %v8360, %v8393
      %v8437 = vadd.f32 %v8361, %v8397
      %v8438 = vadd.f32 %v8362, %v8393
      %v8439 = vadd.f32 %v8363, %v8397
      %v8440 = vadd.f32 %v8364, %v8393
      %v8441 = vadd.f32 %v8365, %v8397
      %v8442 = vadd.f32 %v8366, %v8393
      %v8443 = vadd.f32 %v8367, %v8397
      %v8444 = vadd.f32 %v8368, %v8393
      %v8445 = vadd.f32 %v8369, %v8397
      %v8446 = vadd.f32 %v8370, %v8393
      %v8447 = vadd.f32 %v8371, %v8397
      %v8448 = vadd.f32 %v8372, %v8393
      %v8449 = vadd.f32 %v8373, %v8397
      %v8450 = vadd.f32 %v8374, %v8393
      %v8451 = vadd.f32 %v8375, %v8397
      %v8452 = vadd.f32 %v8376, %v8393
      %v8453 = vadd.f32 %v8377, %v8397
      %v8454 = vadd.f32 %v8378, %v8393
      %v8455 = vadd.f32 %v8379, %v8397
      %v8456 = vadd.f32 %v8380, %v8393
      %v8457 = vadd.f32 %v8381, %v8397
      %v8458 = vadd.f32 %v8382, %v8393
      %v8459 = vadd.f32 %v8383, %v8397
      %v8460 = vadd.f32 %v8384, %v8393
      %v8461 = vadd.f32 %v8385, %v8397
      %v8462 = vadd.f32 %v8386, %v8393
      %v8463 = vadd.f32 %v8387, %v8397
      %v8464 = vmax.f32 %v8400, 0.0
      %v8465 = vmax.f32 %v8401, 0.0
      %v8466 = vmax.f32 %v8402, 0.0
      %v8467 = vmax.f32 %v8403, 0.0
      %v8468 = vmax.f32 %v8404, 0.0
      %v8469 = vmax.f32 %v8405, 0.0
      %v8470 = vmax.f32 %v8406, 0.0
      %v8471 = vmax.f32 %v8407, 0.0
      %v8472 = vmax.f32 %v8408, 0.0
      %v8473 = vmax.f32 %v8409, 0.0
      %v8474 = vmax.f32 %v8410, 0.0
      %v8475 = vmax.f32 %v8411, 0.0
      %v8476 = vmax.f32 %v8412, 0.0
      %v8477 = vmax.f32 %v8413, 0.0
      %v8478 = vmax.f32 %v8414, 0.0
      %v8479 = vmax.f32 %v8415, 0.0
      %v8480 = vmax.f32 %v8416, 0.0
      %v8481 = vmax.f32 %v8417, 0.0
      %v8482 = vmax.f32 %v8418, 0.0
      %v8483 = vmax.f32 %v8419, 0.0
      %v8484 = vmax.f32 %v8420, 0.0
      %v8485 = vmax.f32 %v8421, 0.0
      %v8486 = vmax.f32 %v8422, 0.0
      %v8487 = vmax.f32 %v8423, 0.0
      %v8488 = vmax.f32 %v8424, 0.0
      %v8489 = vmax.f32 %v8425, 0.0
      %v8490 = vmax.f32 %v8426, 0.0
      %v8491 = vmax.f32 %v8427, 0.0
      %v8492 = vmax.f32 %v8428, 0.0
      %v8493 = vmax.f32 %v8429, 0.0
      %v8494 = vmax.f32 %v8430, 0.0
      %v8495 = vmax.f32 %v8431, 0.0
      %v8496 = vmax.f32 %v8432, 0.0
      %v8497 = vmax.f32 %v8433, 0.0
      %v8498 = vmax.f32 %v8434, 0.0
      %v8499 = vmax.f32 %v8435, 0.0
      %v8500 = vmax.f32 %v8436, 0.0
      %v8501 = vmax.f32 %v8437, 0.0
      %v8502 = vmax.f32 %v8438, 0.0
      %v8503 = vmax.f32 %v8439, 0.0
      %v8504 = vmax.f32 %v8440, 0.0
      %v8505 = vmax.f32 %v8441, 0.0
      %v8506 = vmax.f32 %v8442, 0.0
      %v8507 = vmax.f32 %v8443, 0.0
      %v8508 = vmax.f32 %v8444, 0.0
      %v8509 = vmax.f32 %v8445, 0.0
      %v8510 = vmax.f32 %v8446, 0.0
      %v8511 = vmax.f32 %v8447, 0.0
      %v8512 = vmax.f32 %v8448, 0.0
      %v8513 = vmax.f32 %v8449, 0.0
      %v8514 = vmax.f32 %v8450, 0.0
      %v8515 = vmax.f32 %v8451, 0.0
      %v8516 = vmax.f32 %v8452, 0.0
      %v8517 = vmax.f32 %v8453, 0.0
      %v8518 = vmax.f32 %v8454, 0.0
      %v8519 = vmax.f32 %v8455, 0.0
      %v8520 = vmax.f32 %v8456, 0.0
      %v8521 = vmax.f32 %v8457, 0.0
      %v8522 = vmax.f32 %v8458, 0.0
      %v8523 = vmax.f32 %v8459, 0.0
      %v8524 = vmax.f32 %v8460, 0.0
      %v8525 = vmax.f32 %v8461, 0.0
      %v8526 = vmax.f32 %v8462, 0.0
      %v8527 = vmax.f32 %v8463, 0.0
      %8528 = vst [vmem:[#allocation3] sm:$0xff] %v8464
      %8529 = vst [vmem:[#allocation3 + $0x8] sm:$0xff] %v8465
      %8530 = vst [vmem:[#allocation3 + $0x10] sm:$0xff] %v8466
      %8531 = vst [vmem:[#allocation3 + $0x18] sm:$0xff] %v8467
      %8532 = vst [vmem:[#allocation3 + $0x20] sm:$0xff] %v8468
      %8533 = vst [vmem:[#allocation3 + $0x28] sm:$0xff] %v8469
      %8534 = vst [vmem:[#allocation3 + $0x30] sm:$0xff] %v8470
      %8535 = vst [vmem:[#allocation3 + $0x38] sm:$0xff] %v8471
      %8536 = vst [vmem:[#allocation3 + $0x40] sm:$0xff] %v8472
      %8537 = vst [vmem:[#allocation3 + $0x48] sm:$0xff] %v8473
      %8538 = vst [vmem:[#allocation3 + $0x50] sm:$0xff] %v8474
      %8539 = vst [vmem:[#allocation3 + $0x58] sm:$0xff] %v8475
      %8540 = vst [vmem:[#allocation3 + $0x60] sm:$0xff] %v8476
      %8541 = vst [vmem:[#allocation3 + $0x68] sm:$0xff] %v8477
      %8542 = vst [vmem:[#allocation3 + $0x70] sm:$0xff] %v8478
      %8543 = vst [vmem:[#allocation3 + $0x78] sm:$0xff] %v8479
      %8544 = vst [vmem:[#allocation3 + $0x80] sm:$0xff] %v8480
      %8545 = vst [vmem:[#allocation3 + $0x88] sm:$0xff] %v8481
      %8546 = vst [vmem:[#allocation3 + $0x90] sm:$0xff] %v8482
      %8547 = vst [vmem:[#allocation3 + $0x98] sm:$0xff] %v8483
      %8548 = vst [vmem:[#allocation3 + $0xa0] sm:$0xff] %v8484
      %8549 = vst [vmem:[#allocation3 + $0xa8] sm:$0xff] %v8485
      %8550 = vst [vmem:[#allocation3 + $0xb0] sm:$0xff] %v8486
      %8551 = vst [vmem:[#allocation3 + $0xb8] sm:$0xff] %v8487
      %8552 = vst [vmem:[#allocation3 + $0xc0] sm:$0xff] %v8488
      %8553 = vst [vmem:[#allocation3 + $0xc8] sm:$0xff] %v8489
      %8554 = vst [vmem:[#allocation3 + $0xd0] sm:$0xff] %v8490
      %8555 = vst [vmem:[#allocation3 + $0xd8] sm:$0xff] %v8491
      %8556 = vst [vmem:[#allocation3 + $0xe0] sm:$0xff] %v8492
      %8557 = vst [vmem:[#allocation3 + $0xe8] sm:$0xff] %v8493
      %8558 = vst [vmem:[#allocation3 + $0xf0] sm:$0xff] %v8494
      %8559 = vst [vmem:[#allocation3 + $0xf8] sm:$0xff] %v8495
      %8560 = vst [vmem:[#allocation3 + $0x100] sm:$0xff] %v8496
      %8561 = vst [vmem:[#allocation3 + $0x108] sm:$0xff] %v8497
      %8562 = vst [vmem:[#allocation3 + $0x110] sm:$0xff] %v8498
      %8563 = vst [vmem:[#allocation3 + $0x118] sm:$0xff] %v8499
      %8564 = vst [vmem:[#allocation3 + $0x120] sm:$0xff] %v8500
      %8565 = vst [vmem:[#allocation3 + $0x128] sm:$0xff] %v8501
      %8566 = vst [vmem:[#allocation3 + $0x130] sm:$0xff] %v8502
      %8567 = vst [vmem:[#allocation3 + $0x138] sm:$0xff] %v8503
      %8568 = vst [vmem:[#allocation3 + $0x140] sm:$0xff] %v8504
      %8569 = vst [vmem:[#allocation3 + $0x148] sm:$0xff] %v8505
      %8570 = vst [vmem:[#allocation3 + $0x150] sm:$0xff] %v8506
      %8571 = vst [vmem:[#allocation3 + $0x158] sm:$0xff] %v8507
      %8572 = vst [vmem:[#allocation3 + $0x160] sm:$0xff] %v8508
      %8573 = vst [vmem:[#allocation3 + $0x168] sm:$0xff] %v8509
      %8574 = vst [vmem:[#allocation3 + $0x170] sm:$0xff] %v8510
      %8575 = vst [vmem:[#allocation3 + $0x178] sm:$0xff] %v8511
      %8576 = vst [vmem:[#allocation3 + $0x180] sm:$0xff] %v8512
      %8577 = vst [vmem:[#allocation3 + $0x188] sm:$0xff] %v8513
      %8578 = vst [vmem:[#allocation3 + $0x190] sm:$0xff] %v8514
      %8579 = vst [vmem:[#allocation3 + $0x198] sm:$0xff] %v8515
      %8580 = vst [vmem:[#allocation3 + $0x1a0] sm:$0xff] %v8516
      %8581 = vst [vmem:[#allocation3 + $0x1a8] sm:$0xff] %v8517
      %8582 = vst [vmem:[#allocation3 + $0x1b0] sm:$0xff] %v8518
      %8583 = vst [vmem:[#allocation3 + $0x1b8] sm:$0xff] %v8519
      %8584 = vst [vmem:[#allocation3 + $0x1c0] sm:$0xff] %v8520
      %8585 = vst [vmem:[#allocation3 + $0x1c8] sm:$0xff] %v8521
      %8586 = vst [vmem:[#allocation3 + $0x1d0] sm:$0xff] %v8522
      %8587 = vst [vmem:[#allocation3 + $0x1d8] sm:$0xff] %v8523
      %8588 = vst [vmem:[#allocation3 + $0x1e0] sm:$0xff] %v8524
      %8589 = vst [vmem:[#allocation3 + $0x1e8] sm:$0xff] %v8525
      %8590 = vst [vmem:[#allocation3 + $0x1f0] sm:$0xff] %v8526
      %8591 = vst [vmem:[#allocation3 + $0x1f8] sm:$0xff] %v8527
      %8592 = vst [vmem:[#allocation3 + $0x200] sm:$0xff] 0.0
      %8593 = vst [vmem:[#allocation3 + $0x208] sm:$0xff] 0.0
      %8594 = vst [vmem:[#allocation3 + $0x210] sm:$0xff] 0.0
      %8595 = vst [vmem:[#allocation3 + $0x218] sm:$0xff] 0.0
      %8596 = vst [vmem:[#allocation3 + $0x220] sm:$0xff] 0.0
      %8597 = vst [vmem:[#allocation3 + $0x228] sm:$0xff] 0.0
      %v8598 = vld [vmem:[#allocation3] sm:$0xff]
      %v8599 = vld [vmem:[#allocation3 + $0x8] sm:$0xff]
      %v8600 = vld [vmem:[#allocation3 + $0x10] sm:$0xff]
      %v8601 = vld [vmem:[#allocation3 + $0x18] sm:$0xff]
      %v8602 = vld [vmem:[#allocation3 + $0x20] sm:$0xff]
      %v8603 = vld [vmem:[#allocation3 + $0x28] sm:$0xff]
      %v8604 = vld [vmem:[#allocation3 + $0x30] sm:$0xff]
      %v8605 = vld [vmem:[#allocation3 + $0x38] sm:$0xff]
      %v8606 = vld [vmem:[#allocation3 + $0x40] sm:$0xff]
      %v8607 = vld [vmem:[#allocation3 + $0x48] sm:$0xff]
      %v8608 = vld [vmem:[#allocation3 + $0x50] sm:$0xff]
      %v8609 = vld [vmem:[#allocation3 + $0x58] sm:$0xff]
      %v8610 = vld [vmem:[#allocation3 + $0x60] sm:$0xff]
      %v8611 = vld [vmem:[#allocation3 + $0x68] sm:$0xff]
      %v8612 = vld [vmem:[#allocation3 + $0x70] sm:$0xff]
      %v8613 = vld [vmem:[#allocation3 + $0x78] sm:$0xff]
      %v8614 = vld [vmem:[#allocation3 + $0x80] sm:$0xff]
      %v8615 = vld [vmem:[#allocation3 + $0x88] sm:$0xff]
      %v8616 = vld [vmem:[#allocation3 + $0x90] sm:$0xff]
      %v8617 = vld [vmem:[#allocation3 + $0x98] sm:$0xff]
      %v8618 = vld [vmem:[#allocation3 + $0xa0] sm:$0xff]
      %v8619 = vld [vmem:[#allocation3 + $0xa8] sm:$0xff]
      %v8620 = vld [vmem:[#allocation3 + $0xb0] sm:$0xff]
      %v8621 = vld [vmem:[#allocation3 + $0xb8] sm:$0xff]
      %v8622 = vld [vmem:[#allocation3 + $0xc0] sm:$0xff]
      %v8623 = vld [vmem:[#allocation3 + $0xc8] sm:$0xff]
      %v8624 = vld [vmem:[#allocation3 + $0xd0] sm:$0xff]
      %v8625 = vld [vmem:[#allocation3 + $0xd8] sm:$0xff]
      %v8626 = vld [vmem:[#allocation3 + $0xe0] sm:$0xff]
      %v8627 = vld [vmem:[#allocation3 + $0xe8] sm:$0xff]
      %v8628 = vld [vmem:[#allocation3 + $0xf0] sm:$0xff]
      %v8629 = vld [vmem:[#allocation3 + $0xf8] sm:$0xff]
      %v8630 = vld [vmem:[#allocation3 + $0x100] sm:$0xff]
      %v8631 = vld [vmem:[#allocation3 + $0x108] sm:$0xff]
      %v8632 = vld [vmem:[#allocation3 + $0x110] sm:$0xff]
      %v8633 = vld [vmem:[#allocation3 + $0x118] sm:$0xff]
      %v8634 = vld [vmem:[#allocation3 + $0x120] sm:$0xff]
      %v8635 = vld [vmem:[#allocation3 + $0x128] sm:$0xff]
      %v8636 = vld [vmem:[#allocation3 + $0x130] sm:$0xff]
      %v8637 = vld [vmem:[#allocation3 + $0x138] sm:$0xff]
      %v8638 = vld [vmem:[#allocation3 + $0x140] sm:$0xff]
      %v8639 = vld [vmem:[#allocation3 + $0x148] sm:$0xff]
      %v8640 = vld [vmem:[#allocation3 + $0x150] sm:$0xff]
      %v8641 = vld [vmem:[#allocation3 + $0x158] sm:$0xff]
      %v8642 = vld [vmem:[#allocation3 + $0x160] sm:$0xff]
      %v8643 = vld [vmem:[#allocation3 + $0x168] sm:$0xff]
      %v8644 = vld [vmem:[#allocation3 + $0x170] sm:$0xff]
      %v8645 = vld [vmem:[#allocation3 + $0x178] sm:$0xff]
      %v8646 = vld [vmem:[#allocation3 + $0x180] sm:$0xff]
      %v8647 = vld [vmem:[#allocation3 + $0x188] sm:$0xff]
      %v8648 = vld [vmem:[#allocation3 + $0x190] sm:$0xff]
      %v8649 = vld [vmem:[#allocation3 + $0x198] sm:$0xff]
      %v8650 = vld [vmem:[#allocation3 + $0x1a0] sm:$0xff]
      %v8651 = vld [vmem:[#allocation3 + $0x1a8] sm:$0xff]
      %v8652 = vld [vmem:[#allocation3 + $0x1b0] sm:$0xff]
      %v8653 = vld [vmem:[#allocation3 + $0x1b8] sm:$0xff]
      %v8654 = vld [vmem:[#allocation3 + $0x1c0] sm:$0xff]
      %v8655 = vld [vmem:[#allocation3 + $0x1c8] sm:$0xff]
      %v8656 = vld [vmem:[#allocation3 + $0x1d0] sm:$0xff]
      %v8657 = vld [vmem:[#allocation3 + $0x1d8] sm:$0xff]
      %v8658 = vld [vmem:[#allocation3 + $0x1e0] sm:$0xff]
      %v8659 = vld [vmem:[#allocation3 + $0x1e8] sm:$0xff]
      %v8660 = vld [vmem:[#allocation3 + $0x1f0] sm:$0xff]
      %v8661 = vld [vmem:[#allocation3 + $0x1f8] sm:$0xff]
      %v8662 = vpack.c.bf16 %v8600, %v8598
      %v8663 = vpack.c.bf16 %v8601, %v8599
      %v8664 = vpack.c.bf16 %v8604, %v8602
      %v8665 = vpack.c.bf16 %v8605, %v8603
      %v8666 = vpack.c.bf16 %v8608, %v8606
      %v8667 = vpack.c.bf16 %v8609, %v8607
      %v8668 = vpack.c.bf16 %v8612, %v8610
      %v8669 = vpack.c.bf16 %v8613, %v8611
      %v8670 = vpack.c.bf16 %v8616, %v8614
      %v8671 = vpack.c.bf16 %v8617, %v8615
      %v8672 = vpack.c.bf16 %v8620, %v8618
      %v8673 = vpack.c.bf16 %v8621, %v8619
      %v8674 = vpack.c.bf16 %v8624, %v8622
      %v8675 = vpack.c.bf16 %v8625, %v8623
      %v8676 = vpack.c.bf16 %v8628, %v8626
      %v8677 = vpack.c.bf16 %v8629, %v8627
      %v8678 = vpack.c.bf16 %v8632, %v8630
      %v8679 = vpack.c.bf16 %v8633, %v8631
      %v8680 = vpack.c.bf16 %v8636, %v8634
      %v8681 = vpack.c.bf16 %v8637, %v8635
      %v8682 = vpack.c.bf16 %v8640, %v8638
      %v8683 = vpack.c.bf16 %v8641, %v8639
      %v8684 = vpack.c.bf16 %v8644, %v8642
      %v8685 = vpack.c.bf16 %v8645, %v8643
      %v8686 = vpack.c.bf16 %v8648, %v8646
      %v8687 = vpack.c.bf16 %v8649, %v8647
      %v8688 = vpack.c.bf16 %v8652, %v8650
      %v8689 = vpack.c.bf16 %v8653, %v8651
      %v8690 = vpack.c.bf16 %v8656, %v8654
      %v8691 = vpack.c.bf16 %v8657, %v8655
      %v8692 = vpack.c.bf16 %v8660, %v8658
      %v8693 = vpack.c.bf16 %v8661, %v8659
      %v8694 = vld [vmem:[%s5] sm:$0xff]
      %v8695 = vld [vmem:[%s5 + $0x8] sm:$0xff]
      %v8696 = vld [vmem:[%s5 + $0x10] sm:$0xff]
      %v8697 = vld [vmem:[%s5 + $0x18] sm:$0xff]
      %v8698 = vld [vmem:[%s5 + $0x20] sm:$0xff]
      %v8699 = vld [vmem:[%s5 + $0x28] sm:$0xff]
      %v8700 = vld [vmem:[%s5 + $0x30] sm:$0xff]
      %v8701 = vld [vmem:[%s5 + $0x38] sm:$0xff]
      %v8702 = vld [vmem:[%s5 + $0x40] sm:$0xff]
      %v8703 = vld [vmem:[%s5 + $0x48] sm:$0xff]
      %v8704 = vld [vmem:[%s5 + $0x50] sm:$0xff]
      %v8705 = vld [vmem:[%s5 + $0x58] sm:$0xff]
      %v8706 = vld [vmem:[%s5 + $0x60] sm:$0xff]
      %v8707 = vld [vmem:[%s5 + $0x68] sm:$0xff]
      %v8708 = vld [vmem:[%s5 + $0x70] sm:$0xff]
      %v8709 = vld [vmem:[%s5 + $0x78] sm:$0xff]
      %v8710 = vld [vmem:[%s5 + $0x80] sm:$0xff]
      %v8711 = vld [vmem:[%s5 + $0x88] sm:$0xff]
      %v8712 = vld [vmem:[%s5 + $0x90] sm:$0xff]
      %v8713 = vld [vmem:[%s5 + $0x98] sm:$0xff]
      %v8714 = vld [vmem:[%s5 + $0xa0] sm:$0xff]
      %v8715 = vld [vmem:[%s5 + $0xa8] sm:$0xff]
      %v8716 = vld [vmem:[%s5 + $0xb0] sm:$0xff]
      %v8717 = vld [vmem:[%s5 + $0xb8] sm:$0xff]
      %v8718 = vld [vmem:[%s5 + $0xc0] sm:$0xff]
      %v8719 = vld [vmem:[%s5 + $0xc8] sm:$0xff]
      %v8720 = vld [vmem:[%s5 + $0xd0] sm:$0xff]
      %v8721 = vld [vmem:[%s5 + $0xd8] sm:$0xff]
      %v8722 = vld [vmem:[%s5 + $0xe0] sm:$0xff]
      %v8723 = vld [vmem:[%s5 + $0xe8] sm:$0xff]
      %v8724 = vld [vmem:[%s5 + $0xf0] sm:$0xff]
      %v8725 = vld [vmem:[%s5 + $0xf8] sm:$0xff]
      %v8726 = vld [vmem:[#allocation3] sm:$0xfe]
      %v8727 = vld [vmem:[#allocation3 + $0x8] sm:$0xfe]
      %v8728 = vld [vmem:[#allocation3 + $0x200] sm:$0x1]
      %v8729 = vld [vmem:[#allocation3 + $0x208] sm:$0x1]
      %v8730 = vpack.c.bf16 %v8600, %v8726
      %v8731 = vpack.c.bf16 %v8601, %v8727
      %v8732 = vpack.c.bf16 %v8728, %v8728
      %v8733 = vpack.c.bf16 %v8729, %v8729
      %s8734 = scalar_lea.vmem %s5, 256
      %v8735 = vld [vmem:[%s8734] sm:$0xff]
      %v8736 = vld [vmem:[%s8734 + $0x8] sm:$0xff]
      %v8737 = vld [vmem:[%s8734 + $0x10] sm:$0xff]
      %v8738 = vld [vmem:[%s8734 + $0x18] sm:$0xff]
      %v8739 = vld [vmem:[%s8734 + $0x20] sm:$0xff]
      %v8740 = vld [vmem:[%s8734 + $0x28] sm:$0xff]
      %v8741 = vld [vmem:[%s8734 + $0x30] sm:$0xff]
      %v8742 = vld [vmem:[%s8734 + $0x38] sm:$0xff]
      %v8743 = vld [vmem:[%s8734 + $0x40] sm:$0xff]
      %v8744 = vld [vmem:[%s8734 + $0x48] sm:$0xff]
      %v8745 = vld [vmem:[%s8734 + $0x50] sm:$0xff]
      %v8746 = vld [vmem:[%s8734 + $0x58] sm:$0xff]
      %v8747 = vld [vmem:[%s8734 + $0x60] sm:$0xff]
      %v8748 = vld [vmem:[%s8734 + $0x68] sm:$0xff]
      %v8749 = vld [vmem:[%s8734 + $0x70] sm:$0xff]
      %v8750 = vld [vmem:[%s8734 + $0x78] sm:$0xff]
      %v8751 = vld [vmem:[%s8734 + $0x80] sm:$0xff]
      %v8752 = vld [vmem:[%s8734 + $0x88] sm:$0xff]
      %v8753 = vld [vmem:[%s8734 + $0x90] sm:$0xff]
      %v8754 = vld [vmem:[%s8734 + $0x98] sm:$0xff]
      %v8755 = vld [vmem:[%s8734 + $0xa0] sm:$0xff]
      %v8756 = vld [vmem:[%s8734 + $0xa8] sm:$0xff]
      %v8757 = vld [vmem:[%s8734 + $0xb0] sm:$0xff]
      %v8758 = vld [vmem:[%s8734 + $0xb8] sm:$0xff]
      %v8759 = vld [vmem:[%s8734 + $0xc0] sm:$0xff]
      %v8760 = vld [vmem:[%s8734 + $0xc8] sm:$0xff]
      %v8761 = vld [vmem:[%s8734 + $0xd0] sm:$0xff]
      %v8762 = vld [vmem:[%s8734 + $0xd8] sm:$0xff]
      %v8763 = vld [vmem:[%s8734 + $0xe0] sm:$0xff]
      %v8764 = vld [vmem:[%s8734 + $0xe8] sm:$0xff]
      %v8765 = vld [vmem:[%s8734 + $0xf0] sm:$0xff]
      %v8766 = vld [vmem:[%s8734 + $0xf8] sm:$0xff]
      %v8768 = vshrl.u32 %v8730, 16
      %v8770 = vshll.u32 %v8730, 16
      %v8772 = vrot.slane %v8770, 1
      %v8773 = vor.u32 %v8768, %v8772
      %v8775 = vshll.u32 %v8664, 16
      %v8777 = vrot.slane %v8775, 1
      %v8778 = vsel %vm2978, %v8773, %v8777
      %v8780 = vshrl.u32 %v8731, 16
      %v8782 = vshll.u32 %v8731, 16
      %v8784 = vrot.slane %v8782, 1
      %v8785 = vor.u32 %v8780, %v8784
      %v8787 = vshll.u32 %v8665, 16
      %v8789 = vrot.slane %v8787, 1
      %v8790 = vsel %vm2978, %v8785, %v8789
      %v8791 = vshrl.u32 %v8664, 16
      %v8793 = vor.u32 %v8791, %v8777
      %v8795 = vshll.u32 %v8666, 16
      %v8797 = vrot.slane %v8795, 1
      %v8798 = vsel %vm2978, %v8793, %v8797
      %v8799 = vshrl.u32 %v8665, 16
      %v8801 = vor.u32 %v8799, %v8789
      %v8803 = vshll.u32 %v8667, 16
      %v8805 = vrot.slane %v8803, 1
      %v8806 = vsel %vm2978, %v8801, %v8805
      %v8807 = vshrl.u32 %v8666, 16
      %v8809 = vor.u32 %v8807, %v8797
      %v8811 = vshll.u32 %v8668, 16
      %v8813 = vrot.slane %v8811, 1
      %v8814 = vsel %vm2978, %v8809, %v8813
      %v8815 = vshrl.u32 %v8667, 16
      %v8817 = vor.u32 %v8815, %v8805
      %v8819 = vshll.u32 %v8669, 16
      %v8821 = vrot.slane %v8819, 1
      %v8822 = vsel %vm2978, %v8817, %v8821
      %v8823 = vshrl.u32 %v8668, 16
      %v8825 = vor.u32 %v8823, %v8813
      %v8827 = vshll.u32 %v8670, 16
      %v8829 = vrot.slane %v8827, 1
      %v8830 = vsel %vm2978, %v8825, %v8829
      %v8831 = vshrl.u32 %v8669, 16
      %v8833 = vor.u32 %v8831, %v8821
      %v8835 = vshll.u32 %v8671, 16
      %v8837 = vrot.slane %v8835, 1
      %v8838 = vsel %vm2978, %v8833, %v8837
      %v8839 = vshrl.u32 %v8670, 16
      %v8841 = vor.u32 %v8839, %v8829
      %v8843 = vshll.u32 %v8672, 16
      %v8845 = vrot.slane %v8843, 1
      %v8846 = vsel %vm2978, %v8841, %v8845
      %v8847 = vshrl.u32 %v8671, 16
      %v8849 = vor.u32 %v8847, %v8837
      %v8851 = vshll.u32 %v8673, 16
      %v8853 = vrot.slane %v8851, 1
      %v8854 = vsel %vm2978, %v8849, %v8853
      %v8855 = vshrl.u32 %v8672, 16
      %v8857 = vor.u32 %v8855, %v8845
      %v8859 = vshll.u32 %v8674, 16
      %v8861 = vrot.slane %v8859, 1
      %v8862 = vsel %vm2978, %v8857, %v8861
      %v8863 = vshrl.u32 %v8673, 16
      %v8865 = vor.u32 %v8863, %v8853
      %v8867 = vshll.u32 %v8675, 16
      %v8869 = vrot.slane %v8867, 1
      %v8870 = vsel %vm2978, %v8865, %v8869
      %v8871 = vshrl.u32 %v8674, 16
      %v8873 = vor.u32 %v8871, %v8861
      %v8875 = vshll.u32 %v8676, 16
      %v8877 = vrot.slane %v8875, 1
      %v8878 = vsel %vm2978, %v8873, %v8877
      %v8879 = vshrl.u32 %v8675, 16
      %v8881 = vor.u32 %v8879, %v8869
      %v8883 = vshll.u32 %v8677, 16
      %v8885 = vrot.slane %v8883, 1
      %v8886 = vsel %vm2978, %v8881, %v8885
      %v8887 = vshrl.u32 %v8676, 16
      %v8889 = vor.u32 %v8887, %v8877
      %v8891 = vshll.u32 %v8678, 16
      %v8893 = vrot.slane %v8891, 1
      %v8894 = vsel %vm2978, %v8889, %v8893
      %v8895 = vshrl.u32 %v8677, 16
      %v8897 = vor.u32 %v8895, %v8885
      %v8899 = vshll.u32 %v8679, 16
      %v8901 = vrot.slane %v8899, 1
      %v8902 = vsel %vm2978, %v8897, %v8901
      %v8903 = vshrl.u32 %v8678, 16
      %v8905 = vor.u32 %v8903, %v8893
      %v8907 = vshll.u32 %v8680, 16
      %v8909 = vrot.slane %v8907, 1
      %v8910 = vsel %vm2978, %v8905, %v8909
      %v8911 = vshrl.u32 %v8679, 16
      %v8913 = vor.u32 %v8911, %v8901
      %v8915 = vshll.u32 %v8681, 16
      %v8917 = vrot.slane %v8915, 1
      %v8918 = vsel %vm2978, %v8913, %v8917
      %v8919 = vshrl.u32 %v8680, 16
      %v8921 = vor.u32 %v8919, %v8909
      %v8923 = vshll.u32 %v8682, 16
      %v8925 = vrot.slane %v8923, 1
      %v8926 = vsel %vm2978, %v8921, %v8925
      %v8927 = vshrl.u32 %v8681, 16
      %v8929 = vor.u32 %v8927, %v8917
      %v8931 = vshll.u32 %v8683, 16
      %v8933 = vrot.slane %v8931, 1
      %v8934 = vsel %vm2978, %v8929, %v8933
      %v8935 = vshrl.u32 %v8682, 16
      %v8937 = vor.u32 %v8935, %v8925
      %v8939 = vshll.u32 %v8684, 16
      %v8941 = vrot.slane %v8939, 1
      %v8942 = vsel %vm2978, %v8937, %v8941
      %v8943 = vshrl.u32 %v8683, 16
      %v8945 = vor.u32 %v8943, %v8933
      %v8947 = vshll.u32 %v8685, 16
      %v8949 = vrot.slane %v8947, 1
      %v8950 = vsel %vm2978, %v8945, %v8949
      %v8951 = vshrl.u32 %v8684, 16
      %v8953 = vor.u32 %v8951, %v8941
      %v8955 = vshll.u32 %v8686, 16
      %v8957 = vrot.slane %v8955, 1
      %v8958 = vsel %vm2978, %v8953, %v8957
      %v8959 = vshrl.u32 %v8685, 16
      %v8961 = vor.u32 %v8959, %v8949
      %v8963 = vshll.u32 %v8687, 16
      %v8965 = vrot.slane %v8963, 1
      %v8966 = vsel %vm2978, %v8961, %v8965
      %v8967 = vshrl.u32 %v8686, 16
      %v8969 = vor.u32 %v8967, %v8957
      %v8971 = vshll.u32 %v8688, 16
      %v8973 = vrot.slane %v8971, 1
      %v8974 = vsel %vm2978, %v8969, %v8973
      %v8975 = vshrl.u32 %v8687, 16
      %v8977 = vor.u32 %v8975, %v8965
      %v8979 = vshll.u32 %v8689, 16
      %v8981 = vrot.slane %v8979, 1
      %v8982 = vsel %vm2978, %v8977, %v8981
      %v8983 = vshrl.u32 %v8688, 16
      %v8985 = vor.u32 %v8983, %v8973
      %v8987 = vshll.u32 %v8690, 16
      %v8989 = vrot.slane %v8987, 1
      %v8990 = vsel %vm2978, %v8985, %v8989
      %v8991 = vshrl.u32 %v8689, 16
      %v8993 = vor.u32 %v8991, %v8981
      %v8995 = vshll.u32 %v8691, 16
      %v8997 = vrot.slane %v8995, 1
      %v8998 = vsel %vm2978, %v8993, %v8997
      %v8999 = vshrl.u32 %v8690, 16
      %v9001 = vor.u32 %v8999, %v8989
      %v9003 = vshll.u32 %v8692, 16
      %v9005 = vrot.slane %v9003, 1
      %v9006 = vsel %vm2978, %v9001, %v9005
      %v9007 = vshrl.u32 %v8691, 16
      %v9009 = vor.u32 %v9007, %v8997
      %v9011 = vshll.u32 %v8693, 16
      %v9013 = vrot.slane %v9011, 1
      %v9014 = vsel %vm2978, %v9009, %v9013
      %v9015 = vshrl.u32 %v8692, 16
      %v9017 = vor.u32 %v9015, %v9005
      %v9019 = vshll.u32 %v8732, 16
      %v9021 = vrot.slane %v9019, 1
      %v9022 = vsel %vm2978, %v9017, %v9021
      %v9023 = vshrl.u32 %v8693, 16
      %v9025 = vor.u32 %v9023, %v9013
      %v9027 = vshll.u32 %v8733, 16
      %v9029 = vrot.slane %v9027, 1
      %v9030 = vsel %vm2978, %v9025, %v9029
      %v9095 = vunpack.c.l.b16 %v8735
      %v9096 = vunpack.c.h.b16 %v8735
      %v9097 = vunpack.c.l.b16 %v8736
      %v9098 = vunpack.c.h.b16 %v8736
      %v9099 = vunpack.c.l.b16 %v8737
      %v9100 = vunpack.c.h.b16 %v8737
      %v9101 = vunpack.c.l.b16 %v8738
      %v9102 = vunpack.c.h.b16 %v8738
      %v9103 = vunpack.c.l.b16 %v8739
      %v9104 = vunpack.c.h.b16 %v8739
      %v9105 = vunpack.c.l.b16 %v8740
      %v9106 = vunpack.c.h.b16 %v8740
      %v9107 = vunpack.c.l.b16 %v8741
      %v9108 = vunpack.c.h.b16 %v8741
      %v9109 = vunpack.c.l.b16 %v8742
      %v9110 = vunpack.c.h.b16 %v8742
      %v9111 = vunpack.c.l.b16 %v8743
      %v9112 = vunpack.c.h.b16 %v8743
      %v9113 = vunpack.c.l.b16 %v8744
      %v9114 = vunpack.c.h.b16 %v8744
      %v9115 = vunpack.c.l.b16 %v8745
      %v9116 = vunpack.c.h.b16 %v8745
      %v9117 = vunpack.c.l.b16 %v8746
      %v9118 = vunpack.c.h.b16 %v8746
      %v9119 = vunpack.c.l.b16 %v8747
      %v9120 = vunpack.c.h.b16 %v8747
      %v9121 = vunpack.c.l.b16 %v8748
      %v9122 = vunpack.c.h.b16 %v8748
      %v9123 = vunpack.c.l.b16 %v8749
      %v9124 = vunpack.c.h.b16 %v8749
      %v9125 = vunpack.c.l.b16 %v8750
      %v9126 = vunpack.c.h.b16 %v8750
      %v9127 = vunpack.c.l.b16 %v8751
      %v9128 = vunpack.c.h.b16 %v8751
      %v9129 = vunpack.c.l.b16 %v8752
      %v9130 = vunpack.c.h.b16 %v8752
      %v9131 = vunpack.c.l.b16 %v8753
      %v9132 = vunpack.c.h.b16 %v8753
      %v9133 = vunpack.c.l.b16 %v8754
      %v9134 = vunpack.c.h.b16 %v8754
      %v9135 = vunpack.c.l.b16 %v8755
      %v9136 = vunpack.c.h.b16 %v8755
      %v9137 = vunpack.c.l.b16 %v8756
      %v9138 = vunpack.c.h.b16 %v8756
      %v9139 = vunpack.c.l.b16 %v8757
      %v9140 = vunpack.c.h.b16 %v8757
      %v9141 = vunpack.c.l.b16 %v8758
      %v9142 = vunpack.c.h.b16 %v8758
      %v9143 = vunpack.c.l.b16 %v8759
      %v9144 = vunpack.c.h.b16 %v8759
      %v9145 = vunpack.c.l.b16 %v8760
      %v9146 = vunpack.c.h.b16 %v8760
      %v9147 = vunpack.c.l.b16 %v8761
      %v9148 = vunpack.c.h.b16 %v8761
      %v9149 = vunpack.c.l.b16 %v8762
      %v9150 = vunpack.c.h.b16 %v8762
      %v9151 = vunpack.c.l.b16 %v8763
      %v9152 = vunpack.c.h.b16 %v8763
      %v9153 = vunpack.c.l.b16 %v8764
      %v9154 = vunpack.c.h.b16 %v8764
      %v9155 = vunpack.c.l.b16 %v8765
      %v9156 = vunpack.c.h.b16 %v8765
      %v9157 = vunpack.c.l.b16 %v8766
      %v9158 = vunpack.c.h.b16 %v8766
      %v9159 = vpack.c.b16 %v9097, %v9095
      %v9160 = vpack.c.b16 %v9098, %v9096
      %v9161 = vpack.c.b16 %v9101, %v9099
      %v9162 = vpack.c.b16 %v9102, %v9100
      %v9163 = vpack.c.b16 %v9105, %v9103
      %v9164 = vpack.c.b16 %v9106, %v9104
      %v9165 = vpack.c.b16 %v9109, %v9107
      %v9166 = vpack.c.b16 %v9110, %v9108
      %v9167 = vpack.c.b16 %v9113, %v9111
      %v9168 = vpack.c.b16 %v9114, %v9112
      %v9169 = vpack.c.b16 %v9117, %v9115
      %v9170 = vpack.c.b16 %v9118, %v9116
      %v9171 = vpack.c.b16 %v9121, %v9119
      %v9172 = vpack.c.b16 %v9122, %v9120
      %v9173 = vpack.c.b16 %v9125, %v9123
      %v9174 = vpack.c.b16 %v9126, %v9124
      %v9175 = vpack.c.b16 %v9129, %v9127
      %v9176 = vpack.c.b16 %v9130, %v9128
      %v9177 = vpack.c.b16 %v9133, %v9131
      %v9178 = vpack.c.b16 %v9134, %v9132
      %v9179 = vpack.c.b16 %v9137, %v9135
      %v9180 = vpack.c.b16 %v9138, %v9136
      %v9181 = vpack.c.b16 %v9141, %v9139
      %v9182 = vpack.c.b16 %v9142, %v9140
      %v9183 = vpack.c.b16 %v9145, %v9143
      %v9184 = vpack.c.b16 %v9146, %v9144
      %v9185 = vpack.c.b16 %v9149, %v9147
      %v9186 = vpack.c.b16 %v9150, %v9148
      %v9187 = vpack.c.b16 %v9153, %v9151
      %v9188 = vpack.c.b16 %v9154, %v9152
      %v9189 = vpack.c.b16 %v9157, %v9155
      %v9190 = vpack.c.b16 %v9158, %v9156
      %9223 = vmatprep.subr.bf16.mxu0 %v9160
      %9224 = vmatpush1.bf16.msra.mxu0 %v9159
      %9225 = vmatprep.subr.bf16.mxu0 %v9162
      %9226 = vmatpush1.bf16.msra.mxu0 %v9161
      %9227 = vmatprep.subr.bf16.mxu0 %v9164
      %9228 = vmatpush1.bf16.msra.mxu0 %v9163
      %9229 = vmatprep.subr.bf16.mxu0 %v9166
      %9230 = vmatpush1.bf16.msra.mxu0 %v9165
      %9231 = vmatprep.subr.bf16.mxu0 %v9168
      %9232 = vmatpush1.bf16.msra.mxu0 %v9167
      %9233 = vmatprep.subr.bf16.mxu0 %v9170
      %9234 = vmatpush1.bf16.msra.mxu0 %v9169
      %9235 = vmatprep.subr.bf16.mxu0 %v9172
      %9236 = vmatpush1.bf16.msra.mxu0 %v9171
      %9237 = vmatprep.subr.bf16.mxu0 %v9174
      %9238 = vmatpush1.bf16.msra.mxu0 %v9173
      %9239 = vmatprep.subr.bf16.mxu0 %v9176
      %9240 = vmatpush1.bf16.msra.mxu0 %v9175
      %9241 = vmatprep.subr.bf16.mxu0 %v9178
      %9242 = vmatpush1.bf16.msra.mxu0 %v9177
      %9243 = vmatprep.subr.bf16.mxu0 %v9180
      %9244 = vmatpush1.bf16.msra.mxu0 %v9179
      %9245 = vmatprep.subr.bf16.mxu0 %v9182
      %9246 = vmatpush1.bf16.msra.mxu0 %v9181
      %9247 = vmatprep.subr.bf16.mxu0 %v9184
      %9248 = vmatpush1.bf16.msra.mxu0 %v9183
      %9249 = vmatprep.subr.bf16.mxu0 %v9186
      %9250 = vmatpush1.bf16.msra.mxu0 %v9185
      %9251 = vmatprep.subr.bf16.mxu0 %v9188
      %9252 = vmatpush1.bf16.msra.mxu0 %v9187
      %9253 = vmatprep.subr.bf16.mxu0 %v9190
      %9254 = vmatpush1.bf16.msra.mxu0 %v9189
      %9255 = vmatprep.mubr.bf16.mxu0 %v8790
      %9256 = vmatmul.mubr.bf16.gmra.mrb[0].mxu0 %v8778
      %v9257 = vpop.f32.mrb[0].mxu0
      %v9258 = vadd.f32 0.0, %v9257
      %v9259 = vpop.f32.mrb[0].mxu0
      %v9260 = vadd.f32 0.0, %v9259
      %v9261 = vpop.f32.mrb[0].mxu0
      %v9262 = vadd.f32 0.0, %v9261
      %v9263 = vpop.f32.mrb[0].mxu0
      %v9264 = vadd.f32 0.0, %v9263
      %9265 = vmatprep.mubr.bf16.mxu0 %v8806
      %9266 = vmatmul.mubr.bf16.gmra.mrb[0].mxu0 %v8798
      %v9267 = vpop.f32.mrb[0].mxu0
      %v9268 = vadd.f32 0.0, %v9267
      %v9269 = vpop.f32.mrb[0].mxu0
      %v9270 = vadd.f32 0.0, %v9269
      %v9271 = vpop.f32.mrb[0].mxu0
      %v9272 = vadd.f32 0.0, %v9271
      %v9273 = vpop.f32.mrb[0].mxu0
      %v9274 = vadd.f32 0.0, %v9273
      %9275 = vmatprep.mubr.bf16.mxu0 %v8822
      %9276 = vmatmul.mubr.bf16.gmra.mrb[0].mxu0 %v8814
      %v9277 = vpop.f32.mrb[0].mxu0
      %v9278 = vadd.f32 0.0, %v9277
      %v9279 = vpop.f32.mrb[0].mxu0
      %v9280 = vadd.f32 0.0, %v9279
      %v9281 = vpop.f32.mrb[0].mxu0
      %v9282 = vadd.f32 0.0, %v9281
      %v9283 = vpop.f32.mrb[0].mxu0
      %v9284 = vadd.f32 0.0, %v9283
      %9285 = vmatprep.mubr.bf16.mxu0 %v8838
      %9286 = vmatmul.mubr.bf16.gmra.mrb[0].mxu0 %v8830
      %v9287 = vpop.f32.mrb[0].mxu0
      %v9288 = vadd.f32 0.0, %v9287
      %v9289 = vpop.f32.mrb[0].mxu0
      %v9290 = vadd.f32 0.0, %v9289
      %v9291 = vpop.f32.mrb[0].mxu0
      %v9292 = vadd.f32 0.0, %v9291
      %v9293 = vpop.f32.mrb[0].mxu0
      %v9294 = vadd.f32 0.0, %v9293
      %9295 = vmatprep.mubr.bf16.mxu0 %v8854
      %9296 = vmatmul.mubr.bf16.gmra.mrb[0].mxu0 %v8846
      %v9297 = vpop.f32.mrb[0].mxu0
      %v9298 = vadd.f32 0.0, %v9297
      %v9299 = vpop.f32.mrb[0].mxu0
      %v9300 = vadd.f32 0.0, %v9299
      %v9301 = vpop.f32.mrb[0].mxu0
      %v9302 = vadd.f32 0.0, %v9301
      %v9303 = vpop.f32.mrb[0].mxu0
      %v9304 = vadd.f32 0.0, %v9303
      %9305 = vmatprep.mubr.bf16.mxu0 %v8870
      %9306 = vmatmul.mubr.bf16.gmra.mrb[0].mxu0 %v8862
      %v9307 = vpop.f32.mrb[0].mxu0
      %v9308 = vadd.f32 0.0, %v9307
      %v9309 = vpop.f32.mrb[0].mxu0
      %v9310 = vadd.f32 0.0, %v9309
      %v9311 = vpop.f32.mrb[0].mxu0
      %v9312 = vadd.f32 0.0, %v9311
      %v9313 = vpop.f32.mrb[0].mxu0
      %v9314 = vadd.f32 0.0, %v9313
      %9315 = vmatprep.mubr.bf16.mxu0 %v8886
      %9316 = vmatmul.mubr.bf16.gmra.mrb[0].mxu0 %v8878
      %v9317 = vpop.f32.mrb[0].mxu0
      %v9318 = vadd.f32 0.0, %v9317
      %v9319 = vpop.f32.mrb[0].mxu0
      %v9320 = vadd.f32 0.0, %v9319
      %v9321 = vpop.f32.mrb[0].mxu0
      %v9322 = vadd.f32 0.0, %v9321
      %v9323 = vpop.f32.mrb[0].mxu0
      %v9324 = vadd.f32 0.0, %v9323
      %9325 = vmatprep.mubr.bf16.mxu0 %v8902
      %9326 = vmatmul.mubr.bf16.gmra.mrb[0].mxu0 %v8894
      %v9327 = vpop.f32.mrb[0].mxu0
      %v9328 = vadd.f32 0.0, %v9327
      %v9329 = vpop.f32.mrb[0].mxu0
      %v9330 = vadd.f32 0.0, %v9329
      %v9331 = vpop.f32.mrb[0].mxu0
      %v9332 = vadd.f32 0.0, %v9331
      %v9333 = vpop.f32.mrb[0].mxu0
      %v9334 = vadd.f32 0.0, %v9333
      %9335 = vmatprep.mubr.bf16.mxu0 %v8918
      %9336 = vmatmul.mubr.bf16.gmra.mrb[0].mxu0 %v8910
      %v9337 = vpop.f32.mrb[0].mxu0
      %v9338 = vadd.f32 0.0, %v9337
      %v9339 = vpop.f32.mrb[0].mxu0
      %v9340 = vadd.f32 0.0, %v9339
      %v9341 = vpop.f32.mrb[0].mxu0
      %v9342 = vadd.f32 0.0, %v9341
      %v9343 = vpop.f32.mrb[0].mxu0
      %v9344 = vadd.f32 0.0, %v9343
      %9345 = vmatprep.mubr.bf16.mxu0 %v8934
      %9346 = vmatmul.mubr.bf16.gmra.mrb[0].mxu0 %v8926
      %v9347 = vpop.f32.mrb[0].mxu0
      %v9348 = vadd.f32 0.0, %v9347
      %v9349 = vpop.f32.mrb[0].mxu0
      %v9350 = vadd.f32 0.0, %v9349
      %v9351 = vpop.f32.mrb[0].mxu0
      %v9352 = vadd.f32 0.0, %v9351
      %v9353 = vpop.f32.mrb[0].mxu0
      %v9354 = vadd.f32 0.0, %v9353
      %9355 = vmatprep.mubr.bf16.mxu0 %v8950
      %9356 = vmatmul.mubr.bf16.gmra.mrb[0].mxu0 %v8942
      %v9357 = vpop.f32.mrb[0].mxu0
      %v9358 = vadd.f32 0.0, %v9357
      %v9359 = vpop.f32.mrb[0].mxu0
      %v9360 = vadd.f32 0.0, %v9359
      %v9361 = vpop.f32.mrb[0].mxu0
      %v9362 = vadd.f32 0.0, %v9361
      %v9363 = vpop.f32.mrb[0].mxu0
      %v9364 = vadd.f32 0.0, %v9363
      %9365 = vmatprep.mubr.bf16.mxu0 %v8966
      %9366 = vmatmul.mubr.bf16.gmra.mrb[0].mxu0 %v8958
      %v9367 = vpop.f32.mrb[0].mxu0
      %v9368 = vadd.f32 0.0, %v9367
      %v9369 = vpop.f32.mrb[0].mxu0
      %v9370 = vadd.f32 0.0, %v9369
      %v9371 = vpop.f32.mrb[0].mxu0
      %v9372 = vadd.f32 0.0, %v9371
      %v9373 = vpop.f32.mrb[0].mxu0
      %v9374 = vadd.f32 0.0, %v9373
      %9375 = vmatprep.mubr.bf16.mxu0 %v8982
      %9376 = vmatmul.mubr.bf16.gmra.mrb[0].mxu0 %v8974
      %v9377 = vpop.f32.mrb[0].mxu0
      %v9378 = vadd.f32 0.0, %v9377
      %v9379 = vpop.f32.mrb[0].mxu0
      %v9380 = vadd.f32 0.0, %v9379
      %v9381 = vpop.f32.mrb[0].mxu0
      %v9382 = vadd.f32 0.0, %v9381
      %v9383 = vpop.f32.mrb[0].mxu0
      %v9384 = vadd.f32 0.0, %v9383
      %9385 = vmatprep.mubr.bf16.mxu0 %v8998
      %9386 = vmatmul.mubr.bf16.gmra.mrb[0].mxu0 %v8990
      %v9387 = vpop.f32.mrb[0].mxu0
      %v9388 = vadd.f32 0.0, %v9387
      %v9389 = vpop.f32.mrb[0].mxu0
      %v9390 = vadd.f32 0.0, %v9389
      %v9391 = vpop.f32.mrb[0].mxu0
      %v9392 = vadd.f32 0.0, %v9391
      %v9393 = vpop.f32.mrb[0].mxu0
      %v9394 = vadd.f32 0.0, %v9393
      %9395 = vmatprep.mubr.bf16.mxu0 %v9014
      %9396 = vmatmul.mubr.bf16.gmra.mrb[0].mxu0 %v9006
      %v9397 = vpop.f32.mrb[0].mxu0
      %v9398 = vadd.f32 0.0, %v9397
      %v9399 = vpop.f32.mrb[0].mxu0
      %v9400 = vadd.f32 0.0, %v9399
      %v9401 = vpop.f32.mrb[0].mxu0
      %v9402 = vadd.f32 0.0, %v9401
      %v9403 = vpop.f32.mrb[0].mxu0
      %v9404 = vadd.f32 0.0, %v9403
      %9405 = vmatprep.mubr.bf16.mxu0 %v9030
      %9406 = vmatmul.mubr.bf16.gmra.mrb[0].mxu0 %v9022
      %v9407 = vpop.f32.mrb[0].mxu0
      %v9408 = vadd.f32 0.0, %v9407
      %v9409 = vpop.f32.mrb[0].mxu0
      %v9410 = vadd.f32 0.0, %v9409
      %v9411 = vpop.f32.mrb[0].mxu0
      %v9412 = vadd.f32 0.0, %v9411
      %v9413 = vpop.f32.mrb[0].mxu0
      %v9414 = vadd.f32 0.0, %v9413
      %9415 = vdwg.mxu0
      %v9448 = vunpack.c.l.b16 %v8694
      %v9449 = vunpack.c.h.b16 %v8694
      %v9450 = vunpack.c.l.b16 %v8695
      %v9451 = vunpack.c.h.b16 %v8695
      %v9452 = vunpack.c.l.b16 %v8696
      %v9453 = vunpack.c.h.b16 %v8696
      %v9454 = vunpack.c.l.b16 %v8697
      %v9455 = vunpack.c.h.b16 %v8697
      %v9456 = vunpack.c.l.b16 %v8698
      %v9457 = vunpack.c.h.b16 %v8698
      %v9458 = vunpack.c.l.b16 %v8699
      %v9459 = vunpack.c.h.b16 %v8699
      %v9460 = vunpack.c.l.b16 %v8700
      %v9461 = vunpack.c.h.b16 %v8700
      %v9462 = vunpack.c.l.b16 %v8701
      %v9463 = vunpack.c.h.b16 %v8701
      %v9464 = vunpack.c.l.b16 %v8702
      %v9465 = vunpack.c.h.b16 %v8702
      %v9466 = vunpack.c.l.b16 %v8703
      %v9467 = vunpack.c.h.b16 %v8703
      %v9468 = vunpack.c.l.b16 %v8704
      %v9469 = vunpack.c.h.b16 %v8704
      %v9470 = vunpack.c.l.b16 %v8705
      %v9471 = vunpack.c.h.b16 %v8705
      %v9472 = vunpack.c.l.b16 %v8706
      %v9473 = vunpack.c.h.b16 %v8706
      %v9474 = vunpack.c.l.b16 %v8707
      %v9475 = vunpack.c.h.b16 %v8707
      %v9476 = vunpack.c.l.b16 %v8708
      %v9477 = vunpack.c.h.b16 %v8708
      %v9478 = vunpack.c.l.b16 %v8709
      %v9479 = vunpack.c.h.b16 %v8709
      %v9480 = vunpack.c.l.b16 %v8710
      %v9481 = vunpack.c.h.b16 %v8710
      %v9482 = vunpack.c.l.b16 %v8711
      %v9483 = vunpack.c.h.b16 %v8711
      %v9484 = vunpack.c.l.b16 %v8712
      %v9485 = vunpack.c.h.b16 %v8712
      %v9486 = vunpack.c.l.b16 %v8713
      %v9487 = vunpack.c.h.b16 %v8713
      %v9488 = vunpack.c.l.b16 %v8714
      %v9489 = vunpack.c.h.b16 %v8714
      %v9490 = vunpack.c.l.b16 %v8715
      %v9491 = vunpack.c.h.b16 %v8715
      %v9492 = vunpack.c.l.b16 %v8716
      %v9493 = vunpack.c.h.b16 %v8716
      %v9494 = vunpack.c.l.b16 %v8717
      %v9495 = vunpack.c.h.b16 %v8717
      %v9496 = vunpack.c.l.b16 %v8718
      %v9497 = vunpack.c.h.b16 %v8718
      %v9498 = vunpack.c.l.b16 %v8719
      %v9499 = vunpack.c.h.b16 %v8719
      %v9500 = vunpack.c.l.b16 %v8720
      %v9501 = vunpack.c.h.b16 %v8720
      %v9502 = vunpack.c.l.b16 %v8721
      %v9503 = vunpack.c.h.b16 %v8721
      %v9504 = vunpack.c.l.b16 %v8722
      %v9505 = vunpack.c.h.b16 %v8722
      %v9506 = vunpack.c.l.b16 %v8723
      %v9507 = vunpack.c.h.b16 %v8723
      %v9508 = vunpack.c.l.b16 %v8724
      %v9509 = vunpack.c.h.b16 %v8724
      %v9510 = vunpack.c.l.b16 %v8725
      %v9511 = vunpack.c.h.b16 %v8725
      %v9512 = vpack.c.b16 %v9450, %v9448
      %v9513 = vpack.c.b16 %v9451, %v9449
      %v9514 = vpack.c.b16 %v9454, %v9452
      %v9515 = vpack.c.b16 %v9455, %v9453
      %v9516 = vpack.c.b16 %v9458, %v9456
      %v9517 = vpack.c.b16 %v9459, %v9457
      %v9518 = vpack.c.b16 %v9462, %v9460
      %v9519 = vpack.c.b16 %v9463, %v9461
      %v9520 = vpack.c.b16 %v9466, %v9464
      %v9521 = vpack.c.b16 %v9467, %v9465
      %v9522 = vpack.c.b16 %v9470, %v9468
      %v9523 = vpack.c.b16 %v9471, %v9469
      %v9524 = vpack.c.b16 %v9474, %v9472
      %v9525 = vpack.c.b16 %v9475, %v9473
      %v9526 = vpack.c.b16 %v9478, %v9476
      %v9527 = vpack.c.b16 %v9479, %v9477
      %v9528 = vpack.c.b16 %v9482, %v9480
      %v9529 = vpack.c.b16 %v9483, %v9481
      %v9530 = vpack.c.b16 %v9486, %v9484
      %v9531 = vpack.c.b16 %v9487, %v9485
      %v9532 = vpack.c.b16 %v9490, %v9488
      %v9533 = vpack.c.b16 %v9491, %v9489
      %v9534 = vpack.c.b16 %v9494, %v9492
      %v9535 = vpack.c.b16 %v9495, %v9493
      %v9536 = vpack.c.b16 %v9498, %v9496
      %v9537 = vpack.c.b16 %v9499, %v9497
      %v9538 = vpack.c.b16 %v9502, %v9500
      %v9539 = vpack.c.b16 %v9503, %v9501
      %v9540 = vpack.c.b16 %v9506, %v9504
      %v9541 = vpack.c.b16 %v9507, %v9505
      %v9542 = vpack.c.b16 %v9510, %v9508
      %v9543 = vpack.c.b16 %v9511, %v9509
      %9576 = vmatprep.subr.bf16.mxu0 %v9513
      %9577 = vmatpush1.bf16.msra.mxu0 %v9512
      %9578 = vmatprep.subr.bf16.mxu0 %v9515
      %9579 = vmatpush1.bf16.msra.mxu0 %v9514
      %9580 = vmatprep.subr.bf16.mxu0 %v9517
      %9581 = vmatpush1.bf16.msra.mxu0 %v9516
      %9582 = vmatprep.subr.bf16.mxu0 %v9519
      %9583 = vmatpush1.bf16.msra.mxu0 %v9518
      %9584 = vmatprep.subr.bf16.mxu0 %v9521
      %9585 = vmatpush1.bf16.msra.mxu0 %v9520
      %9586 = vmatprep.subr.bf16.mxu0 %v9523
      %9587 = vmatpush1.bf16.msra.mxu0 %v9522
      %9588 = vmatprep.subr.bf16.mxu0 %v9525
      %9589 = vmatpush1.bf16.msra.mxu0 %v9524
      %9590 = vmatprep.subr.bf16.mxu0 %v9527
      %9591 = vmatpush1.bf16.msra.mxu0 %v9526
      %9592 = vmatprep.subr.bf16.mxu0 %v9529
      %9593 = vmatpush1.bf16.msra.mxu0 %v9528
      %9594 = vmatprep.subr.bf16.mxu0 %v9531
      %9595 = vmatpush1.bf16.msra.mxu0 %v9530
      %9596 = vmatprep.subr.bf16.mxu0 %v9533
      %9597 = vmatpush1.bf16.msra.mxu0 %v9532
      %9598 = vmatprep.subr.bf16.mxu0 %v9535
      %9599 = vmatpush1.bf16.msra.mxu0 %v9534
      %9600 = vmatprep.subr.bf16.mxu0 %v9537
      %9601 = vmatpush1.bf16.msra.mxu0 %v9536
      %9602 = vmatprep.subr.bf16.mxu0 %v9539
      %9603 = vmatpush1.bf16.msra.mxu0 %v9538
      %9604 = vmatprep.subr.bf16.mxu0 %v9541
      %9605 = vmatpush1.bf16.msra.mxu0 %v9540
      %9606 = vmatprep.subr.bf16.mxu0 %v9543
      %9607 = vmatpush1.bf16.msra.mxu0 %v9542
      %9608 = vmatprep.mubr.bf16.mxu0 %v8663
      %9609 = vmatmul.mubr.bf16.gmra.mrb[0].mxu0 %v8662
      %v9610 = vpop.f32.mrb[0].mxu0
      %v9611 = vadd.f32 %v9258, %v9610
      %v9612 = vpop.f32.mrb[0].mxu0
      %v9613 = vadd.f32 %v9260, %v9612
      %v9614 = vpop.f32.mrb[0].mxu0
      %v9615 = vadd.f32 %v9262, %v9614
      %v9616 = vpop.f32.mrb[0].mxu0
      %v9617 = vadd.f32 %v9264, %v9616
      %9618 = vmatprep.mubr.bf16.mxu0 %v8665
      %9619 = vmatmul.mubr.bf16.gmra.mrb[0].mxu0 %v8664
      %v9620 = vpop.f32.mrb[0].mxu0
      %v9621 = vadd.f32 %v9268, %v9620
      %v9622 = vpop.f32.mrb[0].mxu0
      %v9623 = vadd.f32 %v9270, %v9622
      %v9624 = vpop.f32.mrb[0].mxu0
      %v9625 = vadd.f32 %v9272, %v9624
      %v9626 = vpop.f32.mrb[0].mxu0
      %v9627 = vadd.f32 %v9274, %v9626
      %9628 = vmatprep.mubr.bf16.mxu0 %v8667
      %9629 = vmatmul.mubr.bf16.gmra.mrb[0].mxu0 %v8666
      %v9630 = vpop.f32.mrb[0].mxu0
      %v9631 = vadd.f32 %v9278, %v9630
      %v9632 = vpop.f32.mrb[0].mxu0
      %v9633 = vadd.f32 %v9280, %v9632
      %v9634 = vpop.f32.mrb[0].mxu0
      %v9635 = vadd.f32 %v9282, %v9634
      %v9636 = vpop.f32.mrb[0].mxu0
      %v9637 = vadd.f32 %v9284, %v9636
      %9638 = vmatprep.mubr.bf16.mxu0 %v8669
      %9639 = vmatmul.mubr.bf16.gmra.mrb[0].mxu0 %v8668
      %v9640 = vpop.f32.mrb[0].mxu0
      %v9641 = vadd.f32 %v9288, %v9640
      %v9642 = vpop.f32.mrb[0].mxu0
      %v9643 = vadd.f32 %v9290, %v9642
      %v9644 = vpop.f32.mrb[0].mxu0
      %v9645 = vadd.f32 %v9292, %v9644
      %v9646 = vpop.f32.mrb[0].mxu0
      %v9647 = vadd.f32 %v9294, %v9646
      %9648 = vmatprep.mubr.bf16.mxu0 %v8671
      %9649 = vmatmul.mubr.bf16.gmra.mrb[0].mxu0 %v8670
      %v9650 = vpop.f32.mrb[0].mxu0
      %v9651 = vadd.f32 %v9298, %v9650
      %v9652 = vpop.f32.mrb[0].mxu0
      %v9653 = vadd.f32 %v9300, %v9652
      %v9654 = vpop.f32.mrb[0].mxu0
      %v9655 = vadd.f32 %v9302, %v9654
      %v9656 = vpop.f32.mrb[0].mxu0
      %v9657 = vadd.f32 %v9304, %v9656
      %9658 = vmatprep.mubr.bf16.mxu0 %v8673
      %9659 = vmatmul.mubr.bf16.gmra.mrb[0].mxu0 %v8672
      %v9660 = vpop.f32.mrb[0].mxu0
      %v9661 = vadd.f32 %v9308, %v9660
      %v9662 = vpop.f32.mrb[0].mxu0
      %v9663 = vadd.f32 %v9310, %v9662
      %v9664 = vpop.f32.mrb[0].mxu0
      %v9665 = vadd.f32 %v9312, %v9664
      %v9666 = vpop.f32.mrb[0].mxu0
      %v9667 = vadd.f32 %v9314, %v9666
      %9668 = vmatprep.mubr.bf16.mxu0 %v8675
      %9669 = vmatmul.mubr.bf16.gmra.mrb[0].mxu0 %v8674
      %v9670 = vpop.f32.mrb[0].mxu0
      %v9671 = vadd.f32 %v9318, %v9670
      %v9672 = vpop.f32.mrb[0].mxu0
      %v9673 = vadd.f32 %v9320, %v9672
      %v9674 = vpop.f32.mrb[0].mxu0
      %v9675 = vadd.f32 %v9322, %v9674
      %v9676 = vpop.f32.mrb[0].mxu0
      %v9677 = vadd.f32 %v9324, %v9676
      %9678 = vmatprep.mubr.bf16.mxu0 %v8677
      %9679 = vmatmul.mubr.bf16.gmra.mrb[0].mxu0 %v8676
      %v9680 = vpop.f32.mrb[0].mxu0
      %v9681 = vadd.f32 %v9328, %v9680
      %v9682 = vpop.f32.mrb[0].mxu0
      %v9683 = vadd.f32 %v9330, %v9682
      %v9684 = vpop.f32.mrb[0].mxu0
      %v9685 = vadd.f32 %v9332, %v9684
      %v9686 = vpop.f32.mrb[0].mxu0
      %v9687 = vadd.f32 %v9334, %v9686
      %9688 = vmatprep.mubr.bf16.mxu0 %v8679
      %9689 = vmatmul.mubr.bf16.gmra.mrb[0].mxu0 %v8678
      %v9690 = vpop.f32.mrb[0].mxu0
      %v9691 = vadd.f32 %v9338, %v9690
      %v9692 = vpop.f32.mrb[0].mxu0
      %v9693 = vadd.f32 %v9340, %v9692
      %v9694 = vpop.f32.mrb[0].mxu0
      %v9695 = vadd.f32 %v9342, %v9694
      %v9696 = vpop.f32.mrb[0].mxu0
      %v9697 = vadd.f32 %v9344, %v9696
      %9698 = vmatprep.mubr.bf16.mxu0 %v8681
      %9699 = vmatmul.mubr.bf16.gmra.mrb[0].mxu0 %v8680
      %v9700 = vpop.f32.mrb[0].mxu0
      %v9701 = vadd.f32 %v9348, %v9700
      %v9702 = vpop.f32.mrb[0].mxu0
      %v9703 = vadd.f32 %v9350, %v9702
      %v9704 = vpop.f32.mrb[0].mxu0
      %v9705 = vadd.f32 %v9352, %v9704
      %v9706 = vpop.f32.mrb[0].mxu0
      %v9707 = vadd.f32 %v9354, %v9706
      %9708 = vmatprep.mubr.bf16.mxu0 %v8683
      %9709 = vmatmul.mubr.bf16.gmra.mrb[0].mxu0 %v8682
      %v9710 = vpop.f32.mrb[0].mxu0
      %v9711 = vadd.f32 %v9358, %v9710
      %v9712 = vpop.f32.mrb[0].mxu0
      %v9713 = vadd.f32 %v9360, %v9712
      %v9714 = vpop.f32.mrb[0].mxu0
      %v9715 = vadd.f32 %v9362, %v9714
      %v9716 = vpop.f32.mrb[0].mxu0
      %v9717 = vadd.f32 %v9364, %v9716
      %9718 = vmatprep.mubr.bf16.mxu0 %v8685
      %9719 = vmatmul.mubr.bf16.gmra.mrb[0].mxu0 %v8684
      %v9720 = vpop.f32.mrb[0].mxu0
      %v9721 = vadd.f32 %v9368, %v9720
      %v9722 = vpop.f32.mrb[0].mxu0
      %v9723 = vadd.f32 %v9370, %v9722
      %v9724 = vpop.f32.mrb[0].mxu0
      %v9725 = vadd.f32 %v9372, %v9724
      %v9726 = vpop.f32.mrb[0].mxu0
      %v9727 = vadd.f32 %v9374, %v9726
      %9728 = vmatprep.mubr.bf16.mxu0 %v8687
      %9729 = vmatmul.mubr.bf16.gmra.mrb[0].mxu0 %v8686
      %v9730 = vpop.f32.mrb[0].mxu0
      %v9731 = vadd.f32 %v9378, %v9730
      %v9732 = vpop.f32.mrb[0].mxu0
      %v9733 = vadd.f32 %v9380, %v9732
      %v9734 = vpop.f32.mrb[0].mxu0
      %v9735 = vadd.f32 %v9382, %v9734
      %v9736 = vpop.f32.mrb[0].mxu0
      %v9737 = vadd.f32 %v9384, %v9736
      %9738 = vmatprep.mubr.bf16.mxu0 %v8689
      %9739 = vmatmul.mubr.bf16.gmra.mrb[0].mxu0 %v8688
      %v9740 = vpop.f32.mrb[0].mxu0
      %v9741 = vadd.f32 %v9388, %v9740
      %v9742 = vpop.f32.mrb[0].mxu0
      %v9743 = vadd.f32 %v9390, %v9742
      %v9744 = vpop.f32.mrb[0].mxu0
      %v9745 = vadd.f32 %v9392, %v9744
      %v9746 = vpop.f32.mrb[0].mxu0
      %v9747 = vadd.f32 %v9394, %v9746
      %9748 = vmatprep.mubr.bf16.mxu0 %v8691
      %9749 = vmatmul.mubr.bf16.gmra.mrb[0].mxu0 %v8690
      %v9750 = vpop.f32.mrb[0].mxu0
      %v9751 = vadd.f32 %v9398, %v9750
      %v9752 = vpop.f32.mrb[0].mxu0
      %v9753 = vadd.f32 %v9400, %v9752
      %v9754 = vpop.f32.mrb[0].mxu0
      %v9755 = vadd.f32 %v9402, %v9754
      %v9756 = vpop.f32.mrb[0].mxu0
      %v9757 = vadd.f32 %v9404, %v9756
      %9758 = vmatprep.mubr.bf16.mxu0 %v8693
      %9759 = vmatmul.mubr.bf16.gmra.mrb[0].mxu0 %v8692
      %v9760 = vpop.f32.mrb[0].mxu0
      %v9761 = vadd.f32 %v9408, %v9760
      %v9762 = vpop.f32.mrb[0].mxu0
      %v9763 = vadd.f32 %v9410, %v9762
      %v9764 = vpop.f32.mrb[0].mxu0
      %v9765 = vadd.f32 %v9412, %v9764
      %v9766 = vpop.f32.mrb[0].mxu0
      %v9767 = vadd.f32 %v9414, %v9766
      %9768 = vdwg.mxu0
      %v9769 = vld [vmem:[#allocation3 + $0x20] sm:$0xff]
      %v9770 = vld [vmem:[#allocation3 + $0x28] sm:$0xff]
      %v9771 = vld [vmem:[#allocation3 + $0x30] sm:$0xff]
      %v9772 = vld [vmem:[#allocation3 + $0x38] sm:$0xff]
      %v9773 = vld [vmem:[#allocation3 + $0x40] sm:$0xff]
      %v9774 = vld [vmem:[#allocation3 + $0x48] sm:$0xff]
      %v9775 = vld [vmem:[#allocation3 + $0x50] sm:$0xff]
      %v9776 = vld [vmem:[#allocation3 + $0x58] sm:$0xff]
      %v9777 = vld [vmem:[#allocation3 + $0x60] sm:$0xff]
      %v9778 = vld [vmem:[#allocation3 + $0x68] sm:$0xff]
      %v9779 = vld [vmem:[#allocation3 + $0x70] sm:$0xff]
      %v9780 = vld [vmem:[#allocation3 + $0x78] sm:$0xff]
      %v9781 = vld [vmem:[#allocation3 + $0x80] sm:$0xff]
      %v9782 = vld [vmem:[#allocation3 + $0x88] sm:$0xff]
      %v9783 = vld [vmem:[#allocation3 + $0x90] sm:$0xff]
      %v9784 = vld [vmem:[#allocation3 + $0x98] sm:$0xff]
      %v9785 = vld [vmem:[#allocation3 + $0xa0] sm:$0xff]
      %v9786 = vld [vmem:[#allocation3 + $0xa8] sm:$0xff]
      %v9787 = vld [vmem:[#allocation3 + $0xb0] sm:$0xff]
      %v9788 = vld [vmem:[#allocation3 + $0xb8] sm:$0xff]
      %v9789 = vld [vmem:[#allocation3 + $0xc0] sm:$0xff]
      %v9790 = vld [vmem:[#allocation3 + $0xc8] sm:$0xff]
      %v9791 = vld [vmem:[#allocation3 + $0xd0] sm:$0xff]
      %v9792 = vld [vmem:[#allocation3 + $0xd8] sm:$0xff]
      %v9793 = vld [vmem:[#allocation3 + $0xe0] sm:$0xff]
      %v9794 = vld [vmem:[#allocation3 + $0xe8] sm:$0xff]
      %v9795 = vld [vmem:[#allocation3 + $0xf0] sm:$0xff]
      %v9796 = vld [vmem:[#allocation3 + $0xf8] sm:$0xff]
      %v9797 = vld [vmem:[#allocation3 + $0x100] sm:$0xff]
      %v9798 = vld [vmem:[#allocation3 + $0x108] sm:$0xff]
      %v9799 = vld [vmem:[#allocation3 + $0x110] sm:$0xff]
      %v9800 = vld [vmem:[#allocation3 + $0x118] sm:$0xff]
      %v9801 = vld [vmem:[#allocation3 + $0x120] sm:$0xff]
      %v9802 = vld [vmem:[#allocation3 + $0x128] sm:$0xff]
      %v9803 = vld [vmem:[#allocation3 + $0x130] sm:$0xff]
      %v9804 = vld [vmem:[#allocation3 + $0x138] sm:$0xff]
      %v9805 = vld [vmem:[#allocation3 + $0x140] sm:$0xff]
      %v9806 = vld [vmem:[#allocation3 + $0x148] sm:$0xff]
      %v9807 = vld [vmem:[#allocation3 + $0x150] sm:$0xff]
      %v9808 = vld [vmem:[#allocation3 + $0x158] sm:$0xff]
      %v9809 = vld [vmem:[#allocation3 + $0x160] sm:$0xff]
      %v9810 = vld [vmem:[#allocation3 + $0x168] sm:$0xff]
      %v9811 = vld [vmem:[#allocation3 + $0x170] sm:$0xff]
      %v9812 = vld [vmem:[#allocation3 + $0x178] sm:$0xff]
      %v9813 = vld [vmem:[#allocation3 + $0x180] sm:$0xff]
      %v9814 = vld [vmem:[#allocation3 + $0x188] sm:$0xff]
      %v9815 = vld [vmem:[#allocation3 + $0x190] sm:$0xff]
      %v9816 = vld [vmem:[#allocation3 + $0x198] sm:$0xff]
      %v9817 = vld [vmem:[#allocation3 + $0x1a0] sm:$0xff]
      %v9818 = vld [vmem:[#allocation3 + $0x1a8] sm:$0xff]
      %v9819 = vld [vmem:[#allocation3 + $0x1b0] sm:$0xff]
      %v9820 = vld [vmem:[#allocation3 + $0x1b8] sm:$0xff]
      %v9821 = vld [vmem:[#allocation3 + $0x1c0] sm:$0xff]
      %v9822 = vld [vmem:[#allocation3 + $0x1c8] sm:$0xff]
      %v9823 = vld [vmem:[#allocation3 + $0x1d0] sm:$0xff]
      %v9824 = vld [vmem:[#allocation3 + $0x1d8] sm:$0xff]
      %v9825 = vld [vmem:[#allocation3 + $0x1e0] sm:$0xff]
      %v9826 = vld [vmem:[#allocation3 + $0x1e8] sm:$0xff]
      %v9827 = vld [vmem:[#allocation3 + $0x1f0] sm:$0xff]
      %v9828 = vld [vmem:[#allocation3 + $0x1f8] sm:$0xff]
      %v9829 = vld [vmem:[#allocation3 + $0x200] sm:$0xff]
      %v9830 = vld [vmem:[#allocation3 + $0x208] sm:$0xff]
      %v9831 = vld [vmem:[#allocation3 + $0x210] sm:$0xff]
      %v9832 = vld [vmem:[#allocation3 + $0x218] sm:$0xff]
      %v9833 = vpack.c.bf16 %v9771, %v9769
      %v9834 = vpack.c.bf16 %v9772, %v9770
      %v9835 = vpack.c.bf16 %v9775, %v9773
      %v9836 = vpack.c.bf16 %v9776, %v9774
      %v9837 = vpack.c.bf16 %v9779, %v9777
      %v9838 = vpack.c.bf16 %v9780, %v9778
      %v9839 = vpack.c.bf16 %v9783, %v9781
      %v9840 = vpack.c.bf16 %v9784, %v9782
      %v9841 = vpack.c.bf16 %v9787, %v9785
      %v9842 = vpack.c.bf16 %v9788, %v9786
      %v9843 = vpack.c.bf16 %v9791, %v9789
      %v9844 = vpack.c.bf16 %v9792, %v9790
      %v9845 = vpack.c.bf16 %v9795, %v9793
      %v9846 = vpack.c.bf16 %v9796, %v9794
      %v9847 = vpack.c.bf16 %v9799, %v9797
      %v9848 = vpack.c.bf16 %v9800, %v9798
      %v9849 = vpack.c.bf16 %v9803, %v9801
      %v9850 = vpack.c.bf16 %v9804, %v9802
      %v9851 = vpack.c.bf16 %v9807, %v9805
      %v9852 = vpack.c.bf16 %v9808, %v9806
      %v9853 = vpack.c.bf16 %v9811, %v9809
      %v9854 = vpack.c.bf16 %v9812, %v9810
      %v9855 = vpack.c.bf16 %v9815, %v9813
      %v9856 = vpack.c.bf16 %v9816, %v9814
      %v9857 = vpack.c.bf16 %v9819, %v9817
      %v9858 = vpack.c.bf16 %v9820, %v9818
      %v9859 = vpack.c.bf16 %v9823, %v9821
      %v9860 = vpack.c.bf16 %v9824, %v9822
      %v9861 = vpack.c.bf16 %v9827, %v9825
      %v9862 = vpack.c.bf16 %v9828, %v9826
      %v9863 = vpack.c.bf16 %v9831, %v9829
      %v9864 = vpack.c.bf16 %v9832, %v9830
      %s9865 = scalar_lea.vmem %s5, 512
      %v9866 = vld [vmem:[%s9865] sm:$0xff]
      %v9867 = vld [vmem:[%s9865 + $0x8] sm:$0xff]
      %v9868 = vld [vmem:[%s9865 + $0x10] sm:$0xff]
      %v9869 = vld [vmem:[%s9865 + $0x18] sm:$0xff]
      %v9870 = vld [vmem:[%s9865 + $0x20] sm:$0xff]
      %v9871 = vld [vmem:[%s9865 + $0x28] sm:$0xff]
      %v9872 = vld [vmem:[%s9865 + $0x30] sm:$0xff]
      %v9873 = vld [vmem:[%s9865 + $0x38] sm:$0xff]
      %v9874 = vld [vmem:[%s9865 + $0x40] sm:$0xff]
      %v9875 = vld [vmem:[%s9865 + $0x48] sm:$0xff]
      %v9876 = vld [vmem:[%s9865 + $0x50] sm:$0xff]
      %v9877 = vld [vmem:[%s9865 + $0x58] sm:$0xff]
      %v9878 = vld [vmem:[%s9865 + $0x60] sm:$0xff]
      %v9879 = vld [vmem:[%s9865 + $0x68] sm:$0xff]
      %v9880 = vld [vmem:[%s9865 + $0x70] sm:$0xff]
      %v9881 = vld [vmem:[%s9865 + $0x78] sm:$0xff]
      %v9882 = vld [vmem:[%s9865 + $0x80] sm:$0xff]
      %v9883 = vld [vmem:[%s9865 + $0x88] sm:$0xff]
      %v9884 = vld [vmem:[%s9865 + $0x90] sm:$0xff]
      %v9885 = vld [vmem:[%s9865 + $0x98] sm:$0xff]
      %v9886 = vld [vmem:[%s9865 + $0xa0] sm:$0xff]
      %v9887 = vld [vmem:[%s9865 + $0xa8] sm:$0xff]
      %v9888 = vld [vmem:[%s9865 + $0xb0] sm:$0xff]
      %v9889 = vld [vmem:[%s9865 + $0xb8] sm:$0xff]
      %v9890 = vld [vmem:[%s9865 + $0xc0] sm:$0xff]
      %v9891 = vld [vmem:[%s9865 + $0xc8] sm:$0xff]
      %v9892 = vld [vmem:[%s9865 + $0xd0] sm:$0xff]
      %v9893 = vld [vmem:[%s9865 + $0xd8] sm:$0xff]
      %v9894 = vld [vmem:[%s9865 + $0xe0] sm:$0xff]
      %v9895 = vld [vmem:[%s9865 + $0xe8] sm:$0xff]
      %v9896 = vld [vmem:[%s9865 + $0xf0] sm:$0xff]
      %v9897 = vld [vmem:[%s9865 + $0xf8] sm:$0xff]
      %v9930 = vunpack.c.l.b16 %v9866
      %v9931 = vunpack.c.h.b16 %v9866
      %v9932 = vunpack.c.l.b16 %v9867
      %v9933 = vunpack.c.h.b16 %v9867
      %v9934 = vunpack.c.l.b16 %v9868
      %v9935 = vunpack.c.h.b16 %v9868
      %v9936 = vunpack.c.l.b16 %v9869
      %v9937 = vunpack.c.h.b16 %v9869
      %v9938 = vunpack.c.l.b16 %v9870
      %v9939 = vunpack.c.h.b16 %v9870
      %v9940 = vunpack.c.l.b16 %v9871
      %v9941 = vunpack.c.h.b16 %v9871
      %v9942 = vunpack.c.l.b16 %v9872
      %v9943 = vunpack.c.h.b16 %v9872
      %v9944 = vunpack.c.l.b16 %v9873
      %v9945 = vunpack.c.h.b16 %v9873
      %v9946 = vunpack.c.l.b16 %v9874
      %v9947 = vunpack.c.h.b16 %v9874
      %v9948 = vunpack.c.l.b16 %v9875
      %v9949 = vunpack.c.h.b16 %v9875
      %v9950 = vunpack.c.l.b16 %v9876
      %v9951 = vunpack.c.h.b16 %v9876
      %v9952 = vunpack.c.l.b16 %v9877
      %v9953 = vunpack.c.h.b16 %v9877
      %v9954 = vunpack.c.l.b16 %v9878
      %v9955 = vunpack.c.h.b16 %v9878
      %v9956 = vunpack.c.l.b16 %v9879
      %v9957 = vunpack.c.h.b16 %v9879
      %v9958 = vunpack.c.l.b16 %v9880
      %v9959 = vunpack.c.h.b16 %v9880
      %v9960 = vunpack.c.l.b16 %v9881
      %v9961 = vunpack.c.h.b16 %v9881
      %v9962 = vunpack.c.l.b16 %v9882
      %v9963 = vunpack.c.h.b16 %v9882
      %v9964 = vunpack.c.l.b16 %v9883
      %v9965 = vunpack.c.h.b16 %v9883
      %v9966 = vunpack.c.l.b16 %v9884
      %v9967 = vunpack.c.h.b16 %v9884
      %v9968 = vunpack.c.l.b16 %v9885
      %v9969 = vunpack.c.h.b16 %v9885
      %v9970 = vunpack.c.l.b16 %v9886
      %v9971 = vunpack.c.h.b16 %v9886
      %v9972 = vunpack.c.l.b16 %v9887
      %v9973 = vunpack.c.h.b16 %v9887
      %v9974 = vunpack.c.l.b16 %v9888
      %v9975 = vunpack.c.h.b16 %v9888
      %v9976 = vunpack.c.l.b16 %v9889
      %v9977 = vunpack.c.h.b16 %v9889
      %v9978 = vunpack.c.l.b16 %v9890
      %v9979 = vunpack.c.h.b16 %v9890
      %v9980 = vunpack.c.l.b16 %v9891
      %v9981 = vunpack.c.h.b16 %v9891
      %v9982 = vunpack.c.l.b16 %v9892
      %v9983 = vunpack.c.h.b16 %v9892
      %v9984 = vunpack.c.l.b16 %v9893
      %v9985 = vunpack.c.h.b16 %v9893
      %v9986 = vunpack.c.l.b16 %v9894
      %v9987 = vunpack.c.h.b16 %v9894
      %v9988 = vunpack.c.l.b16 %v9895
      %v9989 = vunpack.c.h.b16 %v9895
      %v9990 = vunpack.c.l.b16 %v9896
      %v9991 = vunpack.c.h.b16 %v9896
      %v9992 = vunpack.c.l.b16 %v9897
      %v9993 = vunpack.c.h.b16 %v9897
      %v9994 = vpack.c.b16 %v9932, %v9930
      %v9995 = vpack.c.b16 %v9933, %v9931
      %v9996 = vpack.c.b16 %v9936, %v9934
      %v9997 = vpack.c.b16 %v9937, %v9935
      %v9998 = vpack.c.b16 %v9940, %v9938
      %v9999 = vpack.c.b16 %v9941, %v9939
      %v10000 = vpack.c.b16 %v9944, %v9942
      %v10001 = vpack.c.b16 %v9945, %v9943
      %v10002 = vpack.c.b16 %v9948, %v9946
      %v10003 = vpack.c.b16 %v9949, %v9947
      %v10004 = vpack.c.b16 %v9952, %v9950
      %v10005 = vpack.c.b16 %v9953, %v9951
      %v10006 = vpack.c.b16 %v9956, %v9954
      %v10007 = vpack.c.b16 %v9957, %v9955
      %v10008 = vpack.c.b16 %v9960, %v9958
      %v10009 = vpack.c.b16 %v9961, %v9959
      %v10010 = vpack.c.b16 %v9964, %v9962
      %v10011 = vpack.c.b16 %v9965, %v9963
      %v10012 = vpack.c.b16 %v9968, %v9966
      %v10013 = vpack.c.b16 %v9969, %v9967
      %v10014 = vpack.c.b16 %v9972, %v9970
      %v10015 = vpack.c.b16 %v9973, %v9971
      %v10016 = vpack.c.b16 %v9976, %v9974
      %v10017 = vpack.c.b16 %v9977, %v9975
      %v10018 = vpack.c.b16 %v9980, %v9978
      %v10019 = vpack.c.b16 %v9981, %v9979
      %v10020 = vpack.c.b16 %v9984, %v9982
      %v10021 = vpack.c.b16 %v9985, %v9983
      %v10022 = vpack.c.b16 %v9988, %v9986
      %v10023 = vpack.c.b16 %v9989, %v9987
      %v10024 = vpack.c.b16 %v9992, %v9990
      %v10025 = vpack.c.b16 %v9993, %v9991
      %10058 = vmatprep.subr.bf16.mxu0 %v9995
      %10059 = vmatpush1.bf16.msra.mxu0 %v9994
      %10060 = vmatprep.subr.bf16.mxu0 %v9997
      %10061 = vmatpush1.bf16.msra.mxu0 %v9996
      %10062 = vmatprep.subr.bf16.mxu0 %v9999
      %10063 = vmatpush1.bf16.msra.mxu0 %v9998
      %10064 = vmatprep.subr.bf16.mxu0 %v10001
      %10065 = vmatpush1.bf16.msra.mxu0 %v10000
      %10066 = vmatprep.subr.bf16.mxu0 %v10003
      %10067 = vmatpush1.bf16.msra.mxu0 %v10002
      %10068 = vmatprep.subr.bf16.mxu0 %v10005
      %10069 = vmatpush1.bf16.msra.mxu0 %v10004
      %10070 = vmatprep.subr.bf16.mxu0 %v10007
      %10071 = vmatpush1.bf16.msra.mxu0 %v10006
      %10072 = vmatprep.subr.bf16.mxu0 %v10009
      %10073 = vmatpush1.bf16.msra.mxu0 %v10008
      %10074 = vmatprep.subr.bf16.mxu0 %v10011
      %10075 = vmatpush1.bf16.msra.mxu0 %v10010
      %10076 = vmatprep.subr.bf16.mxu0 %v10013
      %10077 = vmatpush1.bf16.msra.mxu0 %v10012
      %10078 = vmatprep.subr.bf16.mxu0 %v10015
      %10079 = vmatpush1.bf16.msra.mxu0 %v10014
      %10080 = vmatprep.subr.bf16.mxu0 %v10017
      %10081 = vmatpush1.bf16.msra.mxu0 %v10016
      %10082 = vmatprep.subr.bf16.mxu0 %v10019
      %10083 = vmatpush1.bf16.msra.mxu0 %v10018
      %10084 = vmatprep.subr.bf16.mxu0 %v10021
      %10085 = vmatpush1.bf16.msra.mxu0 %v10020
      %10086 = vmatprep.subr.bf16.mxu0 %v10023
      %10087 = vmatpush1.bf16.msra.mxu0 %v10022
      %10088 = vmatprep.subr.bf16.mxu0 %v10025
      %10089 = vmatpush1.bf16.msra.mxu0 %v10024
      %10090 = vmatprep.mubr.bf16.mxu0 %v9834
      %10091 = vmatmul.mubr.bf16.gmra.mrb[0].mxu0 %v9833
      %v10092 = vpop.f32.mrb[0].mxu0
      %v10093 = vadd.f32 0.0, %v10092
      %v10094 = vpop.f32.mrb[0].mxu0
      %v10095 = vadd.f32 0.0, %v10094
      %v10096 = vpop.f32.mrb[0].mxu0
      %v10097 = vadd.f32 0.0, %v10096
      %v10098 = vpop.f32.mrb[0].mxu0
      %v10099 = vadd.f32 0.0, %v10098
      %10100 = vmatprep.mubr.bf16.mxu0 %v9836
      %10101 = vmatmul.mubr.bf16.gmra.mrb[0].mxu0 %v9835
      %v10102 = vpop.f32.mrb[0].mxu0
      %v10103 = vadd.f32 0.0, %v10102
      %v10104 = vpop.f32.mrb[0].mxu0
      %v10105 = vadd.f32 0.0, %v10104
      %v10106 = vpop.f32.mrb[0].mxu0
      %v10107 = vadd.f32 0.0, %v10106
      %v10108 = vpop.f32.mrb[0].mxu0
      %v10109 = vadd.f32 0.0, %v10108
      %10110 = vmatprep.mubr.bf16.mxu0 %v9838
      %10111 = vmatmul.mubr.bf16.gmra.mrb[0].mxu0 %v9837
      %v10112 = vpop.f32.mrb[0].mxu0
      %v10113 = vadd.f32 0.0, %v10112
      %v10114 = vpop.f32.mrb[0].mxu0
      %v10115 = vadd.f32 0.0, %v10114
      %v10116 = vpop.f32.mrb[0].mxu0
      %v10117 = vadd.f32 0.0, %v10116
      %v10118 = vpop.f32.mrb[0].mxu0
      %v10119 = vadd.f32 0.0, %v10118
      %10120 = vmatprep.mubr.bf16.mxu0 %v9840
      %10121 = vmatmul.mubr.bf16.gmra.mrb[0].mxu0 %v9839
      %v10122 = vpop.f32.mrb[0].mxu0
      %v10123 = vadd.f32 0.0, %v10122
      %v10124 = vpop.f32.mrb[0].mxu0
      %v10125 = vadd.f32 0.0, %v10124
      %v10126 = vpop.f32.mrb[0].mxu0
      %v10127 = vadd.f32 0.0, %v10126
      %v10128 = vpop.f32.mrb[0].mxu0
      %v10129 = vadd.f32 0.0, %v10128
      %10130 = vmatprep.mubr.bf16.mxu0 %v9842
      %10131 = vmatmul.mubr.bf16.gmra.mrb[0].mxu0 %v9841
      %v10132 = vpop.f32.mrb[0].mxu0
      %v10133 = vadd.f32 0.0, %v10132
      %v10134 = vpop.f32.mrb[0].mxu0
      %v10135 = vadd.f32 0.0, %v10134
      %v10136 = vpop.f32.mrb[0].mxu0
      %v10137 = vadd.f32 0.0, %v10136
      %v10138 = vpop.f32.mrb[0].mxu0
      %v10139 = vadd.f32 0.0, %v10138
      %10140 = vmatprep.mubr.bf16.mxu0 %v9844
      %10141 = vmatmul.mubr.bf16.gmra.mrb[0].mxu0 %v9843
      %v10142 = vpop.f32.mrb[0].mxu0
      %v10143 = vadd.f32 0.0, %v10142
      %v10144 = vpop.f32.mrb[0].mxu0
      %v10145 = vadd.f32 0.0, %v10144
      %v10146 = vpop.f32.mrb[0].mxu0
      %v10147 = vadd.f32 0.0, %v10146
      %v10148 = vpop.f32.mrb[0].mxu0
      %v10149 = vadd.f32 0.0, %v10148
      %10150 = vmatprep.mubr.bf16.mxu0 %v9846
      %10151 = vmatmul.mubr.bf16.gmra.mrb[0].mxu0 %v9845
      %v10152 = vpop.f32.mrb[0].mxu0
      %v10153 = vadd.f32 0.0, %v10152
      %v10154 = vpop.f32.mrb[0].mxu0
      %v10155 = vadd.f32 0.0, %v10154
      %v10156 = vpop.f32.mrb[0].mxu0
      %v10157 = vadd.f32 0.0, %v10156
      %v10158 = vpop.f32.mrb[0].mxu0
      %v10159 = vadd.f32 0.0, %v10158
      %10160 = vmatprep.mubr.bf16.mxu0 %v9848
      %10161 = vmatmul.mubr.bf16.gmra.mrb[0].mxu0 %v9847
      %v10162 = vpop.f32.mrb[0].mxu0
      %v10163 = vadd.f32 0.0, %v10162
      %v10164 = vpop.f32.mrb[0].mxu0
      %v10165 = vadd.f32 0.0, %v10164
      %v10166 = vpop.f32.mrb[0].mxu0
      %v10167 = vadd.f32 0.0, %v10166
      %v10168 = vpop.f32.mrb[0].mxu0
      %v10169 = vadd.f32 0.0, %v10168
      %10170 = vmatprep.mubr.bf16.mxu0 %v9850
      %10171 = vmatmul.mubr.bf16.gmra.mrb[0].mxu0 %v9849
      %v10172 = vpop.f32.mrb[0].mxu0
      %v10173 = vadd.f32 0.0, %v10172
      %v10174 = vpop.f32.mrb[0].mxu0
      %v10175 = vadd.f32 0.0, %v10174
      %v10176 = vpop.f32.mrb[0].mxu0
      %v10177 = vadd.f32 0.0, %v10176
      %v10178 = vpop.f32.mrb[0].mxu0
      %v10179 = vadd.f32 0.0, %v10178
      %10180 = vmatprep.mubr.bf16.mxu0 %v9852
      %10181 = vmatmul.mubr.bf16.gmra.mrb[0].mxu0 %v9851
      %v10182 = vpop.f32.mrb[0].mxu0
      %v10183 = vadd.f32 0.0, %v10182
      %v10184 = vpop.f32.mrb[0].mxu0
      %v10185 = vadd.f32 0.0, %v10184
      %v10186 = vpop.f32.mrb[0].mxu0
      %v10187 = vadd.f32 0.0, %v10186
      %v10188 = vpop.f32.mrb[0].mxu0
      %v10189 = vadd.f32 0.0, %v10188
      %10190 = vmatprep.mubr.bf16.mxu0 %v9854
      %10191 = vmatmul.mubr.bf16.gmra.mrb[0].mxu0 %v9853
      %v10192 = vpop.f32.mrb[0].mxu0
      %v10193 = vadd.f32 0.0, %v10192
      %v10194 = vpop.f32.mrb[0].mxu0
      %v10195 = vadd.f32 0.0, %v10194
      %v10196 = vpop.f32.mrb[0].mxu0
      %v10197 = vadd.f32 0.0, %v10196
      %v10198 = vpop.f32.mrb[0].mxu0
      %v10199 = vadd.f32 0.0, %v10198
      %10200 = vmatprep.mubr.bf16.mxu0 %v9856
      %10201 = vmatmul.mubr.bf16.gmra.mrb[0].mxu0 %v9855
      %v10202 = vpop.f32.mrb[0].mxu0
      %v10203 = vadd.f32 0.0, %v10202
      %v10204 = vpop.f32.mrb[0].mxu0
      %v10205 = vadd.f32 0.0, %v10204
      %v10206 = vpop.f32.mrb[0].mxu0
      %v10207 = vadd.f32 0.0, %v10206
      %v10208 = vpop.f32.mrb[0].mxu0
      %v10209 = vadd.f32 0.0, %v10208
      %10210 = vmatprep.mubr.bf16.mxu0 %v9858
      %10211 = vmatmul.mubr.bf16.gmra.mrb[0].mxu0 %v9857
      %v10212 = vpop.f32.mrb[0].mxu0
      %v10213 = vadd.f32 0.0, %v10212
      %v10214 = vpop.f32.mrb[0].mxu0
      %v10215 = vadd.f32 0.0, %v10214
      %v10216 = vpop.f32.mrb[0].mxu0
      %v10217 = vadd.f32 0.0, %v10216
      %v10218 = vpop.f32.mrb[0].mxu0
      %v10219 = vadd.f32 0.0, %v10218
      %10220 = vmatprep.mubr.bf16.mxu0 %v9860
      %10221 = vmatmul.mubr.bf16.gmra.mrb[0].mxu0 %v9859
      %v10222 = vpop.f32.mrb[0].mxu0
      %v10223 = vadd.f32 0.0, %v10222
      %v10224 = vpop.f32.mrb[0].mxu0
      %v10225 = vadd.f32 0.0, %v10224
      %v10226 = vpop.f32.mrb[0].mxu0
      %v10227 = vadd.f32 0.0, %v10226
      %v10228 = vpop.f32.mrb[0].mxu0
      %v10229 = vadd.f32 0.0, %v10228
      %10230 = vmatprep.mubr.bf16.mxu0 %v9862
      %10231 = vmatmul.mubr.bf16.gmra.mrb[0].mxu0 %v9861
      %v10232 = vpop.f32.mrb[0].mxu0
      %v10233 = vadd.f32 0.0, %v10232
      %v10234 = vpop.f32.mrb[0].mxu0
      %v10235 = vadd.f32 0.0, %v10234
      %v10236 = vpop.f32.mrb[0].mxu0
      %v10237 = vadd.f32 0.0, %v10236
      %v10238 = vpop.f32.mrb[0].mxu0
      %v10239 = vadd.f32 0.0, %v10238
      %10240 = vmatprep.mubr.bf16.mxu0 %v9864
      %10241 = vmatmul.mubr.bf16.gmra.mrb[0].mxu0 %v9863
      %v10242 = vpop.f32.mrb[0].mxu0
      %v10243 = vadd.f32 0.0, %v10242
      %v10244 = vpop.f32.mrb[0].mxu0
      %v10245 = vadd.f32 0.0, %v10244
      %v10246 = vpop.f32.mrb[0].mxu0
      %v10247 = vadd.f32 0.0, %v10246
      %v10248 = vpop.f32.mrb[0].mxu0
      %v10249 = vadd.f32 0.0, %v10248
      %10250 = vdwg.mxu0
      %v10251 = vadd.f32 %v9611, %v10093
      %v10252 = vadd.f32 %v9613, %v10095
      %v10253 = vadd.f32 %v9615, %v10097
      %v10254 = vadd.f32 %v9617, %v10099
      %v10255 = vadd.f32 %v9621, %v10103
      %v10256 = vadd.f32 %v9623, %v10105
      %v10257 = vadd.f32 %v9625, %v10107
      %v10258 = vadd.f32 %v9627, %v10109
      %v10259 = vadd.f32 %v9631, %v10113
      %v10260 = vadd.f32 %v9633, %v10115
      %v10261 = vadd.f32 %v9635, %v10117
      %v10262 = vadd.f32 %v9637, %v10119
      %v10263 = vadd.f32 %v9641, %v10123
      %v10264 = vadd.f32 %v9643, %v10125
      %v10265 = vadd.f32 %v9645, %v10127
      %v10266 = vadd.f32 %v9647, %v10129
      %v10267 = vadd.f32 %v9651, %v10133
      %v10268 = vadd.f32 %v9653, %v10135
      %v10269 = vadd.f32 %v9655, %v10137
      %v10270 = vadd.f32 %v9657, %v10139
      %v10271 = vadd.f32 %v9661, %v10143
      %v10272 = vadd.f32 %v9663, %v10145
      %v10273 = vadd.f32 %v9665, %v10147
      %v10274 = vadd.f32 %v9667, %v10149
      %v10275 = vadd.f32 %v9671, %v10153
      %v10276 = vadd.f32 %v9673, %v10155
      %v10277 = vadd.f32 %v9675, %v10157
      %v10278 = vadd.f32 %v9677, %v10159
      %v10279 = vadd.f32 %v9681, %v10163
      %v10280 = vadd.f32 %v9683, %v10165
      %v10281 = vadd.f32 %v9685, %v10167
      %v10282 = vadd.f32 %v9687, %v10169
      %v10283 = vadd.f32 %v9691, %v10173
      %v10284 = vadd.f32 %v9693, %v10175
      %v10285 = vadd.f32 %v9695, %v10177
      %v10286 = vadd.f32 %v9697, %v10179
      %v10287 = vadd.f32 %v9701, %v10183
      %v10288 = vadd.f32 %v9703, %v10185
      %v10289 = vadd.f32 %v9705, %v10187
      %v10290 = vadd.f32 %v9707, %v10189
      %v10291 = vadd.f32 %v9711, %v10193
      %v10292 = vadd.f32 %v9713, %v10195
      %v10293 = vadd.f32 %v9715, %v10197
      %v10294 = vadd.f32 %v9717, %v10199
      %v10295 = vadd.f32 %v9721, %v10203
      %v10296 = vadd.f32 %v9723, %v10205
      %v10297 = vadd.f32 %v9725, %v10207
      %v10298 = vadd.f32 %v9727, %v10209
      %v10299 = vadd.f32 %v9731, %v10213
      %v10300 = vadd.f32 %v9733, %v10215
      %v10301 = vadd.f32 %v9735, %v10217
      %v10302 = vadd.f32 %v9737, %v10219
      %v10303 = vadd.f32 %v9741, %v10223
      %v10304 = vadd.f32 %v9743, %v10225
      %v10305 = vadd.f32 %v9745, %v10227
      %v10306 = vadd.f32 %v9747, %v10229
      %v10307 = vadd.f32 %v9751, %v10233
      %v10308 = vadd.f32 %v9753, %v10235
      %v10309 = vadd.f32 %v9755, %v10237
      %v10310 = vadd.f32 %v9757, %v10239
      %v10311 = vadd.f32 %v9761, %v10243
      %v10312 = vadd.f32 %v9763, %v10245
      %v10313 = vadd.f32 %v9765, %v10247
      %v10314 = vadd.f32 %v9767, %v10249
      %v10315 = vld [vmem:[#allocation3 + $0x20] sm:$0xfe]
      %v10316 = vld [vmem:[#allocation3 + $0x28] sm:$0xfe]
      %v10317 = vld [vmem:[#allocation3 + $0x30] sm:$0xff]
      %v10318 = vld [vmem:[#allocation3 + $0x38] sm:$0xff]
      %v10319 = vld [vmem:[#allocation3 + $0x40] sm:$0xff]
      %v10320 = vld [vmem:[#allocation3 + $0x48] sm:$0xff]
      %v10321 = vld [vmem:[#allocation3 + $0x50] sm:$0xff]
      %v10322 = vld [vmem:[#allocation3 + $0x58] sm:$0xff]
      %v10323 = vld [vmem:[#allocation3 + $0x60] sm:$0xff]
      %v10324 = vld [vmem:[#allocation3 + $0x68] sm:$0xff]
      %v10325 = vld [vmem:[#allocation3 + $0x70] sm:$0xff]
      %v10326 = vld [vmem:[#allocation3 + $0x78] sm:$0xff]
      %v10327 = vld [vmem:[#allocation3 + $0x80] sm:$0xff]
      %v10328 = vld [vmem:[#allocation3 + $0x88] sm:$0xff]
      %v10329 = vld [vmem:[#allocation3 + $0x90] sm:$0xff]
      %v10330 = vld [vmem:[#allocation3 + $0x98] sm:$0xff]
      %v10331 = vld [vmem:[#allocation3 + $0xa0] sm:$0xff]
      %v10332 = vld [vmem:[#allocation3 + $0xa8] sm:$0xff]
      %v10333 = vld [vmem:[#allocation3 + $0xb0] sm:$0xff]
      %v10334 = vld [vmem:[#allocation3 + $0xb8] sm:$0xff]
      %v10335 = vld [vmem:[#allocation3 + $0xc0] sm:$0xff]
      %v10336 = vld [vmem:[#allocation3 + $0xc8] sm:$0xff]
      %v10337 = vld [vmem:[#allocation3 + $0xd0] sm:$0xff]
      %v10338 = vld [vmem:[#allocation3 + $0xd8] sm:$0xff]
      %v10339 = vld [vmem:[#allocation3 + $0xe0] sm:$0xff]
      %v10340 = vld [vmem:[#allocation3 + $0xe8] sm:$0xff]
      %v10341 = vld [vmem:[#allocation3 + $0xf0] sm:$0xff]
      %v10342 = vld [vmem:[#allocation3 + $0xf8] sm:$0xff]
      %v10343 = vld [vmem:[#allocation3 + $0x100] sm:$0xff]
      %v10344 = vld [vmem:[#allocation3 + $0x108] sm:$0xff]
      %v10345 = vld [vmem:[#allocation3 + $0x110] sm:$0xff]
      %v10346 = vld [vmem:[#allocation3 + $0x118] sm:$0xff]
      %v10347 = vld [vmem:[#allocation3 + $0x120] sm:$0xff]
      %v10348 = vld [vmem:[#allocation3 + $0x128] sm:$0xff]
      %v10349 = vld [vmem:[#allocation3 + $0x130] sm:$0xff]
      %v10350 = vld [vmem:[#allocation3 + $0x138] sm:$0xff]
      %v10351 = vld [vmem:[#allocation3 + $0x140] sm:$0xff]
      %v10352 = vld [vmem:[#allocation3 + $0x148] sm:$0xff]
      %v10353 = vld [vmem:[#allocation3 + $0x150] sm:$0xff]
      %v10354 = vld [vmem:[#allocation3 + $0x158] sm:$0xff]
      %v10355 = vld [vmem:[#allocation3 + $0x160] sm:$0xff]
      %v10356 = vld [vmem:[#allocation3 + $0x168] sm:$0xff]
      %v10357 = vld [vmem:[#allocation3 + $0x170] sm:$0xff]
      %v10358 = vld [vmem:[#allocation3 + $0x178] sm:$0xff]
      %v10359 = vld [vmem:[#allocation3 + $0x180] sm:$0xff]
      %v10360 = vld [vmem:[#allocation3 + $0x188] sm:$0xff]
      %v10361 = vld [vmem:[#allocation3 + $0x190] sm:$0xff]
      %v10362 = vld [vmem:[#allocation3 + $0x198] sm:$0xff]
      %v10363 = vld [vmem:[#allocation3 + $0x1a0] sm:$0xff]
      %v10364 = vld [vmem:[#allocation3 + $0x1a8] sm:$0xff]
      %v10365 = vld [vmem:[#allocation3 + $0x1b0] sm:$0xff]
      %v10366 = vld [vmem:[#allocation3 + $0x1b8] sm:$0xff]
      %v10367 = vld [vmem:[#allocation3 + $0x1c0] sm:$0xff]
      %v10368 = vld [vmem:[#allocation3 + $0x1c8] sm:$0xff]
      %v10369 = vld [vmem:[#allocation3 + $0x1d0] sm:$0xff]
      %v10370 = vld [vmem:[#allocation3 + $0x1d8] sm:$0xff]
      %v10371 = vld [vmem:[#allocation3 + $0x1e0] sm:$0xff]
      %v10372 = vld [vmem:[#allocation3 + $0x1e8] sm:$0xff]
      %v10373 = vld [vmem:[#allocation3 + $0x1f0] sm:$0xff]
      %v10374 = vld [vmem:[#allocation3 + $0x1f8] sm:$0xff]
      %v10375 = vld [vmem:[#allocation3 + $0x200] sm:$0xff]
      %v10376 = vld [vmem:[#allocation3 + $0x208] sm:$0xff]
      %v10377 = vld [vmem:[#allocation3 + $0x210] sm:$0xff]
      %v10378 = vld [vmem:[#allocation3 + $0x218] sm:$0xff]
      %v10379 = vld [vmem:[#allocation3 + $0x220] sm:$0x1]
      %v10380 = vld [vmem:[#allocation3 + $0x228] sm:$0x1]
      %v10381 = vpack.c.bf16 %v10317, %v10315
      %v10382 = vpack.c.bf16 %v10318, %v10316
      %v10383 = vpack.c.bf16 %v10321, %v10319
      %v10384 = vpack.c.bf16 %v10322, %v10320
      %v10385 = vpack.c.bf16 %v10325, %v10323
      %v10386 = vpack.c.bf16 %v10326, %v10324
      %v10387 = vpack.c.bf16 %v10329, %v10327
      %v10388 = vpack.c.bf16 %v10330, %v10328
      %v10389 = vpack.c.bf16 %v10333, %v10331
      %v10390 = vpack.c.bf16 %v10334, %v10332
      %v10391 = vpack.c.bf16 %v10337, %v10335
      %v10392 = vpack.c.bf16 %v10338, %v10336
      %v10393 = vpack.c.bf16 %v10341, %v10339
      %v10394 = vpack.c.bf16 %v10342, %v10340
      %v10395 = vpack.c.bf16 %v10345, %v10343
      %v10396 = vpack.c.bf16 %v10346, %v10344
      %v10397 = vpack.c.bf16 %v10349, %v10347
      %v10398 = vpack.c.bf16 %v10350, %v10348
      %v10399 = vpack.c.bf16 %v10353, %v10351
      %v10400 = vpack.c.bf16 %v10354, %v10352
      %v10401 = vpack.c.bf16 %v10357, %v10355
      %v10402 = vpack.c.bf16 %v10358, %v10356
      %v10403 = vpack.c.bf16 %v10361, %v10359
      %v10404 = vpack.c.bf16 %v10362, %v10360
      %v10405 = vpack.c.bf16 %v10365, %v10363
      %v10406 = vpack.c.bf16 %v10366, %v10364
      %v10407 = vpack.c.bf16 %v10369, %v10367
      %v10408 = vpack.c.bf16 %v10370, %v10368
      %v10409 = vpack.c.bf16 %v10373, %v10371
      %v10410 = vpack.c.bf16 %v10374, %v10372
      %v10411 = vpack.c.bf16 %v10377, %v10375
      %v10412 = vpack.c.bf16 %v10378, %v10376
      %v10413 = vpack.c.bf16 %v10379, %v10379
      %v10414 = vpack.c.bf16 %v10380, %v10380
      %s10415 = scalar_lea.vmem %s5, 768
      %v10416 = vld [vmem:[%s10415] sm:$0xff]
      %v10417 = vld [vmem:[%s10415 + $0x8] sm:$0xff]
      %v10418 = vld [vmem:[%s10415 + $0x10] sm:$0xff]
      %v10419 = vld [vmem:[%s10415 + $0x18] sm:$0xff]
      %v10420 = vld [vmem:[%s10415 + $0x20] sm:$0xff]
      %v10421 = vld [vmem:[%s10415 + $0x28] sm:$0xff]
      %v10422 = vld [vmem:[%s10415 + $0x30] sm:$0xff]
      %v10423 = vld [vmem:[%s10415 + $0x38] sm:$0xff]
      %v10424 = vld [vmem:[%s10415 + $0x40] sm:$0xff]
      %v10425 = vld [vmem:[%s10415 + $0x48] sm:$0xff]
      %v10426 = vld [vmem:[%s10415 + $0x50] sm:$0xff]
      %v10427 = vld [vmem:[%s10415 + $0x58] sm:$0xff]
      %v10428 = vld [vmem:[%s10415 + $0x60] sm:$0xff]
      %v10429 = vld [vmem:[%s10415 + $0x68] sm:$0xff]
      %v10430 = vld [vmem:[%s10415 + $0x70] sm:$0xff]
      %v10431 = vld [vmem:[%s10415 + $0x78] sm:$0xff]
      %v10432 = vld [vmem:[%s10415 + $0x80] sm:$0xff]
      %v10433 = vld [vmem:[%s10415 + $0x88] sm:$0xff]
      %v10434 = vld [vmem:[%s10415 + $0x90] sm:$0xff]
      %v10435 = vld [vmem:[%s10415 + $0x98] sm:$0xff]
      %v10436 = vld [vmem:[%s10415 + $0xa0] sm:$0xff]
      %v10437 = vld [vmem:[%s10415 + $0xa8] sm:$0xff]
      %v10438 = vld [vmem:[%s10415 + $0xb0] sm:$0xff]
      %v10439 = vld [vmem:[%s10415 + $0xb8] sm:$0xff]
      %v10440 = vld [vmem:[%s10415 + $0xc0] sm:$0xff]
      %v10441 = vld [vmem:[%s10415 + $0xc8] sm:$0xff]
      %v10442 = vld [vmem:[%s10415 + $0xd0] sm:$0xff]
      %v10443 = vld [vmem:[%s10415 + $0xd8] sm:$0xff]
      %v10444 = vld [vmem:[%s10415 + $0xe0] sm:$0xff]
      %v10445 = vld [vmem:[%s10415 + $0xe8] sm:$0xff]
      %v10446 = vld [vmem:[%s10415 + $0xf0] sm:$0xff]
      %v10447 = vld [vmem:[%s10415 + $0xf8] sm:$0xff]
      %v10449 = vshrl.u32 %v10381, 16
      %v10451 = vshll.u32 %v10381, 16
      %v10453 = vrot.slane %v10451, 1
      %v10454 = vor.u32 %v10449, %v10453
      %v10456 = vshll.u32 %v10383, 16
      %v10458 = vrot.slane %v10456, 1
      %v10459 = vsel %vm2978, %v10454, %v10458
      %v10461 = vshrl.u32 %v10382, 16
      %v10463 = vshll.u32 %v10382, 16
      %v10465 = vrot.slane %v10463, 1
      %v10466 = vor.u32 %v10461, %v10465
      %v10468 = vshll.u32 %v10384, 16
      %v10470 = vrot.slane %v10468, 1
      %v10471 = vsel %vm2978, %v10466, %v10470
      %v10472 = vshrl.u32 %v10383, 16
      %v10474 = vor.u32 %v10472, %v10458
      %v10476 = vshll.u32 %v10385, 16
      %v10478 = vrot.slane %v10476, 1
      %v10479 = vsel %vm2978, %v10474, %v10478
      %v10480 = vshrl.u32 %v10384, 16
      %v10482 = vor.u32 %v10480, %v10470
      %v10484 = vshll.u32 %v10386, 16
      %v10486 = vrot.slane %v10484, 1
      %v10487 = vsel %vm2978, %v10482, %v10486
      %v10488 = vshrl.u32 %v10385, 16
      %v10490 = vor.u32 %v10488, %v10478
      %v10492 = vshll.u32 %v10387, 16
      %v10494 = vrot.slane %v10492, 1
      %v10495 = vsel %vm2978, %v10490, %v10494
      %v10496 = vshrl.u32 %v10386, 16
      %v10498 = vor.u32 %v10496, %v10486
      %v10500 = vshll.u32 %v10388, 16
      %v10502 = vrot.slane %v10500, 1
      %v10503 = vsel %vm2978, %v10498, %v10502
      %v10504 = vshrl.u32 %v10387, 16
      %v10506 = vor.u32 %v10504, %v10494
      %v10508 = vshll.u32 %v10389, 16
      %v10510 = vrot.slane %v10508, 1
      %v10511 = vsel %vm2978, %v10506, %v10510
      %v10512 = vshrl.u32 %v10388, 16
      %v10514 = vor.u32 %v10512, %v10502
      %v10516 = vshll.u32 %v10390, 16
      %v10518 = vrot.slane %v10516, 1
      %v10519 = vsel %vm2978, %v10514, %v10518
      %v10520 = vshrl.u32 %v10389, 16
      %v10522 = vor.u32 %v10520, %v10510
      %v10524 = vshll.u32 %v10391, 16
      %v10526 = vrot.slane %v10524, 1
      %v10527 = vsel %vm2978, %v10522, %v10526
      %v10528 = vshrl.u32 %v10390, 16
      %v10530 = vor.u32 %v10528, %v10518
      %v10532 = vshll.u32 %v10392, 16
      %v10534 = vrot.slane %v10532, 1
      %v10535 = vsel %vm2978, %v10530, %v10534
      %v10536 = vshrl.u32 %v10391, 16
      %v10538 = vor.u32 %v10536, %v10526
      %v10540 = vshll.u32 %v10393, 16
      %v10542 = vrot.slane %v10540, 1
      %v10543 = vsel %vm2978, %v10538, %v10542
      %v10544 = vshrl.u32 %v10392, 16
      %v10546 = vor.u32 %v10544, %v10534
      %v10548 = vshll.u32 %v10394, 16
      %v10550 = vrot.slane %v10548, 1
      %v10551 = vsel %vm2978, %v10546, %v10550
      %v10552 = vshrl.u32 %v10393, 16
      %v10554 = vor.u32 %v10552, %v10542
      %v10556 = vshll.u32 %v10395, 16
      %v10558 = vrot.slane %v10556, 1
      %v10559 = vsel %vm2978, %v10554, %v10558
      %v10560 = vshrl.u32 %v10394, 16
      %v10562 = vor.u32 %v10560, %v10550
      %v10564 = vshll.u32 %v10396, 16
      %v10566 = vrot.slane %v10564, 1
      %v10567 = vsel %vm2978, %v10562, %v10566
      %v10568 = vshrl.u32 %v10395, 16
      %v10570 = vor.u32 %v10568, %v10558
      %v10572 = vshll.u32 %v10397, 16
      %v10574 = vrot.slane %v10572, 1
      %v10575 = vsel %vm2978, %v10570, %v10574
      %v10576 = vshrl.u32 %v10396, 16
      %v10578 = vor.u32 %v10576, %v10566
      %v10580 = vshll.u32 %v10398, 16
      %v10582 = vrot.slane %v10580, 1
      %v10583 = vsel %vm2978, %v10578, %v10582
      %v10584 = vshrl.u32 %v10397, 16
      %v10586 = vor.u32 %v10584, %v10574
      %v10588 = vshll.u32 %v10399, 16
      %v10590 = vrot.slane %v10588, 1
      %v10591 = vsel %vm2978, %v10586, %v10590
      %v10592 = vshrl.u32 %v10398, 16
      %v10594 = vor.u32 %v10592, %v10582
      %v10596 = vshll.u32 %v10400, 16
      %v10598 = vrot.slane %v10596, 1
      %v10599 = vsel %vm2978, %v10594, %v10598
      %v10600 = vshrl.u32 %v10399, 16
      %v10602 = vor.u32 %v10600, %v10590
      %v10604 = vshll.u32 %v10401, 16
      %v10606 = vrot.slane %v10604, 1
      %v10607 = vsel %vm2978, %v10602, %v10606
      %v10608 = vshrl.u32 %v10400, 16
      %v10610 = vor.u32 %v10608, %v10598
      %v10612 = vshll.u32 %v10402, 16
      %v10614 = vrot.slane %v10612, 1
      %v10615 = vsel %vm2978, %v10610, %v10614
      %v10616 = vshrl.u32 %v10401, 16
      %v10618 = vor.u32 %v10616, %v10606
      %v10620 = vshll.u32 %v10403, 16
      %v10622 = vrot.slane %v10620, 1
      %v10623 = vsel %vm2978, %v10618, %v10622
      %v10624 = vshrl.u32 %v10402, 16
      %v10626 = vor.u32 %v10624, %v10614
      %v10628 = vshll.u32 %v10404, 16
      %v10630 = vrot.slane %v10628, 1
      %v10631 = vsel %vm2978, %v10626, %v10630
      %v10632 = vshrl.u32 %v10403, 16
      %v10634 = vor.u32 %v10632, %v10622
      %v10636 = vshll.u32 %v10405, 16
      %v10638 = vrot.slane %v10636, 1
      %v10639 = vsel %vm2978, %v10634, %v10638
      %v10640 = vshrl.u32 %v10404, 16
      %v10642 = vor.u32 %v10640, %v10630
      %v10644 = vshll.u32 %v10406, 16
      %v10646 = vrot.slane %v10644, 1
      %v10647 = vsel %vm2978, %v10642, %v10646
      %v10648 = vshrl.u32 %v10405, 16
      %v10650 = vor.u32 %v10648, %v10638
      %v10652 = vshll.u32 %v10407, 16
      %v10654 = vrot.slane %v10652, 1
      %v10655 = vsel %vm2978, %v10650, %v10654
      %v10656 = vshrl.u32 %v10406, 16
      %v10658 = vor.u32 %v10656, %v10646
      %v10660 = vshll.u32 %v10408, 16
      %v10662 = vrot.slane %v10660, 1
      %v10663 = vsel %vm2978, %v10658, %v10662
      %v10664 = vshrl.u32 %v10407, 16
      %v10666 = vor.u32 %v10664, %v10654
      %v10668 = vshll.u32 %v10409, 16
      %v10670 = vrot.slane %v10668, 1
      %v10671 = vsel %vm2978, %v10666, %v10670
      %v10672 = vshrl.u32 %v10408, 16
      %v10674 = vor.u32 %v10672, %v10662
      %v10676 = vshll.u32 %v10410, 16
      %v10678 = vrot.slane %v10676, 1
      %v10679 = vsel %vm2978, %v10674, %v10678
      %v10680 = vshrl.u32 %v10409, 16
      %v10682 = vor.u32 %v10680, %v10670
      %v10684 = vshll.u32 %v10411, 16
      %v10686 = vrot.slane %v10684, 1
      %v10687 = vsel %vm2978, %v10682, %v10686
      %v10688 = vshrl.u32 %v10410, 16
      %v10690 = vor.u32 %v10688, %v10678
      %v10692 = vshll.u32 %v10412, 16
      %v10694 = vrot.slane %v10692, 1
      %v10695 = vsel %vm2978, %v10690, %v10694
      %v10696 = vshrl.u32 %v10411, 16
      %v10698 = vor.u32 %v10696, %v10686
      %v10700 = vshll.u32 %v10413, 16
      %v10702 = vrot.slane %v10700, 1
      %v10703 = vsel %vm2978, %v10698, %v10702
      %v10704 = vshrl.u32 %v10412, 16
      %v10706 = vor.u32 %v10704, %v10694
      %v10708 = vshll.u32 %v10414, 16
      %v10710 = vrot.slane %v10708, 1
      %v10711 = vsel %vm2978, %v10706, %v10710
      %v10776 = vunpack.c.l.b16 %v10416
      %v10777 = vunpack.c.h.b16 %v10416
      %v10778 = vunpack.c.l.b16 %v10417
      %v10779 = vunpack.c.h.b16 %v10417
      %v10780 = vunpack.c.l.b16 %v10418
      %v10781 = vunpack.c.h.b16 %v10418
      %v10782 = vunpack.c.l.b16 %v10419
      %v10783 = vunpack.c.h.b16 %v10419
      %v10784 = vunpack.c.l.b16 %v10420
      %v10785 = vunpack.c.h.b16 %v10420
      %v10786 = vunpack.c.l.b16 %v10421
      %v10787 = vunpack.c.h.b16 %v10421
      %v10788 = vunpack.c.l.b16 %v10422
      %v10789 = vunpack.c.h.b16 %v10422
      %v10790 = vunpack.c.l.b16 %v10423
      %v10791 = vunpack.c.h.b16 %v10423
      %v10792 = vunpack.c.l.b16 %v10424
      %v10793 = vunpack.c.h.b16 %v10424
      %v10794 = vunpack.c.l.b16 %v10425
      %v10795 = vunpack.c.h.b16 %v10425
      %v10796 = vunpack.c.l.b16 %v10426
      %v10797 = vunpack.c.h.b16 %v10426
      %v10798 = vunpack.c.l.b16 %v10427
      %v10799 = vunpack.c.h.b16 %v10427
      %v10800 = vunpack.c.l.b16 %v10428
      %v10801 = vunpack.c.h.b16 %v10428
      %v10802 = vunpack.c.l.b16 %v10429
      %v10803 = vunpack.c.h.b16 %v10429
      %v10804 = vunpack.c.l.b16 %v10430
      %v10805 = vunpack.c.h.b16 %v10430
      %v10806 = vunpack.c.l.b16 %v10431
      %v10807 = vunpack.c.h.b16 %v10431
      %v10808 = vunpack.c.l.b16 %v10432
      %v10809 = vunpack.c.h.b16 %v10432
      %v10810 = vunpack.c.l.b16 %v10433
      %v10811 = vunpack.c.h.b16 %v10433
      %v10812 = vunpack.c.l.b16 %v10434
      %v10813 = vunpack.c.h.b16 %v10434
      %v10814 = vunpack.c.l.b16 %v10435
      %v10815 = vunpack.c.h.b16 %v10435
      %v10816 = vunpack.c.l.b16 %v10436
      %v10817 = vunpack.c.h.b16 %v10436
      %v10818 = vunpack.c.l.b16 %v10437
      %v10819 = vunpack.c.h.b16 %v10437
      %v10820 = vunpack.c.l.b16 %v10438
      %v10821 = vunpack.c.h.b16 %v10438
      %v10822 = vunpack.c.l.b16 %v10439
      %v10823 = vunpack.c.h.b16 %v10439
      %v10824 = vunpack.c.l.b16 %v10440
      %v10825 = vunpack.c.h.b16 %v10440
      %v10826 = vunpack.c.l.b16 %v10441
      %v10827 = vunpack.c.h.b16 %v10441
      %v10828 = vunpack.c.l.b16 %v10442
      %v10829 = vunpack.c.h.b16 %v10442
      %v10830 = vunpack.c.l.b16 %v10443
      %v10831 = vunpack.c.h.b16 %v10443
      %v10832 = vunpack.c.l.b16 %v10444
      %v10833 = vunpack.c.h.b16 %v10444
      %v10834 = vunpack.c.l.b16 %v10445
      %v10835 = vunpack.c.h.b16 %v10445
      %v10836 = vunpack.c.l.b16 %v10446
      %v10837 = vunpack.c.h.b16 %v10446
      %v10838 = vunpack.c.l.b16 %v10447
      %v10839 = vunpack.c.h.b16 %v10447
      %v10840 = vpack.c.b16 %v10778, %v10776
      %v10841 = vpack.c.b16 %v10779, %v10777
      %v10842 = vpack.c.b16 %v10782, %v10780
      %v10843 = vpack.c.b16 %v10783, %v10781
      %v10844 = vpack.c.b16 %v10786, %v10784
      %v10845 = vpack.c.b16 %v10787, %v10785
      %v10846 = vpack.c.b16 %v10790, %v10788
      %v10847 = vpack.c.b16 %v10791, %v10789
      %v10848 = vpack.c.b16 %v10794, %v10792
      %v10849 = vpack.c.b16 %v10795, %v10793
      %v10850 = vpack.c.b16 %v10798, %v10796
      %v10851 = vpack.c.b16 %v10799, %v10797
      %v10852 = vpack.c.b16 %v10802, %v10800
      %v10853 = vpack.c.b16 %v10803, %v10801
      %v10854 = vpack.c.b16 %v10806, %v10804
      %v10855 = vpack.c.b16 %v10807, %v10805
      %v10856 = vpack.c.b16 %v10810, %v10808
      %v10857 = vpack.c.b16 %v10811, %v10809
      %v10858 = vpack.c.b16 %v10814, %v10812
      %v10859 = vpack.c.b16 %v10815, %v10813
      %v10860 = vpack.c.b16 %v10818, %v10816
      %v10861 = vpack.c.b16 %v10819, %v10817
      %v10862 = vpack.c.b16 %v10822, %v10820
      %v10863 = vpack.c.b16 %v10823, %v10821
      %v10864 = vpack.c.b16 %v10826, %v10824
      %v10865 = vpack.c.b16 %v10827, %v10825
      %v10866 = vpack.c.b16 %v10830, %v10828
      %v10867 = vpack.c.b16 %v10831, %v10829
      %v10868 = vpack.c.b16 %v10834, %v10832
      %v10869 = vpack.c.b16 %v10835, %v10833
      %v10870 = vpack.c.b16 %v10838, %v10836
      %v10871 = vpack.c.b16 %v10839, %v10837
      %10904 = vmatprep.subr.bf16.mxu0 %v10841
      %10905 = vmatpush1.bf16.msra.mxu0 %v10840
      %10906 = vmatprep.subr.bf16.mxu0 %v10843
      %10907 = vmatpush1.bf16.msra.mxu0 %v10842
      %10908 = vmatprep.subr.bf16.mxu0 %v10845
      %10909 = vmatpush1.bf16.msra.mxu0 %v10844
      %10910 = vmatprep.subr.bf16.mxu0 %v10847
      %10911 = vmatpush1.bf16.msra.mxu0 %v10846
      %10912 = vmatprep.subr.bf16.mxu0 %v10849
      %10913 = vmatpush1.bf16.msra.mxu0 %v10848
      %10914 = vmatprep.subr.bf16.mxu0 %v10851
      %10915 = vmatpush1.bf16.msra.mxu0 %v10850
      %10916 = vmatprep.subr.bf16.mxu0 %v10853
      %10917 = vmatpush1.bf16.msra.mxu0 %v10852
      %10918 = vmatprep.subr.bf16.mxu0 %v10855
      %10919 = vmatpush1.bf16.msra.mxu0 %v10854
      %10920 = vmatprep.subr.bf16.mxu0 %v10857
      %10921 = vmatpush1.bf16.msra.mxu0 %v10856
      %10922 = vmatprep.subr.bf16.mxu0 %v10859
      %10923 = vmatpush1.bf16.msra.mxu0 %v10858
      %10924 = vmatprep.subr.bf16.mxu0 %v10861
      %10925 = vmatpush1.bf16.msra.mxu0 %v10860
      %10926 = vmatprep.subr.bf16.mxu0 %v10863
      %10927 = vmatpush1.bf16.msra.mxu0 %v10862
      %10928 = vmatprep.subr.bf16.mxu0 %v10865
      %10929 = vmatpush1.bf16.msra.mxu0 %v10864
      %10930 = vmatprep.subr.bf16.mxu0 %v10867
      %10931 = vmatpush1.bf16.msra.mxu0 %v10866
      %10932 = vmatprep.subr.bf16.mxu0 %v10869
      %10933 = vmatpush1.bf16.msra.mxu0 %v10868
      %10934 = vmatprep.subr.bf16.mxu0 %v10871
      %10935 = vmatpush1.bf16.msra.mxu0 %v10870
      %10936 = vmatprep.mubr.bf16.mxu0 %v10471
      %10937 = vmatmul.mubr.bf16.gmra.mrb[0].mxu0 %v10459
      %v10938 = vpop.f32.mrb[0].mxu0
      %v10939 = vadd.f32 0.0, %v10938
      %v10940 = vpop.f32.mrb[0].mxu0
      %v10941 = vadd.f32 0.0, %v10940
      %v10942 = vpop.f32.mrb[0].mxu0
      %v10943 = vadd.f32 0.0, %v10942
      %v10944 = vpop.f32.mrb[0].mxu0
      %v10945 = vadd.f32 0.0, %v10944
      %10946 = vmatprep.mubr.bf16.mxu0 %v10487
      %10947 = vmatmul.mubr.bf16.gmra.mrb[0].mxu0 %v10479
      %v10948 = vpop.f32.mrb[0].mxu0
      %v10949 = vadd.f32 0.0, %v10948
      %v10950 = vpop.f32.mrb[0].mxu0
      %v10951 = vadd.f32 0.0, %v10950
      %v10952 = vpop.f32.mrb[0].mxu0
      %v10953 = vadd.f32 0.0, %v10952
      %v10954 = vpop.f32.mrb[0].mxu0
      %v10955 = vadd.f32 0.0, %v10954
      %10956 = vmatprep.mubr.bf16.mxu0 %v10503
      %10957 = vmatmul.mubr.bf16.gmra.mrb[0].mxu0 %v10495
      %v10958 = vpop.f32.mrb[0].mxu0
      %v10959 = vadd.f32 0.0, %v10958
      %v10960 = vpop.f32.mrb[0].mxu0
      %v10961 = vadd.f32 0.0, %v10960
      %v10962 = vpop.f32.mrb[0].mxu0
      %v10963 = vadd.f32 0.0, %v10962
      %v10964 = vpop.f32.mrb[0].mxu0
      %v10965 = vadd.f32 0.0, %v10964
      %10966 = vmatprep.mubr.bf16.mxu0 %v10519
      %10967 = vmatmul.mubr.bf16.gmra.mrb[0].mxu0 %v10511
      %v10968 = vpop.f32.mrb[0].mxu0
      %v10969 = vadd.f32 0.0, %v10968
      %v10970 = vpop.f32.mrb[0].mxu0
      %v10971 = vadd.f32 0.0, %v10970
      %v10972 = vpop.f32.mrb[0].mxu0
      %v10973 = vadd.f32 0.0, %v10972
      %v10974 = vpop.f32.mrb[0].mxu0
      %v10975 = vadd.f32 0.0, %v10974
      %10976 = vmatprep.mubr.bf16.mxu0 %v10535
      %10977 = vmatmul.mubr.bf16.gmra.mrb[0].mxu0 %v10527
      %v10978 = vpop.f32.mrb[0].mxu0
      %v10979 = vadd.f32 0.0, %v10978
      %v10980 = vpop.f32.mrb[0].mxu0
      %v10981 = vadd.f32 0.0, %v10980
      %v10982 = vpop.f32.mrb[0].mxu0
      %v10983 = vadd.f32 0.0, %v10982
      %v10984 = vpop.f32.mrb[0].mxu0
      %v10985 = vadd.f32 0.0, %v10984
      %10986 = vmatprep.mubr.bf16.mxu0 %v10551
      %10987 = vmatmul.mubr.bf16.gmra.mrb[0].mxu0 %v10543
      %v10988 = vpop.f32.mrb[0].mxu0
      %v10989 = vadd.f32 0.0, %v10988
      %v10990 = vpop.f32.mrb[0].mxu0
      %v10991 = vadd.f32 0.0, %v10990
      %v10992 = vpop.f32.mrb[0].mxu0
      %v10993 = vadd.f32 0.0, %v10992
      %v10994 = vpop.f32.mrb[0].mxu0
      %v10995 = vadd.f32 0.0, %v10994
      %10996 = vmatprep.mubr.bf16.mxu0 %v10567
      %10997 = vmatmul.mubr.bf16.gmra.mrb[0].mxu0 %v10559
      %v10998 = vpop.f32.mrb[0].mxu0
      %v10999 = vadd.f32 0.0, %v10998
      %v11000 = vpop.f32.mrb[0].mxu0
      %v11001 = vadd.f32 0.0, %v11000
      %v11002 = vpop.f32.mrb[0].mxu0
      %v11003 = vadd.f32 0.0, %v11002
      %v11004 = vpop.f32.mrb[0].mxu0
      %v11005 = vadd.f32 0.0, %v11004
      %11006 = vmatprep.mubr.bf16.mxu0 %v10583
      %11007 = vmatmul.mubr.bf16.gmra.mrb[0].mxu0 %v10575
      %v11008 = vpop.f32.mrb[0].mxu0
      %v11009 = vadd.f32 0.0, %v11008
      %v11010 = vpop.f32.mrb[0].mxu0
      %v11011 = vadd.f32 0.0, %v11010
      %v11012 = vpop.f32.mrb[0].mxu0
      %v11013 = vadd.f32 0.0, %v11012
      %v11014 = vpop.f32.mrb[0].mxu0
      %v11015 = vadd.f32 0.0, %v11014
      %11016 = vmatprep.mubr.bf16.mxu0 %v10599
      %11017 = vmatmul.mubr.bf16.gmra.mrb[0].mxu0 %v10591
      %v11018 = vpop.f32.mrb[0].mxu0
      %v11019 = vadd.f32 0.0, %v11018
      %v11020 = vpop.f32.mrb[0].mxu0
      %v11021 = vadd.f32 0.0, %v11020
      %v11022 = vpop.f32.mrb[0].mxu0
      %v11023 = vadd.f32 0.0, %v11022
      %v11024 = vpop.f32.mrb[0].mxu0
      %v11025 = vadd.f32 0.0, %v11024
      %11026 = vmatprep.mubr.bf16.mxu0 %v10615
      %11027 = vmatmul.mubr.bf16.gmra.mrb[0].mxu0 %v10607
      %v11028 = vpop.f32.mrb[0].mxu0
      %v11029 = vadd.f32 0.0, %v11028
      %v11030 = vpop.f32.mrb[0].mxu0
      %v11031 = vadd.f32 0.0, %v11030
      %v11032 = vpop.f32.mrb[0].mxu0
      %v11033 = vadd.f32 0.0, %v11032
      %v11034 = vpop.f32.mrb[0].mxu0
      %v11035 = vadd.f32 0.0, %v11034
      %11036 = vmatprep.mubr.bf16.mxu0 %v10631
      %11037 = vmatmul.mubr.bf16.gmra.mrb[0].mxu0 %v10623
      %v11038 = vpop.f32.mrb[0].mxu0
      %v11039 = vadd.f32 0.0, %v11038
      %v11040 = vpop.f32.mrb[0].mxu0
      %v11041 = vadd.f32 0.0, %v11040
      %v11042 = vpop.f32.mrb[0].mxu0
      %v11043 = vadd.f32 0.0, %v11042
      %v11044 = vpop.f32.mrb[0].mxu0
      %v11045 = vadd.f32 0.0, %v11044
      %11046 = vmatprep.mubr.bf16.mxu0 %v10647
      %11047 = vmatmul.mubr.bf16.gmra.mrb[0].mxu0 %v10639
      %v11048 = vpop.f32.mrb[0].mxu0
      %v11049 = vadd.f32 0.0, %v11048
      %v11050 = vpop.f32.mrb[0].mxu0
      %v11051 = vadd.f32 0.0, %v11050
      %v11052 = vpop.f32.mrb[0].mxu0
      %v11053 = vadd.f32 0.0, %v11052
      %v11054 = vpop.f32.mrb[0].mxu0
      %v11055 = vadd.f32 0.0, %v11054
      %11056 = vmatprep.mubr.bf16.mxu0 %v10663
      %11057 = vmatmul.mubr.bf16.gmra.mrb[0].mxu0 %v10655
      %v11058 = vpop.f32.mrb[0].mxu0
      %v11059 = vadd.f32 0.0, %v11058
      %v11060 = vpop.f32.mrb[0].mxu0
      %v11061 = vadd.f32 0.0, %v11060
      %v11062 = vpop.f32.mrb[0].mxu0
      %v11063 = vadd.f32 0.0, %v11062
      %v11064 = vpop.f32.mrb[0].mxu0
      %v11065 = vadd.f32 0.0, %v11064
      %11066 = vmatprep.mubr.bf16.mxu0 %v10679
      %11067 = vmatmul.mubr.bf16.gmra.mrb[0].mxu0 %v10671
      %v11068 = vpop.f32.mrb[0].mxu0
      %v11069 = vadd.f32 0.0, %v11068
      %v11070 = vpop.f32.mrb[0].mxu0
      %v11071 = vadd.f32 0.0, %v11070
      %v11072 = vpop.f32.mrb[0].mxu0
      %v11073 = vadd.f32 0.0, %v11072
      %v11074 = vpop.f32.mrb[0].mxu0
      %v11075 = vadd.f32 0.0, %v11074
      %11076 = vmatprep.mubr.bf16.mxu0 %v10695
      %11077 = vmatmul.mubr.bf16.gmra.mrb[0].mxu0 %v10687
      %v11078 = vpop.f32.mrb[0].mxu0
      %v11079 = vadd.f32 0.0, %v11078
      %v11080 = vpop.f32.mrb[0].mxu0
      %v11081 = vadd.f32 0.0, %v11080
      %v11082 = vpop.f32.mrb[0].mxu0
      %v11083 = vadd.f32 0.0, %v11082
      %v11084 = vpop.f32.mrb[0].mxu0
      %v11085 = vadd.f32 0.0, %v11084
      %11086 = vmatprep.mubr.bf16.mxu0 %v10711
      %11087 = vmatmul.mubr.bf16.gmra.mrb[0].mxu0 %v10703
      %v11088 = vpop.f32.mrb[0].mxu0
      %v11089 = vadd.f32 0.0, %v11088
      %v11090 = vpop.f32.mrb[0].mxu0
      %v11091 = vadd.f32 0.0, %v11090
      %v11092 = vpop.f32.mrb[0].mxu0
      %v11093 = vadd.f32 0.0, %v11092
      %v11094 = vpop.f32.mrb[0].mxu0
      %v11095 = vadd.f32 0.0, %v11094
      %11096 = vdwg.mxu0
      %v11097 = vadd.f32 %v10251, %v10939
      %v11098 = vadd.f32 %v10252, %v10941
      %v11099 = vadd.f32 %v10253, %v10943
      %v11100 = vadd.f32 %v10254, %v10945
      %v11101 = vadd.f32 %v10255, %v10949
      %v11102 = vadd.f32 %v10256, %v10951
      %v11103 = vadd.f32 %v10257, %v10953
      %v11104 = vadd.f32 %v10258, %v10955
      %v11105 = vadd.f32 %v10259, %v10959
      %v11106 = vadd.f32 %v10260, %v10961
      %v11107 = vadd.f32 %v10261, %v10963
      %v11108 = vadd.f32 %v10262, %v10965
      %v11109 = vadd.f32 %v10263, %v10969
      %v11110 = vadd.f32 %v10264, %v10971
      %v11111 = vadd.f32 %v10265, %v10973
      %v11112 = vadd.f32 %v10266, %v10975
      %v11113 = vadd.f32 %v10267, %v10979
      %v11114 = vadd.f32 %v10268, %v10981
      %v11115 = vadd.f32 %v10269, %v10983
      %v11116 = vadd.f32 %v10270, %v10985
      %v11117 = vadd.f32 %v10271, %v10989
      %v11118 = vadd.f32 %v10272, %v10991
      %v11119 = vadd.f32 %v10273, %v10993
      %v11120 = vadd.f32 %v10274, %v10995
      %v11121 = vadd.f32 %v10275, %v10999
      %v11122 = vadd.f32 %v10276, %v11001
      %v11123 = vadd.f32 %v10277, %v11003
      %v11124 = vadd.f32 %v10278, %v11005
      %v11125 = vadd.f32 %v10279, %v11009
      %v11126 = vadd.f32 %v10280, %v11011
      %v11127 = vadd.f32 %v10281, %v11013
      %v11128 = vadd.f32 %v10282, %v11015
      %v11129 = vadd.f32 %v10283, %v11019
      %v11130 = vadd.f32 %v10284, %v11021
      %v11131 = vadd.f32 %v10285, %v11023
      %v11132 = vadd.f32 %v10286, %v11025
      %v11133 = vadd.f32 %v10287, %v11029
      %v11134 = vadd.f32 %v10288, %v11031
      %v11135 = vadd.f32 %v10289, %v11033
      %v11136 = vadd.f32 %v10290, %v11035
      %v11137 = vadd.f32 %v10291, %v11039
      %v11138 = vadd.f32 %v10292, %v11041
      %v11139 = vadd.f32 %v10293, %v11043
      %v11140 = vadd.f32 %v10294, %v11045
      %v11141 = vadd.f32 %v10295, %v11049
      %v11142 = vadd.f32 %v10296, %v11051
      %v11143 = vadd.f32 %v10297, %v11053
      %v11144 = vadd.f32 %v10298, %v11055
      %v11145 = vadd.f32 %v10299, %v11059
      %v11146 = vadd.f32 %v10300, %v11061
      %v11147 = vadd.f32 %v10301, %v11063
      %v11148 = vadd.f32 %v10302, %v11065
      %v11149 = vadd.f32 %v10303, %v11069
      %v11150 = vadd.f32 %v10304, %v11071
      %v11151 = vadd.f32 %v10305, %v11073
      %v11152 = vadd.f32 %v10306, %v11075
      %v11153 = vadd.f32 %v10307, %v11079
      %v11154 = vadd.f32 %v10308, %v11081
      %v11155 = vadd.f32 %v10309, %v11083
      %v11156 = vadd.f32 %v10310, %v11085
      %v11157 = vadd.f32 %v10311, %v11089
      %v11158 = vadd.f32 %v10312, %v11091
      %v11159 = vadd.f32 %v10313, %v11093
      %v11160 = vadd.f32 %v10314, %v11095
      %v11161 = vld [vmem:[%s6] sm:$0x3]
      %v11163 = vlaneseq
      %v11164 = vshrl.u32 %v11163, 7
      %v11165 = vsub.s32 0, %v11164
      %v11166 = vrot.slane %v11161, %v11165
      %v11167 = vlaneseq
      %v11168 = vshrl.u32 %v11167, 7
      %v11169 = vsub.s32 1, %v11168
      %v11170 = vrot.slane %v11161, %v11169
      %v11173 = vadd.f32 %v11097, %v11166
      %v11174 = vadd.f32 %v11098, %v11170
      %v11175 = vadd.f32 %v11099, %v11166
      %v11176 = vadd.f32 %v11100, %v11170
      %v11177 = vadd.f32 %v11101, %v11166
      %v11178 = vadd.f32 %v11102, %v11170
      %v11179 = vadd.f32 %v11103, %v11166
      %v11180 = vadd.f32 %v11104, %v11170
      %v11181 = vadd.f32 %v11105, %v11166
      %v11182 = vadd.f32 %v11106, %v11170
      %v11183 = vadd.f32 %v11107, %v11166
      %v11184 = vadd.f32 %v11108, %v11170
      %v11185 = vadd.f32 %v11109, %v11166
      %v11186 = vadd.f32 %v11110, %v11170
      %v11187 = vadd.f32 %v11111, %v11166
      %v11188 = vadd.f32 %v11112, %v11170
      %v11189 = vadd.f32 %v11113, %v11166
      %v11190 = vadd.f32 %v11114, %v11170
      %v11191 = vadd.f32 %v11115, %v11166
      %v11192 = vadd.f32 %v11116, %v11170
      %v11193 = vadd.f32 %v11117, %v11166
      %v11194 = vadd.f32 %v11118, %v11170
      %v11195 = vadd.f32 %v11119, %v11166
      %v11196 = vadd.f32 %v11120, %v11170
      %v11197 = vadd.f32 %v11121, %v11166
      %v11198 = vadd.f32 %v11122, %v11170
      %v11199 = vadd.f32 %v11123, %v11166
      %v11200 = vadd.f32 %v11124, %v11170
      %v11201 = vadd.f32 %v11125, %v11166
      %v11202 = vadd.f32 %v11126, %v11170
      %v11203 = vadd.f32 %v11127, %v11166
      %v11204 = vadd.f32 %v11128, %v11170
      %v11205 = vadd.f32 %v11129, %v11166
      %v11206 = vadd.f32 %v11130, %v11170
      %v11207 = vadd.f32 %v11131, %v11166
      %v11208 = vadd.f32 %v11132, %v11170
      %v11209 = vadd.f32 %v11133, %v11166
      %v11210 = vadd.f32 %v11134, %v11170
      %v11211 = vadd.f32 %v11135, %v11166
      %v11212 = vadd.f32 %v11136, %v11170
      %v11213 = vadd.f32 %v11137, %v11166
      %v11214 = vadd.f32 %v11138, %v11170
      %v11215 = vadd.f32 %v11139, %v11166
      %v11216 = vadd.f32 %v11140, %v11170
      %v11217 = vadd.f32 %v11141, %v11166
      %v11218 = vadd.f32 %v11142, %v11170
      %v11219 = vadd.f32 %v11143, %v11166
      %v11220 = vadd.f32 %v11144, %v11170
      %v11221 = vadd.f32 %v11145, %v11166
      %v11222 = vadd.f32 %v11146, %v11170
      %v11223 = vadd.f32 %v11147, %v11166
      %v11224 = vadd.f32 %v11148, %v11170
      %v11225 = vadd.f32 %v11149, %v11166
      %v11226 = vadd.f32 %v11150, %v11170
      %v11227 = vadd.f32 %v11151, %v11166
      %v11228 = vadd.f32 %v11152, %v11170
      %v11229 = vadd.f32 %v11153, %v11166
      %v11230 = vadd.f32 %v11154, %v11170
      %v11231 = vadd.f32 %v11155, %v11166
      %v11232 = vadd.f32 %v11156, %v11170
      %v11233 = vadd.f32 %v11157, %v11166
      %v11234 = vadd.f32 %v11158, %v11170
      %v11235 = vadd.f32 %v11159, %v11166
      %v11236 = vadd.f32 %v11160, %v11170
      %v11237 = vmax.f32 %v11173, 0.0
      %v11238 = vmax.f32 %v11174, 0.0
      %v11239 = vmax.f32 %v11175, 0.0
      %v11240 = vmax.f32 %v11176, 0.0
      %v11241 = vmax.f32 %v11177, 0.0
      %v11242 = vmax.f32 %v11178, 0.0
      %v11243 = vmax.f32 %v11179, 0.0
      %v11244 = vmax.f32 %v11180, 0.0
      %v11245 = vmax.f32 %v11181, 0.0
      %v11246 = vmax.f32 %v11182, 0.0
      %v11247 = vmax.f32 %v11183, 0.0
      %v11248 = vmax.f32 %v11184, 0.0
      %v11249 = vmax.f32 %v11185, 0.0
      %v11250 = vmax.f32 %v11186, 0.0
      %v11251 = vmax.f32 %v11187, 0.0
      %v11252 = vmax.f32 %v11188, 0.0
      %v11253 = vmax.f32 %v11189, 0.0
      %v11254 = vmax.f32 %v11190, 0.0
      %v11255 = vmax.f32 %v11191, 0.0
      %v11256 = vmax.f32 %v11192, 0.0
      %v11257 = vmax.f32 %v11193, 0.0
      %v11258 = vmax.f32 %v11194, 0.0
      %v11259 = vmax.f32 %v11195, 0.0
      %v11260 = vmax.f32 %v11196, 0.0
      %v11261 = vmax.f32 %v11197, 0.0
      %v11262 = vmax.f32 %v11198, 0.0
      %v11263 = vmax.f32 %v11199, 0.0
      %v11264 = vmax.f32 %v11200, 0.0
      %v11265 = vmax.f32 %v11201, 0.0
      %v11266 = vmax.f32 %v11202, 0.0
      %v11267 = vmax.f32 %v11203, 0.0
      %v11268 = vmax.f32 %v11204, 0.0
      %v11269 = vmax.f32 %v11205, 0.0
      %v11270 = vmax.f32 %v11206, 0.0
      %v11271 = vmax.f32 %v11207, 0.0
      %v11272 = vmax.f32 %v11208, 0.0
      %v11273 = vmax.f32 %v11209, 0.0
      %v11274 = vmax.f32 %v11210, 0.0
      %v11275 = vmax.f32 %v11211, 0.0
      %v11276 = vmax.f32 %v11212, 0.0
      %v11277 = vmax.f32 %v11213, 0.0
      %v11278 = vmax.f32 %v11214, 0.0
      %v11279 = vmax.f32 %v11215, 0.0
      %v11280 = vmax.f32 %v11216, 0.0
      %v11281 = vmax.f32 %v11217, 0.0
      %v11282 = vmax.f32 %v11218, 0.0
      %v11283 = vmax.f32 %v11219, 0.0
      %v11284 = vmax.f32 %v11220, 0.0
      %v11285 = vmax.f32 %v11221, 0.0
      %v11286 = vmax.f32 %v11222, 0.0
      %v11287 = vmax.f32 %v11223, 0.0
      %v11288 = vmax.f32 %v11224, 0.0
      %v11289 = vmax.f32 %v11225, 0.0
      %v11290 = vmax.f32 %v11226, 0.0
      %v11291 = vmax.f32 %v11227, 0.0
      %v11292 = vmax.f32 %v11228, 0.0
      %v11293 = vmax.f32 %v11229, 0.0
      %v11294 = vmax.f32 %v11230, 0.0
      %v11295 = vmax.f32 %v11231, 0.0
      %v11296 = vmax.f32 %v11232, 0.0
      %v11297 = vmax.f32 %v11233, 0.0
      %v11298 = vmax.f32 %v11234, 0.0
      %v11299 = vmax.f32 %v11235, 0.0
      %v11300 = vmax.f32 %v11236, 0.0
      %v11301 = vpack.c.bf16 %v11239, %v11237
      %v11302 = vpack.c.bf16 %v11240, %v11238
      %v11303 = vpack.c.bf16 %v11243, %v11241
      %v11304 = vpack.c.bf16 %v11244, %v11242
      %v11305 = vpack.c.bf16 %v11247, %v11245
      %v11306 = vpack.c.bf16 %v11248, %v11246
      %v11307 = vpack.c.bf16 %v11251, %v11249
      %v11308 = vpack.c.bf16 %v11252, %v11250
      %v11309 = vpack.c.bf16 %v11255, %v11253
      %v11310 = vpack.c.bf16 %v11256, %v11254
      %v11311 = vpack.c.bf16 %v11259, %v11257
      %v11312 = vpack.c.bf16 %v11260, %v11258
      %v11313 = vpack.c.bf16 %v11263, %v11261
      %v11314 = vpack.c.bf16 %v11264, %v11262
      %v11315 = vpack.c.bf16 %v11267, %v11265
      %v11316 = vpack.c.bf16 %v11268, %v11266
      %v11317 = vpack.c.bf16 %v11271, %v11269
      %v11318 = vpack.c.bf16 %v11272, %v11270
      %v11319 = vpack.c.bf16 %v11275, %v11273
      %v11320 = vpack.c.bf16 %v11276, %v11274
      %v11321 = vpack.c.bf16 %v11279, %v11277
      %v11322 = vpack.c.bf16 %v11280, %v11278
      %v11323 = vpack.c.bf16 %v11283, %v11281
      %v11324 = vpack.c.bf16 %v11284, %v11282
      %v11325 = vpack.c.bf16 %v11287, %v11285
      %v11326 = vpack.c.bf16 %v11288, %v11286
      %v11327 = vpack.c.bf16 %v11291, %v11289
      %v11328 = vpack.c.bf16 %v11292, %v11290
      %v11329 = vpack.c.bf16 %v11295, %v11293
      %v11330 = vpack.c.bf16 %v11296, %v11294
      %v11331 = vpack.c.bf16 %v11299, %v11297
      %v11332 = vpack.c.bf16 %v11300, %v11298
      %v11333 = vld [vmem:[%s7] sm:$0xf]
      %v11334 = vld [vmem:[%s7 + $0x4] sm:$0xf]
      %v11335 = vld [vmem:[%s7 + $0x8] sm:$0xf]
      %v11336 = vld [vmem:[%s7 + $0xc] sm:$0xf]
      %v11337 = vld [vmem:[%s7 + $0x10] sm:$0xf]
      %v11338 = vld [vmem:[%s7 + $0x14] sm:$0xf]
      %v11339 = vld [vmem:[%s7 + $0x18] sm:$0xf]
      %v11340 = vld [vmem:[%s7 + $0x1c] sm:$0xf]
      %v11341 = vld [vmem:[%s7 + $0x20] sm:$0xf]
      %v11342 = vld [vmem:[%s7 + $0x24] sm:$0xf]
      %v11343 = vld [vmem:[%s7 + $0x28] sm:$0xf]
      %v11344 = vld [vmem:[%s7 + $0x2c] sm:$0xf]
      %v11345 = vld [vmem:[%s7 + $0x30] sm:$0xf]
      %v11346 = vld [vmem:[%s7 + $0x34] sm:$0xf]
      %v11347 = vld [vmem:[%s7 + $0x38] sm:$0xf]
      %v11348 = vld [vmem:[%s7 + $0x3c] sm:$0xf]
      %v11349 = vld [vmem:[%s7 + $0x40] sm:$0xf]
      %v11350 = vld [vmem:[%s7 + $0x44] sm:$0xf]
      %v11351 = vld [vmem:[%s7 + $0x48] sm:$0xf]
      %v11352 = vld [vmem:[%s7 + $0x4c] sm:$0xf]
      %v11353 = vld [vmem:[%s7 + $0x50] sm:$0xf]
      %v11354 = vld [vmem:[%s7 + $0x54] sm:$0xf]
      %v11355 = vld [vmem:[%s7 + $0x58] sm:$0xf]
      %v11356 = vld [vmem:[%s7 + $0x5c] sm:$0xf]
      %v11357 = vld [vmem:[%s7 + $0x60] sm:$0xf]
      %v11358 = vld [vmem:[%s7 + $0x64] sm:$0xf]
      %v11359 = vld [vmem:[%s7 + $0x68] sm:$0xf]
      %v11360 = vld [vmem:[%s7 + $0x6c] sm:$0xf]
      %v11361 = vld [vmem:[%s7 + $0x70] sm:$0xf]
      %v11362 = vld [vmem:[%s7 + $0x74] sm:$0xf]
      %v11363 = vld [vmem:[%s7 + $0x78] sm:$0xf]
      %v11364 = vld [vmem:[%s7 + $0x7c] sm:$0xf]
      %v11365 = vld [vmem:[%s8] sm:$0x1]
      %v11367 = vlaneseq
      %v11368 = vshrl.u32 %v11367, 7
      %v11369 = vsub.s32 0, %v11368
      %v11370 = vrot.slane %v11365, %v11369
      %v11404 = vunpack.c.l.b16 %v11333
      %v11405 = vunpack.c.l.b16 %v11334
      %v11406 = vunpack.c.l.b16 %v11335
      %v11407 = vunpack.c.l.b16 %v11336
      %v11408 = vunpack.c.l.b16 %v11337
      %v11409 = vunpack.c.l.b16 %v11338
      %v11410 = vunpack.c.l.b16 %v11339
      %v11411 = vunpack.c.l.b16 %v11340
      %v11412 = vunpack.c.l.b16 %v11341
      %v11413 = vunpack.c.l.b16 %v11342
      %v11414 = vunpack.c.l.b16 %v11343
      %v11415 = vunpack.c.l.b16 %v11344
      %v11416 = vunpack.c.l.b16 %v11345
      %v11417 = vunpack.c.l.b16 %v11346
      %v11418 = vunpack.c.l.b16 %v11347
      %v11419 = vunpack.c.l.b16 %v11348
      %v11420 = vunpack.c.l.b16 %v11349
      %v11421 = vunpack.c.l.b16 %v11350
      %v11422 = vunpack.c.l.b16 %v11351
      %v11423 = vunpack.c.l.b16 %v11352
      %v11424 = vunpack.c.l.b16 %v11353
      %v11425 = vunpack.c.l.b16 %v11354
      %v11426 = vunpack.c.l.b16 %v11355
      %v11427 = vunpack.c.l.b16 %v11356
      %v11428 = vunpack.c.l.b16 %v11357
      %v11429 = vunpack.c.l.b16 %v11358
      %v11430 = vunpack.c.l.b16 %v11359
      %v11431 = vunpack.c.l.b16 %v11360
      %v11432 = vunpack.c.l.b16 %v11361
      %v11433 = vunpack.c.l.b16 %v11362
      %v11434 = vunpack.c.l.b16 %v11363
      %v11435 = vunpack.c.l.b16 %v11364
      %v11436 = vpack.c.b16 %v11405, %v11404
      %v11437 = vpack.c.b16 %v11407, %v11406
      %v11438 = vpack.c.b16 %v11409, %v11408
      %v11439 = vpack.c.b16 %v11411, %v11410
      %v11440 = vpack.c.b16 %v11413, %v11412
      %v11441 = vpack.c.b16 %v11415, %v11414
      %v11442 = vpack.c.b16 %v11417, %v11416
      %v11443 = vpack.c.b16 %v11419, %v11418
      %v11444 = vpack.c.b16 %v11421, %v11420
      %v11445 = vpack.c.b16 %v11423, %v11422
      %v11446 = vpack.c.b16 %v11425, %v11424
      %v11447 = vpack.c.b16 %v11427, %v11426
      %v11448 = vpack.c.b16 %v11429, %v11428
      %v11449 = vpack.c.b16 %v11431, %v11430
      %v11450 = vpack.c.b16 %v11433, %v11432
      %v11451 = vpack.c.b16 %v11435, %v11434
      %11468 = vmatprep.subr.bf16.mxu0 0
      %11469 = vmatpush1.bf16.msra.mxu0 %v11436
      %11470 = vmatprep.subr.bf16.mxu0 0
      %11471 = vmatpush1.bf16.msra.mxu0 %v11437
      %11472 = vmatprep.subr.bf16.mxu0 0
      %11473 = vmatpush1.bf16.msra.mxu0 %v11438
      %11474 = vmatprep.subr.bf16.mxu0 0
      %11475 = vmatpush1.bf16.msra.mxu0 %v11439
      %11476 = vmatprep.subr.bf16.mxu0 0
      %11477 = vmatpush1.bf16.msra.mxu0 %v11440
      %11478 = vmatprep.subr.bf16.mxu0 0
      %11479 = vmatpush1.bf16.msra.mxu0 %v11441
      %11480 = vmatprep.subr.bf16.mxu0 0
      %11481 = vmatpush1.bf16.msra.mxu0 %v11442
      %11482 = vmatprep.subr.bf16.mxu0 0
      %11483 = vmatpush1.bf16.msra.mxu0 %v11443
      %11484 = vmatprep.subr.bf16.mxu0 0
      %11485 = vmatpush1.bf16.msra.mxu0 %v11444
      %11486 = vmatprep.subr.bf16.mxu0 0
      %11487 = vmatpush1.bf16.msra.mxu0 %v11445
      %11488 = vmatprep.subr.bf16.mxu0 0
      %11489 = vmatpush1.bf16.msra.mxu0 %v11446
      %11490 = vmatprep.subr.bf16.mxu0 0
      %11491 = vmatpush1.bf16.msra.mxu0 %v11447
      %11492 = vmatprep.subr.bf16.mxu0 0
      %11493 = vmatpush1.bf16.msra.mxu0 %v11448
      %11494 = vmatprep.subr.bf16.mxu0 0
      %11495 = vmatpush1.bf16.msra.mxu0 %v11449
      %11496 = vmatprep.subr.bf16.mxu0 0
      %11497 = vmatpush1.bf16.msra.mxu0 %v11450
      %11498 = vmatprep.subr.bf16.mxu0 0
      %11499 = vmatpush1.bf16.msra.mxu0 %v11451
      %11500 = vmatprep.mubr.bf16.mxu0 %v11302
      %11501 = vmatmul.mubr.bf16.gmra.mrb[0].mxu0 %v11301
      %v11502 = vpop.f32.mrb[0].mxu0
      %v11503 = vadd.f32 %v11370, %v11502
      %v11504 = vpop.f32.mrb[0].mxu0
      %v11505 = vpop.f32.mrb[0].mxu0
      %v11506 = vadd.f32 %v11370, %v11505
      %v11507 = vpop.f32.mrb[0].mxu0
      %11508 = vmatprep.mubr.bf16.mxu0 %v11304
      %11509 = vmatmul.mubr.bf16.gmra.mrb[0].mxu0 %v11303
      %v11510 = vpop.f32.mrb[0].mxu0
      %v11511 = vadd.f32 %v11370, %v11510
      %v11512 = vpop.f32.mrb[0].mxu0
      %v11513 = vpop.f32.mrb[0].mxu0
      %v11514 = vadd.f32 %v11370, %v11513
      %v11515 = vpop.f32.mrb[0].mxu0
      %11516 = vmatprep.mubr.bf16.mxu0 %v11306
      %11517 = vmatmul.mubr.bf16.gmra.mrb[0].mxu0 %v11305
      %v11518 = vpop.f32.mrb[0].mxu0
      %v11519 = vadd.f32 %v11370, %v11518
      %v11520 = vpop.f32.mrb[0].mxu0
      %v11521 = vpop.f32.mrb[0].mxu0
      %v11522 = vadd.f32 %v11370, %v11521
      %v11523 = vpop.f32.mrb[0].mxu0
      %11524 = vmatprep.mubr.bf16.mxu0 %v11308
      %11525 = vmatmul.mubr.bf16.gmra.mrb[0].mxu0 %v11307
      %v11526 = vpop.f32.mrb[0].mxu0
      %v11527 = vadd.f32 %v11370, %v11526
      %v11528 = vpop.f32.mrb[0].mxu0
      %v11529 = vpop.f32.mrb[0].mxu0
      %v11530 = vadd.f32 %v11370, %v11529
      %v11531 = vpop.f32.mrb[0].mxu0
      %11532 = vmatprep.mubr.bf16.mxu0 %v11310
      %11533 = vmatmul.mubr.bf16.gmra.mrb[0].mxu0 %v11309
      %v11534 = vpop.f32.mrb[0].mxu0
      %v11535 = vadd.f32 %v11370, %v11534
      %v11536 = vpop.f32.mrb[0].mxu0
      %v11537 = vpop.f32.mrb[0].mxu0
      %v11538 = vadd.f32 %v11370, %v11537
      %v11539 = vpop.f32.mrb[0].mxu0
      %11540 = vmatprep.mubr.bf16.mxu0 %v11312
      %11541 = vmatmul.mubr.bf16.gmra.mrb[0].mxu0 %v11311
      %v11542 = vpop.f32.mrb[0].mxu0
      %v11543 = vadd.f32 %v11370, %v11542
      %v11544 = vpop.f32.mrb[0].mxu0
      %v11545 = vpop.f32.mrb[0].mxu0
      %v11546 = vadd.f32 %v11370, %v11545
      %v11547 = vpop.f32.mrb[0].mxu0
      %11548 = vmatprep.mubr.bf16.mxu0 %v11314
      %11549 = vmatmul.mubr.bf16.gmra.mrb[0].mxu0 %v11313
      %v11550 = vpop.f32.mrb[0].mxu0
      %v11551 = vadd.f32 %v11370, %v11550
      %v11552 = vpop.f32.mrb[0].mxu0
      %v11553 = vpop.f32.mrb[0].mxu0
      %v11554 = vadd.f32 %v11370, %v11553
      %v11555 = vpop.f32.mrb[0].mxu0
      %11556 = vmatprep.mubr.bf16.mxu0 %v11316
      %11557 = vmatmul.mubr.bf16.gmra.mrb[0].mxu0 %v11315
      %v11558 = vpop.f32.mrb[0].mxu0
      %v11559 = vadd.f32 %v11370, %v11558
      %v11560 = vpop.f32.mrb[0].mxu0
      %v11561 = vpop.f32.mrb[0].mxu0
      %v11562 = vadd.f32 %v11370, %v11561
      %v11563 = vpop.f32.mrb[0].mxu0
      %11564 = vmatprep.mubr.bf16.mxu0 %v11318
      %11565 = vmatmul.mubr.bf16.gmra.mrb[0].mxu0 %v11317
      %v11566 = vpop.f32.mrb[0].mxu0
      %v11567 = vadd.f32 %v11370, %v11566
      %v11568 = vpop.f32.mrb[0].mxu0
      %v11569 = vpop.f32.mrb[0].mxu0
      %v11570 = vadd.f32 %v11370, %v11569
      %v11571 = vpop.f32.mrb[0].mxu0
      %11572 = vmatprep.mubr.bf16.mxu0 %v11320
      %11573 = vmatmul.mubr.bf16.gmra.mrb[0].mxu0 %v11319
      %v11574 = vpop.f32.mrb[0].mxu0
      %v11575 = vadd.f32 %v11370, %v11574
      %v11576 = vpop.f32.mrb[0].mxu0
      %v11577 = vpop.f32.mrb[0].mxu0
      %v11578 = vadd.f32 %v11370, %v11577
      %v11579 = vpop.f32.mrb[0].mxu0
      %11580 = vmatprep.mubr.bf16.mxu0 %v11322
      %11581 = vmatmul.mubr.bf16.gmra.mrb[0].mxu0 %v11321
      %v11582 = vpop.f32.mrb[0].mxu0
      %v11583 = vadd.f32 %v11370, %v11582
      %v11584 = vpop.f32.mrb[0].mxu0
      %v11585 = vpop.f32.mrb[0].mxu0
      %v11586 = vadd.f32 %v11370, %v11585
      %v11587 = vpop.f32.mrb[0].mxu0
      %11588 = vmatprep.mubr.bf16.mxu0 %v11324
      %11589 = vmatmul.mubr.bf16.gmra.mrb[0].mxu0 %v11323
      %v11590 = vpop.f32.mrb[0].mxu0
      %v11591 = vadd.f32 %v11370, %v11590
      %v11592 = vpop.f32.mrb[0].mxu0
      %v11593 = vpop.f32.mrb[0].mxu0
      %v11594 = vadd.f32 %v11370, %v11593
      %v11595 = vpop.f32.mrb[0].mxu0
      %11596 = vmatprep.mubr.bf16.mxu0 %v11326
      %11597 = vmatmul.mubr.bf16.gmra.mrb[0].mxu0 %v11325
      %v11598 = vpop.f32.mrb[0].mxu0
      %v11599 = vadd.f32 %v11370, %v11598
      %v11600 = vpop.f32.mrb[0].mxu0
      %v11601 = vpop.f32.mrb[0].mxu0
      %v11602 = vadd.f32 %v11370, %v11601
      %v11603 = vpop.f32.mrb[0].mxu0
      %11604 = vmatprep.mubr.bf16.mxu0 %v11328
      %11605 = vmatmul.mubr.bf16.gmra.mrb[0].mxu0 %v11327
      %v11606 = vpop.f32.mrb[0].mxu0
      %v11607 = vadd.f32 %v11370, %v11606
      %v11608 = vpop.f32.mrb[0].mxu0
      %v11609 = vpop.f32.mrb[0].mxu0
      %v11610 = vadd.f32 %v11370, %v11609
      %v11611 = vpop.f32.mrb[0].mxu0
      %11612 = vmatprep.mubr.bf16.mxu0 %v11330
      %11613 = vmatmul.mubr.bf16.gmra.mrb[0].mxu0 %v11329
      %v11614 = vpop.f32.mrb[0].mxu0
      %v11615 = vadd.f32 %v11370, %v11614
      %v11616 = vpop.f32.mrb[0].mxu0
      %v11617 = vpop.f32.mrb[0].mxu0
      %v11618 = vadd.f32 %v11370, %v11617
      %v11619 = vpop.f32.mrb[0].mxu0
      %11620 = vmatprep.mubr.bf16.mxu0 %v11332
      %11621 = vmatmul.mubr.bf16.gmra.mrb[0].mxu0 %v11331
      %v11622 = vpop.f32.mrb[0].mxu0
      %v11623 = vadd.f32 %v11370, %v11622
      %v11624 = vpop.f32.mrb[0].mxu0
      %v11625 = vpop.f32.mrb[0].mxu0
      %v11626 = vadd.f32 %v11370, %v11625
      %v11627 = vpop.f32.mrb[0].mxu0
      %11628 = vdwg.mxu0
      %11629 = vst [vmem:[%s386] sm:$0xff] %v11503
      %11630 = vst [vmem:[%s386 + $0x8] sm:$0xff] %v11506
      %11631 = vst [vmem:[%s386 + $0x10] sm:$0xff] %v11511
      %11632 = vst [vmem:[%s386 + $0x18] sm:$0xff] %v11514
      %11633 = vst [vmem:[%s386 + $0x20] sm:$0xff] %v11519
      %11634 = vst [vmem:[%s386 + $0x28] sm:$0xff] %v11522
      %11635 = vst [vmem:[%s386 + $0x30] sm:$0xff] %v11527
      %11636 = vst [vmem:[%s386 + $0x38] sm:$0xff] %v11530
      %11637 = vst [vmem:[%s386 + $0x40] sm:$0xff] %v11535
      %11638 = vst [vmem:[%s386 + $0x48] sm:$0xff] %v11538
      %11639 = vst [vmem:[%s386 + $0x50] sm:$0xff] %v11543
      %11640 = vst [vmem:[%s386 + $0x58] sm:$0xff] %v11546
      %11641 = vst [vmem:[%s386 + $0x60] sm:$0xff] %v11551
      %11642 = vst [vmem:[%s386 + $0x68] sm:$0xff] %v11554
      %11643 = vst [vmem:[%s386 + $0x70] sm:$0xff] %v11559
      %11644 = vst [vmem:[%s386 + $0x78] sm:$0xff] %v11562
      %11645 = vst [vmem:[%s386 + $0x80] sm:$0xff] %v11567
      %11646 = vst [vmem:[%s386 + $0x88] sm:$0xff] %v11570
      %11647 = vst [vmem:[%s386 + $0x90] sm:$0xff] %v11575
      %11648 = vst [vmem:[%s386 + $0x98] sm:$0xff] %v11578
      %11649 = vst [vmem:[%s386 + $0xa0] sm:$0xff] %v11583
      %11650 = vst [vmem:[%s386 + $0xa8] sm:$0xff] %v11586
      %11651 = vst [vmem:[%s386 + $0xb0] sm:$0xff] %v11591
      %11652 = vst [vmem:[%s386 + $0xb8] sm:$0xff] %v11594
      %11653 = vst [vmem:[%s386 + $0xc0] sm:$0xff] %v11599
      %11654 = vst [vmem:[%s386 + $0xc8] sm:$0xff] %v11602
      %11655 = vst [vmem:[%s386 + $0xd0] sm:$0xff] %v11607
      %11656 = vst [vmem:[%s386 + $0xd8] sm:$0xff] %v11610
      %11657 = vst [vmem:[%s386 + $0xe0] sm:$0xff] %v11615
      %11658 = vst [vmem:[%s386 + $0xe8] sm:$0xff] %v11618
      %11659 = vst [vmem:[%s386 + $0xf0] sm:$0xff] %v11623
      %11660 = vst [vmem:[%s386 + $0xf8] sm:$0xff] %v11626
      %p11661 = scmp.lt.s32.totalorder %s22, 1
      %s11662 = scalar_select %p11661, %s22, 1
      %s11663 = smul.addr %s11662, 32
      %s11664 = smul.addr %s11663, 8
      %s11665 = scalar_lea.vmem %s11, %s11664
      // Predicated region
      $region65: #{mask_head_forward.1} parent=63 // pred_check
        %p11666 = pneg %p276
      $region66: #{mask_head_forward.1} parent=63 // pred_check_branch
        %11668 = sbr.rel (%p11666) target = $region68
      $region67: #{mask_head_forward.1} parent=63 // pred_region
        _
      $region68: #{mask_head_forward.1} parent=63 // pred_fallthru
        _
    $region64: #{mask_head_forward.1} parent=5 // pred_fallthru
      _
    %p11669 = scmp.le.s32.totalorder 2, %s17
    // Predicated region
    $region69: #{mask_head_forward.1} parent=5 // pred_check
      %p11670 = pneg %p11669
    $region70: #{mask_head_forward.1} parent=5 // pred_check_branch
      %11672 = sbr.rel (%p11670) target = $region72
    $region71: #{mask_head_forward.1} parent=5 // pred_region
      %s11673 = ssub.s32 %s17, 2
      // Predicated region
      $region73: #{mask_head_forward.1} parent=71 // pred_check
        %p11674 = pneg %p282
      $region74: #{mask_head_forward.1} parent=71 // pred_check_branch
        %11676 = sbr.rel (%p11674) target = $region76
      $region75: #{mask_head_forward.1} parent=71 // pred_region
        %p11677 = scmp.lt.s32.totalorder %s23, 1
        %s11678 = scalar_select %p11677, %s23, 1
        %s11679 = smul.addr %s11678, 32
        %s11680 = smul.addr %s11679, 8
        %s11681 = scalar_lea.vmem %s11, %s11680
      $region76: #{mask_head_forward.1} parent=71 // pred_fallthru
        _
    $region72: #{mask_head_forward.1} parent=5 // pred_fallthru
      _
  $region6: #{mask_head_forward.1} parent=0 // loop_footer
    %s21 = sadd.s32 1, %s17
  $region7: #{mask_head_forward.1} parent=0 // loop_footer_branch
    %16 = sbr.rel target = $region3
  $region8: #{mask_head_forward.1} parent=0 // loop_exit
    _

</llo_original>
